<compile_context>
chip_gen: v7x
topology: tpu7x:2x2x1
jax: 0.10.0
libtpu: 0.0.40
codegen_flags: <defaults>
</compile_context>

<pallas_src>
import functools
import math

import jax
import jax.numpy as jnp
from jax import lax
from jax.experimental import pallas as pl
from jax.experimental.pallas import tpu as pltpu


def _layernorm(x, gamma, beta, eps=1e-5):
    # PyTorch nn.LayerNorm semantics: biased variance, eps=1e-5, affine.
    mu = jnp.mean(x, axis=-1, keepdims=True)
    xc = x - mu
    var = jnp.mean(xc * xc, axis=-1, keepdims=True)
    return xc * lax.rsqrt(var + eps) * gamma + beta


# ----------------------------- Pallas kernel ---------------------------------

def _cross_block_kernel(
    xa_ref, xb_ref,                                # (L, B_blk, E) bf16 activation tiles
    wq, bq, wk, bk, wv, bv,                        # fused projections (bf16 W, f32 b)
    wo, bo,                                        # MHA out-projection
    g1, be1,                                       # LayerNorm after attention residual
    wf1, bf1, wf2, bf2,                            # position-wise FFN
    g2, be2,                                       # LayerNorm after FFN residual
    out_ref,                                       # (L, B_blk, E) f32
    o_scratch,                                     # (L, B_blk, E) bf16 VMEM scratch
    *, heads):
    L, B, E = xa_ref.shape
    hd = E // heads

    xa = xa_ref[...]                               # bf16, residual / q,k source
    xb = xb_ref[...]                               # bf16, value source
    xa2 = xa.reshape(L * B, E)                     # rows over (seq, batch-block)
    xb2 = xb.reshape(L * B, E)

    # Fused (cross_attn_block + MHA in-proj) projections: 3 matmuls, M = L*B.
    # The 1/sqrt(hd) attention scale is already folded into wq/bq.
    q = jnp.dot(xa2, wq[...], preferred_element_type=jnp.float32) + bq[...]
    k = jnp.dot(xa2, wk[...], preferred_element_type=jnp.float32) + bk[...]
    v = jnp.dot(xb2, wv[...], preferred_element_type=jnp.float32) + bv[...]
    q3 = q.astype(jnp.bfloat16).reshape(L, B, E)
    k3 = k.astype(jnp.bfloat16).reshape(L, B, E)
    v3 = v.astype(jnp.bfloat16).reshape(L, B, E)

    # Per-(batch, head) scaled dot-product attention.  Each head's output lands
    # in its lane slice of the bf16 scratch so the output projection below is a
    # single full-K (E) matmul -- no per-head small-K accumulation.
    for b in range(B):
        for h in range(heads):
            lo = h * hd
            qh = q3[:, b, lo:lo + hd]              # (L, hd) bf16
            kh = k3[:, b, lo:lo + hd]
            vh = v3[:, b, lo:lo + hd]
            # s = qh @ kh^T without materializing a transpose.
            s = lax.dot_general(qh, kh, (((1,), (1,)), ((), ())),
                                preferred_element_type=jnp.float32)  # (L, L) f32
            s = s - jnp.max(s, axis=-1, keepdims=True)
            e = jnp.exp(s)
            # approx reciprocal (EUP); small relative error, covered by the
            # matched-precision tolerance in the checks below.
            p = e * pl.reciprocal(jnp.sum(e, axis=-1, keepdims=True), approx=True)
            oh = jnp.dot(p.astype(jnp.bfloat16), vh,
                         preferred_element_type=jnp.float32)         # (L, hd)
            o_scratch[:, b, lo:lo + hd] = oh.astype(jnp.bfloat16)

    # One output projection for the whole block.
    o = o_scratch[...].reshape(L * B, E)
    attn = jnp.dot(o, wo[...], preferred_element_type=jnp.float32) + bo[...]

    # residual + LayerNorm (dropout rate 0 -> identity), f32.
    y = _layernorm(xa2.astype(jnp.float32) + attn, g1[...], be1[...])

    # position-wise FFN: Linear -> ReLU -> Linear, M = L*B.
    h1 = jnp.maximum(
        jnp.dot(y.astype(jnp.bfloat16), wf1[...],
                preferred_element_type=jnp.float32) + bf1[...], 0.0)
    ffn = jnp.dot(h1.astype(jnp.bfloat16), wf2[...],
                  preferred_element_type=jnp.float32) + bf2[...]

    z = _layernorm(y + ffn, g2[...], be2[...])
    out_ref[...] = z.reshape(L, B, E)


_PARAM_ORDER = ("wq", "bq", "wk", "bk", "wv", "bv", "wo", "bo",
                "g1", "be1", "wf1", "bf1", "wf2", "bf2", "g2", "be2")


def _const_idx(nb):
    return (0, 0)


def _vmem_limit_bytes():
    # Generation-aware VMEM budget: ~3/4 of physical capacity
    # (~96 MiB on v5e/v6e's 128 MiB, ~48 MiB on v7x's 64 MiB).
    try:
        return int(pltpu.get_tpu_info().vmem_capacity_bytes * 3 // 4)
    except Exception:
        return 48 * 1024 * 1024


def _pick_batch_block(n):
    # Block several batch elements per grid step so the projection / FFN matmul
    # row dim is L*B_blk and the ~0.35us/step grid overhead is amortized.  The
    # second-to-last block dim must be a multiple of 8 or the full array dim.
    if n % 8 == 0:
        return 8
    return n


def cross_block_pallas(xa, xb, params, heads):
    """One direction of the channel. xa/xb: (L, N, E) bfloat16 in native layout."""
    L, N, E = xa.shape
    assert E % heads == 0, "embedding dim must be divisible by heads"
    B_blk = _pick_batch_block(N)
    grid = (N // B_blk,)
    weight_args = [params[k] for k in _PARAM_ORDER]

    act_spec = pl.BlockSpec((L, B_blk, E), lambda nb: (0, nb, 0))
    out_spec = pl.BlockSpec((L, B_blk, E), lambda nb: (0, nb, 0))
    kernel = functools.partial(_cross_block_kernel, heads=heads)

    def build(single_buffer_weights):
        if single_buffer_weights:
            # Constant index_map -> weights never re-DMA; single-buffer them to
            # halve the resident-weight VMEM footprint (make-or-break on v7x).
            wspecs = [pl.BlockSpec(p.shape, _const_idx, pipeline_mode=pl.Buffered(1))
                      for p in weight_args]
        else:
            wspecs = [pl.BlockSpec(p.shape, _const_idx) for p in weight_args]
        return pl.pallas_call(
            kernel,
            grid=grid,
            out_shape=jax.ShapeDtypeStruct((L, N, E), jnp.float32),
            in_specs=[act_spec, act_spec] + wspecs,
            out_specs=out_spec,
            scratch_shapes=[pltpu.VMEM((L, B_blk, E), jnp.bfloat16)],
            compiler_params=pltpu.CompilerParams(
                dimension_semantics=("parallel",),       # megacore-splittable
                vmem_limit_bytes=_vmem_limit_bytes()),
        )

    try:
        out = build(True)(xa, xb, *weight_args)
        return jax.block_until_ready(out)
    except Exception:
        # Fallback if pipeline_mode=pl.Buffered(1) is unsupported by this
        # jax/Mosaic build; everything else is unchanged.
        out = build(False)(xa, xb, *weight_args)
        return jax.block_until_ready(out)


def cross_attn_channel_forward(m1, m2, prepared, heads):
    """m1, m2: (L, N, E) float32 as in the PyTorch module. Returns (m1_out, m2_out)."""
    m1b = m1.astype(jnp.bfloat16)    # bf16 activation stream into the kernel
    m2b = m2.astype(jnp.bfloat16)
    y1 = cross_block_pallas(m1b, m2b, prepared["m1"], heads)   # m1 attends over m2's values
    y2 = cross_block_pallas(m2b, m1b, prepared["m2"], heads)   # m2 attends over m1's values
    return y1, y2


# --------------------- parameter preparation (fusion + bf16) ------------------

def prepare_params(raw, heads):
    """Fuse cross_attn_block._to_{key,query,value} into the MHA in-projections
    ((x@W1+b1)@W2+b2 == x@(W1@W2)+(b1@W2+b2)), fold the 1/sqrt(hd) attention
    scale into wq/bq, and cast matmul weights to bf16."""
    bf, f32 = jnp.bfloat16, jnp.float32
    dim = raw["w_q"].shape[0]
    scale = 1.0 / math.sqrt(dim // heads)
    p = {}
    p["wq"] = ((raw["w_key"] @ raw["w_q"]) * scale).astype(bf)
    p["bq"] = ((raw["b_key"] @ raw["w_q"] + raw["b_q"]) * scale).astype(f32)
    p["wk"] = (raw["w_qry"] @ raw["w_k"]).astype(bf)
    p["bk"] = (raw["b_qry"] @ raw["w_k"] + raw["b_k"]).astype(f32)
    p["wv"] = (raw["w_val"] @ raw["w_v"]).astype(bf)
    p["bv"] = (raw["b_val"] @ raw["w_v"] + raw["b_v"]).astype(f32)
    p["wo"] = raw["w_o"].astype(bf)
    p["bo"] = raw["b_o"].astype(f32)
    p["g1"], p["be1"] = raw["g1"].astype(f32), raw["be1"].astype(f32)
    p["wf1"], p["bf1"] = raw["w_f1"].astype(bf), raw["b_f1"].astype(f32)
    p["wf2"], p["bf2"] = raw["w_f2"].astype(bf), raw["b_f2"].astype(f32)
    p["g2"], p["be2"] = raw["g2"].astype(f32), raw["be2"].astype(f32)
    return p


# ------------------------- pure-JAX references (for checking) -----------------

def cross_block_ref_f32(xa, xb, p, heads):
    """Full-f32, unfused reference of the original module math (raw params).
    xa, xb: (L, N, E) float32."""
    L, N, E = xa.shape
    hd = E // heads
    xa2 = xa.reshape(L * N, E)
    xb2 = xb.reshape(L * N, E)
    q = (xa2 @ p["w_key"] + p["b_key"]) @ p["w_q"] + p["b_q"]
    k = (xa2 @ p["w_qry"] + p["b_qry"]) @ p["w_k"] + p["b_k"]
    v = (xb2 @ p["w_val"] + p["b_val"]) @ p["w_v"] + p["b_v"]
    q = q.reshape(L, N, heads, hd)
    k = k.reshape(L, N, heads, hd)
    v = v.reshape(L, N, heads, hd)
    s = jnp.einsum('lnhd,snhd->nhls', q, k) / math.sqrt(hd)
    pr = jax.nn.softmax(s, axis=-1)
    o = jnp.einsum('nhls,snhd->lnhd', pr, v).reshape(L * N, E)
    attn = o @ p["w_o"] + p["b_o"]
    y = _layernorm(xa2 + attn, p["g1"], p["be1"])
    h1 = jnp.maximum(y @ p["w_f1"] + p["b_f1"], 0.0)
    ffn = h1 @ p["w_f2"] + p["b_f2"]
    z = _layernorm(y + ffn, p["g2"], p["be2"])
    return z.reshape(L, N, E)


def cross_block_ref_mixed(xa_bf, xb_bf, p, heads):
    """Reference mirroring the kernel's numerics (bf16 activations/weights,
    f32 accumulation, scale folded into wq/bq). xa_bf/xb_bf: (L, N, E) bf16."""
    L, N, E = xa_bf.shape
    hd = E // heads
    bf = jnp.bfloat16
    xa2 = xa_bf.reshape(L * N, E)
    xb2 = xb_bf.reshape(L * N, E)
    q = jnp.dot(xa2, p["wq"], preferred_element_type=jnp.float32) + p["bq"]
    k = jnp.dot(xa2, p["wk"], preferred_element_type=jnp.float32) + p["bk"]
    v = jnp.dot(xb2, p["wv"], preferred_element_type=jnp.float32) + p["bv"]
    q = q.astype(bf).reshape(L, N, heads, hd)
    k = k.astype(bf).reshape(L, N, heads, hd)
    v = v.astype(bf).reshape(L, N, heads, hd)
    s = jnp.einsum('lnhd,snhd->nhls', q, k, preferred_element_type=jnp.float32)
    pr = jax.nn.softmax(s, axis=-1)
    o = jnp.einsum('nhls,snhd->lnhd', pr.astype(bf), v,
                   preferred_element_type=jnp.float32)
    o = o.astype(bf).reshape(L * N, E)
    attn = jnp.dot(o, p["wo"], preferred_element_type=jnp.float32) + p["bo"]
    y = _layernorm(xa2.astype(jnp.float32) + attn, p["g1"], p["be1"])
    h1 = jnp.maximum(jnp.dot(y.astype(bf), p["wf1"],
                             preferred_element_type=jnp.float32) + p["bf1"], 0.0)
    ffn = jnp.dot(h1.astype(bf), p["wf2"],
                  preferred_element_type=jnp.float32) + p["bf2"]
    z = _layernorm(y + ffn, p["g2"], p["be2"])
    return z.reshape(L, N, E)


# ------------------------- deterministic parameter init -----------------------

def _linear(key, fin, fout):
    # Weights stored as (in, out) so y = x @ W + b (== torch Linear y = x @ W_t.T + b).
    kw, kb = jax.random.split(key)
    s = 1.0 / math.sqrt(fin)
    w = jax.random.uniform(kw, (fin, fout), jnp.float32, -s, s)
    b = jax.random.uniform(kb, (1, fout), jnp.float32, -s, s)
    return w, b


def init_direction_params(key, dim, pffn_dim):
    ks = jax.random.split(key, 9)
    p = {}
    p["w_key"], p["b_key"] = _linear(ks[0], dim, dim)      # _to_key
    p["w_qry"], p["b_qry"] = _linear(ks[1], dim, dim)      # _to_query
    p["w_val"], p["b_val"] = _linear(ks[2], dim, dim)      # _to_value
    p["w_q"], p["b_q"] = _linear(ks[3], dim, dim)          # MHA in_proj (q part)
    p["w_k"], p["b_k"] = _linear(ks[4], dim, dim)          # MHA in_proj (k part)
    p["w_v"], p["b_v"] = _linear(ks[5], dim, dim)          # MHA in_proj (v part)
    p["w_o"], p["b_o"] = _linear(ks[6], dim, dim)          # MHA out_proj
    p["g1"] = jnp.ones((1, dim), jnp.float32)              # LayerNorm after attn
    p["be1"] = jnp.zeros((1, dim), jnp.float32)
    p["w_f1"], p["b_f1"] = _linear(ks[7], dim, pffn_dim)   # pffn layer 1
    p["w_f2"], p["b_f2"] = _linear(ks[8], pffn_dim, dim)   # pffn layer 2
    p["g2"] = jnp.ones((1, dim), jnp.float32)              # LayerNorm after pffn
    p["be2"] = jnp.zeros((1, dim), jnp.float32)
    return p


if __name__ == "__main__":
    # dim_m1 == dim_m2 (required by the PyTorch module for shapes to work out)
    L, N, E, H, P = 8, 2, 32, 4, 64
    key = jax.random.PRNGKey(0)
    k1, k2, k3, k4 = jax.random.split(key, 4)
    m1 = jax.random.normal(k1, (L, N, E), jnp.float32)
    m2 = jax.random.normal(k2, (L, N, E), jnp.float32)
    raw = {"m1": init_direction_params(k3, E, P),
           "m2": init_direction_params(k4, E, P)}
    prepared = {"m1": prepare_params(raw["m1"], H),
                "m2": prepare_params(raw["m2"], H)}

    y1, y2 = cross_attn_channel_forward(m1, m2, prepared, H)
    jax.block_until_ready((y1, y2))
    assert y1.shape == (L, N, E) and y2.shape == (L, N, E)

    m1b = m1.astype(jnp.bfloat16)
    m2b = m2.astype(jnp.bfloat16)

    # (1) matched-precision reference (same bf16/fused recipe) -> tight check
    r1m = cross_block_ref_mixed(m1b, m2b, prepared["m1"], H)
    r2m = cross_block_ref_mixed(m2b, m1b, prepared["m2"], H)
    assert jnp.allclose(y1, r1m, atol=5e-3, rtol=5e-3)
    assert jnp.allclose(y2, r2m, atol=5e-3, rtol=5e-3)

    # (2) full-f32 unfused reference (original module math) -> bf16-level check
    r1f = cross_block_ref_f32(m1, m2, raw["m1"], H)
    r2f = cross_block_ref_f32(m2, m1, raw["m2"], H)
    assert jnp.allclose(y1, r1f, atol=5e-2, rtol=5e-2)
    assert jnp.allclose(y2, r2f, atol=5e-2, rtol=5e-2)

    print("KERNEL_OK")
</pallas_src>

<mosaic_0001>
module attributes {stable_mosaic.version = 11 : i64} {
  func.func @_cross_block_kernel(%arg0: i32, %arg1: memref<8x2x32xbf16, #tpu.memory_space<vmem>>, %arg2: memref<8x2x32xbf16, #tpu.memory_space<vmem>>, %arg3: memref<32x32xbf16, #tpu.memory_space<vmem>>, %arg4: memref<1x32xf32, #tpu.memory_space<vmem>>, %arg5: memref<32x32xbf16, #tpu.memory_space<vmem>>, %arg6: memref<1x32xf32, #tpu.memory_space<vmem>>, %arg7: memref<32x32xbf16, #tpu.memory_space<vmem>>, %arg8: memref<1x32xf32, #tpu.memory_space<vmem>>, %arg9: memref<32x32xbf16, #tpu.memory_space<vmem>>, %arg10: memref<1x32xf32, #tpu.memory_space<vmem>>, %arg11: memref<1x32xf32, #tpu.memory_space<vmem>>, %arg12: memref<1x32xf32, #tpu.memory_space<vmem>>, %arg13: memref<32x64xbf16, #tpu.memory_space<vmem>>, %arg14: memref<1x64xf32, #tpu.memory_space<vmem>>, %arg15: memref<64x32xbf16, #tpu.memory_space<vmem>>, %arg16: memref<1x32xf32, #tpu.memory_space<vmem>>, %arg17: memref<1x32xf32, #tpu.memory_space<vmem>>, %arg18: memref<1x32xf32, #tpu.memory_space<vmem>>, %arg19: memref<8x2x32xf32, #tpu.memory_space<vmem>>, %arg20: memref<8x2x32xbf16, #tpu.memory_space<vmem>>) attributes {dimension_semantics = [#tpu.dimension_semantics<parallel>], iteration_bounds = array<i64: 1>, scalar_prefetch = 0 : i64, scratch_operands = 1 : i64, tpu.core_type = #tpu.core_type<tc>, window_params = [{transform_indices = @transform_0, window_bounds = array<i64: 8, 2, 32>}, {transform_indices = @transform_1, window_bounds = array<i64: 8, 2, 32>}, {pipeline_mode = #tpu.pipeline_mode<synchronous>, transform_indices = @transform_2, window_bounds = array<i64: 32, 32>}, {pipeline_mode = #tpu.pipeline_mode<synchronous>, transform_indices = @transform_3, window_bounds = array<i64: 1, 32>}, {pipeline_mode = #tpu.pipeline_mode<synchronous>, transform_indices = @transform_4, window_bounds = array<i64: 32, 32>}, {pipeline_mode = #tpu.pipeline_mode<synchronous>, transform_indices = @transform_5, window_bounds = array<i64: 1, 32>}, {pipeline_mode = #tpu.pipeline_mode<synchronous>, transform_indices = @transform_6, window_bounds = array<i64: 32, 32>}, {pipeline_mode = #tpu.pipeline_mode<synchronous>, transform_indices = @transform_7, window_bounds = array<i64: 1, 32>}, {pipeline_mode = #tpu.pipeline_mode<synchronous>, transform_indices = @transform_8, window_bounds = array<i64: 32, 32>}, {pipeline_mode = #tpu.pipeline_mode<synchronous>, transform_indices = @transform_9, window_bounds = array<i64: 1, 32>}, {pipeline_mode = #tpu.pipeline_mode<synchronous>, transform_indices = @transform_10, window_bounds = array<i64: 1, 32>}, {pipeline_mode = #tpu.pipeline_mode<synchronous>, transform_indices = @transform_11, window_bounds = array<i64: 1, 32>}, {pipeline_mode = #tpu.pipeline_mode<synchronous>, transform_indices = @transform_12, window_bounds = array<i64: 32, 64>}, {pipeline_mode = #tpu.pipeline_mode<synchronous>, transform_indices = @transform_13, window_bounds = array<i64: 1, 64>}, {pipeline_mode = #tpu.pipeline_mode<synchronous>, transform_indices = @transform_14, window_bounds = array<i64: 64, 32>}, {pipeline_mode = #tpu.pipeline_mode<synchronous>, transform_indices = @transform_15, window_bounds = array<i64: 1, 32>}, {pipeline_mode = #tpu.pipeline_mode<synchronous>, transform_indices = @transform_16, window_bounds = array<i64: 1, 32>}, {pipeline_mode = #tpu.pipeline_mode<synchronous>, transform_indices = @transform_17, window_bounds = array<i64: 1, 32>}, {transform_indices = @transform_18, window_bounds = array<i64: 8, 2, 32>}]} {
    %c0 = arith.constant 0 : index
    %c0_0 = arith.constant 0 : index
    %c0_1 = arith.constant 0 : index
    %0 = vector.load %arg1[%c0, %c0_0, %c0_1] : memref<8x2x32xbf16, #tpu.memory_space<vmem>>, vector<8x2x32xbf16>
    %c0_2 = arith.constant 0 : index
    %c0_3 = arith.constant 0 : index
    %c0_4 = arith.constant 0 : index
    %1 = vector.load %arg2[%c0_2, %c0_3, %c0_4] : memref<8x2x32xbf16, #tpu.memory_space<vmem>>, vector<8x2x32xbf16>
    %2 = vector.shape_cast %0 : vector<8x2x32xbf16> to vector<16x32xbf16>
    %3 = vector.shape_cast %1 : vector<8x2x32xbf16> to vector<16x32xbf16>
    %c0_5 = arith.constant 0 : index
    %c0_6 = arith.constant 0 : index
    %4 = vector.load %arg3[%c0_5, %c0_6] : memref<32x32xbf16, #tpu.memory_space<vmem>>, vector<32x32xbf16>
    %cst = arith.constant dense<0.000000e+00> : vector<16x32xf32>
    %5 = tpu.matmul %2, %4, %cst {dimension_numbers = #tpu.dot_dimension_numbers<[1], [0], [0], [1], [0, 0, 1, 1], [], []>} : vector<16x32xbf16>, vector<32x32xbf16>, vector<16x32xf32> -> vector<16x32xf32>
    %c0_7 = arith.constant 0 : index
    %c0_8 = arith.constant 0 : index
    %6 = vector.load %arg4[%c0_7, %c0_8] : memref<1x32xf32, #tpu.memory_space<vmem>>, vector<1x32xf32>
    %7 = vector.broadcast %6 : vector<1x32xf32> to vector<16x32xf32>
    %8 = arith.addf %5, %7 : vector<16x32xf32>
    %c0_9 = arith.constant 0 : index
    %c0_10 = arith.constant 0 : index
    %9 = vector.load %arg5[%c0_9, %c0_10] : memref<32x32xbf16, #tpu.memory_space<vmem>>, vector<32x32xbf16>
    %cst_11 = arith.constant dense<0.000000e+00> : vector<16x32xf32>
    %10 = tpu.matmul %2, %9, %cst_11 {dimension_numbers = #tpu.dot_dimension_numbers<[1], [0], [0], [1], [0, 0, 1, 1], [], []>} : vector<16x32xbf16>, vector<32x32xbf16>, vector<16x32xf32> -> vector<16x32xf32>
    %c0_12 = arith.constant 0 : index
    %c0_13 = arith.constant 0 : index
    %11 = vector.load %arg6[%c0_12, %c0_13] : memref<1x32xf32, #tpu.memory_space<vmem>>, vector<1x32xf32>
    %12 = vector.broadcast %11 : vector<1x32xf32> to vector<16x32xf32>
    %13 = arith.addf %10, %12 : vector<16x32xf32>
    %c0_14 = arith.constant 0 : index
    %c0_15 = arith.constant 0 : index
    %14 = vector.load %arg7[%c0_14, %c0_15] : memref<32x32xbf16, #tpu.memory_space<vmem>>, vector<32x32xbf16>
    %cst_16 = arith.constant dense<0.000000e+00> : vector<16x32xf32>
    %15 = tpu.matmul %3, %14, %cst_16 {dimension_numbers = #tpu.dot_dimension_numbers<[1], [0], [0], [1], [0, 0, 1, 1], [], []>} : vector<16x32xbf16>, vector<32x32xbf16>, vector<16x32xf32> -> vector<16x32xf32>
    %c0_17 = arith.constant 0 : index
    %c0_18 = arith.constant 0 : index
    %16 = vector.load %arg8[%c0_17, %c0_18] : memref<1x32xf32, #tpu.memory_space<vmem>>, vector<1x32xf32>
    %17 = vector.broadcast %16 : vector<1x32xf32> to vector<16x32xf32>
    %18 = arith.addf %15, %17 : vector<16x32xf32>
    %19 = arith.truncf %8 : vector<16x32xf32> to vector<16x32xbf16>
    %20 = vector.shape_cast %19 : vector<16x32xbf16> to vector<8x2x32xbf16>
    %21 = arith.truncf %13 : vector<16x32xf32> to vector<16x32xbf16>
    %22 = vector.shape_cast %21 : vector<16x32xbf16> to vector<8x2x32xbf16>
    %23 = arith.truncf %18 : vector<16x32xf32> to vector<16x32xbf16>
    %24 = vector.shape_cast %23 : vector<16x32xbf16> to vector<8x2x32xbf16>
    %25 = vector.extract_strided_slice %20 {offsets = [0, 0, 0], sizes = [8, 1, 8], strides = [1, 1, 1]} : vector<8x2x32xbf16> to vector<8x1x8xbf16>
    %26 = vector.shape_cast %25 : vector<8x1x8xbf16> to vector<8x8xbf16>
    %27 = vector.extract_strided_slice %22 {offsets = [0, 0, 0], sizes = [8, 1, 8], strides = [1, 1, 1]} : vector<8x2x32xbf16> to vector<8x1x8xbf16>
    %28 = vector.shape_cast %27 : vector<8x1x8xbf16> to vector<8x8xbf16>
    %29 = vector.extract_strided_slice %24 {offsets = [0, 0, 0], sizes = [8, 1, 8], strides = [1, 1, 1]} : vector<8x2x32xbf16> to vector<8x1x8xbf16>
    %30 = vector.shape_cast %29 : vector<8x1x8xbf16> to vector<8x8xbf16>
    %cst_19 = arith.constant dense<0.000000e+00> : vector<8x8xf32>
    %31 = tpu.matmul %26, %28, %cst_19 {dimension_numbers = #tpu.dot_dimension_numbers<[1], [1], [0], [0], [0, 0, 1, 0], [], []>} : vector<8x8xbf16>, vector<8x8xbf16>, vector<8x8xf32> -> vector<8x8xf32>
    %cst_20 = arith.constant dense<0xFF800000> : vector<8xf32>
    %32 = vector.multi_reduction <maximumf>, %31, %cst_20 [1] : vector<8x8xf32> to vector<8xf32>
    %33 = vector.shape_cast %32 : vector<8xf32> to vector<8x1xf32>
    %34 = vector.broadcast %33 : vector<8x1xf32> to vector<8x8xf32>
    %35 = arith.subf %31, %34 : vector<8x8xf32>
    %36 = math.exp %35 : vector<8x8xf32>
    %cst_21 = arith.constant dense<0.000000e+00> : vector<8xf32>
    %37 = vector.multi_reduction <add>, %36, %cst_21 [1] : vector<8x8xf32> to vector<8xf32>
    %38 = vector.shape_cast %37 : vector<8xf32> to vector<8x1xf32>
    %39 = tpu.reciprocal %38 {approx = true} : vector<8x1xf32> -> vector<8x1xf32>
    %40 = vector.broadcast %39 : vector<8x1xf32> to vector<8x8xf32>
    %41 = arith.mulf %36, %40 : vector<8x8xf32>
    %42 = arith.truncf %41 : vector<8x8xf32> to vector<8x8xbf16>
    %cst_22 = arith.constant dense<0.000000e+00> : vector<8x8xf32>
    %43 = tpu.matmul %42, %30, %cst_22 {dimension_numbers = #tpu.dot_dimension_numbers<[1], [0], [0], [1], [0, 0, 1, 1], [], []>} : vector<8x8xbf16>, vector<8x8xbf16>, vector<8x8xf32> -> vector<8x8xf32>
    %44 = arith.truncf %43 : vector<8x8xf32> to vector<8x8xbf16>
    %c0_23 = arith.constant 0 : index
    %c0_24 = arith.constant 0 : index
    %c0_25 = arith.constant 0 : index
    %45 = vector.load %arg20[%c0_23, %c0_24, %c0_25] : memref<8x2x32xbf16, #tpu.memory_space<vmem>>, vector<8x1x8xbf16>
    %46 = vector.shape_cast %45 : vector<8x1x8xbf16> to vector<8x8xbf16>
    %47 = vector.shape_cast %44 : vector<8x8xbf16> to vector<8x1x8xbf16>
    tpu.vector_store %arg20[%c0_23, %c0_24, %c0_25], %47 {strides = array<i32>} : memref<8x2x32xbf16, #tpu.memory_space<vmem>>, vector<8x1x8xbf16>,
    %48 = vector.extract_strided_slice %20 {offsets = [0, 0, 8], sizes = [8, 1, 8], strides = [1, 1, 1]} : vector<8x2x32xbf16> to vector<8x1x8xbf16>
    %49 = vector.shape_cast %48 : vector<8x1x8xbf16> to vector<8x8xbf16>
    %50 = vector.extract_strided_slice %22 {offsets = [0, 0, 8], sizes = [8, 1, 8], strides = [1, 1, 1]} : vector<8x2x32xbf16> to vector<8x1x8xbf16>
    %51 = vector.shape_cast %50 : vector<8x1x8xbf16> to vector<8x8xbf16>
    %52 = vector.extract_strided_slice %24 {offsets = [0, 0, 8], sizes = [8, 1, 8], strides = [1, 1, 1]} : vector<8x2x32xbf16> to vector<8x1x8xbf16>
    %53 = vector.shape_cast %52 : vector<8x1x8xbf16> to vector<8x8xbf16>
    %cst_26 = arith.constant dense<0.000000e+00> : vector<8x8xf32>
    %54 = tpu.matmul %49, %51, %cst_26 {dimension_numbers = #tpu.dot_dimension_numbers<[1], [1], [0], [0], [0, 0, 1, 0], [], []>} : vector<8x8xbf16>, vector<8x8xbf16>, vector<8x8xf32> -> vector<8x8xf32>
    %cst_27 = arith.constant dense<0xFF800000> : vector<8xf32>
    %55 = vector.multi_reduction <maximumf>, %54, %cst_27 [1] : vector<8x8xf32> to vector<8xf32>
    %56 = vector.shape_cast %55 : vector<8xf32> to vector<8x1xf32>
    %57 = vector.broadcast %56 : vector<8x1xf32> to vector<8x8xf32>
    %58 = arith.subf %54, %57 : vector<8x8xf32>
    %59 = math.exp %58 : vector<8x8xf32>
    %cst_28 = arith.constant dense<0.000000e+00> : vector<8xf32>
    %60 = vector.multi_reduction <add>, %59, %cst_28 [1] : vector<8x8xf32> to vector<8xf32>
    %61 = vector.shape_cast %60 : vector<8xf32> to vector<8x1xf32>
    %62 = tpu.reciprocal %61 {approx = true} : vector<8x1xf32> -> vector<8x1xf32>
    %63 = vector.broadcast %62 : vector<8x1xf32> to vector<8x8xf32>
    %64 = arith.mulf %59, %63 : vector<8x8xf32>
    %65 = arith.truncf %64 : vector<8x8xf32> to vector<8x8xbf16>
    %cst_29 = arith.constant dense<0.000000e+00> : vector<8x8xf32>
    %66 = tpu.matmul %65, %53, %cst_29 {dimension_numbers = #tpu.dot_dimension_numbers<[1], [0], [0], [1], [0, 0, 1, 1], [], []>} : vector<8x8xbf16>, vector<8x8xbf16>, vector<8x8xf32> -> vector<8x8xf32>
    %67 = arith.truncf %66 : vector<8x8xf32> to vector<8x8xbf16>
    %c0_30 = arith.constant 0 : index
    %c0_31 = arith.constant 0 : index
    %c8 = arith.constant 8 : index
    %68 = vector.load %arg20[%c0_30, %c0_31, %c8] : memref<8x2x32xbf16, #tpu.memory_space<vmem>>, vector<8x1x8xbf16>
    %69 = vector.shape_cast %68 : vector<8x1x8xbf16> to vector<8x8xbf16>
    %70 = vector.shape_cast %67 : vector<8x8xbf16> to vector<8x1x8xbf16>
    tpu.vector_store %arg20[%c0_30, %c0_31, %c8], %70 {strides = array<i32>} : memref<8x2x32xbf16, #tpu.memory_space<vmem>>, vector<8x1x8xbf16>,
    %71 = vector.extract_strided_slice %20 {offsets = [0, 0, 16], sizes = [8, 1, 8], strides = [1, 1, 1]} : vector<8x2x32xbf16> to vector<8x1x8xbf16>
    %72 = vector.shape_cast %71 : vector<8x1x8xbf16> to vector<8x8xbf16>
    %73 = vector.extract_strided_slice %22 {offsets = [0, 0, 16], sizes = [8, 1, 8], strides = [1, 1, 1]} : vector<8x2x32xbf16> to vector<8x1x8xbf16>
    %74 = vector.shape_cast %73 : vector<8x1x8xbf16> to vector<8x8xbf16>
    %75 = vector.extract_strided_slice %24 {offsets = [0, 0, 16], sizes = [8, 1, 8], strides = [1, 1, 1]} : vector<8x2x32xbf16> to vector<8x1x8xbf16>
    %76 = vector.shape_cast %75 : vector<8x1x8xbf16> to vector<8x8xbf16>
    %cst_32 = arith.constant dense<0.000000e+00> : vector<8x8xf32>
    %77 = tpu.matmul %72, %74, %cst_32 {dimension_numbers = #tpu.dot_dimension_numbers<[1], [1], [0], [0], [0, 0, 1, 0], [], []>} : vector<8x8xbf16>, vector<8x8xbf16>, vector<8x8xf32> -> vector<8x8xf32>
    %cst_33 = arith.constant dense<0xFF800000> : vector<8xf32>
    %78 = vector.multi_reduction <maximumf>, %77, %cst_33 [1] : vector<8x8xf32> to vector<8xf32>
    %79 = vector.shape_cast %78 : vector<8xf32> to vector<8x1xf32>
    %80 = vector.broadcast %79 : vector<8x1xf32> to vector<8x8xf32>
    %81 = arith.subf %77, %80 : vector<8x8xf32>
    %82 = math.exp %81 : vector<8x8xf32>
    %cst_34 = arith.constant dense<0.000000e+00> : vector<8xf32>
    %83 = vector.multi_reduction <add>, %82, %cst_34 [1] : vector<8x8xf32> to vector<8xf32>
    %84 = vector.shape_cast %83 : vector<8xf32> to vector<8x1xf32>
    %85 = tpu.reciprocal %84 {approx = true} : vector<8x1xf32> -> vector<8x1xf32>
    %86 = vector.broadcast %85 : vector<8x1xf32> to vector<8x8xf32>
    %87 = arith.mulf %82, %86 : vector<8x8xf32>
    %88 = arith.truncf %87 : vector<8x8xf32> to vector<8x8xbf16>
    %cst_35 = arith.constant dense<0.000000e+00> : vector<8x8xf32>
    %89 = tpu.matmul %88, %76, %cst_35 {dimension_numbers = #tpu.dot_dimension_numbers<[1], [0], [0], [1], [0, 0, 1, 1], [], []>} : vector<8x8xbf16>, vector<8x8xbf16>, vector<8x8xf32> -> vector<8x8xf32>
    %90 = arith.truncf %89 : vector<8x8xf32> to vector<8x8xbf16>
    %c0_36 = arith.constant 0 : index
    %c0_37 = arith.constant 0 : index
    %c16 = arith.constant 16 : index
    %91 = vector.load %arg20[%c0_36, %c0_37, %c16] : memref<8x2x32xbf16, #tpu.memory_space<vmem>>, vector<8x1x8xbf16>
    %92 = vector.shape_cast %91 : vector<8x1x8xbf16> to vector<8x8xbf16>
    %93 = vector.shape_cast %90 : vector<8x8xbf16> to vector<8x1x8xbf16>
    tpu.vector_store %arg20[%c0_36, %c0_37, %c16], %93 {strides = array<i32>} : memref<8x2x32xbf16, #tpu.memory_space<vmem>>, vector<8x1x8xbf16>,
    %94 = vector.extract_strided_slice %20 {offsets = [0, 0, 24], sizes = [8, 1, 8], strides = [1, 1, 1]} : vector<8x2x32xbf16> to vector<8x1x8xbf16>
    %95 = vector.shape_cast %94 : vector<8x1x8xbf16> to vector<8x8xbf16>
    %96 = vector.extract_strided_slice %22 {offsets = [0, 0, 24], sizes = [8, 1, 8], strides = [1, 1, 1]} : vector<8x2x32xbf16> to vector<8x1x8xbf16>
    %97 = vector.shape_cast %96 : vector<8x1x8xbf16> to vector<8x8xbf16>
    %98 = vector.extract_strided_slice %24 {offsets = [0, 0, 24], sizes = [8, 1, 8], strides = [1, 1, 1]} : vector<8x2x32xbf16> to vector<8x1x8xbf16>
    %99 = vector.shape_cast %98 : vector<8x1x8xbf16> to vector<8x8xbf16>
    %cst_38 = arith.constant dense<0.000000e+00> : vector<8x8xf32>
    %100 = tpu.matmul %95, %97, %cst_38 {dimension_numbers = #tpu.dot_dimension_numbers<[1], [1], [0], [0], [0, 0, 1, 0], [], []>} : vector<8x8xbf16>, vector<8x8xbf16>, vector<8x8xf32> -> vector<8x8xf32>
    %cst_39 = arith.constant dense<0xFF800000> : vector<8xf32>
    %101 = vector.multi_reduction <maximumf>, %100, %cst_39 [1] : vector<8x8xf32> to vector<8xf32>
    %102 = vector.shape_cast %101 : vector<8xf32> to vector<8x1xf32>
    %103 = vector.broadcast %102 : vector<8x1xf32> to vector<8x8xf32>
    %104 = arith.subf %100, %103 : vector<8x8xf32>
    %105 = math.exp %104 : vector<8x8xf32>
    %cst_40 = arith.constant dense<0.000000e+00> : vector<8xf32>
    %106 = vector.multi_reduction <add>, %105, %cst_40 [1] : vector<8x8xf32> to vector<8xf32>
    %107 = vector.shape_cast %106 : vector<8xf32> to vector<8x1xf32>
    %108 = tpu.reciprocal %107 {approx = true} : vector<8x1xf32> -> vector<8x1xf32>
    %109 = vector.broadcast %108 : vector<8x1xf32> to vector<8x8xf32>
    %110 = arith.mulf %105, %109 : vector<8x8xf32>
    %111 = arith.truncf %110 : vector<8x8xf32> to vector<8x8xbf16>
    %cst_41 = arith.constant dense<0.000000e+00> : vector<8x8xf32>
    %112 = tpu.matmul %111, %99, %cst_41 {dimension_numbers = #tpu.dot_dimension_numbers<[1], [0], [0], [1], [0, 0, 1, 1], [], []>} : vector<8x8xbf16>, vector<8x8xbf16>, vector<8x8xf32> -> vector<8x8xf32>
    %113 = arith.truncf %112 : vector<8x8xf32> to vector<8x8xbf16>
    %c0_42 = arith.constant 0 : index
    %c0_43 = arith.constant 0 : index
    %c24 = arith.constant 24 : index
    %114 = vector.load %arg20[%c0_42, %c0_43, %c24] : memref<8x2x32xbf16, #tpu.memory_space<vmem>>, vector<8x1x8xbf16>
    %115 = vector.shape_cast %114 : vector<8x1x8xbf16> to vector<8x8xbf16>
    %116 = vector.shape_cast %113 : vector<8x8xbf16> to vector<8x1x8xbf16>
    tpu.vector_store %arg20[%c0_42, %c0_43, %c24], %116 {strides = array<i32>} : memref<8x2x32xbf16, #tpu.memory_space<vmem>>, vector<8x1x8xbf16>,
    %117 = vector.extract_strided_slice %20 {offsets = [0, 1, 0], sizes = [8, 1, 8], strides = [1, 1, 1]} : vector<8x2x32xbf16> to vector<8x1x8xbf16>
    %118 = vector.shape_cast %117 : vector<8x1x8xbf16> to vector<8x8xbf16>
    %119 = vector.extract_strided_slice %22 {offsets = [0, 1, 0], sizes = [8, 1, 8], strides = [1, 1, 1]} : vector<8x2x32xbf16> to vector<8x1x8xbf16>
    %120 = vector.shape_cast %119 : vector<8x1x8xbf16> to vector<8x8xbf16>
    %121 = vector.extract_strided_slice %24 {offsets = [0, 1, 0], sizes = [8, 1, 8], strides = [1, 1, 1]} : vector<8x2x32xbf16> to vector<8x1x8xbf16>
    %122 = vector.shape_cast %121 : vector<8x1x8xbf16> to vector<8x8xbf16>
    %cst_44 = arith.constant dense<0.000000e+00> : vector<8x8xf32>
    %123 = tpu.matmul %118, %120, %cst_44 {dimension_numbers = #tpu.dot_dimension_numbers<[1], [1], [0], [0], [0, 0, 1, 0], [], []>} : vector<8x8xbf16>, vector<8x8xbf16>, vector<8x8xf32> -> vector<8x8xf32>
    %cst_45 = arith.constant dense<0xFF800000> : vector<8xf32>
    %124 = vector.multi_reduction <maximumf>, %123, %cst_45 [1] : vector<8x8xf32> to vector<8xf32>
    %125 = vector.shape_cast %124 : vector<8xf32> to vector<8x1xf32>
    %126 = vector.broadcast %125 : vector<8x1xf32> to vector<8x8xf32>
    %127 = arith.subf %123, %126 : vector<8x8xf32>
    %128 = math.exp %127 : vector<8x8xf32>
    %cst_46 = arith.constant dense<0.000000e+00> : vector<8xf32>
    %129 = vector.multi_reduction <add>, %128, %cst_46 [1] : vector<8x8xf32> to vector<8xf32>
    %130 = vector.shape_cast %129 : vector<8xf32> to vector<8x1xf32>
    %131 = tpu.reciprocal %130 {approx = true} : vector<8x1xf32> -> vector<8x1xf32>
    %132 = vector.broadcast %131 : vector<8x1xf32> to vector<8x8xf32>
    %133 = arith.mulf %128, %132 : vector<8x8xf32>
    %134 = arith.truncf %133 : vector<8x8xf32> to vector<8x8xbf16>
    %cst_47 = arith.constant dense<0.000000e+00> : vector<8x8xf32>
    %135 = tpu.matmul %134, %122, %cst_47 {dimension_numbers = #tpu.dot_dimension_numbers<[1], [0], [0], [1], [0, 0, 1, 1], [], []>} : vector<8x8xbf16>, vector<8x8xbf16>, vector<8x8xf32> -> vector<8x8xf32>
    %136 = arith.truncf %135 : vector<8x8xf32> to vector<8x8xbf16>
    %c0_48 = arith.constant 0 : index
    %c1 = arith.constant 1 : index
    %c0_49 = arith.constant 0 : index
    %137 = vector.load %arg20[%c0_48, %c1, %c0_49] : memref<8x2x32xbf16, #tpu.memory_space<vmem>>, vector<8x1x8xbf16>
    %138 = vector.shape_cast %137 : vector<8x1x8xbf16> to vector<8x8xbf16>
    %139 = vector.shape_cast %136 : vector<8x8xbf16> to vector<8x1x8xbf16>
    tpu.vector_store %arg20[%c0_48, %c1, %c0_49], %139 {strides = array<i32>} : memref<8x2x32xbf16, #tpu.memory_space<vmem>>, vector<8x1x8xbf16>,
    %140 = vector.extract_strided_slice %20 {offsets = [0, 1, 8], sizes = [8, 1, 8], strides = [1, 1, 1]} : vector<8x2x32xbf16> to vector<8x1x8xbf16>
    %141 = vector.shape_cast %140 : vector<8x1x8xbf16> to vector<8x8xbf16>
    %142 = vector.extract_strided_slice %22 {offsets = [0, 1, 8], sizes = [8, 1, 8], strides = [1, 1, 1]} : vector<8x2x32xbf16> to vector<8x1x8xbf16>
    %143 = vector.shape_cast %142 : vector<8x1x8xbf16> to vector<8x8xbf16>
    %144 = vector.extract_strided_slice %24 {offsets = [0, 1, 8], sizes = [8, 1, 8], strides = [1, 1, 1]} : vector<8x2x32xbf16> to vector<8x1x8xbf16>
    %145 = vector.shape_cast %144 : vector<8x1x8xbf16> to vector<8x8xbf16>
    %cst_50 = arith.constant dense<0.000000e+00> : vector<8x8xf32>
    %146 = tpu.matmul %141, %143, %cst_50 {dimension_numbers = #tpu.dot_dimension_numbers<[1], [1], [0], [0], [0, 0, 1, 0], [], []>} : vector<8x8xbf16>, vector<8x8xbf16>, vector<8x8xf32> -> vector<8x8xf32>
    %cst_51 = arith.constant dense<0xFF800000> : vector<8xf32>
    %147 = vector.multi_reduction <maximumf>, %146, %cst_51 [1] : vector<8x8xf32> to vector<8xf32>
    %148 = vector.shape_cast %147 : vector<8xf32> to vector<8x1xf32>
    %149 = vector.broadcast %148 : vector<8x1xf32> to vector<8x8xf32>
    %150 = arith.subf %146, %149 : vector<8x8xf32>
    %151 = math.exp %150 : vector<8x8xf32>
    %cst_52 = arith.constant dense<0.000000e+00> : vector<8xf32>
    %152 = vector.multi_reduction <add>, %151, %cst_52 [1] : vector<8x8xf32> to vector<8xf32>
    %153 = vector.shape_cast %152 : vector<8xf32> to vector<8x1xf32>
    %154 = tpu.reciprocal %153 {approx = true} : vector<8x1xf32> -> vector<8x1xf32>
    %155 = vector.broadcast %154 : vector<8x1xf32> to vector<8x8xf32>
    %156 = arith.mulf %151, %155 : vector<8x8xf32>
    %157 = arith.truncf %156 : vector<8x8xf32> to vector<8x8xbf16>
    %cst_53 = arith.constant dense<0.000000e+00> : vector<8x8xf32>
    %158 = tpu.matmul %157, %145, %cst_53 {dimension_numbers = #tpu.dot_dimension_numbers<[1], [0], [0], [1], [0, 0, 1, 1], [], []>} : vector<8x8xbf16>, vector<8x8xbf16>, vector<8x8xf32> -> vector<8x8xf32>
    %159 = arith.truncf %158 : vector<8x8xf32> to vector<8x8xbf16>
    %c0_54 = arith.constant 0 : index
    %c1_55 = arith.constant 1 : index
    %c8_56 = arith.constant 8 : index
    %160 = vector.load %arg20[%c0_54, %c1_55, %c8_56] : memref<8x2x32xbf16, #tpu.memory_space<vmem>>, vector<8x1x8xbf16>
    %161 = vector.shape_cast %160 : vector<8x1x8xbf16> to vector<8x8xbf16>
    %162 = vector.shape_cast %159 : vector<8x8xbf16> to vector<8x1x8xbf16>
    tpu.vector_store %arg20[%c0_54, %c1_55, %c8_56], %162 {strides = array<i32>} : memref<8x2x32xbf16, #tpu.memory_space<vmem>>, vector<8x1x8xbf16>,
    %163 = vector.extract_strided_slice %20 {offsets = [0, 1, 16], sizes = [8, 1, 8], strides = [1, 1, 1]} : vector<8x2x32xbf16> to vector<8x1x8xbf16>
    %164 = vector.shape_cast %163 : vector<8x1x8xbf16> to vector<8x8xbf16>
    %165 = vector.extract_strided_slice %22 {offsets = [0, 1, 16], sizes = [8, 1, 8], strides = [1, 1, 1]} : vector<8x2x32xbf16> to vector<8x1x8xbf16>
    %166 = vector.shape_cast %165 : vector<8x1x8xbf16> to vector<8x8xbf16>
    %167 = vector.extract_strided_slice %24 {offsets = [0, 1, 16], sizes = [8, 1, 8], strides = [1, 1, 1]} : vector<8x2x32xbf16> to vector<8x1x8xbf16>
    %168 = vector.shape_cast %167 : vector<8x1x8xbf16> to vector<8x8xbf16>
    %cst_57 = arith.constant dense<0.000000e+00> : vector<8x8xf32>
    %169 = tpu.matmul %164, %166, %cst_57 {dimension_numbers = #tpu.dot_dimension_numbers<[1], [1], [0], [0], [0, 0, 1, 0], [], []>} : vector<8x8xbf16>, vector<8x8xbf16>, vector<8x8xf32> -> vector<8x8xf32>
    %cst_58 = arith.constant dense<0xFF800000> : vector<8xf32>
    %170 = vector.multi_reduction <maximumf>, %169, %cst_58 [1] : vector<8x8xf32> to vector<8xf32>
    %171 = vector.shape_cast %170 : vector<8xf32> to vector<8x1xf32>
    %172 = vector.broadcast %171 : vector<8x1xf32> to vector<8x8xf32>
    %173 = arith.subf %169, %172 : vector<8x8xf32>
    %174 = math.exp %173 : vector<8x8xf32>
    %cst_59 = arith.constant dense<0.000000e+00> : vector<8xf32>
    %175 = vector.multi_reduction <add>, %174, %cst_59 [1] : vector<8x8xf32> to vector<8xf32>
    %176 = vector.shape_cast %175 : vector<8xf32> to vector<8x1xf32>
    %177 = tpu.reciprocal %176 {approx = true} : vector<8x1xf32> -> vector<8x1xf32>
    %178 = vector.broadcast %177 : vector<8x1xf32> to vector<8x8xf32>
    %179 = arith.mulf %174, %178 : vector<8x8xf32>
    %180 = arith.truncf %179 : vector<8x8xf32> to vector<8x8xbf16>
    %cst_60 = arith.constant dense<0.000000e+00> : vector<8x8xf32>
    %181 = tpu.matmul %180, %168, %cst_60 {dimension_numbers = #tpu.dot_dimension_numbers<[1], [0], [0], [1], [0, 0, 1, 1], [], []>} : vector<8x8xbf16>, vector<8x8xbf16>, vector<8x8xf32> -> vector<8x8xf32>
    %182 = arith.truncf %181 : vector<8x8xf32> to vector<8x8xbf16>
    %c0_61 = arith.constant 0 : index
    %c1_62 = arith.constant 1 : index
    %c16_63 = arith.constant 16 : index
    %183 = vector.load %arg20[%c0_61, %c1_62, %c16_63] : memref<8x2x32xbf16, #tpu.memory_space<vmem>>, vector<8x1x8xbf16>
    %184 = vector.shape_cast %183 : vector<8x1x8xbf16> to vector<8x8xbf16>
    %185 = vector.shape_cast %182 : vector<8x8xbf16> to vector<8x1x8xbf16>
    tpu.vector_store %arg20[%c0_61, %c1_62, %c16_63], %185 {strides = array<i32>} : memref<8x2x32xbf16, #tpu.memory_space<vmem>>, vector<8x1x8xbf16>,
    %186 = vector.extract_strided_slice %20 {offsets = [0, 1, 24], sizes = [8, 1, 8], strides = [1, 1, 1]} : vector<8x2x32xbf16> to vector<8x1x8xbf16>
    %187 = vector.shape_cast %186 : vector<8x1x8xbf16> to vector<8x8xbf16>
    %188 = vector.extract_strided_slice %22 {offsets = [0, 1, 24], sizes = [8, 1, 8], strides = [1, 1, 1]} : vector<8x2x32xbf16> to vector<8x1x8xbf16>
    %189 = vector.shape_cast %188 : vector<8x1x8xbf16> to vector<8x8xbf16>
    %190 = vector.extract_strided_slice %24 {offsets = [0, 1, 24], sizes = [8, 1, 8], strides = [1, 1, 1]} : vector<8x2x32xbf16> to vector<8x1x8xbf16>
    %191 = vector.shape_cast %190 : vector<8x1x8xbf16> to vector<8x8xbf16>
    %cst_64 = arith.constant dense<0.000000e+00> : vector<8x8xf32>
    %192 = tpu.matmul %187, %189, %cst_64 {dimension_numbers = #tpu.dot_dimension_numbers<[1], [1], [0], [0], [0, 0, 1, 0], [], []>} : vector<8x8xbf16>, vector<8x8xbf16>, vector<8x8xf32> -> vector<8x8xf32>
    %cst_65 = arith.constant dense<0xFF800000> : vector<8xf32>
    %193 = vector.multi_reduction <maximumf>, %192, %cst_65 [1] : vector<8x8xf32> to vector<8xf32>
    %194 = vector.shape_cast %193 : vector<8xf32> to vector<8x1xf32>
    %195 = vector.broadcast %194 : vector<8x1xf32> to vector<8x8xf32>
    %196 = arith.subf %192, %195 : vector<8x8xf32>
    %197 = math.exp %196 : vector<8x8xf32>
    %cst_66 = arith.constant dense<0.000000e+00> : vector<8xf32>
    %198 = vector.multi_reduction <add>, %197, %cst_66 [1] : vector<8x8xf32> to vector<8xf32>
    %199 = vector.shape_cast %198 : vector<8xf32> to vector<8x1xf32>
    %200 = tpu.reciprocal %199 {approx = true} : vector<8x1xf32> -> vector<8x1xf32>
    %201 = vector.broadcast %200 : vector<8x1xf32> to vector<8x8xf32>
    %202 = arith.mulf %197, %201 : vector<8x8xf32>
    %203 = arith.truncf %202 : vector<8x8xf32> to vector<8x8xbf16>
    %cst_67 = arith.constant dense<0.000000e+00> : vector<8x8xf32>
    %204 = tpu.matmul %203, %191, %cst_67 {dimension_numbers = #tpu.dot_dimension_numbers<[1], [0], [0], [1], [0, 0, 1, 1], [], []>} : vector<8x8xbf16>, vector<8x8xbf16>, vector<8x8xf32> -> vector<8x8xf32>
    %205 = arith.truncf %204 : vector<8x8xf32> to vector<8x8xbf16>
    %c0_68 = arith.constant 0 : index
    %c1_69 = arith.constant 1 : index
    %c24_70 = arith.constant 24 : index
    %206 = vector.load %arg20[%c0_68, %c1_69, %c24_70] : memref<8x2x32xbf16, #tpu.memory_space<vmem>>, vector<8x1x8xbf16>
    %207 = vector.shape_cast %206 : vector<8x1x8xbf16> to vector<8x8xbf16>
    %208 = vector.shape_cast %205 : vector<8x8xbf16> to vector<8x1x8xbf16>
    tpu.vector_store %arg20[%c0_68, %c1_69, %c24_70], %208 {strides = array<i32>} : memref<8x2x32xbf16, #tpu.memory_space<vmem>>, vector<8x1x8xbf16>,
    %c0_71 = arith.constant 0 : index
    %c0_72 = arith.constant 0 : index
    %c0_73 = arith.constant 0 : index
    %209 = vector.load %arg20[%c0_71, %c0_72, %c0_73] : memref<8x2x32xbf16, #tpu.memory_space<vmem>>, vector<8x2x32xbf16>
    %210 = vector.shape_cast %209 : vector<8x2x32xbf16> to vector<16x32xbf16>
    %c0_74 = arith.constant 0 : index
    %c0_75 = arith.constant 0 : index
    %211 = vector.load %arg9[%c0_74, %c0_75] : memref<32x32xbf16, #tpu.memory_space<vmem>>, vector<32x32xbf16>
    %cst_76 = arith.constant dense<0.000000e+00> : vector<16x32xf32>
    %212 = tpu.matmul %210, %211, %cst_76 {dimension_numbers = #tpu.dot_dimension_numbers<[1], [0], [0], [1], [0, 0, 1, 1], [], []>} : vector<16x32xbf16>, vector<32x32xbf16>, vector<16x32xf32> -> vector<16x32xf32>
    %c0_77 = arith.constant 0 : index
    %c0_78 = arith.constant 0 : index
    %213 = vector.load %arg10[%c0_77, %c0_78] : memref<1x32xf32, #tpu.memory_space<vmem>>, vector<1x32xf32>
    %214 = vector.broadcast %213 : vector<1x32xf32> to vector<16x32xf32>
    %215 = arith.addf %212, %214 : vector<16x32xf32>
    %216 = arith.extf %2 : vector<16x32xbf16> to vector<16x32xf32>
    %217 = arith.addf %216, %215 : vector<16x32xf32>
    %c0_79 = arith.constant 0 : index
    %c0_80 = arith.constant 0 : index
    %218 = vector.load %arg11[%c0_79, %c0_80] : memref<1x32xf32, #tpu.memory_space<vmem>>, vector<1x32xf32>
    %c0_81 = arith.constant 0 : index
    %c0_82 = arith.constant 0 : index
    %219 = vector.load %arg12[%c0_81, %c0_82] : memref<1x32xf32, #tpu.memory_space<vmem>>, vector<1x32xf32>
    %cst_83 = arith.constant dense<0.000000e+00> : vector<16xf32>
    %220 = vector.multi_reduction <add>, %217, %cst_83 [1] : vector<16x32xf32> to vector<16xf32>
    %221 = vector.shape_cast %220 : vector<16xf32> to vector<16x1xf32>
    %cst_84 = arith.constant 3.200000e+01 : f32
    %222 = vector.broadcast %cst_84 : f32 to vector<16x1xf32>
    %223 = arith.divf %221, %222 : vector<16x1xf32>
    %224 = vector.broadcast %223 : vector<16x1xf32> to vector<16x32xf32>
    %225 = arith.subf %217, %224 : vector<16x32xf32>
    %226 = arith.mulf %225, %225 : vector<16x32xf32>
    %cst_85 = arith.constant dense<0.000000e+00> : vector<16xf32>
    %227 = vector.multi_reduction <add>, %226, %cst_85 [1] : vector<16x32xf32> to vector<16xf32>
    %228 = vector.shape_cast %227 : vector<16xf32> to vector<16x1xf32>
    %cst_86 = arith.constant 3.200000e+01 : f32
    %229 = vector.broadcast %cst_86 : f32 to vector<16x1xf32>
    %230 = arith.divf %228, %229 : vector<16x1xf32>
    %cst_87 = arith.constant 9.99999974E-6 : f32
    %231 = vector.broadcast %cst_87 : f32 to vector<16x1xf32>
    %232 = arith.addf %230, %231 : vector<16x1xf32>
    %233 = math.rsqrt %232 : vector<16x1xf32>
    %234 = vector.broadcast %233 : vector<16x1xf32> to vector<16x32xf32>
    %235 = arith.mulf %225, %234 : vector<16x32xf32>
    %236 = vector.broadcast %218 : vector<1x32xf32> to vector<16x32xf32>
    %237 = arith.mulf %235, %236 : vector<16x32xf32>
    %238 = vector.broadcast %219 : vector<1x32xf32> to vector<16x32xf32>
    %239 = arith.addf %237, %238 : vector<16x32xf32>
    %240 = arith.truncf %239 : vector<16x32xf32> to vector<16x32xbf16>
    %c0_88 = arith.constant 0 : index
    %c0_89 = arith.constant 0 : index
    %241 = vector.load %arg13[%c0_88, %c0_89] : memref<32x64xbf16, #tpu.memory_space<vmem>>, vector<32x64xbf16>
    %cst_90 = arith.constant dense<0.000000e+00> : vector<16x64xf32>
    %242 = tpu.matmul %240, %241, %cst_90 {dimension_numbers = #tpu.dot_dimension_numbers<[1], [0], [0], [1], [0, 0, 1, 1], [], []>} : vector<16x32xbf16>, vector<32x64xbf16>, vector<16x64xf32> -> vector<16x64xf32>
    %c0_91 = arith.constant 0 : index
    %c0_92 = arith.constant 0 : index
    %243 = vector.load %arg14[%c0_91, %c0_92] : memref<1x64xf32, #tpu.memory_space<vmem>>, vector<1x64xf32>
    %244 = vector.broadcast %243 : vector<1x64xf32> to vector<16x64xf32>
    %245 = arith.addf %242, %244 : vector<16x64xf32>
    %cst_93 = arith.constant 0.000000e+00 : f32
    %246 = vector.broadcast %cst_93 : f32 to vector<16x64xf32>
    %247 = arith.maximumf %245, %246 : vector<16x64xf32>
    %248 = arith.truncf %247 : vector<16x64xf32> to vector<16x64xbf16>
    %c0_94 = arith.constant 0 : index
    %c0_95 = arith.constant 0 : index
    %249 = vector.load %arg15[%c0_94, %c0_95] : memref<64x32xbf16, #tpu.memory_space<vmem>>, vector<64x32xbf16>
    %cst_96 = arith.constant dense<0.000000e+00> : vector<16x32xf32>
    %250 = tpu.matmul %248, %249, %cst_96 {dimension_numbers = #tpu.dot_dimension_numbers<[1], [0], [0], [1], [0, 0, 1, 1], [], []>} : vector<16x64xbf16>, vector<64x32xbf16>, vector<16x32xf32> -> vector<16x32xf32>
    %c0_97 = arith.constant 0 : index
    %c0_98 = arith.constant 0 : index
    %251 = vector.load %arg16[%c0_97, %c0_98] : memref<1x32xf32, #tpu.memory_space<vmem>>, vector<1x32xf32>
    %252 = vector.broadcast %251 : vector<1x32xf32> to vector<16x32xf32>
    %253 = arith.addf %250, %252 : vector<16x32xf32>
    %254 = arith.addf %239, %253 : vector<16x32xf32>
    %c0_99 = arith.constant 0 : index
    %c0_100 = arith.constant 0 : index
    %255 = vector.load %arg17[%c0_99, %c0_100] : memref<1x32xf32, #tpu.memory_space<vmem>>, vector<1x32xf32>
    %c0_101 = arith.constant 0 : index
    %c0_102 = arith.constant 0 : index
    %256 = vector.load %arg18[%c0_101, %c0_102] : memref<1x32xf32, #tpu.memory_space<vmem>>, vector<1x32xf32>
    %cst_103 = arith.constant dense<0.000000e+00> : vector<16xf32>
    %257 = vector.multi_reduction <add>, %254, %cst_103 [1] : vector<16x32xf32> to vector<16xf32>
    %258 = vector.shape_cast %257 : vector<16xf32> to vector<16x1xf32>
    %cst_104 = arith.constant 3.200000e+01 : f32
    %259 = vector.broadcast %cst_104 : f32 to vector<16x1xf32>
    %260 = arith.divf %258, %259 : vector<16x1xf32>
    %261 = vector.broadcast %260 : vector<16x1xf32> to vector<16x32xf32>
    %262 = arith.subf %254, %261 : vector<16x32xf32>
    %263 = arith.mulf %262, %262 : vector<16x32xf32>
    %cst_105 = arith.constant dense<0.000000e+00> : vector<16xf32>
    %264 = vector.multi_reduction <add>, %263, %cst_105 [1] : vector<16x32xf32> to vector<16xf32>
    %265 = vector.shape_cast %264 : vector<16xf32> to vector<16x1xf32>
    %cst_106 = arith.constant 3.200000e+01 : f32
    %266 = vector.broadcast %cst_106 : f32 to vector<16x1xf32>
    %267 = arith.divf %265, %266 : vector<16x1xf32>
    %cst_107 = arith.constant 9.99999974E-6 : f32
    %268 = vector.broadcast %cst_107 : f32 to vector<16x1xf32>
    %269 = arith.addf %267, %268 : vector<16x1xf32>
    %270 = math.rsqrt %269 : vector<16x1xf32>
    %271 = vector.broadcast %270 : vector<16x1xf32> to vector<16x32xf32>
    %272 = arith.mulf %262, %271 : vector<16x32xf32>
    %273 = vector.broadcast %255 : vector<1x32xf32> to vector<16x32xf32>
    %274 = arith.mulf %272, %273 : vector<16x32xf32>
    %275 = vector.broadcast %256 : vector<1x32xf32> to vector<16x32xf32>
    %276 = arith.addf %274, %275 : vector<16x32xf32>
    %277 = vector.shape_cast %276 : vector<16x32xf32> to vector<8x2x32xf32>
    %c0_108 = arith.constant 0 : index
    %c0_109 = arith.constant 0 : index
    %c0_110 = arith.constant 0 : index
    %278 = vector.load %arg19[%c0_108, %c0_109, %c0_110] : memref<8x2x32xf32, #tpu.memory_space<vmem>>, vector<8x2x32xf32>
    tpu.vector_store %arg19[%c0_108, %c0_109, %c0_110], %277 {strides = array<i32>} : memref<8x2x32xf32, #tpu.memory_space<vmem>>, vector<8x2x32xf32>,
    return
  }
  func.func @transform_0(%arg0: i32) -> (i32, i32, i32) {
    %c0_i32 = arith.constant 0 : i32
    %c0_i32_0 = arith.constant 0 : i32
    %c0_i32_1 = arith.constant 0 : i32
    return %c0_i32, %arg0, %c0_i32_0 : i32, i32, i32
  }
  func.func @transform_1(%arg0: i32) -> (i32, i32, i32) {
    %c0_i32 = arith.constant 0 : i32
    %c0_i32_0 = arith.constant 0 : i32
    %c0_i32_1 = arith.constant 0 : i32
    return %c0_i32, %arg0, %c0_i32_0 : i32, i32, i32
  }
  func.func @transform_2(%arg0: i32) -> (i32, i32) {
    %c0_i32 = arith.constant 0 : i32
    %c0_i32_0 = arith.constant 0 : i32
    %c0_i32_1 = arith.constant 0 : i32
    return %c0_i32, %c0_i32_0 : i32, i32
  }
  func.func @transform_3(%arg0: i32) -> (i32, i32) {
    %c0_i32 = arith.constant 0 : i32
    %c0_i32_0 = arith.constant 0 : i32
    %c0_i32_1 = arith.constant 0 : i32
    return %c0_i32, %c0_i32_0 : i32, i32
  }
  func.func @transform_4(%arg0: i32) -> (i32, i32) {
    %c0_i32 = arith.constant 0 : i32
    %c0_i32_0 = arith.constant 0 : i32
    %c0_i32_1 = arith.constant 0 : i32
    return %c0_i32, %c0_i32_0 : i32, i32
  }
  func.func @transform_5(%arg0: i32) -> (i32, i32) {
    %c0_i32 = arith.constant 0 : i32
    %c0_i32_0 = arith.constant 0 : i32
    %c0_i32_1 = arith.constant 0 : i32
    return %c0_i32, %c0_i32_0 : i32, i32
  }
  func.func @transform_6(%arg0: i32) -> (i32, i32) {
    %c0_i32 = arith.constant 0 : i32
    %c0_i32_0 = arith.constant 0 : i32
    %c0_i32_1 = arith.constant 0 : i32
    return %c0_i32, %c0_i32_0 : i32, i32
  }
  func.func @transform_7(%arg0: i32) -> (i32, i32) {
    %c0_i32 = arith.constant 0 : i32
    %c0_i32_0 = arith.constant 0 : i32
    %c0_i32_1 = arith.constant 0 : i32
    return %c0_i32, %c0_i32_0 : i32, i32
  }
  func.func @transform_8(%arg0: i32) -> (i32, i32) {
    %c0_i32 = arith.constant 0 : i32
    %c0_i32_0 = arith.constant 0 : i32
    %c0_i32_1 = arith.constant 0 : i32
    return %c0_i32, %c0_i32_0 : i32, i32
  }
  func.func @transform_9(%arg0: i32) -> (i32, i32) {
    %c0_i32 = arith.constant 0 : i32
    %c0_i32_0 = arith.constant 0 : i32
    %c0_i32_1 = arith.constant 0 : i32
    return %c0_i32, %c0_i32_0 : i32, i32
  }
  func.func @transform_10(%arg0: i32) -> (i32, i32) {
    %c0_i32 = arith.constant 0 : i32
    %c0_i32_0 = arith.constant 0 : i32
    %c0_i32_1 = arith.constant 0 : i32
    return %c0_i32, %c0_i32_0 : i32, i32
  }
  func.func @transform_11(%arg0: i32) -> (i32, i32) {
    %c0_i32 = arith.constant 0 : i32
    %c0_i32_0 = arith.constant 0 : i32
    %c0_i32_1 = arith.constant 0 : i32
    return %c0_i32, %c0_i32_0 : i32, i32
  }
  func.func @transform_12(%arg0: i32) -> (i32, i32) {
    %c0_i32 = arith.constant 0 : i32
    %c0_i32_0 = arith.constant 0 : i32
    %c0_i32_1 = arith.constant 0 : i32
    return %c0_i32, %c0_i32_0 : i32, i32
  }
  func.func @transform_13(%arg0: i32) -> (i32, i32) {
    %c0_i32 = arith.constant 0 : i32
    %c0_i32_0 = arith.constant 0 : i32
    %c0_i32_1 = arith.constant 0 : i32
    return %c0_i32, %c0_i32_0 : i32, i32
  }
  func.func @transform_14(%arg0: i32) -> (i32, i32) {
    %c0_i32 = arith.constant 0 : i32
    %c0_i32_0 = arith.constant 0 : i32
    %c0_i32_1 = arith.constant 0 : i32
    return %c0_i32, %c0_i32_0 : i32, i32
  }
  func.func @transform_15(%arg0: i32) -> (i32, i32) {
    %c0_i32 = arith.constant 0 : i32
    %c0_i32_0 = arith.constant 0 : i32
    %c0_i32_1 = arith.constant 0 : i32
    return %c0_i32, %c0_i32_0 : i32, i32
  }
  func.func @transform_16(%arg0: i32) -> (i32, i32) {
    %c0_i32 = arith.constant 0 : i32
    %c0_i32_0 = arith.constant 0 : i32
    %c0_i32_1 = arith.constant 0 : i32
    return %c0_i32, %c0_i32_0 : i32, i32
  }
  func.func @transform_17(%arg0: i32) -> (i32, i32) {
    %c0_i32 = arith.constant 0 : i32
    %c0_i32_0 = arith.constant 0 : i32
    %c0_i32_1 = arith.constant 0 : i32
    return %c0_i32, %c0_i32_0 : i32, i32
  }
  func.func @transform_18(%arg0: i32) -> (i32, i32, i32) {
    %c0_i32 = arith.constant 0 : i32
    %c0_i32_0 = arith.constant 0 : i32
    %c0_i32_1 = arith.constant 0 : i32
    return %c0_i32, %arg0, %c0_i32_0 : i32, i32, i32
  }
}

module attributes {stable_mosaic.version = 11 : i64} {
  func.func @_cross_block_kernel(%arg0: i32, %arg1: memref<8x2x32xbf16, #tpu.memory_space<vmem>>, %arg2: memref<8x2x32xbf16, #tpu.memory_space<vmem>>, %arg3: memref<32x32xbf16, #tpu.memory_space<vmem>>, %arg4: memref<1x32xf32, #tpu.memory_space<vmem>>, %arg5: memref<32x32xbf16, #tpu.memory_space<vmem>>, %arg6: memref<1x32xf32, #tpu.memory_space<vmem>>, %arg7: memref<32x32xbf16, #tpu.memory_space<vmem>>, %arg8: memref<1x32xf32, #tpu.memory_space<vmem>>, %arg9: memref<32x32xbf16, #tpu.memory_space<vmem>>, %arg10: memref<1x32xf32, #tpu.memory_space<vmem>>, %arg11: memref<1x32xf32, #tpu.memory_space<vmem>>, %arg12: memref<1x32xf32, #tpu.memory_space<vmem>>, %arg13: memref<32x64xbf16, #tpu.memory_space<vmem>>, %arg14: memref<1x64xf32, #tpu.memory_space<vmem>>, %arg15: memref<64x32xbf16, #tpu.memory_space<vmem>>, %arg16: memref<1x32xf32, #tpu.memory_space<vmem>>, %arg17: memref<1x32xf32, #tpu.memory_space<vmem>>, %arg18: memref<1x32xf32, #tpu.memory_space<vmem>>, %arg19: memref<8x2x32xf32, #tpu.memory_space<vmem>>, %arg20: memref<8x2x32xbf16, #tpu.memory_space<vmem>>) attributes {dimension_semantics = [#tpu.dimension_semantics<parallel>], iteration_bounds = array<i64: 1>, scalar_prefetch = 0 : i64, scratch_operands = 1 : i64, tpu.core_type = #tpu.core_type<tc>, window_params = [{transform_indices = @transform_0, window_bounds = array<i64: 8, 2, 32>}, {transform_indices = @transform_1, window_bounds = array<i64: 8, 2, 32>}, {pipeline_mode = #tpu.pipeline_mode<synchronous>, transform_indices = @transform_2, window_bounds = array<i64: 32, 32>}, {pipeline_mode = #tpu.pipeline_mode<synchronous>, transform_indices = @transform_3, window_bounds = array<i64: 1, 32>}, {pipeline_mode = #tpu.pipeline_mode<synchronous>, transform_indices = @transform_4, window_bounds = array<i64: 32, 32>}, {pipeline_mode = #tpu.pipeline_mode<synchronous>, transform_indices = @transform_5, window_bounds = array<i64: 1, 32>}, {pipeline_mode = #tpu.pipeline_mode<synchronous>, transform_indices = @transform_6, window_bounds = array<i64: 32, 32>}, {pipeline_mode = #tpu.pipeline_mode<synchronous>, transform_indices = @transform_7, window_bounds = array<i64: 1, 32>}, {pipeline_mode = #tpu.pipeline_mode<synchronous>, transform_indices = @transform_8, window_bounds = array<i64: 32, 32>}, {pipeline_mode = #tpu.pipeline_mode<synchronous>, transform_indices = @transform_9, window_bounds = array<i64: 1, 32>}, {pipeline_mode = #tpu.pipeline_mode<synchronous>, transform_indices = @transform_10, window_bounds = array<i64: 1, 32>}, {pipeline_mode = #tpu.pipeline_mode<synchronous>, transform_indices = @transform_11, window_bounds = array<i64: 1, 32>}, {pipeline_mode = #tpu.pipeline_mode<synchronous>, transform_indices = @transform_12, window_bounds = array<i64: 32, 64>}, {pipeline_mode = #tpu.pipeline_mode<synchronous>, transform_indices = @transform_13, window_bounds = array<i64: 1, 64>}, {pipeline_mode = #tpu.pipeline_mode<synchronous>, transform_indices = @transform_14, window_bounds = array<i64: 64, 32>}, {pipeline_mode = #tpu.pipeline_mode<synchronous>, transform_indices = @transform_15, window_bounds = array<i64: 1, 32>}, {pipeline_mode = #tpu.pipeline_mode<synchronous>, transform_indices = @transform_16, window_bounds = array<i64: 1, 32>}, {pipeline_mode = #tpu.pipeline_mode<synchronous>, transform_indices = @transform_17, window_bounds = array<i64: 1, 32>}, {transform_indices = @transform_18, window_bounds = array<i64: 8, 2, 32>}]} {
    %c0 = arith.constant 0 : index
    %c0_0 = arith.constant 0 : index
    %c0_1 = arith.constant 0 : index
    %0 = vector.load %arg1[%c0, %c0_0, %c0_1] : memref<8x2x32xbf16, #tpu.memory_space<vmem>>, vector<8x2x32xbf16>
    %c0_2 = arith.constant 0 : index
    %c0_3 = arith.constant 0 : index
    %c0_4 = arith.constant 0 : index
    %1 = vector.load %arg2[%c0_2, %c0_3, %c0_4] : memref<8x2x32xbf16, #tpu.memory_space<vmem>>, vector<8x2x32xbf16>
    %2 = vector.shape_cast %0 : vector<8x2x32xbf16> to vector<16x32xbf16>
    %3 = vector.shape_cast %1 : vector<8x2x32xbf16> to vector<16x32xbf16>
    %c0_5 = arith.constant 0 : index
    %c0_6 = arith.constant 0 : index
    %4 = vector.load %arg3[%c0_5, %c0_6] : memref<32x32xbf16, #tpu.memory_space<vmem>>, vector<32x32xbf16>
    %cst = arith.constant dense<0.000000e+00> : vector<16x32xf32>
    %5 = tpu.matmul %2, %4, %cst {dimension_numbers = #tpu.dot_dimension_numbers<[1], [0], [0], [1], [0, 0, 1, 1], [], []>} : vector<16x32xbf16>, vector<32x32xbf16>, vector<16x32xf32> -> vector<16x32xf32>
    %c0_7 = arith.constant 0 : index
    %c0_8 = arith.constant 0 : index
    %6 = vector.load %arg4[%c0_7, %c0_8] : memref<1x32xf32, #tpu.memory_space<vmem>>, vector<1x32xf32>
    %7 = vector.broadcast %6 : vector<1x32xf32> to vector<16x32xf32>
    %8 = arith.addf %5, %7 : vector<16x32xf32>
    %c0_9 = arith.constant 0 : index
    %c0_10 = arith.constant 0 : index
    %9 = vector.load %arg5[%c0_9, %c0_10] : memref<32x32xbf16, #tpu.memory_space<vmem>>, vector<32x32xbf16>
    %cst_11 = arith.constant dense<0.000000e+00> : vector<16x32xf32>
    %10 = tpu.matmul %2, %9, %cst_11 {dimension_numbers = #tpu.dot_dimension_numbers<[1], [0], [0], [1], [0, 0, 1, 1], [], []>} : vector<16x32xbf16>, vector<32x32xbf16>, vector<16x32xf32> -> vector<16x32xf32>
    %c0_12 = arith.constant 0 : index
    %c0_13 = arith.constant 0 : index
    %11 = vector.load %arg6[%c0_12, %c0_13] : memref<1x32xf32, #tpu.memory_space<vmem>>, vector<1x32xf32>
    %12 = vector.broadcast %11 : vector<1x32xf32> to vector<16x32xf32>
    %13 = arith.addf %10, %12 : vector<16x32xf32>
    %c0_14 = arith.constant 0 : index
    %c0_15 = arith.constant 0 : index
    %14 = vector.load %arg7[%c0_14, %c0_15] : memref<32x32xbf16, #tpu.memory_space<vmem>>, vector<32x32xbf16>
    %cst_16 = arith.constant dense<0.000000e+00> : vector<16x32xf32>
    %15 = tpu.matmul %3, %14, %cst_16 {dimension_numbers = #tpu.dot_dimension_numbers<[1], [0], [0], [1], [0, 0, 1, 1], [], []>} : vector<16x32xbf16>, vector<32x32xbf16>, vector<16x32xf32> -> vector<16x32xf32>
    %c0_17 = arith.constant 0 : index
    %c0_18 = arith.constant 0 : index
    %16 = vector.load %arg8[%c0_17, %c0_18] : memref<1x32xf32, #tpu.memory_space<vmem>>, vector<1x32xf32>
    %17 = vector.broadcast %16 : vector<1x32xf32> to vector<16x32xf32>
    %18 = arith.addf %15, %17 : vector<16x32xf32>
    %19 = arith.truncf %8 : vector<16x32xf32> to vector<16x32xbf16>
    %20 = vector.shape_cast %19 : vector<16x32xbf16> to vector<8x2x32xbf16>
    %21 = arith.truncf %13 : vector<16x32xf32> to vector<16x32xbf16>
    %22 = vector.shape_cast %21 : vector<16x32xbf16> to vector<8x2x32xbf16>
    %23 = arith.truncf %18 : vector<16x32xf32> to vector<16x32xbf16>
    %24 = vector.shape_cast %23 : vector<16x32xbf16> to vector<8x2x32xbf16>
    %25 = vector.extract_strided_slice %20 {offsets = [0, 0, 0], sizes = [8, 1, 8], strides = [1, 1, 1]} : vector<8x2x32xbf16> to vector<8x1x8xbf16>
    %26 = vector.shape_cast %25 : vector<8x1x8xbf16> to vector<8x8xbf16>
    %27 = vector.extract_strided_slice %22 {offsets = [0, 0, 0], sizes = [8, 1, 8], strides = [1, 1, 1]} : vector<8x2x32xbf16> to vector<8x1x8xbf16>
    %28 = vector.shape_cast %27 : vector<8x1x8xbf16> to vector<8x8xbf16>
    %29 = vector.extract_strided_slice %24 {offsets = [0, 0, 0], sizes = [8, 1, 8], strides = [1, 1, 1]} : vector<8x2x32xbf16> to vector<8x1x8xbf16>
    %30 = vector.shape_cast %29 : vector<8x1x8xbf16> to vector<8x8xbf16>
    %cst_19 = arith.constant dense<0.000000e+00> : vector<8x8xf32>
    %31 = tpu.matmul %26, %28, %cst_19 {dimension_numbers = #tpu.dot_dimension_numbers<[1], [1], [0], [0], [0, 0, 1, 0], [], []>} : vector<8x8xbf16>, vector<8x8xbf16>, vector<8x8xf32> -> vector<8x8xf32>
    %cst_20 = arith.constant dense<0xFF800000> : vector<8xf32>
    %32 = vector.multi_reduction <maximumf>, %31, %cst_20 [1] : vector<8x8xf32> to vector<8xf32>
    %33 = vector.shape_cast %32 : vector<8xf32> to vector<8x1xf32>
    %34 = vector.broadcast %33 : vector<8x1xf32> to vector<8x8xf32>
    %35 = arith.subf %31, %34 : vector<8x8xf32>
    %36 = math.exp %35 : vector<8x8xf32>
    %cst_21 = arith.constant dense<0.000000e+00> : vector<8xf32>
    %37 = vector.multi_reduction <add>, %36, %cst_21 [1] : vector<8x8xf32> to vector<8xf32>
    %38 = vector.shape_cast %37 : vector<8xf32> to vector<8x1xf32>
    %39 = tpu.reciprocal %38 {approx = true} : vector<8x1xf32> -> vector<8x1xf32>
    %40 = vector.broadcast %39 : vector<8x1xf32> to vector<8x8xf32>
    %41 = arith.mulf %36, %40 : vector<8x8xf32>
    %42 = arith.truncf %41 : vector<8x8xf32> to vector<8x8xbf16>
    %cst_22 = arith.constant dense<0.000000e+00> : vector<8x8xf32>
    %43 = tpu.matmul %42, %30, %cst_22 {dimension_numbers = #tpu.dot_dimension_numbers<[1], [0], [0], [1], [0, 0, 1, 1], [], []>} : vector<8x8xbf16>, vector<8x8xbf16>, vector<8x8xf32> -> vector<8x8xf32>
    %44 = arith.truncf %43 : vector<8x8xf32> to vector<8x8xbf16>
    %c0_23 = arith.constant 0 : index
    %c0_24 = arith.constant 0 : index
    %c0_25 = arith.constant 0 : index
    %45 = vector.load %arg20[%c0_23, %c0_24, %c0_25] : memref<8x2x32xbf16, #tpu.memory_space<vmem>>, vector<8x1x8xbf16>
    %46 = vector.shape_cast %45 : vector<8x1x8xbf16> to vector<8x8xbf16>
    %47 = vector.shape_cast %44 : vector<8x8xbf16> to vector<8x1x8xbf16>
    tpu.vector_store %arg20[%c0_23, %c0_24, %c0_25], %47 {strides = array<i32>} : memref<8x2x32xbf16, #tpu.memory_space<vmem>>, vector<8x1x8xbf16>,
    %48 = vector.extract_strided_slice %20 {offsets = [0, 0, 8], sizes = [8, 1, 8], strides = [1, 1, 1]} : vector<8x2x32xbf16> to vector<8x1x8xbf16>
    %49 = vector.shape_cast %48 : vector<8x1x8xbf16> to vector<8x8xbf16>
    %50 = vector.extract_strided_slice %22 {offsets = [0, 0, 8], sizes = [8, 1, 8], strides = [1, 1, 1]} : vector<8x2x32xbf16> to vector<8x1x8xbf16>
    %51 = vector.shape_cast %50 : vector<8x1x8xbf16> to vector<8x8xbf16>
    %52 = vector.extract_strided_slice %24 {offsets = [0, 0, 8], sizes = [8, 1, 8], strides = [1, 1, 1]} : vector<8x2x32xbf16> to vector<8x1x8xbf16>
    %53 = vector.shape_cast %52 : vector<8x1x8xbf16> to vector<8x8xbf16>
    %cst_26 = arith.constant dense<0.000000e+00> : vector<8x8xf32>
    %54 = tpu.matmul %49, %51, %cst_26 {dimension_numbers = #tpu.dot_dimension_numbers<[1], [1], [0], [0], [0, 0, 1, 0], [], []>} : vector<8x8xbf16>, vector<8x8xbf16>, vector<8x8xf32> -> vector<8x8xf32>
    %cst_27 = arith.constant dense<0xFF800000> : vector<8xf32>
    %55 = vector.multi_reduction <maximumf>, %54, %cst_27 [1] : vector<8x8xf32> to vector<8xf32>
    %56 = vector.shape_cast %55 : vector<8xf32> to vector<8x1xf32>
    %57 = vector.broadcast %56 : vector<8x1xf32> to vector<8x8xf32>
    %58 = arith.subf %54, %57 : vector<8x8xf32>
    %59 = math.exp %58 : vector<8x8xf32>
    %cst_28 = arith.constant dense<0.000000e+00> : vector<8xf32>
    %60 = vector.multi_reduction <add>, %59, %cst_28 [1] : vector<8x8xf32> to vector<8xf32>
    %61 = vector.shape_cast %60 : vector<8xf32> to vector<8x1xf32>
    %62 = tpu.reciprocal %61 {approx = true} : vector<8x1xf32> -> vector<8x1xf32>
    %63 = vector.broadcast %62 : vector<8x1xf32> to vector<8x8xf32>
    %64 = arith.mulf %59, %63 : vector<8x8xf32>
    %65 = arith.truncf %64 : vector<8x8xf32> to vector<8x8xbf16>
    %cst_29 = arith.constant dense<0.000000e+00> : vector<8x8xf32>
    %66 = tpu.matmul %65, %53, %cst_29 {dimension_numbers = #tpu.dot_dimension_numbers<[1], [0], [0], [1], [0, 0, 1, 1], [], []>} : vector<8x8xbf16>, vector<8x8xbf16>, vector<8x8xf32> -> vector<8x8xf32>
    %67 = arith.truncf %66 : vector<8x8xf32> to vector<8x8xbf16>
    %c0_30 = arith.constant 0 : index
    %c0_31 = arith.constant 0 : index
    %c8 = arith.constant 8 : index
    %68 = vector.load %arg20[%c0_30, %c0_31, %c8] : memref<8x2x32xbf16, #tpu.memory_space<vmem>>, vector<8x1x8xbf16>
    %69 = vector.shape_cast %68 : vector<8x1x8xbf16> to vector<8x8xbf16>
    %70 = vector.shape_cast %67 : vector<8x8xbf16> to vector<8x1x8xbf16>
    tpu.vector_store %arg20[%c0_30, %c0_31, %c8], %70 {strides = array<i32>} : memref<8x2x32xbf16, #tpu.memory_space<vmem>>, vector<8x1x8xbf16>,
    %71 = vector.extract_strided_slice %20 {offsets = [0, 0, 16], sizes = [8, 1, 8], strides = [1, 1, 1]} : vector<8x2x32xbf16> to vector<8x1x8xbf16>
    %72 = vector.shape_cast %71 : vector<8x1x8xbf16> to vector<8x8xbf16>
    %73 = vector.extract_strided_slice %22 {offsets = [0, 0, 16], sizes = [8, 1, 8], strides = [1, 1, 1]} : vector<8x2x32xbf16> to vector<8x1x8xbf16>
    %74 = vector.shape_cast %73 : vector<8x1x8xbf16> to vector<8x8xbf16>
    %75 = vector.extract_strided_slice %24 {offsets = [0, 0, 16], sizes = [8, 1, 8], strides = [1, 1, 1]} : vector<8x2x32xbf16> to vector<8x1x8xbf16>
    %76 = vector.shape_cast %75 : vector<8x1x8xbf16> to vector<8x8xbf16>
    %cst_32 = arith.constant dense<0.000000e+00> : vector<8x8xf32>
    %77 = tpu.matmul %72, %74, %cst_32 {dimension_numbers = #tpu.dot_dimension_numbers<[1], [1], [0], [0], [0, 0, 1, 0], [], []>} : vector<8x8xbf16>, vector<8x8xbf16>, vector<8x8xf32> -> vector<8x8xf32>
    %cst_33 = arith.constant dense<0xFF800000> : vector<8xf32>
    %78 = vector.multi_reduction <maximumf>, %77, %cst_33 [1] : vector<8x8xf32> to vector<8xf32>
    %79 = vector.shape_cast %78 : vector<8xf32> to vector<8x1xf32>
    %80 = vector.broadcast %79 : vector<8x1xf32> to vector<8x8xf32>
    %81 = arith.subf %77, %80 : vector<8x8xf32>
    %82 = math.exp %81 : vector<8x8xf32>
    %cst_34 = arith.constant dense<0.000000e+00> : vector<8xf32>
    %83 = vector.multi_reduction <add>, %82, %cst_34 [1] : vector<8x8xf32> to vector<8xf32>
    %84 = vector.shape_cast %83 : vector<8xf32> to vector<8x1xf32>
    %85 = tpu.reciprocal %84 {approx = true} : vector<8x1xf32> -> vector<8x1xf32>
    %86 = vector.broadcast %85 : vector<8x1xf32> to vector<8x8xf32>
    %87 = arith.mulf %82, %86 : vector<8x8xf32>
    %88 = arith.truncf %87 : vector<8x8xf32> to vector<8x8xbf16>
    %cst_35 = arith.constant dense<0.000000e+00> : vector<8x8xf32>
    %89 = tpu.matmul %88, %76, %cst_35 {dimension_numbers = #tpu.dot_dimension_numbers<[1], [0], [0], [1], [0, 0, 1, 1], [], []>} : vector<8x8xbf16>, vector<8x8xbf16>, vector<8x8xf32> -> vector<8x8xf32>
    %90 = arith.truncf %89 : vector<8x8xf32> to vector<8x8xbf16>
    %c0_36 = arith.constant 0 : index
    %c0_37 = arith.constant 0 : index
    %c16 = arith.constant 16 : index
    %91 = vector.load %arg20[%c0_36, %c0_37, %c16] : memref<8x2x32xbf16, #tpu.memory_space<vmem>>, vector<8x1x8xbf16>
    %92 = vector.shape_cast %91 : vector<8x1x8xbf16> to vector<8x8xbf16>
    %93 = vector.shape_cast %90 : vector<8x8xbf16> to vector<8x1x8xbf16>
    tpu.vector_store %arg20[%c0_36, %c0_37, %c16], %93 {strides = array<i32>} : memref<8x2x32xbf16, #tpu.memory_space<vmem>>, vector<8x1x8xbf16>,
    %94 = vector.extract_strided_slice %20 {offsets = [0, 0, 24], sizes = [8, 1, 8], strides = [1, 1, 1]} : vector<8x2x32xbf16> to vector<8x1x8xbf16>
    %95 = vector.shape_cast %94 : vector<8x1x8xbf16> to vector<8x8xbf16>
    %96 = vector.extract_strided_slice %22 {offsets = [0, 0, 24], sizes = [8, 1, 8], strides = [1, 1, 1]} : vector<8x2x32xbf16> to vector<8x1x8xbf16>
    %97 = vector.shape_cast %96 : vector<8x1x8xbf16> to vector<8x8xbf16>
    %98 = vector.extract_strided_slice %24 {offsets = [0, 0, 24], sizes = [8, 1, 8], strides = [1, 1, 1]} : vector<8x2x32xbf16> to vector<8x1x8xbf16>
    %99 = vector.shape_cast %98 : vector<8x1x8xbf16> to vector<8x8xbf16>
    %cst_38 = arith.constant dense<0.000000e+00> : vector<8x8xf32>
    %100 = tpu.matmul %95, %97, %cst_38 {dimension_numbers = #tpu.dot_dimension_numbers<[1], [1], [0], [0], [0, 0, 1, 0], [], []>} : vector<8x8xbf16>, vector<8x8xbf16>, vector<8x8xf32> -> vector<8x8xf32>
    %cst_39 = arith.constant dense<0xFF800000> : vector<8xf32>
    %101 = vector.multi_reduction <maximumf>, %100, %cst_39 [1] : vector<8x8xf32> to vector<8xf32>
    %102 = vector.shape_cast %101 : vector<8xf32> to vector<8x1xf32>
    %103 = vector.broadcast %102 : vector<8x1xf32> to vector<8x8xf32>
    %104 = arith.subf %100, %103 : vector<8x8xf32>
    %105 = math.exp %104 : vector<8x8xf32>
    %cst_40 = arith.constant dense<0.000000e+00> : vector<8xf32>
    %106 = vector.multi_reduction <add>, %105, %cst_40 [1] : vector<8x8xf32> to vector<8xf32>
    %107 = vector.shape_cast %106 : vector<8xf32> to vector<8x1xf32>
    %108 = tpu.reciprocal %107 {approx = true} : vector<8x1xf32> -> vector<8x1xf32>
    %109 = vector.broadcast %108 : vector<8x1xf32> to vector<8x8xf32>
    %110 = arith.mulf %105, %109 : vector<8x8xf32>
    %111 = arith.truncf %110 : vector<8x8xf32> to vector<8x8xbf16>
    %cst_41 = arith.constant dense<0.000000e+00> : vector<8x8xf32>
    %112 = tpu.matmul %111, %99, %cst_41 {dimension_numbers = #tpu.dot_dimension_numbers<[1], [0], [0], [1], [0, 0, 1, 1], [], []>} : vector<8x8xbf16>, vector<8x8xbf16>, vector<8x8xf32> -> vector<8x8xf32>
    %113 = arith.truncf %112 : vector<8x8xf32> to vector<8x8xbf16>
    %c0_42 = arith.constant 0 : index
    %c0_43 = arith.constant 0 : index
    %c24 = arith.constant 24 : index
    %114 = vector.load %arg20[%c0_42, %c0_43, %c24] : memref<8x2x32xbf16, #tpu.memory_space<vmem>>, vector<8x1x8xbf16>
    %115 = vector.shape_cast %114 : vector<8x1x8xbf16> to vector<8x8xbf16>
    %116 = vector.shape_cast %113 : vector<8x8xbf16> to vector<8x1x8xbf16>
    tpu.vector_store %arg20[%c0_42, %c0_43, %c24], %116 {strides = array<i32>} : memref<8x2x32xbf16, #tpu.memory_space<vmem>>, vector<8x1x8xbf16>,
    %117 = vector.extract_strided_slice %20 {offsets = [0, 1, 0], sizes = [8, 1, 8], strides = [1, 1, 1]} : vector<8x2x32xbf16> to vector<8x1x8xbf16>
    %118 = vector.shape_cast %117 : vector<8x1x8xbf16> to vector<8x8xbf16>
    %119 = vector.extract_strided_slice %22 {offsets = [0, 1, 0], sizes = [8, 1, 8], strides = [1, 1, 1]} : vector<8x2x32xbf16> to vector<8x1x8xbf16>
    %120 = vector.shape_cast %119 : vector<8x1x8xbf16> to vector<8x8xbf16>
    %121 = vector.extract_strided_slice %24 {offsets = [0, 1, 0], sizes = [8, 1, 8], strides = [1, 1, 1]} : vector<8x2x32xbf16> to vector<8x1x8xbf16>
    %122 = vector.shape_cast %121 : vector<8x1x8xbf16> to vector<8x8xbf16>
    %cst_44 = arith.constant dense<0.000000e+00> : vector<8x8xf32>
    %123 = tpu.matmul %118, %120, %cst_44 {dimension_numbers = #tpu.dot_dimension_numbers<[1], [1], [0], [0], [0, 0, 1, 0], [], []>} : vector<8x8xbf16>, vector<8x8xbf16>, vector<8x8xf32> -> vector<8x8xf32>
    %cst_45 = arith.constant dense<0xFF800000> : vector<8xf32>
    %124 = vector.multi_reduction <maximumf>, %123, %cst_45 [1] : vector<8x8xf32> to vector<8xf32>
    %125 = vector.shape_cast %124 : vector<8xf32> to vector<8x1xf32>
    %126 = vector.broadcast %125 : vector<8x1xf32> to vector<8x8xf32>
    %127 = arith.subf %123, %126 : vector<8x8xf32>
    %128 = math.exp %127 : vector<8x8xf32>
    %cst_46 = arith.constant dense<0.000000e+00> : vector<8xf32>
    %129 = vector.multi_reduction <add>, %128, %cst_46 [1] : vector<8x8xf32> to vector<8xf32>
    %130 = vector.shape_cast %129 : vector<8xf32> to vector<8x1xf32>
    %131 = tpu.reciprocal %130 {approx = true} : vector<8x1xf32> -> vector<8x1xf32>
    %132 = vector.broadcast %131 : vector<8x1xf32> to vector<8x8xf32>
    %133 = arith.mulf %128, %132 : vector<8x8xf32>
    %134 = arith.truncf %133 : vector<8x8xf32> to vector<8x8xbf16>
    %cst_47 = arith.constant dense<0.000000e+00> : vector<8x8xf32>
    %135 = tpu.matmul %134, %122, %cst_47 {dimension_numbers = #tpu.dot_dimension_numbers<[1], [0], [0], [1], [0, 0, 1, 1], [], []>} : vector<8x8xbf16>, vector<8x8xbf16>, vector<8x8xf32> -> vector<8x8xf32>
    %136 = arith.truncf %135 : vector<8x8xf32> to vector<8x8xbf16>
    %c0_48 = arith.constant 0 : index
    %c1 = arith.constant 1 : index
    %c0_49 = arith.constant 0 : index
    %137 = vector.load %arg20[%c0_48, %c1, %c0_49] : memref<8x2x32xbf16, #tpu.memory_space<vmem>>, vector<8x1x8xbf16>
    %138 = vector.shape_cast %137 : vector<8x1x8xbf16> to vector<8x8xbf16>
    %139 = vector.shape_cast %136 : vector<8x8xbf16> to vector<8x1x8xbf16>
    tpu.vector_store %arg20[%c0_48, %c1, %c0_49], %139 {strides = array<i32>} : memref<8x2x32xbf16, #tpu.memory_space<vmem>>, vector<8x1x8xbf16>,
    %140 = vector.extract_strided_slice %20 {offsets = [0, 1, 8], sizes = [8, 1, 8], strides = [1, 1, 1]} : vector<8x2x32xbf16> to vector<8x1x8xbf16>
    %141 = vector.shape_cast %140 : vector<8x1x8xbf16> to vector<8x8xbf16>
    %142 = vector.extract_strided_slice %22 {offsets = [0, 1, 8], sizes = [8, 1, 8], strides = [1, 1, 1]} : vector<8x2x32xbf16> to vector<8x1x8xbf16>
    %143 = vector.shape_cast %142 : vector<8x1x8xbf16> to vector<8x8xbf16>
    %144 = vector.extract_strided_slice %24 {offsets = [0, 1, 8], sizes = [8, 1, 8], strides = [1, 1, 1]} : vector<8x2x32xbf16> to vector<8x1x8xbf16>
    %145 = vector.shape_cast %144 : vector<8x1x8xbf16> to vector<8x8xbf16>
    %cst_50 = arith.constant dense<0.000000e+00> : vector<8x8xf32>
    %146 = tpu.matmul %141, %143, %cst_50 {dimension_numbers = #tpu.dot_dimension_numbers<[1], [1], [0], [0], [0, 0, 1, 0], [], []>} : vector<8x8xbf16>, vector<8x8xbf16>, vector<8x8xf32> -> vector<8x8xf32>
    %cst_51 = arith.constant dense<0xFF800000> : vector<8xf32>
    %147 = vector.multi_reduction <maximumf>, %146, %cst_51 [1] : vector<8x8xf32> to vector<8xf32>
    %148 = vector.shape_cast %147 : vector<8xf32> to vector<8x1xf32>
    %149 = vector.broadcast %148 : vector<8x1xf32> to vector<8x8xf32>
    %150 = arith.subf %146, %149 : vector<8x8xf32>
    %151 = math.exp %150 : vector<8x8xf32>
    %cst_52 = arith.constant dense<0.000000e+00> : vector<8xf32>
    %152 = vector.multi_reduction <add>, %151, %cst_52 [1] : vector<8x8xf32> to vector<8xf32>
    %153 = vector.shape_cast %152 : vector<8xf32> to vector<8x1xf32>
    %154 = tpu.reciprocal %153 {approx = true} : vector<8x1xf32> -> vector<8x1xf32>
    %155 = vector.broadcast %154 : vector<8x1xf32> to vector<8x8xf32>
    %156 = arith.mulf %151, %155 : vector<8x8xf32>
    %157 = arith.truncf %156 : vector<8x8xf32> to vector<8x8xbf16>
    %cst_53 = arith.constant dense<0.000000e+00> : vector<8x8xf32>
    %158 = tpu.matmul %157, %145, %cst_53 {dimension_numbers = #tpu.dot_dimension_numbers<[1], [0], [0], [1], [0, 0, 1, 1], [], []>} : vector<8x8xbf16>, vector<8x8xbf16>, vector<8x8xf32> -> vector<8x8xf32>
    %159 = arith.truncf %158 : vector<8x8xf32> to vector<8x8xbf16>
    %c0_54 = arith.constant 0 : index
    %c1_55 = arith.constant 1 : index
    %c8_56 = arith.constant 8 : index
    %160 = vector.load %arg20[%c0_54, %c1_55, %c8_56] : memref<8x2x32xbf16, #tpu.memory_space<vmem>>, vector<8x1x8xbf16>
    %161 = vector.shape_cast %160 : vector<8x1x8xbf16> to vector<8x8xbf16>
    %162 = vector.shape_cast %159 : vector<8x8xbf16> to vector<8x1x8xbf16>
    tpu.vector_store %arg20[%c0_54, %c1_55, %c8_56], %162 {strides = array<i32>} : memref<8x2x32xbf16, #tpu.memory_space<vmem>>, vector<8x1x8xbf16>,
    %163 = vector.extract_strided_slice %20 {offsets = [0, 1, 16], sizes = [8, 1, 8], strides = [1, 1, 1]} : vector<8x2x32xbf16> to vector<8x1x8xbf16>
    %164 = vector.shape_cast %163 : vector<8x1x8xbf16> to vector<8x8xbf16>
    %165 = vector.extract_strided_slice %22 {offsets = [0, 1, 16], sizes = [8, 1, 8], strides = [1, 1, 1]} : vector<8x2x32xbf16> to vector<8x1x8xbf16>
    %166 = vector.shape_cast %165 : vector<8x1x8xbf16> to vector<8x8xbf16>
    %167 = vector.extract_strided_slice %24 {offsets = [0, 1, 16], sizes = [8, 1, 8], strides = [1, 1, 1]} : vector<8x2x32xbf16> to vector<8x1x8xbf16>
    %168 = vector.shape_cast %167 : vector<8x1x8xbf16> to vector<8x8xbf16>
    %cst_57 = arith.constant dense<0.000000e+00> : vector<8x8xf32>
    %169 = tpu.matmul %164, %166, %cst_57 {dimension_numbers = #tpu.dot_dimension_numbers<[1], [1], [0], [0], [0, 0, 1, 0], [], []>} : vector<8x8xbf16>, vector<8x8xbf16>, vector<8x8xf32> -> vector<8x8xf32>
    %cst_58 = arith.constant dense<0xFF800000> : vector<8xf32>
    %170 = vector.multi_reduction <maximumf>, %169, %cst_58 [1] : vector<8x8xf32> to vector<8xf32>
    %171 = vector.shape_cast %170 : vector<8xf32> to vector<8x1xf32>
    %172 = vector.broadcast %171 : vector<8x1xf32> to vector<8x8xf32>
    %173 = arith.subf %169, %172 : vector<8x8xf32>
    %174 = math.exp %173 : vector<8x8xf32>
    %cst_59 = arith.constant dense<0.000000e+00> : vector<8xf32>
    %175 = vector.multi_reduction <add>, %174, %cst_59 [1] : vector<8x8xf32> to vector<8xf32>
    %176 = vector.shape_cast %175 : vector<8xf32> to vector<8x1xf32>
    %177 = tpu.reciprocal %176 {approx = true} : vector<8x1xf32> -> vector<8x1xf32>
    %178 = vector.broadcast %177 : vector<8x1xf32> to vector<8x8xf32>
    %179 = arith.mulf %174, %178 : vector<8x8xf32>
    %180 = arith.truncf %179 : vector<8x8xf32> to vector<8x8xbf16>
    %cst_60 = arith.constant dense<0.000000e+00> : vector<8x8xf32>
    %181 = tpu.matmul %180, %168, %cst_60 {dimension_numbers = #tpu.dot_dimension_numbers<[1], [0], [0], [1], [0, 0, 1, 1], [], []>} : vector<8x8xbf16>, vector<8x8xbf16>, vector<8x8xf32> -> vector<8x8xf32>
    %182 = arith.truncf %181 : vector<8x8xf32> to vector<8x8xbf16>
    %c0_61 = arith.constant 0 : index
    %c1_62 = arith.constant 1 : index
    %c16_63 = arith.constant 16 : index
    %183 = vector.load %arg20[%c0_61, %c1_62, %c16_63] : memref<8x2x32xbf16, #tpu.memory_space<vmem>>, vector<8x1x8xbf16>
    %184 = vector.shape_cast %183 : vector<8x1x8xbf16> to vector<8x8xbf16>
    %185 = vector.shape_cast %182 : vector<8x8xbf16> to vector<8x1x8xbf16>
    tpu.vector_store %arg20[%c0_61, %c1_62, %c16_63], %185 {strides = array<i32>} : memref<8x2x32xbf16, #tpu.memory_space<vmem>>, vector<8x1x8xbf16>,
    %186 = vector.extract_strided_slice %20 {offsets = [0, 1, 24], sizes = [8, 1, 8], strides = [1, 1, 1]} : vector<8x2x32xbf16> to vector<8x1x8xbf16>
    %187 = vector.shape_cast %186 : vector<8x1x8xbf16> to vector<8x8xbf16>
    %188 = vector.extract_strided_slice %22 {offsets = [0, 1, 24], sizes = [8, 1, 8], strides = [1, 1, 1]} : vector<8x2x32xbf16> to vector<8x1x8xbf16>
    %189 = vector.shape_cast %188 : vector<8x1x8xbf16> to vector<8x8xbf16>
    %190 = vector.extract_strided_slice %24 {offsets = [0, 1, 24], sizes = [8, 1, 8], strides = [1, 1, 1]} : vector<8x2x32xbf16> to vector<8x1x8xbf16>
    %191 = vector.shape_cast %190 : vector<8x1x8xbf16> to vector<8x8xbf16>
    %cst_64 = arith.constant dense<0.000000e+00> : vector<8x8xf32>
    %192 = tpu.matmul %187, %189, %cst_64 {dimension_numbers = #tpu.dot_dimension_numbers<[1], [1], [0], [0], [0, 0, 1, 0], [], []>} : vector<8x8xbf16>, vector<8x8xbf16>, vector<8x8xf32> -> vector<8x8xf32>
    %cst_65 = arith.constant dense<0xFF800000> : vector<8xf32>
    %193 = vector.multi_reduction <maximumf>, %192, %cst_65 [1] : vector<8x8xf32> to vector<8xf32>
    %194 = vector.shape_cast %193 : vector<8xf32> to vector<8x1xf32>
    %195 = vector.broadcast %194 : vector<8x1xf32> to vector<8x8xf32>
    %196 = arith.subf %192, %195 : vector<8x8xf32>
    %197 = math.exp %196 : vector<8x8xf32>
    %cst_66 = arith.constant dense<0.000000e+00> : vector<8xf32>
    %198 = vector.multi_reduction <add>, %197, %cst_66 [1] : vector<8x8xf32> to vector<8xf32>
    %199 = vector.shape_cast %198 : vector<8xf32> to vector<8x1xf32>
    %200 = tpu.reciprocal %199 {approx = true} : vector<8x1xf32> -> vector<8x1xf32>
    %201 = vector.broadcast %200 : vector<8x1xf32> to vector<8x8xf32>
    %202 = arith.mulf %197, %201 : vector<8x8xf32>
    %203 = arith.truncf %202 : vector<8x8xf32> to vector<8x8xbf16>
    %cst_67 = arith.constant dense<0.000000e+00> : vector<8x8xf32>
    %204 = tpu.matmul %203, %191, %cst_67 {dimension_numbers = #tpu.dot_dimension_numbers<[1], [0], [0], [1], [0, 0, 1, 1], [], []>} : vector<8x8xbf16>, vector<8x8xbf16>, vector<8x8xf32> -> vector<8x8xf32>
    %205 = arith.truncf %204 : vector<8x8xf32> to vector<8x8xbf16>
    %c0_68 = arith.constant 0 : index
    %c1_69 = arith.constant 1 : index
    %c24_70 = arith.constant 24 : index
    %206 = vector.load %arg20[%c0_68, %c1_69, %c24_70] : memref<8x2x32xbf16, #tpu.memory_space<vmem>>, vector<8x1x8xbf16>
    %207 = vector.shape_cast %206 : vector<8x1x8xbf16> to vector<8x8xbf16>
    %208 = vector.shape_cast %205 : vector<8x8xbf16> to vector<8x1x8xbf16>
    tpu.vector_store %arg20[%c0_68, %c1_69, %c24_70], %208 {strides = array<i32>} : memref<8x2x32xbf16, #tpu.memory_space<vmem>>, vector<8x1x8xbf16>,
    %c0_71 = arith.constant 0 : index
    %c0_72 = arith.constant 0 : index
    %c0_73 = arith.constant 0 : index
    %209 = vector.load %arg20[%c0_71, %c0_72, %c0_73] : memref<8x2x32xbf16, #tpu.memory_space<vmem>>, vector<8x2x32xbf16>
    %210 = vector.shape_cast %209 : vector<8x2x32xbf16> to vector<16x32xbf16>
    %c0_74 = arith.constant 0 : index
    %c0_75 = arith.constant 0 : index
    %211 = vector.load %arg9[%c0_74, %c0_75] : memref<32x32xbf16, #tpu.memory_space<vmem>>, vector<32x32xbf16>
    %cst_76 = arith.constant dense<0.000000e+00> : vector<16x32xf32>
    %212 = tpu.matmul %210, %211, %cst_76 {dimension_numbers = #tpu.dot_dimension_numbers<[1], [0], [0], [1], [0, 0, 1, 1], [], []>} : vector<16x32xbf16>, vector<32x32xbf16>, vector<16x32xf32> -> vector<16x32xf32>
    %c0_77 = arith.constant 0 : index
    %c0_78 = arith.constant 0 : index
    %213 = vector.load %arg10[%c0_77, %c0_78] : memref<1x32xf32, #tpu.memory_space<vmem>>, vector<1x32xf32>
    %214 = vector.broadcast %213 : vector<1x32xf32> to vector<16x32xf32>
    %215 = arith.addf %212, %214 : vector<16x32xf32>
    %216 = arith.extf %2 : vector<16x32xbf16> to vector<16x32xf32>
    %217 = arith.addf %216, %215 : vector<16x32xf32>
    %c0_79 = arith.constant 0 : index
    %c0_80 = arith.constant 0 : index
    %218 = vector.load %arg11[%c0_79, %c0_80] : memref<1x32xf32, #tpu.memory_space<vmem>>, vector<1x32xf32>
    %c0_81 = arith.constant 0 : index
    %c0_82 = arith.constant 0 : index
    %219 = vector.load %arg12[%c0_81, %c0_82] : memref<1x32xf32, #tpu.memory_space<vmem>>, vector<1x32xf32>
    %cst_83 = arith.constant dense<0.000000e+00> : vector<16xf32>
    %220 = vector.multi_reduction <add>, %217, %cst_83 [1] : vector<16x32xf32> to vector<16xf32>
    %221 = vector.shape_cast %220 : vector<16xf32> to vector<16x1xf32>
    %cst_84 = arith.constant 3.200000e+01 : f32
    %222 = vector.broadcast %cst_84 : f32 to vector<16x1xf32>
    %223 = arith.divf %221, %222 : vector<16x1xf32>
    %224 = vector.broadcast %223 : vector<16x1xf32> to vector<16x32xf32>
    %225 = arith.subf %217, %224 : vector<16x32xf32>
    %226 = arith.mulf %225, %225 : vector<16x32xf32>
    %cst_85 = arith.constant dense<0.000000e+00> : vector<16xf32>
    %227 = vector.multi_reduction <add>, %226, %cst_85 [1] : vector<16x32xf32> to vector<16xf32>
    %228 = vector.shape_cast %227 : vector<16xf32> to vector<16x1xf32>
    %cst_86 = arith.constant 3.200000e+01 : f32
    %229 = vector.broadcast %cst_86 : f32 to vector<16x1xf32>
    %230 = arith.divf %228, %229 : vector<16x1xf32>
    %cst_87 = arith.constant 9.99999974E-6 : f32
    %231 = vector.broadcast %cst_87 : f32 to vector<16x1xf32>
    %232 = arith.addf %230, %231 : vector<16x1xf32>
    %233 = math.rsqrt %232 : vector<16x1xf32>
    %234 = vector.broadcast %233 : vector<16x1xf32> to vector<16x32xf32>
    %235 = arith.mulf %225, %234 : vector<16x32xf32>
    %236 = vector.broadcast %218 : vector<1x32xf32> to vector<16x32xf32>
    %237 = arith.mulf %235, %236 : vector<16x32xf32>
    %238 = vector.broadcast %219 : vector<1x32xf32> to vector<16x32xf32>
    %239 = arith.addf %237, %238 : vector<16x32xf32>
    %240 = arith.truncf %239 : vector<16x32xf32> to vector<16x32xbf16>
    %c0_88 = arith.constant 0 : index
    %c0_89 = arith.constant 0 : index
    %241 = vector.load %arg13[%c0_88, %c0_89] : memref<32x64xbf16, #tpu.memory_space<vmem>>, vector<32x64xbf16>
    %cst_90 = arith.constant dense<0.000000e+00> : vector<16x64xf32>
    %242 = tpu.matmul %240, %241, %cst_90 {dimension_numbers = #tpu.dot_dimension_numbers<[1], [0], [0], [1], [0, 0, 1, 1], [], []>} : vector<16x32xbf16>, vector<32x64xbf16>, vector<16x64xf32> -> vector<16x64xf32>
    %c0_91 = arith.constant 0 : index
    %c0_92 = arith.constant 0 : index
    %243 = vector.load %arg14[%c0_91, %c0_92] : memref<1x64xf32, #tpu.memory_space<vmem>>, vector<1x64xf32>
    %244 = vector.broadcast %243 : vector<1x64xf32> to vector<16x64xf32>
    %245 = arith.addf %242, %244 : vector<16x64xf32>
    %cst_93 = arith.constant 0.000000e+00 : f32
    %246 = vector.broadcast %cst_93 : f32 to vector<16x64xf32>
    %247 = arith.maximumf %245, %246 : vector<16x64xf32>
    %248 = arith.truncf %247 : vector<16x64xf32> to vector<16x64xbf16>
    %c0_94 = arith.constant 0 : index
    %c0_95 = arith.constant 0 : index
    %249 = vector.load %arg15[%c0_94, %c0_95] : memref<64x32xbf16, #tpu.memory_space<vmem>>, vector<64x32xbf16>
    %cst_96 = arith.constant dense<0.000000e+00> : vector<16x32xf32>
    %250 = tpu.matmul %248, %249, %cst_96 {dimension_numbers = #tpu.dot_dimension_numbers<[1], [0], [0], [1], [0, 0, 1, 1], [], []>} : vector<16x64xbf16>, vector<64x32xbf16>, vector<16x32xf32> -> vector<16x32xf32>
    %c0_97 = arith.constant 0 : index
    %c0_98 = arith.constant 0 : index
    %251 = vector.load %arg16[%c0_97, %c0_98] : memref<1x32xf32, #tpu.memory_space<vmem>>, vector<1x32xf32>
    %252 = vector.broadcast %251 : vector<1x32xf32> to vector<16x32xf32>
    %253 = arith.addf %250, %252 : vector<16x32xf32>
    %254 = arith.addf %239, %253 : vector<16x32xf32>
    %c0_99 = arith.constant 0 : index
    %c0_100 = arith.constant 0 : index
    %255 = vector.load %arg17[%c0_99, %c0_100] : memref<1x32xf32, #tpu.memory_space<vmem>>, vector<1x32xf32>
    %c0_101 = arith.constant 0 : index
    %c0_102 = arith.constant 0 : index
    %256 = vector.load %arg18[%c0_101, %c0_102] : memref<1x32xf32, #tpu.memory_space<vmem>>, vector<1x32xf32>
    %cst_103 = arith.constant dense<0.000000e+00> : vector<16xf32>
    %257 = vector.multi_reduction <add>, %254, %cst_103 [1] : vector<16x32xf32> to vector<16xf32>
    %258 = vector.shape_cast %257 : vector<16xf32> to vector<16x1xf32>
    %cst_104 = arith.constant 3.200000e+01 : f32
    %259 = vector.broadcast %cst_104 : f32 to vector<16x1xf32>
    %260 = arith.divf %258, %259 : vector<16x1xf32>
    %261 = vector.broadcast %260 : vector<16x1xf32> to vector<16x32xf32>
    %262 = arith.subf %254, %261 : vector<16x32xf32>
    %263 = arith.mulf %262, %262 : vector<16x32xf32>
    %cst_105 = arith.constant dense<0.000000e+00> : vector<16xf32>
    %264 = vector.multi_reduction <add>, %263, %cst_105 [1] : vector<16x32xf32> to vector<16xf32>
    %265 = vector.shape_cast %264 : vector<16xf32> to vector<16x1xf32>
    %cst_106 = arith.constant 3.200000e+01 : f32
    %266 = vector.broadcast %cst_106 : f32 to vector<16x1xf32>
    %267 = arith.divf %265, %266 : vector<16x1xf32>
    %cst_107 = arith.constant 9.99999974E-6 : f32
    %268 = vector.broadcast %cst_107 : f32 to vector<16x1xf32>
    %269 = arith.addf %267, %268 : vector<16x1xf32>
    %270 = math.rsqrt %269 : vector<16x1xf32>
    %271 = vector.broadcast %270 : vector<16x1xf32> to vector<16x32xf32>
    %272 = arith.mulf %262, %271 : vector<16x32xf32>
    %273 = vector.broadcast %255 : vector<1x32xf32> to vector<16x32xf32>
    %274 = arith.mulf %272, %273 : vector<16x32xf32>
    %275 = vector.broadcast %256 : vector<1x32xf32> to vector<16x32xf32>
    %276 = arith.addf %274, %275 : vector<16x32xf32>
    %277 = vector.shape_cast %276 : vector<16x32xf32> to vector<8x2x32xf32>
    %c0_108 = arith.constant 0 : index
    %c0_109 = arith.constant 0 : index
    %c0_110 = arith.constant 0 : index
    %278 = vector.load %arg19[%c0_108, %c0_109, %c0_110] : memref<8x2x32xf32, #tpu.memory_space<vmem>>, vector<8x2x32xf32>
    tpu.vector_store %arg19[%c0_108, %c0_109, %c0_110], %277 {strides = array<i32>} : memref<8x2x32xf32, #tpu.memory_space<vmem>>, vector<8x2x32xf32>,
    return
  }
  func.func @transform_0(%arg0: i32) -> (i32, i32, i32) {
    %c0_i32 = arith.constant 0 : i32
    %c0_i32_0 = arith.constant 0 : i32
    %c0_i32_1 = arith.constant 0 : i32
    return %c0_i32, %arg0, %c0_i32_0 : i32, i32, i32
  }
  func.func @transform_1(%arg0: i32) -> (i32, i32, i32) {
    %c0_i32 = arith.constant 0 : i32
    %c0_i32_0 = arith.constant 0 : i32
    %c0_i32_1 = arith.constant 0 : i32
    return %c0_i32, %arg0, %c0_i32_0 : i32, i32, i32
  }
  func.func @transform_2(%arg0: i32) -> (i32, i32) {
    %c0_i32 = arith.constant 0 : i32
    %c0_i32_0 = arith.constant 0 : i32
    %c0_i32_1 = arith.constant 0 : i32
    return %c0_i32, %c0_i32_0 : i32, i32
  }
  func.func @transform_3(%arg0: i32) -> (i32, i32) {
    %c0_i32 = arith.constant 0 : i32
    %c0_i32_0 = arith.constant 0 : i32
    %c0_i32_1 = arith.constant 0 : i32
    return %c0_i32, %c0_i32_0 : i32, i32
  }
  func.func @transform_4(%arg0: i32) -> (i32, i32) {
    %c0_i32 = arith.constant 0 : i32
    %c0_i32_0 = arith.constant 0 : i32
    %c0_i32_1 = arith.constant 0 : i32
    return %c0_i32, %c0_i32_0 : i32, i32
  }
  func.func @transform_5(%arg0: i32) -> (i32, i32) {
    %c0_i32 = arith.constant 0 : i32
    %c0_i32_0 = arith.constant 0 : i32
    %c0_i32_1 = arith.constant 0 : i32
    return %c0_i32, %c0_i32_0 : i32, i32
  }
  func.func @transform_6(%arg0: i32) -> (i32, i32) {
    %c0_i32 = arith.constant 0 : i32
    %c0_i32_0 = arith.constant 0 : i32
    %c0_i32_1 = arith.constant 0 : i32
    return %c0_i32, %c0_i32_0 : i32, i32
  }
  func.func @transform_7(%arg0: i32) -> (i32, i32) {
    %c0_i32 = arith.constant 0 : i32
    %c0_i32_0 = arith.constant 0 : i32
    %c0_i32_1 = arith.constant 0 : i32
    return %c0_i32, %c0_i32_0 : i32, i32
  }
  func.func @transform_8(%arg0: i32) -> (i32, i32) {
    %c0_i32 = arith.constant 0 : i32
    %c0_i32_0 = arith.constant 0 : i32
    %c0_i32_1 = arith.constant 0 : i32
    return %c0_i32, %c0_i32_0 : i32, i32
  }
  func.func @transform_9(%arg0: i32) -> (i32, i32) {
    %c0_i32 = arith.constant 0 : i32
    %c0_i32_0 = arith.constant 0 : i32
    %c0_i32_1 = arith.constant 0 : i32
    return %c0_i32, %c0_i32_0 : i32, i32
  }
  func.func @transform_10(%arg0: i32) -> (i32, i32) {
    %c0_i32 = arith.constant 0 : i32
    %c0_i32_0 = arith.constant 0 : i32
    %c0_i32_1 = arith.constant 0 : i32
    return %c0_i32, %c0_i32_0 : i32, i32
  }
  func.func @transform_11(%arg0: i32) -> (i32, i32) {
    %c0_i32 = arith.constant 0 : i32
    %c0_i32_0 = arith.constant 0 : i32
    %c0_i32_1 = arith.constant 0 : i32
    return %c0_i32, %c0_i32_0 : i32, i32
  }
  func.func @transform_12(%arg0: i32) -> (i32, i32) {
    %c0_i32 = arith.constant 0 : i32
    %c0_i32_0 = arith.constant 0 : i32
    %c0_i32_1 = arith.constant 0 : i32
    return %c0_i32, %c0_i32_0 : i32, i32
  }
  func.func @transform_13(%arg0: i32) -> (i32, i32) {
    %c0_i32 = arith.constant 0 : i32
    %c0_i32_0 = arith.constant 0 : i32
    %c0_i32_1 = arith.constant 0 : i32
    return %c0_i32, %c0_i32_0 : i32, i32
  }
  func.func @transform_14(%arg0: i32) -> (i32, i32) {
    %c0_i32 = arith.constant 0 : i32
    %c0_i32_0 = arith.constant 0 : i32
    %c0_i32_1 = arith.constant 0 : i32
    return %c0_i32, %c0_i32_0 : i32, i32
  }
  func.func @transform_15(%arg0: i32) -> (i32, i32) {
    %c0_i32 = arith.constant 0 : i32
    %c0_i32_0 = arith.constant 0 : i32
    %c0_i32_1 = arith.constant 0 : i32
    return %c0_i32, %c0_i32_0 : i32, i32
  }
  func.func @transform_16(%arg0: i32) -> (i32, i32) {
    %c0_i32 = arith.constant 0 : i32
    %c0_i32_0 = arith.constant 0 : i32
    %c0_i32_1 = arith.constant 0 : i32
    return %c0_i32, %c0_i32_0 : i32, i32
  }
  func.func @transform_17(%arg0: i32) -> (i32, i32) {
    %c0_i32 = arith.constant 0 : i32
    %c0_i32_0 = arith.constant 0 : i32
    %c0_i32_1 = arith.constant 0 : i32
    return %c0_i32, %c0_i32_0 : i32, i32
  }
  func.func @transform_18(%arg0: i32) -> (i32, i32, i32) {
    %c0_i32 = arith.constant 0 : i32
    %c0_i32_0 = arith.constant 0 : i32
    %c0_i32_1 = arith.constant 0 : i32
    return %c0_i32, %arg0, %c0_i32_0 : i32, i32, i32
  }
}

</mosaic_0001>

<llo_original>
// kernel: tpu_custom_call.1
$region0: #{tpu_custom_call.1}
  #allocation0 [shape = 'u32[]', space=smem, size = 0x4, offset = 0x4, fixed_abs, tag = 'smem constant byte address 0x4 - core index']
  #allocation1 [shape = 'u32[144,128]{1,0:T(1,128)}', space=vmem, size = 0x12000, scoped, tag = 'internal scratch']
  #allocation2 [shape = 'bf16[8,2,32]{2,1,0:T(2,128)(2,1)}', space=vmem, size = 0x1000, scoped, tag = 'scratch operand']
  %s0 = inlined_call_operand.hbm [shape: bf16[8,2,32], index: 0, kind: input, shape index: {}]
  %s1 = inlined_call_operand.hbm [shape: bf16[8,2,32], index: 1, kind: input, shape index: {}]
  %s2 = inlined_call_operand.vmem [shape: bf16[32,32], index: 2, kind: input, shape index: {}]
  %s3 = inlined_call_operand.vmem [shape: f32[1,32], index: 3, kind: input, shape index: {}]
  %s4 = inlined_call_operand.vmem [shape: bf16[32,32], index: 4, kind: input, shape index: {}]
  %s5 = inlined_call_operand.vmem [shape: f32[1,32], index: 5, kind: input, shape index: {}]
  %s6 = inlined_call_operand.vmem [shape: bf16[32,32], index: 6, kind: input, shape index: {}]
  %s7 = inlined_call_operand.hbm [shape: f32[1,32], index: 7, kind: input, shape index: {}]
  %s8 = inlined_call_operand.hbm [shape: bf16[32,32], index: 8, kind: input, shape index: {}]
  %s9 = inlined_call_operand.hbm [shape: f32[1,32], index: 9, kind: input, shape index: {}]
  %s10 = inlined_call_operand.vmem [shape: f32[1,32], index: 10, kind: input, shape index: {}]
  %s11 = inlined_call_operand.vmem [shape: f32[1,32], index: 11, kind: input, shape index: {}]
  %s12 = inlined_call_operand.vmem [shape: bf16[32,64], index: 12, kind: input, shape index: {}]
  %s13 = inlined_call_operand.vmem [shape: f32[1,64], index: 13, kind: input, shape index: {}]
  %s14 = inlined_call_operand.vmem [shape: bf16[64,32], index: 14, kind: input, shape index: {}]
  %s15 = inlined_call_operand.vmem [shape: f32[1,32], index: 15, kind: input, shape index: {}]
  %s16 = inlined_call_operand.vmem [shape: f32[1,32], index: 16, kind: input, shape index: {}]
  %s17 = inlined_call_operand.vmem [shape: f32[1,32], index: 17, kind: input, shape index: {}]
  %s18 = inlined_call_operand.hbm [shape: f32[8,2,32], index: 18, kind: output, shape index: {}]
  %s19 = sld [smem:[#allocation0]]
  $region102: #{tpu_custom_call.1} parent=0
    _
  %s21 = ssub.s32 1, %s19
  %s22 = scalar_select 0, %s21, %s19
  $region1: #{tpu_custom_call.1} parent=0
    #allocation3 [shape = 'u8[4096]{0}', space=vmem, size = 0x1000, scoped, tag = 'input window, operand 0, single buffered']
    #allocation4 [shape = 's32[1]{0}', space=sflag, size = 0x4, scoped, tag = 'scoped memory for tpu_custom_call.1']
    #allocation5 [shape = 's32[1]{0}', space=sflag, size = 0x4, scoped, tag = 'scoped memory for tpu_custom_call.1']
    #allocation6 [shape = 'u8[4096]{0}', space=vmem, size = 0x1000, scoped, tag = 'input window, operand 1, single buffered']
    #allocation7 [shape = 's32[1]{0}', space=sflag, size = 0x4, scoped, tag = 'scoped memory for tpu_custom_call.1']
    #allocation8 [shape = 'u8[512]{0}', space=vmem, size = 0x400, scoped, tag = 'input window, operand 7, single buffered']
    #allocation9 [shape = 'u8[8192]{0}', space=vmem, size = 0x2000, scoped, tag = 'input window, operand 8, single buffered']
    #allocation10 [shape = 's32[1]{0}', space=sflag, size = 0x4, scoped, tag = 'scoped memory for tpu_custom_call.1']
    #allocation11 [shape = 'u8[512]{0}', space=vmem, size = 0x400, scoped, tag = 'input window, operand 9, single buffered']
    #allocation12 [shape = 'u8[8192]{0}', space=vmem, size = 0x2000, scoped, tag = 'output window, operand 0, single buffered']
    %23 = vsyncpa [#allocation4], 0
    %24 = vsyncpa [#allocation7], 0
    %25 = vsyncpa [#allocation10], 0
    %26 = vsyncpa [#allocation5], 0
    // Predicated region
    $region2: #{tpu_custom_call.1} parent=1 // pred_check
      _
    $region3: #{tpu_custom_call.1} parent=1 // pred_check_branch
      %28 = sbr.rel (0) target = $region5
    $region4: #{tpu_custom_call.1} parent=1 // pred_region
      %s30 = ssub.s32 128, 128
      %31 = vsyncadd [#allocation4], %s30
      %s32 = sshll.u32 [#allocation3], 4
      %s33 = int_to_ptr.vmem [resolvable:$true] %s32
      %38 = dma.hbm_to_vmem [thread:$0]  %s0, 128, %s33, [#allocation4], 16, 16, 1
    $region5: #{tpu_custom_call.1} parent=1 // pred_fallthru
      _
    // Predicated region
    $region6: #{tpu_custom_call.1} parent=1 // pred_check
      _
    $region7: #{tpu_custom_call.1} parent=1 // pred_check_branch
      %40 = sbr.rel (0) target = $region9
    $region8: #{tpu_custom_call.1} parent=1 // pred_region
      %s42 = ssub.s32 128, 128
      %43 = vsyncadd [#allocation7], %s42
      %s44 = sshll.u32 [#allocation6], 4
      %s45 = int_to_ptr.vmem [resolvable:$true] %s44
      %50 = dma.hbm_to_vmem [thread:$0]  %s1, 128, %s45, [#allocation7], 16, 16, 1
    $region9: #{tpu_custom_call.1} parent=1 // pred_fallthru
      _
    // Predicated region
    $region10: #{tpu_custom_call.1} parent=1 // pred_check
      _
    $region11: #{tpu_custom_call.1} parent=1 // pred_check_branch
      %52 = sbr.rel (0) target = $region13
    $region12: #{tpu_custom_call.1} parent=1 // pred_region
      _
    $region13: #{tpu_custom_call.1} parent=1 // pred_fallthru
      _
    // Predicated region
    $region14: #{tpu_custom_call.1} parent=1 // pred_check
      _
    $region15: #{tpu_custom_call.1} parent=1 // pred_check_branch
      %54 = sbr.rel (0) target = $region17
    $region16: #{tpu_custom_call.1} parent=1 // pred_region
      _
    $region17: #{tpu_custom_call.1} parent=1 // pred_fallthru
      _
    // Predicated region
    $region18: #{tpu_custom_call.1} parent=1 // pred_check
      _
    $region19: #{tpu_custom_call.1} parent=1 // pred_check_branch
      %56 = sbr.rel (0) target = $region21
    $region20: #{tpu_custom_call.1} parent=1 // pred_region
      _
    $region21: #{tpu_custom_call.1} parent=1 // pred_fallthru
      _
    // Predicated region
    $region22: #{tpu_custom_call.1} parent=1 // pred_check
      _
    $region23: #{tpu_custom_call.1} parent=1 // pred_check_branch
      %58 = sbr.rel (0) target = $region25
    $region24: #{tpu_custom_call.1} parent=1 // pred_region
      _
    $region25: #{tpu_custom_call.1} parent=1 // pred_fallthru
      _
    // Predicated region
    $region26: #{tpu_custom_call.1} parent=1 // pred_check
      _
    $region27: #{tpu_custom_call.1} parent=1 // pred_check_branch
      %60 = sbr.rel (0) target = $region29
    $region28: #{tpu_custom_call.1} parent=1 // pred_region
      _
    $region29: #{tpu_custom_call.1} parent=1 // pred_fallthru
      _
    // Predicated region
    $region30: #{tpu_custom_call.1} parent=1 // pred_check
      _
    $region31: #{tpu_custom_call.1} parent=1 // pred_check_branch
      %62 = sbr.rel (0) target = $region33
    $region32: #{tpu_custom_call.1} parent=1 // pred_region
      %s64 = ssub.s32 16, 16
      %65 = vsyncadd [#allocation7], %s64
      %s67 = sshll.u32 [#allocation8], 4
      %s68 = int_to_ptr.vmem [resolvable:$true] %s67
      %70 = dma.hbm_to_vmem [thread:$0]  %s7, 16, %s68, [#allocation7]
    $region33: #{tpu_custom_call.1} parent=1 // pred_fallthru
      _
    // Predicated region
    $region34: #{tpu_custom_call.1} parent=1 // pred_check
      _
    $region35: #{tpu_custom_call.1} parent=1 // pred_check_branch
      %72 = sbr.rel (0) target = $region37
    $region36: #{tpu_custom_call.1} parent=1 // pred_region
      %s74 = ssub.s32 256, 256
      %75 = vsyncadd [#allocation10], %s74
      %s76 = sshll.u32 [#allocation9], 4
      %s77 = int_to_ptr.vmem [resolvable:$true] %s76
      %82 = dma.hbm_to_vmem [thread:$0]  %s8, 256, %s77, [#allocation10], 64, 64, 4
    $region37: #{tpu_custom_call.1} parent=1 // pred_fallthru
      _
    // Predicated region
    $region38: #{tpu_custom_call.1} parent=1 // pred_check
      _
    $region39: #{tpu_custom_call.1} parent=1 // pred_check_branch
      %84 = sbr.rel (0) target = $region41
    $region40: #{tpu_custom_call.1} parent=1 // pred_region
      %s86 = ssub.s32 16, 16
      %87 = vsyncadd [#allocation10], %s86
      %s89 = sshll.u32 [#allocation11], 4
      %s90 = int_to_ptr.vmem [resolvable:$true] %s89
      %92 = dma.hbm_to_vmem [thread:$0]  %s9, 16, %s90, [#allocation10]
    $region41: #{tpu_custom_call.1} parent=1 // pred_fallthru
      _
    // Predicated region
    $region42: #{tpu_custom_call.1} parent=1 // pred_check
      _
    $region43: #{tpu_custom_call.1} parent=1 // pred_check_branch
      %94 = sbr.rel (0) target = $region45
    $region44: #{tpu_custom_call.1} parent=1 // pred_region
      _
    $region45: #{tpu_custom_call.1} parent=1 // pred_fallthru
      _
    // Predicated region
    $region46: #{tpu_custom_call.1} parent=1 // pred_check
      _
    $region47: #{tpu_custom_call.1} parent=1 // pred_check_branch
      %96 = sbr.rel (0) target = $region49
    $region48: #{tpu_custom_call.1} parent=1 // pred_region
      _
    $region49: #{tpu_custom_call.1} parent=1 // pred_fallthru
      _
    // Predicated region
    $region50: #{tpu_custom_call.1} parent=1 // pred_check
      _
    $region51: #{tpu_custom_call.1} parent=1 // pred_check_branch
      %98 = sbr.rel (0) target = $region53
    $region52: #{tpu_custom_call.1} parent=1 // pred_region
      _
    $region53: #{tpu_custom_call.1} parent=1 // pred_fallthru
      _
    // Predicated region
    $region54: #{tpu_custom_call.1} parent=1 // pred_check
      _
    $region55: #{tpu_custom_call.1} parent=1 // pred_check_branch
      %100 = sbr.rel (0) target = $region57
    $region56: #{tpu_custom_call.1} parent=1 // pred_region
      _
    $region57: #{tpu_custom_call.1} parent=1 // pred_fallthru
      _
    // Predicated region
    $region58: #{tpu_custom_call.1} parent=1 // pred_check
      _
    $region59: #{tpu_custom_call.1} parent=1 // pred_check_branch
      %102 = sbr.rel (0) target = $region61
    $region60: #{tpu_custom_call.1} parent=1 // pred_region
      _
    $region61: #{tpu_custom_call.1} parent=1 // pred_fallthru
      _
    // Predicated region
    $region62: #{tpu_custom_call.1} parent=1 // pred_check
      _
    $region63: #{tpu_custom_call.1} parent=1 // pred_check_branch
      %104 = sbr.rel (0) target = $region65
    $region64: #{tpu_custom_call.1} parent=1 // pred_region
      _
    $region65: #{tpu_custom_call.1} parent=1 // pred_fallthru
      _
    // Predicated region
    $region66: #{tpu_custom_call.1} parent=1 // pred_check
      _
    $region67: #{tpu_custom_call.1} parent=1 // pred_check_branch
      %106 = sbr.rel (0) target = $region69
    $region68: #{tpu_custom_call.1} parent=1 // pred_region
      _
    $region69: #{tpu_custom_call.1} parent=1 // pred_fallthru
      _
    // Predicated region
    $region70: #{tpu_custom_call.1} parent=1 // pred_check
      _
    $region71: #{tpu_custom_call.1} parent=1 // pred_check_branch
      %108 = sbr.rel (0) target = $region73
    $region72: #{tpu_custom_call.1} parent=1 // pred_region
      _
    $region73: #{tpu_custom_call.1} parent=1 // pred_fallthru
      _
    // Predicated region
    $region74: #{tpu_custom_call.1} parent=1 // pred_check
      _
    $region75: #{tpu_custom_call.1} parent=1 // pred_check_branch
      %110 = sbr.rel (0) target = $region77
    $region76: #{tpu_custom_call.1} parent=1 // pred_region
      %111 = dma.done [#allocation4], 128
    $region77: #{tpu_custom_call.1} parent=1 // pred_fallthru
      _
    // Predicated region
    $region78: #{tpu_custom_call.1} parent=1 // pred_check
      _
    $region79: #{tpu_custom_call.1} parent=1 // pred_check_branch
      %113 = sbr.rel (0) target = $region81
    $region80: #{tpu_custom_call.1} parent=1 // pred_region
      %114 = dma.done [#allocation7], 128
    $region81: #{tpu_custom_call.1} parent=1 // pred_fallthru
      _
    // Predicated region
    $region82: #{tpu_custom_call.1} parent=1 // pred_check
      _
    $region83: #{tpu_custom_call.1} parent=1 // pred_check_branch
      %116 = sbr.rel (0) target = $region85
    $region84: #{tpu_custom_call.1} parent=1 // pred_region
      %117 = dma.done [#allocation7], 16
    $region85: #{tpu_custom_call.1} parent=1 // pred_fallthru
      _
    // Predicated region
    $region86: #{tpu_custom_call.1} parent=1 // pred_check
      _
    $region87: #{tpu_custom_call.1} parent=1 // pred_check_branch
      %119 = sbr.rel (0) target = $region89
    $region88: #{tpu_custom_call.1} parent=1 // pred_region
      %120 = dma.done [#allocation10], 256
    $region89: #{tpu_custom_call.1} parent=1 // pred_fallthru
      _
    // Predicated region
    $region90: #{tpu_custom_call.1} parent=1 // pred_check
      _
    $region91: #{tpu_custom_call.1} parent=1 // pred_check_branch
      %122 = sbr.rel (0) target = $region93
    $region92: #{tpu_custom_call.1} parent=1 // pred_region
      %123 = dma.done [#allocation10], 16
    $region93: #{tpu_custom_call.1} parent=1 // pred_fallthru
      _
    %v125 = vld [vmem:[#allocation3] sm:$0x1]
    %v126 = vld [vmem:[#allocation3 + $0x1] sm:$0x1]
    %v127 = vld [vmem:[#allocation3 + $0x2] sm:$0x1]
    %v128 = vld [vmem:[#allocation3 + $0x3] sm:$0x1]
    %v129 = vld [vmem:[#allocation3 + $0x4] sm:$0x1]
    %v130 = vld [vmem:[#allocation3 + $0x5] sm:$0x1]
    %v131 = vld [vmem:[#allocation3 + $0x6] sm:$0x1]
    %v132 = vld [vmem:[#allocation3 + $0x7] sm:$0x1]
    %v133 = vld [vmem:[#allocation6] sm:$0x1]
    %v134 = vld [vmem:[#allocation6 + $0x1] sm:$0x1]
    %v135 = vld [vmem:[#allocation6 + $0x2] sm:$0x1]
    %v136 = vld [vmem:[#allocation6 + $0x3] sm:$0x1]
    %v137 = vld [vmem:[#allocation6 + $0x4] sm:$0x1]
    %v138 = vld [vmem:[#allocation6 + $0x5] sm:$0x1]
    %v139 = vld [vmem:[#allocation6 + $0x6] sm:$0x1]
    %v140 = vld [vmem:[#allocation6 + $0x7] sm:$0x1]
    %v141 = vld [vmem:[%s2] sm:$0xf]
    %v142 = vld [vmem:[%s2 + $0x4] sm:$0xf]
    %v143 = vld [vmem:[%s2 + $0x8] sm:$0xf]
    %v144 = vld [vmem:[%s2 + $0xc] sm:$0xf]
    %v145 = vld [vmem:[%s3] sm:$0x1]
    %v147 = vlaneseq
    %v148 = vshrl.u32 %v147, 7
    %v149 = vsub.s32 0, %v148
    %v150 = vrot.slane %v145, %v149
    %v160 = vcombine.low %v125, %v126
    %v161 = vcombine.low %v127, %v128
    %v162 = vcombine.low %v129, %v130
    %v163 = vcombine.low %v131, %v132
    %v165 = vunpack.c.l.s4 1966171168
    %v166 = vunpack.c.0.s8 %v165
    %v167 = vlaneseq
    %v168 = vshrl.u32 %v167, 7
    %v169 = vsub.s32 %v166, %v168
    %v170 = vrot.slane %v160, %v169
    %v172 = vunpack.c.l.s4 1966171168
    %v173 = vunpack.c.0.s8 %v172
    %v174 = vlaneseq
    %v175 = vshrl.u32 %v174, 7
    %v176 = vsub.s32 %v173, %v175
    %v177 = vrot.slane %v161, %v176
    %v179 = vunpack.c.l.s4 1966171168
    %v180 = vunpack.c.0.s8 %v179
    %v181 = vlaneseq
    %v182 = vshrl.u32 %v181, 7
    %v183 = vsub.s32 %v180, %v182
    %v184 = vrot.slane %v162, %v183
    %v186 = vunpack.c.l.s4 1966171168
    %v187 = vunpack.c.0.s8 %v186
    %v188 = vlaneseq
    %v189 = vshrl.u32 %v188, 7
    %v190 = vsub.s32 %v187, %v189
    %v191 = vrot.slane %v163, %v190
    %v192 = vcombine.low %v170, %v177
    %v193 = vcombine.low %v184, %v191
    %v195 = vunpack.c.l.s4 1966171168
    %v196 = vunpack.c.0.s8 %v195
    %v197 = vlaneseq
    %v198 = vshrl.u32 %v197, 7
    %v199 = vsub.s32 %v196, %v198
    %v200 = vrot.slane %v192, %v199
    %v202 = vunpack.c.l.s4 1966171168
    %v203 = vunpack.c.0.s8 %v202
    %v204 = vlaneseq
    %v205 = vshrl.u32 %v204, 7
    %v206 = vsub.s32 %v203, %v205
    %v207 = vrot.slane %v193, %v206
    %v208 = vcombine.low %v200, %v207
    %v213 = vunpack.c.l.b16 %v141
    %v214 = vunpack.c.l.b16 %v142
    %v215 = vunpack.c.l.b16 %v143
    %v216 = vunpack.c.l.b16 %v144
    %v217 = vpack.c.b16 %v214, %v213
    %v218 = vpack.c.b16 %v216, %v215
    %vm221 = vcmask 261120
    %v223 = vsel %vm221, %v208, 0
    %225 = vmatprep.subr.bf16.mxu0 0
    %226 = vmatpush1.bf16.msra.mxu0 %v217
    %227 = vmatprep.subr.bf16.mxu0 0
    %228 = vmatpush1.bf16.msra.mxu0 %v218
    %229 = vmatprep.subr.bf16.mxu0 0
    %230 = vmatpush1.bf16.msra.mxu0 0
    %231 = vmatprep.subr.bf16.mxu0 0
    %232 = vmatpush1.bf16.msra.mxu0 0
    %233 = vmatprep.subr.bf16.mxu0 0
    %234 = vmatpush1.bf16.msra.mxu0 0
    %235 = vmatprep.subr.bf16.mxu0 0
    %236 = vmatpush1.bf16.msra.mxu0 0
    %237 = vmatprep.subr.bf16.mxu0 0
    %238 = vmatpush1.bf16.msra.mxu0 0
    %239 = vmatprep.subr.bf16.mxu0 0
    %240 = vmatpush1.bf16.msra.mxu0 0
    %241 = vmatprep.subr.bf16.mxu0 0
    %242 = vmatpush1.bf16.msra.mxu0 0
    %243 = vmatprep.subr.bf16.mxu0 0
    %244 = vmatpush1.bf16.msra.mxu0 0
    %245 = vmatprep.subr.bf16.mxu0 0
    %246 = vmatpush1.bf16.msra.mxu0 0
    %247 = vmatprep.subr.bf16.mxu0 0
    %248 = vmatpush1.bf16.msra.mxu0 0
    %249 = vmatprep.subr.bf16.mxu0 0
    %250 = vmatpush1.bf16.msra.mxu0 0
    %251 = vmatprep.subr.bf16.mxu0 0
    %252 = vmatpush1.bf16.msra.mxu0 0
    %253 = vmatprep.subr.bf16.mxu0 0
    %254 = vmatpush1.bf16.msra.mxu0 0
    %255 = vmatprep.subr.bf16.mxu0 0
    %256 = vmatpush1.bf16.msra.mxu0 0
    %257 = vmatprep.mubr.bf16.mxu0 0
    %258 = vmatmul.mubr.bf16.gmra.mrb[0].mxu0 %v223
    %v259 = vpop.f32.mrb[0].mxu0
    %v260 = vadd.f32 %v150, %v259
    %v261 = vpop.f32.mrb[0].mxu0
    %v262 = vpop.f32.mrb[0].mxu0
    %v263 = vadd.f32 %v150, %v262
    %v264 = vpop.f32.mrb[0].mxu0
    %265 = vdwg.mxu0
    %v266 = vld [vmem:[%s4] sm:$0xf]
    %v267 = vld [vmem:[%s4 + $0x4] sm:$0xf]
    %v268 = vld [vmem:[%s4 + $0x8] sm:$0xf]
    %v269 = vld [vmem:[%s4 + $0xc] sm:$0xf]
    %v270 = vld [vmem:[%s5] sm:$0x1]
    %v272 = vlaneseq
    %v273 = vshrl.u32 %v272, 7
    %v274 = vsub.s32 0, %v273
    %v275 = vrot.slane %v270, %v274
    %v281 = vunpack.c.l.b16 %v266
    %v282 = vunpack.c.l.b16 %v267
    %v283 = vunpack.c.l.b16 %v268
    %v284 = vunpack.c.l.b16 %v269
    %v285 = vpack.c.b16 %v282, %v281
    %v286 = vpack.c.b16 %v284, %v283
    %289 = vmatprep.subr.bf16.mxu0 0
    %290 = vmatpush1.bf16.msra.mxu0 %v285
    %291 = vmatprep.subr.bf16.mxu0 0
    %292 = vmatpush1.bf16.msra.mxu0 %v286
    %293 = vmatprep.subr.bf16.mxu0 0
    %294 = vmatpush1.bf16.msra.mxu0 0
    %295 = vmatprep.subr.bf16.mxu0 0
    %296 = vmatpush1.bf16.msra.mxu0 0
    %297 = vmatprep.subr.bf16.mxu0 0
    %298 = vmatpush1.bf16.msra.mxu0 0
    %299 = vmatprep.subr.bf16.mxu0 0
    %300 = vmatpush1.bf16.msra.mxu0 0
    %301 = vmatprep.subr.bf16.mxu0 0
    %302 = vmatpush1.bf16.msra.mxu0 0
    %303 = vmatprep.subr.bf16.mxu0 0
    %304 = vmatpush1.bf16.msra.mxu0 0
    %305 = vmatprep.subr.bf16.mxu0 0
    %306 = vmatpush1.bf16.msra.mxu0 0
    %307 = vmatprep.subr.bf16.mxu0 0
    %308 = vmatpush1.bf16.msra.mxu0 0
    %309 = vmatprep.subr.bf16.mxu0 0
    %310 = vmatpush1.bf16.msra.mxu0 0
    %311 = vmatprep.subr.bf16.mxu0 0
    %312 = vmatpush1.bf16.msra.mxu0 0
    %313 = vmatprep.subr.bf16.mxu0 0
    %314 = vmatpush1.bf16.msra.mxu0 0
    %315 = vmatprep.subr.bf16.mxu0 0
    %316 = vmatpush1.bf16.msra.mxu0 0
    %317 = vmatprep.subr.bf16.mxu0 0
    %318 = vmatpush1.bf16.msra.mxu0 0
    %319 = vmatprep.subr.bf16.mxu0 0
    %320 = vmatpush1.bf16.msra.mxu0 0
    %321 = vmatprep.mubr.bf16.mxu0 0
    %322 = vmatmul.mubr.bf16.gmra.mrb[0].mxu0 %v223
    %v323 = vpop.f32.mrb[0].mxu0
    %v324 = vadd.f32 %v275, %v323
    %v325 = vpop.f32.mrb[0].mxu0
    %v326 = vpop.f32.mrb[0].mxu0
    %v327 = vadd.f32 %v275, %v326
    %v328 = vpop.f32.mrb[0].mxu0
    %329 = vdwg.mxu0
    %v330 = vld [vmem:[%s6] sm:$0xf]
    %v331 = vld [vmem:[%s6 + $0x4] sm:$0xf]
    %v332 = vld [vmem:[%s6 + $0x8] sm:$0xf]
    %v333 = vld [vmem:[%s6 + $0xc] sm:$0xf]
    %v334 = vld [vmem:[#allocation8] sm:$0x1]
    %v336 = vlaneseq
    %v337 = vshrl.u32 %v336, 7
    %v338 = vsub.s32 0, %v337
    %v339 = vrot.slane %v334, %v338
    %v349 = vcombine.low %v133, %v134
    %v350 = vcombine.low %v135, %v136
    %v351 = vcombine.low %v137, %v138
    %v352 = vcombine.low %v139, %v140
    %v354 = vunpack.c.l.s4 1966171168
    %v355 = vunpack.c.0.s8 %v354
    %v356 = vlaneseq
    %v357 = vshrl.u32 %v356, 7
    %v358 = vsub.s32 %v355, %v357
    %v359 = vrot.slane %v349, %v358
    %v361 = vunpack.c.l.s4 1966171168
    %v362 = vunpack.c.0.s8 %v361
    %v363 = vlaneseq
    %v364 = vshrl.u32 %v363, 7
    %v365 = vsub.s32 %v362, %v364
    %v366 = vrot.slane %v350, %v365
    %v368 = vunpack.c.l.s4 1966171168
    %v369 = vunpack.c.0.s8 %v368
    %v370 = vlaneseq
    %v371 = vshrl.u32 %v370, 7
    %v372 = vsub.s32 %v369, %v371
    %v373 = vrot.slane %v351, %v372
    %v375 = vunpack.c.l.s4 1966171168
    %v376 = vunpack.c.0.s8 %v375
    %v377 = vlaneseq
    %v378 = vshrl.u32 %v377, 7
    %v379 = vsub.s32 %v376, %v378
    %v380 = vrot.slane %v352, %v379
    %v381 = vcombine.low %v359, %v366
    %v382 = vcombine.low %v373, %v380
    %v384 = vunpack.c.l.s4 1966171168
    %v385 = vunpack.c.0.s8 %v384
    %v386 = vlaneseq
    %v387 = vshrl.u32 %v386, 7
    %v388 = vsub.s32 %v385, %v387
    %v389 = vrot.slane %v381, %v388
    %v391 = vunpack.c.l.s4 1966171168
    %v392 = vunpack.c.0.s8 %v391
    %v393 = vlaneseq
    %v394 = vshrl.u32 %v393, 7
    %v395 = vsub.s32 %v392, %v394
    %v396 = vrot.slane %v382, %v395
    %v397 = vcombine.low %v389, %v396
    %v402 = vunpack.c.l.b16 %v330
    %v403 = vunpack.c.l.b16 %v331
    %v404 = vunpack.c.l.b16 %v332
    %v405 = vunpack.c.l.b16 %v333
    %v406 = vpack.c.b16 %v403, %v402
    %v407 = vpack.c.b16 %v405, %v404
    %v411 = vsel %vm221, %v397, 0
    %413 = vmatprep.subr.bf16.mxu0 0
    %414 = vmatpush1.bf16.msra.mxu0 %v406
    %415 = vmatprep.subr.bf16.mxu0 0
    %416 = vmatpush1.bf16.msra.mxu0 %v407
    %417 = vmatprep.subr.bf16.mxu0 0
    %418 = vmatpush1.bf16.msra.mxu0 0
    %419 = vmatprep.subr.bf16.mxu0 0
    %420 = vmatpush1.bf16.msra.mxu0 0
    %421 = vmatprep.subr.bf16.mxu0 0
    %422 = vmatpush1.bf16.msra.mxu0 0
    %423 = vmatprep.subr.bf16.mxu0 0
    %424 = vmatpush1.bf16.msra.mxu0 0
    %425 = vmatprep.subr.bf16.mxu0 0
    %426 = vmatpush1.bf16.msra.mxu0 0
    %427 = vmatprep.subr.bf16.mxu0 0
    %428 = vmatpush1.bf16.msra.mxu0 0
    %429 = vmatprep.subr.bf16.mxu0 0
    %430 = vmatpush1.bf16.msra.mxu0 0
    %431 = vmatprep.subr.bf16.mxu0 0
    %432 = vmatpush1.bf16.msra.mxu0 0
    %433 = vmatprep.subr.bf16.mxu0 0
    %434 = vmatpush1.bf16.msra.mxu0 0
    %435 = vmatprep.subr.bf16.mxu0 0
    %436 = vmatpush1.bf16.msra.mxu0 0
    %437 = vmatprep.subr.bf16.mxu0 0
    %438 = vmatpush1.bf16.msra.mxu0 0
    %439 = vmatprep.subr.bf16.mxu0 0
    %440 = vmatpush1.bf16.msra.mxu0 0
    %441 = vmatprep.subr.bf16.mxu0 0
    %442 = vmatpush1.bf16.msra.mxu0 0
    %443 = vmatprep.subr.bf16.mxu0 0
    %444 = vmatpush1.bf16.msra.mxu0 0
    %445 = vmatprep.mubr.bf16.mxu0 0
    %446 = vmatmul.mubr.bf16.gmra.mrb[0].mxu0 %v411
    %v447 = vpop.f32.mrb[0].mxu0
    %v448 = vadd.f32 %v339, %v447
    %v449 = vpop.f32.mrb[0].mxu0
    %v450 = vpop.f32.mrb[0].mxu0
    %v451 = vadd.f32 %v339, %v450
    %v452 = vpop.f32.mrb[0].mxu0
    %453 = vdwg.mxu0
    %v454 = vpack.c.bf16 %v263, %v260
    %v456 = vcombine.high %v454, %v454
    %v458 = vunpack.c.l.s4 1966171168
    %v459 = vunpack.c.0.s8 %v458
    %v460 = vlaneseq
    %v461 = vshrl.u32 %v460, 7
    %v462 = vsub.s32 %v459, %v461
    %v463 = vrot.slane %v454, %v462
    %v465 = vunpack.c.l.s4 1966171168
    %v466 = vunpack.c.0.s8 %v465
    %v467 = vlaneseq
    %v468 = vshrl.u32 %v467, 7
    %v469 = vsub.s32 %v466, %v468
    %v470 = vrot.slane %v456, %v469
    %v471 = vcombine.high %v463, %v463
    %v472 = vcombine.high %v470, %v470
    %v474 = vunpack.c.l.s4 1966171168
    %v475 = vunpack.c.0.s8 %v474
    %v476 = vlaneseq
    %v477 = vshrl.u32 %v476, 7
    %v478 = vsub.s32 %v475, %v477
    %v479 = vrot.slane %v463, %v478
    %v481 = vunpack.c.l.s4 1966171168
    %v482 = vunpack.c.0.s8 %v481
    %v483 = vlaneseq
    %v484 = vshrl.u32 %v483, 7
    %v485 = vsub.s32 %v482, %v484
    %v486 = vrot.slane %v470, %v485
    %v488 = vunpack.c.l.s4 1966171168
    %v489 = vunpack.c.0.s8 %v488
    %v490 = vlaneseq
    %v491 = vshrl.u32 %v490, 7
    %v492 = vsub.s32 %v489, %v491
    %v493 = vrot.slane %v471, %v492
    %v495 = vunpack.c.l.s4 1966171168
    %v496 = vunpack.c.0.s8 %v495
    %v497 = vlaneseq
    %v498 = vshrl.u32 %v497, 7
    %v499 = vsub.s32 %v496, %v498
    %v500 = vrot.slane %v472, %v499
    %v501 = vcombine.high %v479, %v479
    %v502 = vcombine.high %v486, %v486
    %v503 = vcombine.high %v493, %v493
    %v504 = vcombine.high %v500, %v500
    %v505 = vpack.c.bf16 %v327, %v324
    %v507 = vcombine.high %v505, %v505
    %v509 = vunpack.c.l.s4 1966171168
    %v510 = vunpack.c.0.s8 %v509
    %v511 = vlaneseq
    %v512 = vshrl.u32 %v511, 7
    %v513 = vsub.s32 %v510, %v512
    %v514 = vrot.slane %v505, %v513
    %v516 = vunpack.c.l.s4 1966171168
    %v517 = vunpack.c.0.s8 %v516
    %v518 = vlaneseq
    %v519 = vshrl.u32 %v518, 7
    %v520 = vsub.s32 %v517, %v519
    %v521 = vrot.slane %v507, %v520
    %v522 = vcombine.high %v514, %v514
    %v523 = vcombine.high %v521, %v521
    %v525 = vunpack.c.l.s4 1966171168
    %v526 = vunpack.c.0.s8 %v525
    %v527 = vlaneseq
    %v528 = vshrl.u32 %v527, 7
    %v529 = vsub.s32 %v526, %v528
    %v530 = vrot.slane %v514, %v529
    %v532 = vunpack.c.l.s4 1966171168
    %v533 = vunpack.c.0.s8 %v532
    %v534 = vlaneseq
    %v535 = vshrl.u32 %v534, 7
    %v536 = vsub.s32 %v533, %v535
    %v537 = vrot.slane %v521, %v536
    %v539 = vunpack.c.l.s4 1966171168
    %v540 = vunpack.c.0.s8 %v539
    %v541 = vlaneseq
    %v542 = vshrl.u32 %v541, 7
    %v543 = vsub.s32 %v540, %v542
    %v544 = vrot.slane %v522, %v543
    %v546 = vunpack.c.l.s4 1966171168
    %v547 = vunpack.c.0.s8 %v546
    %v548 = vlaneseq
    %v549 = vshrl.u32 %v548, 7
    %v550 = vsub.s32 %v547, %v549
    %v551 = vrot.slane %v523, %v550
    %v552 = vcombine.high %v530, %v530
    %v553 = vcombine.high %v537, %v537
    %v554 = vcombine.high %v544, %v544
    %v555 = vcombine.high %v551, %v551
    %v556 = vpack.c.bf16 %v451, %v448
    %v558 = vcombine.high %v556, %v556
    %v560 = vunpack.c.l.s4 1966171168
    %v561 = vunpack.c.0.s8 %v560
    %v562 = vlaneseq
    %v563 = vshrl.u32 %v562, 7
    %v564 = vsub.s32 %v561, %v563
    %v565 = vrot.slane %v556, %v564
    %v567 = vunpack.c.l.s4 1966171168
    %v568 = vunpack.c.0.s8 %v567
    %v569 = vlaneseq
    %v570 = vshrl.u32 %v569, 7
    %v571 = vsub.s32 %v568, %v570
    %v572 = vrot.slane %v558, %v571
    %v573 = vcombine.high %v565, %v565
    %v574 = vcombine.high %v572, %v572
    %v576 = vunpack.c.l.s4 1966171168
    %v577 = vunpack.c.0.s8 %v576
    %v578 = vlaneseq
    %v579 = vshrl.u32 %v578, 7
    %v580 = vsub.s32 %v577, %v579
    %v581 = vrot.slane %v565, %v580
    %v583 = vunpack.c.l.s4 1966171168
    %v584 = vunpack.c.0.s8 %v583
    %v585 = vlaneseq
    %v586 = vshrl.u32 %v585, 7
    %v587 = vsub.s32 %v584, %v586
    %v588 = vrot.slane %v572, %v587
    %v590 = vunpack.c.l.s4 1966171168
    %v591 = vunpack.c.0.s8 %v590
    %v592 = vlaneseq
    %v593 = vshrl.u32 %v592, 7
    %v594 = vsub.s32 %v591, %v593
    %v595 = vrot.slane %v573, %v594
    %v597 = vunpack.c.l.s4 1966171168
    %v598 = vunpack.c.0.s8 %v597
    %v599 = vlaneseq
    %v600 = vshrl.u32 %v599, 7
    %v601 = vsub.s32 %v598, %v600
    %v602 = vrot.slane %v574, %v601
    %v603 = vcombine.high %v581, %v581
    %v604 = vcombine.high %v588, %v588
    %v605 = vcombine.high %v595, %v595
    %v606 = vcombine.high %v602, %v602
    %v608 = vunpack.c.l.s4 1966171168
    %v609 = vunpack.c.0.s8 %v608
    %v610 = vlaneseq
    %v611 = vshrl.u32 %v610, 7
    %v612 = vsub.s32 %v609, %v611
    %v613 = vrot.slane %v479, %v612
    %v615 = vunpack.c.l.s4 1966171168
    %v616 = vunpack.c.0.s8 %v615
    %v617 = vlaneseq
    %v618 = vshrl.u32 %v617, 7
    %v619 = vsub.s32 %v616, %v618
    %v620 = vrot.slane %v613, %v619
    %v622 = vunpack.c.l.s4 1966171168
    %v623 = vunpack.c.0.s8 %v622
    %v624 = vlaneseq
    %v625 = vshrl.u32 %v624, 7
    %v626 = vsub.s32 %v623, %v625
    %v627 = vrot.slane %v493, %v626
    %v629 = vunpack.c.l.s4 1966171168
    %v630 = vunpack.c.0.s8 %v629
    %v631 = vlaneseq
    %v632 = vshrl.u32 %v631, 7
    %v633 = vsub.s32 %v630, %v632
    %v634 = vrot.slane %v627, %v633
    %v636 = vunpack.c.l.s4 1966171168
    %v637 = vunpack.c.0.s8 %v636
    %v638 = vlaneseq
    %v639 = vshrl.u32 %v638, 7
    %v640 = vsub.s32 %v637, %v639
    %v641 = vrot.slane %v501, %v640
    %v643 = vunpack.c.l.s4 1966171168
    %v644 = vunpack.c.0.s8 %v643
    %v645 = vlaneseq
    %v646 = vshrl.u32 %v645, 7
    %v647 = vsub.s32 %v644, %v646
    %v648 = vrot.slane %v641, %v647
    %v650 = vunpack.c.l.s4 1966171168
    %v651 = vunpack.c.0.s8 %v650
    %v652 = vlaneseq
    %v653 = vshrl.u32 %v652, 7
    %v654 = vsub.s32 %v651, %v653
    %v655 = vrot.slane %v503, %v654
    %v657 = vunpack.c.l.s4 1966171168
    %v658 = vunpack.c.0.s8 %v657
    %v659 = vlaneseq
    %v660 = vshrl.u32 %v659, 7
    %v661 = vsub.s32 %v658, %v660
    %v662 = vrot.slane %v655, %v661
    %v664 = vunpack.c.l.s4 1966171168
    %v665 = vunpack.c.0.s8 %v664
    %v666 = vlaneseq
    %v667 = vshrl.u32 %v666, 7
    %v668 = vsub.s32 %v665, %v667
    %v669 = vrot.slane %v486, %v668
    %v671 = vunpack.c.l.s4 1966171168
    %v672 = vunpack.c.0.s8 %v671
    %v673 = vlaneseq
    %v674 = vshrl.u32 %v673, 7
    %v675 = vsub.s32 %v672, %v674
    %v676 = vrot.slane %v669, %v675
    %v678 = vunpack.c.l.s4 1966171168
    %v679 = vunpack.c.0.s8 %v678
    %v680 = vlaneseq
    %v681 = vshrl.u32 %v680, 7
    %v682 = vsub.s32 %v679, %v681
    %v683 = vrot.slane %v500, %v682
    %v685 = vunpack.c.l.s4 1966171168
    %v686 = vunpack.c.0.s8 %v685
    %v687 = vlaneseq
    %v688 = vshrl.u32 %v687, 7
    %v689 = vsub.s32 %v686, %v688
    %v690 = vrot.slane %v683, %v689
    %v692 = vunpack.c.l.s4 1966171168
    %v693 = vunpack.c.0.s8 %v692
    %v694 = vlaneseq
    %v695 = vshrl.u32 %v694, 7
    %v696 = vsub.s32 %v693, %v695
    %v697 = vrot.slane %v502, %v696
    %v699 = vunpack.c.l.s4 1966171168
    %v700 = vunpack.c.0.s8 %v699
    %v701 = vlaneseq
    %v702 = vshrl.u32 %v701, 7
    %v703 = vsub.s32 %v700, %v702
    %v704 = vrot.slane %v697, %v703
    %v706 = vunpack.c.l.s4 1966171168
    %v707 = vunpack.c.0.s8 %v706
    %v708 = vlaneseq
    %v709 = vshrl.u32 %v708, 7
    %v710 = vsub.s32 %v707, %v709
    %v711 = vrot.slane %v504, %v710
    %v713 = vunpack.c.l.s4 1966171168
    %v714 = vunpack.c.0.s8 %v713
    %v715 = vlaneseq
    %v716 = vshrl.u32 %v715, 7
    %v717 = vsub.s32 %v714, %v716
    %v718 = vrot.slane %v711, %v717
    %v719 = vunpack.c.l.b16 %v620
    %v720 = vunpack.c.l.b16 %v634
    %v721 = vunpack.c.l.b16 %v648
    %v722 = vunpack.c.l.b16 %v662
    %v723 = vunpack.c.l.b16 %v676
    %v724 = vunpack.c.l.b16 %v690
    %v725 = vunpack.c.l.b16 %v704
    %v726 = vunpack.c.l.b16 %v718
    %v727 = vrot.slane %v720, 7
    %vm728 = vcmask 1041409
    %v729 = vsel %vm728, %v727, %v719
    %v730 = vrot.slane %v721, 6
    %vm731 = vcmask 1042434
    %v732 = vsel %vm731, %v730, %v729
    %v733 = vrot.slane %v722, 5
    %vm734 = vcmask 1043459
    %v735 = vsel %vm734, %v733, %v732
    %v736 = vrot.slane %v723, 4
    %vm737 = vcmask 1044484
    %v738 = vsel %vm737, %v736, %v735
    %v739 = vrot.slane %v724, 3
    %vm740 = vcmask 1045509
    %v741 = vsel %vm740, %v739, %v738
    %v742 = vrot.slane %v725, 2
    %vm743 = vcmask 1046534
    %v744 = vsel %vm743, %v742, %v741
    %v745 = vrot.slane %v726, 1
    %vm746 = vcmask 1047559
    %v747 = vsel %vm746, %v745, %v744
    %v748 = vpack.c.b16 %v747, %v747
    %v750 = vunpack.c.l.s4 1966171168
    %v751 = vunpack.c.0.s8 %v750
    %v752 = vlaneseq
    %v753 = vshrl.u32 %v752, 7
    %v754 = vsub.s32 %v751, %v753
    %v755 = vrot.slane %v530, %v754
    %v757 = vunpack.c.l.s4 1966171168
    %v758 = vunpack.c.0.s8 %v757
    %v759 = vlaneseq
    %v760 = vshrl.u32 %v759, 7
    %v761 = vsub.s32 %v758, %v760
    %v762 = vrot.slane %v755, %v761
    %v764 = vunpack.c.l.s4 1966171168
    %v765 = vunpack.c.0.s8 %v764
    %v766 = vlaneseq
    %v767 = vshrl.u32 %v766, 7
    %v768 = vsub.s32 %v765, %v767
    %v769 = vrot.slane %v544, %v768
    %v771 = vunpack.c.l.s4 1966171168
    %v772 = vunpack.c.0.s8 %v771
    %v773 = vlaneseq
    %v774 = vshrl.u32 %v773, 7
    %v775 = vsub.s32 %v772, %v774
    %v776 = vrot.slane %v769, %v775
    %v778 = vunpack.c.l.s4 1966171168
    %v779 = vunpack.c.0.s8 %v778
    %v780 = vlaneseq
    %v781 = vshrl.u32 %v780, 7
    %v782 = vsub.s32 %v779, %v781
    %v783 = vrot.slane %v552, %v782
    %v785 = vunpack.c.l.s4 1966171168
    %v786 = vunpack.c.0.s8 %v785
    %v787 = vlaneseq
    %v788 = vshrl.u32 %v787, 7
    %v789 = vsub.s32 %v786, %v788
    %v790 = vrot.slane %v783, %v789
    %v792 = vunpack.c.l.s4 1966171168
    %v793 = vunpack.c.0.s8 %v792
    %v794 = vlaneseq
    %v795 = vshrl.u32 %v794, 7
    %v796 = vsub.s32 %v793, %v795
    %v797 = vrot.slane %v554, %v796
    %v799 = vunpack.c.l.s4 1966171168
    %v800 = vunpack.c.0.s8 %v799
    %v801 = vlaneseq
    %v802 = vshrl.u32 %v801, 7
    %v803 = vsub.s32 %v800, %v802
    %v804 = vrot.slane %v797, %v803
    %v806 = vunpack.c.l.s4 1966171168
    %v807 = vunpack.c.0.s8 %v806
    %v808 = vlaneseq
    %v809 = vshrl.u32 %v808, 7
    %v810 = vsub.s32 %v807, %v809
    %v811 = vrot.slane %v537, %v810
    %v813 = vunpack.c.l.s4 1966171168
    %v814 = vunpack.c.0.s8 %v813
    %v815 = vlaneseq
    %v816 = vshrl.u32 %v815, 7
    %v817 = vsub.s32 %v814, %v816
    %v818 = vrot.slane %v811, %v817
    %v820 = vunpack.c.l.s4 1966171168
    %v821 = vunpack.c.0.s8 %v820
    %v822 = vlaneseq
    %v823 = vshrl.u32 %v822, 7
    %v824 = vsub.s32 %v821, %v823
    %v825 = vrot.slane %v551, %v824
    %v827 = vunpack.c.l.s4 1966171168
    %v828 = vunpack.c.0.s8 %v827
    %v829 = vlaneseq
    %v830 = vshrl.u32 %v829, 7
    %v831 = vsub.s32 %v828, %v830
    %v832 = vrot.slane %v825, %v831
    %v834 = vunpack.c.l.s4 1966171168
    %v835 = vunpack.c.0.s8 %v834
    %v836 = vlaneseq
    %v837 = vshrl.u32 %v836, 7
    %v838 = vsub.s32 %v835, %v837
    %v839 = vrot.slane %v553, %v838
    %v841 = vunpack.c.l.s4 1966171168
    %v842 = vunpack.c.0.s8 %v841
    %v843 = vlaneseq
    %v844 = vshrl.u32 %v843, 7
    %v845 = vsub.s32 %v842, %v844
    %v846 = vrot.slane %v839, %v845
    %v848 = vunpack.c.l.s4 1966171168
    %v849 = vunpack.c.0.s8 %v848
    %v850 = vlaneseq
    %v851 = vshrl.u32 %v850, 7
    %v852 = vsub.s32 %v849, %v851
    %v853 = vrot.slane %v555, %v852
    %v855 = vunpack.c.l.s4 1966171168
    %v856 = vunpack.c.0.s8 %v855
    %v857 = vlaneseq
    %v858 = vshrl.u32 %v857, 7
    %v859 = vsub.s32 %v856, %v858
    %v860 = vrot.slane %v853, %v859
    %v861 = vunpack.c.l.b16 %v762
    %v862 = vunpack.c.l.b16 %v776
    %v863 = vunpack.c.l.b16 %v790
    %v864 = vunpack.c.l.b16 %v804
    %v865 = vunpack.c.l.b16 %v818
    %v866 = vunpack.c.l.b16 %v832
    %v867 = vunpack.c.l.b16 %v846
    %v868 = vunpack.c.l.b16 %v860
    %v869 = vrot.slane %v862, 7
    %v870 = vsel %vm728, %v869, %v861
    %v871 = vrot.slane %v863, 6
    %v872 = vsel %vm731, %v871, %v870
    %v873 = vrot.slane %v864, 5
    %v874 = vsel %vm734, %v873, %v872
    %v875 = vrot.slane %v865, 4
    %v876 = vsel %vm737, %v875, %v874
    %v877 = vrot.slane %v866, 3
    %v878 = vsel %vm740, %v877, %v876
    %v879 = vrot.slane %v867, 2
    %v880 = vsel %vm743, %v879, %v878
    %v881 = vrot.slane %v868, 1
    %v882 = vsel %vm746, %v881, %v880
    %v883 = vpack.c.b16 %v882, %v882
    %vm884 = vcmask 64512
    %v886 = vsel %vm884, %v748, 0
    %v889 = vsel %vm884, %v883, 0
    %891 = vmatprep.subr.bf16.mxu0 0
    %892 = vmatpush1.bf16.xpose.msra.mxu0 %v889
    %893 = vmatprep.subr.bf16.mxu0 0
    %894 = vmatpush1.bf16.xpose.msra.mxu0 0
    %895 = vmatprep.subr.bf16.mxu0 0
    %896 = vmatpush1.bf16.xpose.msra.mxu0 0
    %897 = vmatprep.subr.bf16.mxu0 0
    %898 = vmatpush1.bf16.xpose.msra.mxu0 0
    %899 = vmatprep.subr.bf16.mxu0 0
    %900 = vmatpush1.bf16.xpose.msra.mxu0 0
    %901 = vmatprep.subr.bf16.mxu0 0
    %902 = vmatpush1.bf16.xpose.msra.mxu0 0
    %903 = vmatprep.subr.bf16.mxu0 0
    %904 = vmatpush1.bf16.xpose.msra.mxu0 0
    %905 = vmatprep.subr.bf16.mxu0 0
    %906 = vmatpush1.bf16.xpose.msra.mxu0 0
    %907 = vmatprep.subr.bf16.mxu0 0
    %908 = vmatpush1.bf16.xpose.msra.mxu0 0
    %909 = vmatprep.subr.bf16.mxu0 0
    %910 = vmatpush1.bf16.xpose.msra.mxu0 0
    %911 = vmatprep.subr.bf16.mxu0 0
    %912 = vmatpush1.bf16.xpose.msra.mxu0 0
    %913 = vmatprep.subr.bf16.mxu0 0
    %914 = vmatpush1.bf16.xpose.msra.mxu0 0
    %915 = vmatprep.subr.bf16.mxu0 0
    %916 = vmatpush1.bf16.xpose.msra.mxu0 0
    %917 = vmatprep.subr.bf16.mxu0 0
    %918 = vmatpush1.bf16.xpose.msra.mxu0 0
    %919 = vmatprep.subr.bf16.mxu0 0
    %920 = vmatpush1.bf16.xpose.msra.mxu0 0
    %921 = vmatprep.subr.bf16.mxu0 0
    %922 = vmatpush1.bf16.xpose.msra.mxu0 0
    %923 = vmatprep.mubr.bf16.mxu0 0
    %924 = vmatmul.mubr.bf16.gmra.mrb[0].mxu0 %v886
    %v925 = vpop.f32.mrb[0].mxu0
    %v926 = vadd.f32 0.0, %v925
    %v927 = vpop.f32.mrb[0].mxu0
    %v928 = vpop.f32.mrb[0].mxu0
    %v929 = vpop.f32.mrb[0].mxu0
    %930 = vdwg.mxu0
    %v931 = vsel %vm884, %v926, -inf
    %932 = vmax.xlane.f32.xlu0 %v931
    %v933 = vpop.xlane.xlu0 %932
    %v934 = vsub.f32 %v926, %v933
    %v935 = vmul.f32 %v934, 1.442695
    %v936 = vpow.pop %v935
    %v937 = vsel %vm884, %v936, 0.0
    %938 = vadd.xlane.f32.xlu0 %v937
    %v939 = vpop.xlane.xlu0 %938
    %v940 = vrcp.pop %v939
    %v941 = vmul.f32 %v936, %v940
    %v942 = vpack.c.bf16 %v941, %v941
    %v944 = vunpack.c.l.s4 1966171168
    %v945 = vunpack.c.0.s8 %v944
    %v946 = vlaneseq
    %v947 = vshrl.u32 %v946, 7
    %v948 = vsub.s32 %v945, %v947
    %v949 = vrot.slane %v581, %v948
    %v951 = vunpack.c.l.s4 1966171168
    %v952 = vunpack.c.0.s8 %v951
    %v953 = vlaneseq
    %v954 = vshrl.u32 %v953, 7
    %v955 = vsub.s32 %v952, %v954
    %v956 = vrot.slane %v949, %v955
    %v958 = vunpack.c.l.s4 1966171168
    %v959 = vunpack.c.0.s8 %v958
    %v960 = vlaneseq
    %v961 = vshrl.u32 %v960, 7
    %v962 = vsub.s32 %v959, %v961
    %v963 = vrot.slane %v595, %v962
    %v965 = vunpack.c.l.s4 1966171168
    %v966 = vunpack.c.0.s8 %v965
    %v967 = vlaneseq
    %v968 = vshrl.u32 %v967, 7
    %v969 = vsub.s32 %v966, %v968
    %v970 = vrot.slane %v963, %v969
    %v972 = vunpack.c.l.s4 1966171168
    %v973 = vunpack.c.0.s8 %v972
    %v974 = vlaneseq
    %v975 = vshrl.u32 %v974, 7
    %v976 = vsub.s32 %v973, %v975
    %v977 = vrot.slane %v603, %v976
    %v979 = vunpack.c.l.s4 1966171168
    %v980 = vunpack.c.0.s8 %v979
    %v981 = vlaneseq
    %v982 = vshrl.u32 %v981, 7
    %v983 = vsub.s32 %v980, %v982
    %v984 = vrot.slane %v977, %v983
    %v986 = vunpack.c.l.s4 1966171168
    %v987 = vunpack.c.0.s8 %v986
    %v988 = vlaneseq
    %v989 = vshrl.u32 %v988, 7
    %v990 = vsub.s32 %v987, %v989
    %v991 = vrot.slane %v605, %v990
    %v993 = vunpack.c.l.s4 1966171168
    %v994 = vunpack.c.0.s8 %v993
    %v995 = vlaneseq
    %v996 = vshrl.u32 %v995, 7
    %v997 = vsub.s32 %v994, %v996
    %v998 = vrot.slane %v991, %v997
    %v1000 = vunpack.c.l.s4 1966171168
    %v1001 = vunpack.c.0.s8 %v1000
    %v1002 = vlaneseq
    %v1003 = vshrl.u32 %v1002, 7
    %v1004 = vsub.s32 %v1001, %v1003
    %v1005 = vrot.slane %v588, %v1004
    %v1007 = vunpack.c.l.s4 1966171168
    %v1008 = vunpack.c.0.s8 %v1007
    %v1009 = vlaneseq
    %v1010 = vshrl.u32 %v1009, 7
    %v1011 = vsub.s32 %v1008, %v1010
    %v1012 = vrot.slane %v1005, %v1011
    %v1014 = vunpack.c.l.s4 1966171168
    %v1015 = vunpack.c.0.s8 %v1014
    %v1016 = vlaneseq
    %v1017 = vshrl.u32 %v1016, 7
    %v1018 = vsub.s32 %v1015, %v1017
    %v1019 = vrot.slane %v602, %v1018
    %v1021 = vunpack.c.l.s4 1966171168
    %v1022 = vunpack.c.0.s8 %v1021
    %v1023 = vlaneseq
    %v1024 = vshrl.u32 %v1023, 7
    %v1025 = vsub.s32 %v1022, %v1024
    %v1026 = vrot.slane %v1019, %v1025
    %v1028 = vunpack.c.l.s4 1966171168
    %v1029 = vunpack.c.0.s8 %v1028
    %v1030 = vlaneseq
    %v1031 = vshrl.u32 %v1030, 7
    %v1032 = vsub.s32 %v1029, %v1031
    %v1033 = vrot.slane %v604, %v1032
    %v1035 = vunpack.c.l.s4 1966171168
    %v1036 = vunpack.c.0.s8 %v1035
    %v1037 = vlaneseq
    %v1038 = vshrl.u32 %v1037, 7
    %v1039 = vsub.s32 %v1036, %v1038
    %v1040 = vrot.slane %v1033, %v1039
    %v1042 = vunpack.c.l.s4 1966171168
    %v1043 = vunpack.c.0.s8 %v1042
    %v1044 = vlaneseq
    %v1045 = vshrl.u32 %v1044, 7
    %v1046 = vsub.s32 %v1043, %v1045
    %v1047 = vrot.slane %v606, %v1046
    %v1049 = vunpack.c.l.s4 1966171168
    %v1050 = vunpack.c.0.s8 %v1049
    %v1051 = vlaneseq
    %v1052 = vshrl.u32 %v1051, 7
    %v1053 = vsub.s32 %v1050, %v1052
    %v1054 = vrot.slane %v1047, %v1053
    %v1055 = vunpack.c.l.b16 %v956
    %v1056 = vunpack.c.l.b16 %v970
    %v1057 = vunpack.c.l.b16 %v984
    %v1058 = vunpack.c.l.b16 %v998
    %v1059 = vunpack.c.l.b16 %v1012
    %v1060 = vunpack.c.l.b16 %v1026
    %v1061 = vunpack.c.l.b16 %v1040
    %v1062 = vunpack.c.l.b16 %v1054
    %v1063 = vrot.slane %v1056, 7
    %v1064 = vsel %vm728, %v1063, %v1055
    %v1065 = vrot.slane %v1057, 6
    %v1066 = vsel %vm731, %v1065, %v1064
    %v1067 = vrot.slane %v1058, 5
    %v1068 = vsel %vm734, %v1067, %v1066
    %v1069 = vrot.slane %v1059, 4
    %v1070 = vsel %vm737, %v1069, %v1068
    %v1071 = vrot.slane %v1060, 3
    %v1072 = vsel %vm740, %v1071, %v1070
    %v1073 = vrot.slane %v1061, 2
    %v1074 = vsel %vm743, %v1073, %v1072
    %v1075 = vrot.slane %v1062, 1
    %v1076 = vsel %vm746, %v1075, %v1074
    %v1077 = vpack.c.b16 %v1076, %v1076
    %v1079 = vsel %vm884, %v942, 0
    %vm1081 = vcmask 1043456
    %v1083 = vsel %vm1081, %v1077, 0
    %1085 = vmatprep.subr.bf16.mxu0 0
    %1086 = vmatpush1.bf16.msra.mxu0 %v1083
    %1087 = vmatprep.subr.bf16.mxu0 0
    %1088 = vmatpush1.bf16.msra.mxu0 0
    %1089 = vmatprep.subr.bf16.mxu0 0
    %1090 = vmatpush1.bf16.msra.mxu0 0
    %1091 = vmatprep.subr.bf16.mxu0 0
    %1092 = vmatpush1.bf16.msra.mxu0 0
    %1093 = vmatprep.subr.bf16.mxu0 0
    %1094 = vmatpush1.bf16.msra.mxu0 0
    %1095 = vmatprep.subr.bf16.mxu0 0
    %1096 = vmatpush1.bf16.msra.mxu0 0
    %1097 = vmatprep.subr.bf16.mxu0 0
    %1098 = vmatpush1.bf16.msra.mxu0 0
    %1099 = vmatprep.subr.bf16.mxu0 0
    %1100 = vmatpush1.bf16.msra.mxu0 0
    %1101 = vmatprep.subr.bf16.mxu0 0
    %1102 = vmatpush1.bf16.msra.mxu0 0
    %1103 = vmatprep.subr.bf16.mxu0 0
    %1104 = vmatpush1.bf16.msra.mxu0 0
    %1105 = vmatprep.subr.bf16.mxu0 0
    %1106 = vmatpush1.bf16.msra.mxu0 0
    %1107 = vmatprep.subr.bf16.mxu0 0
    %1108 = vmatpush1.bf16.msra.mxu0 0
    %1109 = vmatprep.subr.bf16.mxu0 0
    %1110 = vmatpush1.bf16.msra.mxu0 0
    %1111 = vmatprep.subr.bf16.mxu0 0
    %1112 = vmatpush1.bf16.msra.mxu0 0
    %1113 = vmatprep.subr.bf16.mxu0 0
    %1114 = vmatpush1.bf16.msra.mxu0 0
    %1115 = vmatprep.subr.bf16.mxu0 0
    %1116 = vmatpush1.bf16.msra.mxu0 0
    %1117 = vmatprep.mubr.bf16.mxu0 0
    %1118 = vmatmul.mubr.bf16.gmra.mrb[0].mxu0 %v1079
    %v1119 = vpop.f32.mrb[0].mxu0
    %v1120 = vadd.f32 0.0, %v1119
    %v1121 = vpop.f32.mrb[0].mxu0
    %v1122 = vpop.f32.mrb[0].mxu0
    %v1123 = vpop.f32.mrb[0].mxu0
    %1124 = vdwg.mxu0
    %v1125 = vpack.c.bf16 %v1120, %v1120
    %v1128 = vunpack.c.l.s4 1966171168
    %v1129 = vunpack.c.0.s8 %v1128
    %v1130 = vlaneseq
    %v1131 = vshrl.u32 %v1130, 7
    %v1132 = vsub.s32 %v1129, %v1131
    %v1133 = vrot.slane %v1125, %v1132
    %v1134 = vcombine.high %v1133, %v1133
    %v1136 = vunpack.c.l.s4 1966171168
    %v1137 = vunpack.c.0.s8 %v1136
    %v1138 = vlaneseq
    %v1139 = vshrl.u32 %v1138, 7
    %v1140 = vsub.s32 %v1137, %v1139
    %v1141 = vrot.slane %v1133, %v1140
    %v1143 = vunpack.c.l.s4 1966171168
    %v1144 = vunpack.c.0.s8 %v1143
    %v1145 = vlaneseq
    %v1146 = vshrl.u32 %v1145, 7
    %v1147 = vsub.s32 %v1144, %v1146
    %v1148 = vrot.slane %v1134, %v1147
    %v1149 = vcombine.high %v1141, %v1141
    %v1150 = vcombine.high %v1148, %v1148
    %v1151 = vunpack.i.l.s16 %v1141
    %v1152 = vunpack.i.h.s16 %v1141
    %v1153 = vunpack.i.l.s16 %v1148
    %v1154 = vunpack.i.h.s16 %v1148
    %v1155 = vunpack.i.l.s16 %v1149
    %v1156 = vunpack.i.h.s16 %v1149
    %v1157 = vunpack.i.l.s16 %v1150
    %v1158 = vunpack.i.h.s16 %v1150
    %v1159 = vpack.i.b16 %v1151, %v1151
    %v1160 = vpack.i.b16 %v1152, %v1152
    %v1161 = vpack.i.b16 %v1153, %v1153
    %v1162 = vpack.i.b16 %v1154, %v1154
    %v1163 = vpack.i.b16 %v1155, %v1155
    %v1164 = vpack.i.b16 %v1156, %v1156
    %v1165 = vpack.i.b16 %v1157, %v1157
    %v1166 = vpack.i.b16 %v1158, %v1158
    %vm1175 = vcmask 57344
    %vm1176 = vsmask.f32 256
    %vm1177 = vmand %vm1175, %vm1176
    %v1178 = vld [vmem:[#allocation2] sm:$0x1]
    %v1179 = vsel %vm1177, %v1159, %v1178
    %1180 = vst [vmem:[#allocation2] sm:$0x1] %v1179
    %v1181 = vld [vmem:[#allocation2 + $0x1] sm:$0x1]
    %v1182 = vsel %vm1177, %v1160, %v1181
    %1183 = vst [vmem:[#allocation2 + $0x1] sm:$0x1] %v1182
    %v1184 = vld [vmem:[#allocation2 + $0x2] sm:$0x1]
    %v1185 = vsel %vm1177, %v1161, %v1184
    %1186 = vst [vmem:[#allocation2 + $0x2] sm:$0x1] %v1185
    %v1187 = vld [vmem:[#allocation2 + $0x3] sm:$0x1]
    %v1188 = vsel %vm1177, %v1162, %v1187
    %1189 = vst [vmem:[#allocation2 + $0x3] sm:$0x1] %v1188
    %v1190 = vld [vmem:[#allocation2 + $0x4] sm:$0x1]
    %v1191 = vsel %vm1177, %v1163, %v1190
    %1192 = vst [vmem:[#allocation2 + $0x4] sm:$0x1] %v1191
    %v1193 = vld [vmem:[#allocation2 + $0x5] sm:$0x1]
    %v1194 = vsel %vm1177, %v1164, %v1193
    %1195 = vst [vmem:[#allocation2 + $0x5] sm:$0x1] %v1194
    %v1196 = vld [vmem:[#allocation2 + $0x6] sm:$0x1]
    %v1197 = vsel %vm1177, %v1165, %v1196
    %1198 = vst [vmem:[#allocation2 + $0x6] sm:$0x1] %v1197
    %v1199 = vld [vmem:[#allocation2 + $0x7] sm:$0x1]
    %v1200 = vsel %vm1177, %v1166, %v1199
    %1201 = vst [vmem:[#allocation2 + $0x7] sm:$0x1] %v1200
    %1202 = vrot.lane.b32.xlu0 %v748, 120
    %v1203 = vpop.permute.xlu0 %1202
    %1204 = vrot.lane.b32.xlu0 %v883, 120
    %v1205 = vpop.permute.xlu0 %1204
    %v1207 = vsel %vm884, %v1203, 0
    %v1210 = vsel %vm884, %v1205, 0
    %1212 = vmatprep.subr.bf16.mxu0 0
    %1213 = vmatpush1.bf16.xpose.msra.mxu0 %v1210
    %1214 = vmatprep.subr.bf16.mxu0 0
    %1215 = vmatpush1.bf16.xpose.msra.mxu0 0
    %1216 = vmatprep.subr.bf16.mxu0 0
    %1217 = vmatpush1.bf16.xpose.msra.mxu0 0
    %1218 = vmatprep.subr.bf16.mxu0 0
    %1219 = vmatpush1.bf16.xpose.msra.mxu0 0
    %1220 = vmatprep.subr.bf16.mxu0 0
    %1221 = vmatpush1.bf16.xpose.msra.mxu0 0
    %1222 = vmatprep.subr.bf16.mxu0 0
    %1223 = vmatpush1.bf16.xpose.msra.mxu0 0
    %1224 = vmatprep.subr.bf16.mxu0 0
    %1225 = vmatpush1.bf16.xpose.msra.mxu0 0
    %1226 = vmatprep.subr.bf16.mxu0 0
    %1227 = vmatpush1.bf16.xpose.msra.mxu0 0
    %1228 = vmatprep.subr.bf16.mxu0 0
    %1229 = vmatpush1.bf16.xpose.msra.mxu0 0
    %1230 = vmatprep.subr.bf16.mxu0 0
    %1231 = vmatpush1.bf16.xpose.msra.mxu0 0
    %1232 = vmatprep.subr.bf16.mxu0 0
    %1233 = vmatpush1.bf16.xpose.msra.mxu0 0
    %1234 = vmatprep.subr.bf16.mxu0 0
    %1235 = vmatpush1.bf16.xpose.msra.mxu0 0
    %1236 = vmatprep.subr.bf16.mxu0 0
    %1237 = vmatpush1.bf16.xpose.msra.mxu0 0
    %1238 = vmatprep.subr.bf16.mxu0 0
    %1239 = vmatpush1.bf16.xpose.msra.mxu0 0
    %1240 = vmatprep.subr.bf16.mxu0 0
    %1241 = vmatpush1.bf16.xpose.msra.mxu0 0
    %1242 = vmatprep.subr.bf16.mxu0 0
    %1243 = vmatpush1.bf16.xpose.msra.mxu0 0
    %1244 = vmatprep.mubr.bf16.mxu0 0
    %1245 = vmatmul.mubr.bf16.gmra.mrb[0].mxu0 %v1207
    %v1246 = vpop.f32.mrb[0].mxu0
    %v1247 = vadd.f32 0.0, %v1246
    %v1248 = vpop.f32.mrb[0].mxu0
    %v1249 = vpop.f32.mrb[0].mxu0
    %v1250 = vpop.f32.mrb[0].mxu0
    %1251 = vdwg.mxu0
    %v1252 = vsel %vm884, %v1247, -inf
    %1253 = vmax.xlane.f32.xlu0 %v1252
    %v1254 = vpop.xlane.xlu0 %1253
    %v1255 = vsub.f32 %v1247, %v1254
    %v1256 = vmul.f32 %v1255, 1.442695
    %v1257 = vpow.pop %v1256
    %v1258 = vsel %vm884, %v1257, 0.0
    %1259 = vadd.xlane.f32.xlu0 %v1258
    %v1260 = vpop.xlane.xlu0 %1259
    %v1261 = vrcp.pop %v1260
    %v1262 = vmul.f32 %v1257, %v1261
    %v1263 = vpack.c.bf16 %v1262, %v1262
    %1264 = vrot.lane.b32.xlu0 %v1077, 120
    %v1265 = vpop.permute.xlu0 %1264
    %v1267 = vsel %vm884, %v1263, 0
    %v1270 = vsel %vm1081, %v1265, 0
    %1272 = vmatprep.subr.bf16.mxu0 0
    %1273 = vmatpush1.bf16.msra.mxu0 %v1270
    %1274 = vmatprep.subr.bf16.mxu0 0
    %1275 = vmatpush1.bf16.msra.mxu0 0
    %1276 = vmatprep.subr.bf16.mxu0 0
    %1277 = vmatpush1.bf16.msra.mxu0 0
    %1278 = vmatprep.subr.bf16.mxu0 0
    %1279 = vmatpush1.bf16.msra.mxu0 0
    %1280 = vmatprep.subr.bf16.mxu0 0
    %1281 = vmatpush1.bf16.msra.mxu0 0
    %1282 = vmatprep.subr.bf16.mxu0 0
    %1283 = vmatpush1.bf16.msra.mxu0 0
    %1284 = vmatprep.subr.bf16.mxu0 0
    %1285 = vmatpush1.bf16.msra.mxu0 0
    %1286 = vmatprep.subr.bf16.mxu0 0
    %1287 = vmatpush1.bf16.msra.mxu0 0
    %1288 = vmatprep.subr.bf16.mxu0 0
    %1289 = vmatpush1.bf16.msra.mxu0 0
    %1290 = vmatprep.subr.bf16.mxu0 0
    %1291 = vmatpush1.bf16.msra.mxu0 0
    %1292 = vmatprep.subr.bf16.mxu0 0
    %1293 = vmatpush1.bf16.msra.mxu0 0
    %1294 = vmatprep.subr.bf16.mxu0 0
    %1295 = vmatpush1.bf16.msra.mxu0 0
    %1296 = vmatprep.subr.bf16.mxu0 0
    %1297 = vmatpush1.bf16.msra.mxu0 0
    %1298 = vmatprep.subr.bf16.mxu0 0
    %1299 = vmatpush1.bf16.msra.mxu0 0
    %1300 = vmatprep.subr.bf16.mxu0 0
    %1301 = vmatpush1.bf16.msra.mxu0 0
    %1302 = vmatprep.subr.bf16.mxu0 0
    %1303 = vmatpush1.bf16.msra.mxu0 0
    %1304 = vmatprep.mubr.bf16.mxu0 0
    %1305 = vmatmul.mubr.bf16.gmra.mrb[0].mxu0 %v1267
    %v1306 = vpop.f32.mrb[0].mxu0
    %v1307 = vadd.f32 0.0, %v1306
    %v1308 = vpop.f32.mrb[0].mxu0
    %v1309 = vpop.f32.mrb[0].mxu0
    %v1310 = vpop.f32.mrb[0].mxu0
    %1311 = vdwg.mxu0
    %v1312 = vpack.c.bf16 %v1307, %v1307
    %v1315 = vunpack.c.l.s4 1966171168
    %v1316 = vunpack.c.0.s8 %v1315
    %v1317 = vlaneseq
    %v1318 = vshrl.u32 %v1317, 7
    %v1319 = vsub.s32 %v1316, %v1318
    %v1320 = vrot.slane %v1312, %v1319
    %v1321 = vcombine.high %v1320, %v1320
    %v1323 = vunpack.c.l.s4 1966171168
    %v1324 = vunpack.c.0.s8 %v1323
    %v1325 = vlaneseq
    %v1326 = vshrl.u32 %v1325, 7
    %v1327 = vsub.s32 %v1324, %v1326
    %v1328 = vrot.slane %v1320, %v1327
    %v1330 = vunpack.c.l.s4 1966171168
    %v1331 = vunpack.c.0.s8 %v1330
    %v1332 = vlaneseq
    %v1333 = vshrl.u32 %v1332, 7
    %v1334 = vsub.s32 %v1331, %v1333
    %v1335 = vrot.slane %v1321, %v1334
    %v1336 = vcombine.high %v1328, %v1328
    %v1337 = vcombine.high %v1335, %v1335
    %v1338 = vunpack.i.l.s16 %v1328
    %v1339 = vunpack.i.h.s16 %v1328
    %v1340 = vunpack.i.l.s16 %v1335
    %v1341 = vunpack.i.h.s16 %v1335
    %v1342 = vunpack.i.l.s16 %v1336
    %v1343 = vunpack.i.h.s16 %v1336
    %v1344 = vunpack.i.l.s16 %v1337
    %v1345 = vunpack.i.h.s16 %v1337
    %v1346 = vpack.i.b16 %v1338, %v1338
    %v1347 = vpack.i.b16 %v1339, %v1339
    %v1348 = vpack.i.b16 %v1340, %v1340
    %v1349 = vpack.i.b16 %v1341, %v1341
    %v1350 = vpack.i.b16 %v1342, %v1342
    %v1351 = vpack.i.b16 %v1343, %v1343
    %v1352 = vpack.i.b16 %v1344, %v1344
    %v1353 = vpack.i.b16 %v1345, %v1345
    %1354 = vrot.lane.b32.xlu0 %v1346, 8
    %v1355 = vpop.permute.xlu0 %1354
    %1356 = vrot.lane.b32.xlu0 %v1347, 8
    %v1357 = vpop.permute.xlu0 %1356
    %1358 = vrot.lane.b32.xlu0 %v1348, 8
    %v1359 = vpop.permute.xlu0 %1358
    %1360 = vrot.lane.b32.xlu0 %v1349, 8
    %v1361 = vpop.permute.xlu0 %1360
    %1362 = vrot.lane.b32.xlu0 %v1350, 8
    %v1363 = vpop.permute.xlu0 %1362
    %1364 = vrot.lane.b32.xlu0 %v1351, 8
    %v1365 = vpop.permute.xlu0 %1364
    %1366 = vrot.lane.b32.xlu0 %v1352, 8
    %v1367 = vpop.permute.xlu0 %1366
    %1368 = vrot.lane.b32.xlu0 %v1353, 8
    %v1369 = vpop.permute.xlu0 %1368
    %vm1378 = vcmask 122944
    %vm1379 = vmand %vm1378, %vm1176
    %v1380 = vld [vmem:[#allocation2] sm:$0x1]
    %v1381 = vsel %vm1379, %v1355, %v1380
    %1382 = vst [vmem:[#allocation2] sm:$0x1] %v1381
    %v1383 = vld [vmem:[#allocation2 + $0x1] sm:$0x1]
    %v1384 = vsel %vm1379, %v1357, %v1383
    %1385 = vst [vmem:[#allocation2 + $0x1] sm:$0x1] %v1384
    %v1386 = vld [vmem:[#allocation2 + $0x2] sm:$0x1]
    %v1387 = vsel %vm1379, %v1359, %v1386
    %1388 = vst [vmem:[#allocation2 + $0x2] sm:$0x1] %v1387
    %v1389 = vld [vmem:[#allocation2 + $0x3] sm:$0x1]
    %v1390 = vsel %vm1379, %v1361, %v1389
    %1391 = vst [vmem:[#allocation2 + $0x3] sm:$0x1] %v1390
    %v1392 = vld [vmem:[#allocation2 + $0x4] sm:$0x1]
    %v1393 = vsel %vm1379, %v1363, %v1392
    %1394 = vst [vmem:[#allocation2 + $0x4] sm:$0x1] %v1393
    %v1395 = vld [vmem:[#allocation2 + $0x5] sm:$0x1]
    %v1396 = vsel %vm1379, %v1365, %v1395
    %1397 = vst [vmem:[#allocation2 + $0x5] sm:$0x1] %v1396
    %v1398 = vld [vmem:[#allocation2 + $0x6] sm:$0x1]
    %v1399 = vsel %vm1379, %v1367, %v1398
    %1400 = vst [vmem:[#allocation2 + $0x6] sm:$0x1] %v1399
    %v1401 = vld [vmem:[#allocation2 + $0x7] sm:$0x1]
    %v1402 = vsel %vm1379, %v1369, %v1401
    %1403 = vst [vmem:[#allocation2 + $0x7] sm:$0x1] %v1402
    %1404 = vrot.lane.b32.xlu0 %v748, 112
    %v1405 = vpop.permute.xlu0 %1404
    %1406 = vrot.lane.b32.xlu0 %v883, 112
    %v1407 = vpop.permute.xlu0 %1406
    %v1409 = vsel %vm884, %v1405, 0
    %v1412 = vsel %vm884, %v1407, 0
    %1414 = vmatprep.subr.bf16.mxu0 0
    %1415 = vmatpush1.bf16.xpose.msra.mxu0 %v1412
    %1416 = vmatprep.subr.bf16.mxu0 0
    %1417 = vmatpush1.bf16.xpose.msra.mxu0 0
    %1418 = vmatprep.subr.bf16.mxu0 0
    %1419 = vmatpush1.bf16.xpose.msra.mxu0 0
    %1420 = vmatprep.subr.bf16.mxu0 0
    %1421 = vmatpush1.bf16.xpose.msra.mxu0 0
    %1422 = vmatprep.subr.bf16.mxu0 0
    %1423 = vmatpush1.bf16.xpose.msra.mxu0 0
    %1424 = vmatprep.subr.bf16.mxu0 0
    %1425 = vmatpush1.bf16.xpose.msra.mxu0 0
    %1426 = vmatprep.subr.bf16.mxu0 0
    %1427 = vmatpush1.bf16.xpose.msra.mxu0 0
    %1428 = vmatprep.subr.bf16.mxu0 0
    %1429 = vmatpush1.bf16.xpose.msra.mxu0 0
    %1430 = vmatprep.subr.bf16.mxu0 0
    %1431 = vmatpush1.bf16.xpose.msra.mxu0 0
    %1432 = vmatprep.subr.bf16.mxu0 0
    %1433 = vmatpush1.bf16.xpose.msra.mxu0 0
    %1434 = vmatprep.subr.bf16.mxu0 0
    %1435 = vmatpush1.bf16.xpose.msra.mxu0 0
    %1436 = vmatprep.subr.bf16.mxu0 0
    %1437 = vmatpush1.bf16.xpose.msra.mxu0 0
    %1438 = vmatprep.subr.bf16.mxu0 0
    %1439 = vmatpush1.bf16.xpose.msra.mxu0 0
    %1440 = vmatprep.subr.bf16.mxu0 0
    %1441 = vmatpush1.bf16.xpose.msra.mxu0 0
    %1442 = vmatprep.subr.bf16.mxu0 0
    %1443 = vmatpush1.bf16.xpose.msra.mxu0 0
    %1444 = vmatprep.subr.bf16.mxu0 0
    %1445 = vmatpush1.bf16.xpose.msra.mxu0 0
    %1446 = vmatprep.mubr.bf16.mxu0 0
    %1447 = vmatmul.mubr.bf16.gmra.mrb[0].mxu0 %v1409
    %v1448 = vpop.f32.mrb[0].mxu0
    %v1449 = vadd.f32 0.0, %v1448
    %v1450 = vpop.f32.mrb[0].mxu0
    %v1451 = vpop.f32.mrb[0].mxu0
    %v1452 = vpop.f32.mrb[0].mxu0
    %1453 = vdwg.mxu0
    %v1454 = vsel %vm884, %v1449, -inf
    %1455 = vmax.xlane.f32.xlu0 %v1454
    %v1456 = vpop.xlane.xlu0 %1455
    %v1457 = vsub.f32 %v1449, %v1456
    %v1458 = vmul.f32 %v1457, 1.442695
    %v1459 = vpow.pop %v1458
    %v1460 = vsel %vm884, %v1459, 0.0
    %1461 = vadd.xlane.f32.xlu0 %v1460
    %v1462 = vpop.xlane.xlu0 %1461
    %v1463 = vrcp.pop %v1462
    %v1464 = vmul.f32 %v1459, %v1463
    %v1465 = vpack.c.bf16 %v1464, %v1464
    %1466 = vrot.lane.b32.xlu0 %v1077, 112
    %v1467 = vpop.permute.xlu0 %1466
    %v1469 = vsel %vm884, %v1465, 0
    %v1472 = vsel %vm1081, %v1467, 0
    %1474 = vmatprep.subr.bf16.mxu0 0
    %1475 = vmatpush1.bf16.msra.mxu0 %v1472
    %1476 = vmatprep.subr.bf16.mxu0 0
    %1477 = vmatpush1.bf16.msra.mxu0 0
    %1478 = vmatprep.subr.bf16.mxu0 0
    %1479 = vmatpush1.bf16.msra.mxu0 0
    %1480 = vmatprep.subr.bf16.mxu0 0
    %1481 = vmatpush1.bf16.msra.mxu0 0
    %1482 = vmatprep.subr.bf16.mxu0 0
    %1483 = vmatpush1.bf16.msra.mxu0 0
    %1484 = vmatprep.subr.bf16.mxu0 0
    %1485 = vmatpush1.bf16.msra.mxu0 0
    %1486 = vmatprep.subr.bf16.mxu0 0
    %1487 = vmatpush1.bf16.msra.mxu0 0
    %1488 = vmatprep.subr.bf16.mxu0 0
    %1489 = vmatpush1.bf16.msra.mxu0 0
    %1490 = vmatprep.subr.bf16.mxu0 0
    %1491 = vmatpush1.bf16.msra.mxu0 0
    %1492 = vmatprep.subr.bf16.mxu0 0
    %1493 = vmatpush1.bf16.msra.mxu0 0
    %1494 = vmatprep.subr.bf16.mxu0 0
    %1495 = vmatpush1.bf16.msra.mxu0 0
    %1496 = vmatprep.subr.bf16.mxu0 0
    %1497 = vmatpush1.bf16.msra.mxu0 0
    %1498 = vmatprep.subr.bf16.mxu0 0
    %1499 = vmatpush1.bf16.msra.mxu0 0
    %1500 = vmatprep.subr.bf16.mxu0 0
    %1501 = vmatpush1.bf16.msra.mxu0 0
    %1502 = vmatprep.subr.bf16.mxu0 0
    %1503 = vmatpush1.bf16.msra.mxu0 0
    %1504 = vmatprep.subr.bf16.mxu0 0
    %1505 = vmatpush1.bf16.msra.mxu0 0
    %1506 = vmatprep.mubr.bf16.mxu0 0
    %1507 = vmatmul.mubr.bf16.gmra.mrb[0].mxu0 %v1469
    %v1508 = vpop.f32.mrb[0].mxu0
    %v1509 = vadd.f32 0.0, %v1508
    %v1510 = vpop.f32.mrb[0].mxu0
    %v1511 = vpop.f32.mrb[0].mxu0
    %v1512 = vpop.f32.mrb[0].mxu0
    %1513 = vdwg.mxu0
    %v1514 = vpack.c.bf16 %v1509, %v1509
    %v1517 = vunpack.c.l.s4 1966171168
    %v1518 = vunpack.c.0.s8 %v1517
    %v1519 = vlaneseq
    %v1520 = vshrl.u32 %v1519, 7
    %v1521 = vsub.s32 %v1518, %v1520
    %v1522 = vrot.slane %v1514, %v1521
    %v1523 = vcombine.high %v1522, %v1522
    %v1525 = vunpack.c.l.s4 1966171168
    %v1526 = vunpack.c.0.s8 %v1525
    %v1527 = vlaneseq
    %v1528 = vshrl.u32 %v1527, 7
    %v1529 = vsub.s32 %v1526, %v1528
    %v1530 = vrot.slane %v1522, %v1529
    %v1532 = vunpack.c.l.s4 1966171168
    %v1533 = vunpack.c.0.s8 %v1532
    %v1534 = vlaneseq
    %v1535 = vshrl.u32 %v1534, 7
    %v1536 = vsub.s32 %v1533, %v1535
    %v1537 = vrot.slane %v1523, %v1536
    %v1538 = vcombine.high %v1530, %v1530
    %v1539 = vcombine.high %v1537, %v1537
    %v1540 = vunpack.i.l.s16 %v1530
    %v1541 = vunpack.i.h.s16 %v1530
    %v1542 = vunpack.i.l.s16 %v1537
    %v1543 = vunpack.i.h.s16 %v1537
    %v1544 = vunpack.i.l.s16 %v1538
    %v1545 = vunpack.i.h.s16 %v1538
    %v1546 = vunpack.i.l.s16 %v1539
    %v1547 = vunpack.i.h.s16 %v1539
    %v1548 = vpack.i.b16 %v1540, %v1540
    %v1549 = vpack.i.b16 %v1541, %v1541
    %v1550 = vpack.i.b16 %v1542, %v1542
    %v1551 = vpack.i.b16 %v1543, %v1543
    %v1552 = vpack.i.b16 %v1544, %v1544
    %v1553 = vpack.i.b16 %v1545, %v1545
    %v1554 = vpack.i.b16 %v1546, %v1546
    %v1555 = vpack.i.b16 %v1547, %v1547
    %1556 = vrot.lane.b32.xlu0 %v1548, 16
    %v1557 = vpop.permute.xlu0 %1556
    %1558 = vrot.lane.b32.xlu0 %v1549, 16
    %v1559 = vpop.permute.xlu0 %1558
    %1560 = vrot.lane.b32.xlu0 %v1550, 16
    %v1561 = vpop.permute.xlu0 %1560
    %1562 = vrot.lane.b32.xlu0 %v1551, 16
    %v1563 = vpop.permute.xlu0 %1562
    %1564 = vrot.lane.b32.xlu0 %v1552, 16
    %v1565 = vpop.permute.xlu0 %1564
    %1566 = vrot.lane.b32.xlu0 %v1553, 16
    %v1567 = vpop.permute.xlu0 %1566
    %1568 = vrot.lane.b32.xlu0 %v1554, 16
    %v1569 = vpop.permute.xlu0 %1568
    %1570 = vrot.lane.b32.xlu0 %v1555, 16
    %v1571 = vpop.permute.xlu0 %1570
    %vm1580 = vcmask 188544
    %vm1581 = vmand %vm1580, %vm1176
    %v1582 = vld [vmem:[#allocation2] sm:$0x1]
    %v1583 = vsel %vm1581, %v1557, %v1582
    %1584 = vst [vmem:[#allocation2] sm:$0x1] %v1583
    %v1585 = vld [vmem:[#allocation2 + $0x1] sm:$0x1]
    %v1586 = vsel %vm1581, %v1559, %v1585
    %1587 = vst [vmem:[#allocation2 + $0x1] sm:$0x1] %v1586
    %v1588 = vld [vmem:[#allocation2 + $0x2] sm:$0x1]
    %v1589 = vsel %vm1581, %v1561, %v1588
    %1590 = vst [vmem:[#allocation2 + $0x2] sm:$0x1] %v1589
    %v1591 = vld [vmem:[#allocation2 + $0x3] sm:$0x1]
    %v1592 = vsel %vm1581, %v1563, %v1591
    %1593 = vst [vmem:[#allocation2 + $0x3] sm:$0x1] %v1592
    %v1594 = vld [vmem:[#allocation2 + $0x4] sm:$0x1]
    %v1595 = vsel %vm1581, %v1565, %v1594
    %1596 = vst [vmem:[#allocation2 + $0x4] sm:$0x1] %v1595
    %v1597 = vld [vmem:[#allocation2 + $0x5] sm:$0x1]
    %v1598 = vsel %vm1581, %v1567, %v1597
    %1599 = vst [vmem:[#allocation2 + $0x5] sm:$0x1] %v1598
    %v1600 = vld [vmem:[#allocation2 + $0x6] sm:$0x1]
    %v1601 = vsel %vm1581, %v1569, %v1600
    %1602 = vst [vmem:[#allocation2 + $0x6] sm:$0x1] %v1601
    %v1603 = vld [vmem:[#allocation2 + $0x7] sm:$0x1]
    %v1604 = vsel %vm1581, %v1571, %v1603
    %1605 = vst [vmem:[#allocation2 + $0x7] sm:$0x1] %v1604
    %1606 = vrot.lane.b32.xlu0 %v748, 104
    %v1607 = vpop.permute.xlu0 %1606
    %1608 = vrot.lane.b32.xlu0 %v883, 104
    %v1609 = vpop.permute.xlu0 %1608
    %v1611 = vsel %vm884, %v1607, 0
    %v1614 = vsel %vm884, %v1609, 0
    %1616 = vmatprep.subr.bf16.mxu0 0
    %1617 = vmatpush1.bf16.xpose.msra.mxu0 %v1614
    %1618 = vmatprep.subr.bf16.mxu0 0
    %1619 = vmatpush1.bf16.xpose.msra.mxu0 0
    %1620 = vmatprep.subr.bf16.mxu0 0
    %1621 = vmatpush1.bf16.xpose.msra.mxu0 0
    %1622 = vmatprep.subr.bf16.mxu0 0
    %1623 = vmatpush1.bf16.xpose.msra.mxu0 0
    %1624 = vmatprep.subr.bf16.mxu0 0
    %1625 = vmatpush1.bf16.xpose.msra.mxu0 0
    %1626 = vmatprep.subr.bf16.mxu0 0
    %1627 = vmatpush1.bf16.xpose.msra.mxu0 0
    %1628 = vmatprep.subr.bf16.mxu0 0
    %1629 = vmatpush1.bf16.xpose.msra.mxu0 0
    %1630 = vmatprep.subr.bf16.mxu0 0
    %1631 = vmatpush1.bf16.xpose.msra.mxu0 0
    %1632 = vmatprep.subr.bf16.mxu0 0
    %1633 = vmatpush1.bf16.xpose.msra.mxu0 0
    %1634 = vmatprep.subr.bf16.mxu0 0
    %1635 = vmatpush1.bf16.xpose.msra.mxu0 0
    %1636 = vmatprep.subr.bf16.mxu0 0
    %1637 = vmatpush1.bf16.xpose.msra.mxu0 0
    %1638 = vmatprep.subr.bf16.mxu0 0
    %1639 = vmatpush1.bf16.xpose.msra.mxu0 0
    %1640 = vmatprep.subr.bf16.mxu0 0
    %1641 = vmatpush1.bf16.xpose.msra.mxu0 0
    %1642 = vmatprep.subr.bf16.mxu0 0
    %1643 = vmatpush1.bf16.xpose.msra.mxu0 0
    %1644 = vmatprep.subr.bf16.mxu0 0
    %1645 = vmatpush1.bf16.xpose.msra.mxu0 0
    %1646 = vmatprep.subr.bf16.mxu0 0
    %1647 = vmatpush1.bf16.xpose.msra.mxu0 0
    %1648 = vmatprep.mubr.bf16.mxu0 0
    %1649 = vmatmul.mubr.bf16.gmra.mrb[0].mxu0 %v1611
    %v1650 = vpop.f32.mrb[0].mxu0
    %v1651 = vadd.f32 0.0, %v1650
    %v1652 = vpop.f32.mrb[0].mxu0
    %v1653 = vpop.f32.mrb[0].mxu0
    %v1654 = vpop.f32.mrb[0].mxu0
    %1655 = vdwg.mxu0
    %v1656 = vsel %vm884, %v1651, -inf
    %1657 = vmax.xlane.f32.xlu0 %v1656
    %v1658 = vpop.xlane.xlu0 %1657
    %v1659 = vsub.f32 %v1651, %v1658
    %v1660 = vmul.f32 %v1659, 1.442695
    %v1661 = vpow.pop %v1660
    %v1662 = vsel %vm884, %v1661, 0.0
    %1663 = vadd.xlane.f32.xlu0 %v1662
    %v1664 = vpop.xlane.xlu0 %1663
    %v1665 = vrcp.pop %v1664
    %v1666 = vmul.f32 %v1661, %v1665
    %v1667 = vpack.c.bf16 %v1666, %v1666
    %1668 = vrot.lane.b32.xlu0 %v1077, 104
    %v1669 = vpop.permute.xlu0 %1668
    %v1671 = vsel %vm884, %v1667, 0
    %v1674 = vsel %vm1081, %v1669, 0
    %1676 = vmatprep.subr.bf16.mxu0 0
    %1677 = vmatpush1.bf16.msra.mxu0 %v1674
    %1678 = vmatprep.subr.bf16.mxu0 0
    %1679 = vmatpush1.bf16.msra.mxu0 0
    %1680 = vmatprep.subr.bf16.mxu0 0
    %1681 = vmatpush1.bf16.msra.mxu0 0
    %1682 = vmatprep.subr.bf16.mxu0 0
    %1683 = vmatpush1.bf16.msra.mxu0 0
    %1684 = vmatprep.subr.bf16.mxu0 0
    %1685 = vmatpush1.bf16.msra.mxu0 0
    %1686 = vmatprep.subr.bf16.mxu0 0
    %1687 = vmatpush1.bf16.msra.mxu0 0
    %1688 = vmatprep.subr.bf16.mxu0 0
    %1689 = vmatpush1.bf16.msra.mxu0 0
    %1690 = vmatprep.subr.bf16.mxu0 0
    %1691 = vmatpush1.bf16.msra.mxu0 0
    %1692 = vmatprep.subr.bf16.mxu0 0
    %1693 = vmatpush1.bf16.msra.mxu0 0
    %1694 = vmatprep.subr.bf16.mxu0 0
    %1695 = vmatpush1.bf16.msra.mxu0 0
    %1696 = vmatprep.subr.bf16.mxu0 0
    %1697 = vmatpush1.bf16.msra.mxu0 0
    %1698 = vmatprep.subr.bf16.mxu0 0
    %1699 = vmatpush1.bf16.msra.mxu0 0
    %1700 = vmatprep.subr.bf16.mxu0 0
    %1701 = vmatpush1.bf16.msra.mxu0 0
    %1702 = vmatprep.subr.bf16.mxu0 0
    %1703 = vmatpush1.bf16.msra.mxu0 0
    %1704 = vmatprep.subr.bf16.mxu0 0
    %1705 = vmatpush1.bf16.msra.mxu0 0
    %1706 = vmatprep.subr.bf16.mxu0 0
    %1707 = vmatpush1.bf16.msra.mxu0 0
    %1708 = vmatprep.mubr.bf16.mxu0 0
    %1709 = vmatmul.mubr.bf16.gmra.mrb[0].mxu0 %v1671
    %v1710 = vpop.f32.mrb[0].mxu0
    %v1711 = vadd.f32 0.0, %v1710
    %v1712 = vpop.f32.mrb[0].mxu0
    %v1713 = vpop.f32.mrb[0].mxu0
    %v1714 = vpop.f32.mrb[0].mxu0
    %1715 = vdwg.mxu0
    %v1716 = vpack.c.bf16 %v1711, %v1711
    %v1719 = vunpack.c.l.s4 1966171168
    %v1720 = vunpack.c.0.s8 %v1719
    %v1721 = vlaneseq
    %v1722 = vshrl.u32 %v1721, 7
    %v1723 = vsub.s32 %v1720, %v1722
    %v1724 = vrot.slane %v1716, %v1723
    %v1725 = vcombine.high %v1724, %v1724
    %v1727 = vunpack.c.l.s4 1966171168
    %v1728 = vunpack.c.0.s8 %v1727
    %v1729 = vlaneseq
    %v1730 = vshrl.u32 %v1729, 7
    %v1731 = vsub.s32 %v1728, %v1730
    %v1732 = vrot.slane %v1724, %v1731
    %v1734 = vunpack.c.l.s4 1966171168
    %v1735 = vunpack.c.0.s8 %v1734
    %v1736 = vlaneseq
    %v1737 = vshrl.u32 %v1736, 7
    %v1738 = vsub.s32 %v1735, %v1737
    %v1739 = vrot.slane %v1725, %v1738
    %v1740 = vcombine.high %v1732, %v1732
    %v1741 = vcombine.high %v1739, %v1739
    %v1742 = vunpack.i.l.s16 %v1732
    %v1743 = vunpack.i.h.s16 %v1732
    %v1744 = vunpack.i.l.s16 %v1739
    %v1745 = vunpack.i.h.s16 %v1739
    %v1746 = vunpack.i.l.s16 %v1740
    %v1747 = vunpack.i.h.s16 %v1740
    %v1748 = vunpack.i.l.s16 %v1741
    %v1749 = vunpack.i.h.s16 %v1741
    %v1750 = vpack.i.b16 %v1742, %v1742
    %v1751 = vpack.i.b16 %v1743, %v1743
    %v1752 = vpack.i.b16 %v1744, %v1744
    %v1753 = vpack.i.b16 %v1745, %v1745
    %v1754 = vpack.i.b16 %v1746, %v1746
    %v1755 = vpack.i.b16 %v1747, %v1747
    %v1756 = vpack.i.b16 %v1748, %v1748
    %v1757 = vpack.i.b16 %v1749, %v1749
    %1758 = vrot.lane.b32.xlu0 %v1750, 24
    %v1759 = vpop.permute.xlu0 %1758
    %1760 = vrot.lane.b32.xlu0 %v1751, 24
    %v1761 = vpop.permute.xlu0 %1760
    %1762 = vrot.lane.b32.xlu0 %v1752, 24
    %v1763 = vpop.permute.xlu0 %1762
    %1764 = vrot.lane.b32.xlu0 %v1753, 24
    %v1765 = vpop.permute.xlu0 %1764
    %1766 = vrot.lane.b32.xlu0 %v1754, 24
    %v1767 = vpop.permute.xlu0 %1766
    %1768 = vrot.lane.b32.xlu0 %v1755, 24
    %v1769 = vpop.permute.xlu0 %1768
    %1770 = vrot.lane.b32.xlu0 %v1756, 24
    %v1771 = vpop.permute.xlu0 %1770
    %1772 = vrot.lane.b32.xlu0 %v1757, 24
    %v1773 = vpop.permute.xlu0 %1772
    %vm1782 = vcmask 254144
    %vm1783 = vmand %vm1782, %vm1176
    %v1784 = vld [vmem:[#allocation2] sm:$0x1]
    %v1785 = vsel %vm1783, %v1759, %v1784
    %1786 = vst [vmem:[#allocation2] sm:$0x1] %v1785
    %v1787 = vld [vmem:[#allocation2 + $0x1] sm:$0x1]
    %v1788 = vsel %vm1783, %v1761, %v1787
    %1789 = vst [vmem:[#allocation2 + $0x1] sm:$0x1] %v1788
    %v1790 = vld [vmem:[#allocation2 + $0x2] sm:$0x1]
    %v1791 = vsel %vm1783, %v1763, %v1790
    %1792 = vst [vmem:[#allocation2 + $0x2] sm:$0x1] %v1791
    %v1793 = vld [vmem:[#allocation2 + $0x3] sm:$0x1]
    %v1794 = vsel %vm1783, %v1765, %v1793
    %1795 = vst [vmem:[#allocation2 + $0x3] sm:$0x1] %v1794
    %v1796 = vld [vmem:[#allocation2 + $0x4] sm:$0x1]
    %v1797 = vsel %vm1783, %v1767, %v1796
    %1798 = vst [vmem:[#allocation2 + $0x4] sm:$0x1] %v1797
    %v1799 = vld [vmem:[#allocation2 + $0x5] sm:$0x1]
    %v1800 = vsel %vm1783, %v1769, %v1799
    %1801 = vst [vmem:[#allocation2 + $0x5] sm:$0x1] %v1800
    %v1802 = vld [vmem:[#allocation2 + $0x6] sm:$0x1]
    %v1803 = vsel %vm1783, %v1771, %v1802
    %1804 = vst [vmem:[#allocation2 + $0x6] sm:$0x1] %v1803
    %v1805 = vld [vmem:[#allocation2 + $0x7] sm:$0x1]
    %v1806 = vsel %vm1783, %v1773, %v1805
    %1807 = vst [vmem:[#allocation2 + $0x7] sm:$0x1] %v1806
    %v1808 = vrot.slane %v719, 1
    %v1809 = vsel %vm728, %v720, %v1808
    %v1810 = vrot.slane %v721, 7
    %v1811 = vsel %vm731, %v1810, %v1809
    %v1812 = vrot.slane %v722, 6
    %v1813 = vsel %vm734, %v1812, %v1811
    %v1814 = vrot.slane %v723, 5
    %v1815 = vsel %vm737, %v1814, %v1813
    %v1816 = vrot.slane %v724, 4
    %v1817 = vsel %vm740, %v1816, %v1815
    %v1818 = vrot.slane %v725, 3
    %v1819 = vsel %vm743, %v1818, %v1817
    %v1820 = vrot.slane %v726, 2
    %v1821 = vsel %vm746, %v1820, %v1819
    %v1822 = vpack.c.b16 %v1821, %v1821
    %v1823 = vrot.slane %v861, 1
    %v1824 = vsel %vm728, %v862, %v1823
    %v1825 = vrot.slane %v863, 7
    %v1826 = vsel %vm731, %v1825, %v1824
    %v1827 = vrot.slane %v864, 6
    %v1828 = vsel %vm734, %v1827, %v1826
    %v1829 = vrot.slane %v865, 5
    %v1830 = vsel %vm737, %v1829, %v1828
    %v1831 = vrot.slane %v866, 4
    %v1832 = vsel %vm740, %v1831, %v1830
    %v1833 = vrot.slane %v867, 3
    %v1834 = vsel %vm743, %v1833, %v1832
    %v1835 = vrot.slane %v868, 2
    %v1836 = vsel %vm746, %v1835, %v1834
    %v1837 = vpack.c.b16 %v1836, %v1836
    %v1839 = vsel %vm884, %v1822, 0
    %v1842 = vsel %vm884, %v1837, 0
    %1844 = vmatprep.subr.bf16.mxu0 0
    %1845 = vmatpush1.bf16.xpose.msra.mxu0 %v1842
    %1846 = vmatprep.subr.bf16.mxu0 0
    %1847 = vmatpush1.bf16.xpose.msra.mxu0 0
    %1848 = vmatprep.subr.bf16.mxu0 0
    %1849 = vmatpush1.bf16.xpose.msra.mxu0 0
    %1850 = vmatprep.subr.bf16.mxu0 0
    %1851 = vmatpush1.bf16.xpose.msra.mxu0 0
    %1852 = vmatprep.subr.bf16.mxu0 0
    %1853 = vmatpush1.bf16.xpose.msra.mxu0 0
    %1854 = vmatprep.subr.bf16.mxu0 0
    %1855 = vmatpush1.bf16.xpose.msra.mxu0 0
    %1856 = vmatprep.subr.bf16.mxu0 0
    %1857 = vmatpush1.bf16.xpose.msra.mxu0 0
    %1858 = vmatprep.subr.bf16.mxu0 0
    %1859 = vmatpush1.bf16.xpose.msra.mxu0 0
    %1860 = vmatprep.subr.bf16.mxu0 0
    %1861 = vmatpush1.bf16.xpose.msra.mxu0 0
    %1862 = vmatprep.subr.bf16.mxu0 0
    %1863 = vmatpush1.bf16.xpose.msra.mxu0 0
    %1864 = vmatprep.subr.bf16.mxu0 0
    %1865 = vmatpush1.bf16.xpose.msra.mxu0 0
    %1866 = vmatprep.subr.bf16.mxu0 0
    %1867 = vmatpush1.bf16.xpose.msra.mxu0 0
    %1868 = vmatprep.subr.bf16.mxu0 0
    %1869 = vmatpush1.bf16.xpose.msra.mxu0 0
    %1870 = vmatprep.subr.bf16.mxu0 0
    %1871 = vmatpush1.bf16.xpose.msra.mxu0 0
    %1872 = vmatprep.subr.bf16.mxu0 0
    %1873 = vmatpush1.bf16.xpose.msra.mxu0 0
    %1874 = vmatprep.subr.bf16.mxu0 0
    %1875 = vmatpush1.bf16.xpose.msra.mxu0 0
    %1876 = vmatprep.mubr.bf16.mxu0 0
    %1877 = vmatmul.mubr.bf16.gmra.mrb[0].mxu0 %v1839
    %v1878 = vpop.f32.mrb[0].mxu0
    %v1879 = vadd.f32 0.0, %v1878
    %v1880 = vpop.f32.mrb[0].mxu0
    %v1881 = vpop.f32.mrb[0].mxu0
    %v1882 = vpop.f32.mrb[0].mxu0
    %1883 = vdwg.mxu0
    %v1884 = vsel %vm884, %v1879, -inf
    %1885 = vmax.xlane.f32.xlu0 %v1884
    %v1886 = vpop.xlane.xlu0 %1885
    %v1887 = vsub.f32 %v1879, %v1886
    %v1888 = vmul.f32 %v1887, 1.442695
    %v1889 = vpow.pop %v1888
    %v1890 = vsel %vm884, %v1889, 0.0
    %1891 = vadd.xlane.f32.xlu0 %v1890
    %v1892 = vpop.xlane.xlu0 %1891
    %v1893 = vrcp.pop %v1892
    %v1894 = vmul.f32 %v1889, %v1893
    %v1895 = vpack.c.bf16 %v1894, %v1894
    %v1896 = vrot.slane %v1055, 1
    %v1897 = vsel %vm728, %v1056, %v1896
    %v1898 = vrot.slane %v1057, 7
    %v1899 = vsel %vm731, %v1898, %v1897
    %v1900 = vrot.slane %v1058, 6
    %v1901 = vsel %vm734, %v1900, %v1899
    %v1902 = vrot.slane %v1059, 5
    %v1903 = vsel %vm737, %v1902, %v1901
    %v1904 = vrot.slane %v1060, 4
    %v1905 = vsel %vm740, %v1904, %v1903
    %v1906 = vrot.slane %v1061, 3
    %v1907 = vsel %vm743, %v1906, %v1905
    %v1908 = vrot.slane %v1062, 2
    %v1909 = vsel %vm746, %v1908, %v1907
    %v1910 = vpack.c.b16 %v1909, %v1909
    %v1912 = vsel %vm884, %v1895, 0
    %v1915 = vsel %vm1081, %v1910, 0
    %1917 = vmatprep.subr.bf16.mxu0 0
    %1918 = vmatpush1.bf16.msra.mxu0 %v1915
    %1919 = vmatprep.subr.bf16.mxu0 0
    %1920 = vmatpush1.bf16.msra.mxu0 0
    %1921 = vmatprep.subr.bf16.mxu0 0
    %1922 = vmatpush1.bf16.msra.mxu0 0
    %1923 = vmatprep.subr.bf16.mxu0 0
    %1924 = vmatpush1.bf16.msra.mxu0 0
    %1925 = vmatprep.subr.bf16.mxu0 0
    %1926 = vmatpush1.bf16.msra.mxu0 0
    %1927 = vmatprep.subr.bf16.mxu0 0
    %1928 = vmatpush1.bf16.msra.mxu0 0
    %1929 = vmatprep.subr.bf16.mxu0 0
    %1930 = vmatpush1.bf16.msra.mxu0 0
    %1931 = vmatprep.subr.bf16.mxu0 0
    %1932 = vmatpush1.bf16.msra.mxu0 0
    %1933 = vmatprep.subr.bf16.mxu0 0
    %1934 = vmatpush1.bf16.msra.mxu0 0
    %1935 = vmatprep.subr.bf16.mxu0 0
    %1936 = vmatpush1.bf16.msra.mxu0 0
    %1937 = vmatprep.subr.bf16.mxu0 0
    %1938 = vmatpush1.bf16.msra.mxu0 0
    %1939 = vmatprep.subr.bf16.mxu0 0
    %1940 = vmatpush1.bf16.msra.mxu0 0
    %1941 = vmatprep.subr.bf16.mxu0 0
    %1942 = vmatpush1.bf16.msra.mxu0 0
    %1943 = vmatprep.subr.bf16.mxu0 0
    %1944 = vmatpush1.bf16.msra.mxu0 0
    %1945 = vmatprep.subr.bf16.mxu0 0
    %1946 = vmatpush1.bf16.msra.mxu0 0
    %1947 = vmatprep.subr.bf16.mxu0 0
    %1948 = vmatpush1.bf16.msra.mxu0 0
    %1949 = vmatprep.mubr.bf16.mxu0 0
    %1950 = vmatmul.mubr.bf16.gmra.mrb[0].mxu0 %v1912
    %v1951 = vpop.f32.mrb[0].mxu0
    %v1952 = vadd.f32 0.0, %v1951
    %v1953 = vpop.f32.mrb[0].mxu0
    %v1954 = vpop.f32.mrb[0].mxu0
    %v1955 = vpop.f32.mrb[0].mxu0
    %1956 = vdwg.mxu0
    %v1957 = vpack.c.bf16 %v1952, %v1952
    %v1960 = vunpack.c.l.s4 1966171168
    %v1961 = vunpack.c.0.s8 %v1960
    %v1962 = vlaneseq
    %v1963 = vshrl.u32 %v1962, 7
    %v1964 = vsub.s32 %v1961, %v1963
    %v1965 = vrot.slane %v1957, %v1964
    %v1966 = vcombine.high %v1965, %v1965
    %v1968 = vunpack.c.l.s4 1966171168
    %v1969 = vunpack.c.0.s8 %v1968
    %v1970 = vlaneseq
    %v1971 = vshrl.u32 %v1970, 7
    %v1972 = vsub.s32 %v1969, %v1971
    %v1973 = vrot.slane %v1965, %v1972
    %v1975 = vunpack.c.l.s4 1966171168
    %v1976 = vunpack.c.0.s8 %v1975
    %v1977 = vlaneseq
    %v1978 = vshrl.u32 %v1977, 7
    %v1979 = vsub.s32 %v1976, %v1978
    %v1980 = vrot.slane %v1966, %v1979
    %v1981 = vcombine.high %v1973, %v1973
    %v1982 = vcombine.high %v1980, %v1980
    %v1983 = vunpack.i.l.s16 %v1973
    %v1984 = vunpack.i.h.s16 %v1973
    %v1985 = vunpack.i.l.s16 %v1980
    %v1986 = vunpack.i.h.s16 %v1980
    %v1987 = vunpack.i.l.s16 %v1981
    %v1988 = vunpack.i.h.s16 %v1981
    %v1989 = vunpack.i.l.s16 %v1982
    %v1990 = vunpack.i.h.s16 %v1982
    %v1991 = vpack.i.b16 %v1983, %v1983
    %v1992 = vpack.i.b16 %v1984, %v1984
    %v1993 = vpack.i.b16 %v1985, %v1985
    %v1994 = vpack.i.b16 %v1986, %v1986
    %v1995 = vpack.i.b16 %v1987, %v1987
    %v1996 = vpack.i.b16 %v1988, %v1988
    %v1997 = vpack.i.b16 %v1989, %v1989
    %v1998 = vpack.i.b16 %v1990, %v1990
    %vm2007 = vsmask.f32 7938
    %vm2008 = vmand %vm1175, %vm2007
    %v2009 = vld [vmem:[#allocation2] sm:$0x1]
    %v2010 = vsel %vm2008, %v1991, %v2009
    %2011 = vst [vmem:[#allocation2] sm:$0x1] %v2010
    %v2012 = vld [vmem:[#allocation2 + $0x1] sm:$0x1]
    %v2013 = vsel %vm2008, %v1992, %v2012
    %2014 = vst [vmem:[#allocation2 + $0x1] sm:$0x1] %v2013
    %v2015 = vld [vmem:[#allocation2 + $0x2] sm:$0x1]
    %v2016 = vsel %vm2008, %v1993, %v2015
    %2017 = vst [vmem:[#allocation2 + $0x2] sm:$0x1] %v2016
    %v2018 = vld [vmem:[#allocation2 + $0x3] sm:$0x1]
    %v2019 = vsel %vm2008, %v1994, %v2018
    %2020 = vst [vmem:[#allocation2 + $0x3] sm:$0x1] %v2019
    %v2021 = vld [vmem:[#allocation2 + $0x4] sm:$0x1]
    %v2022 = vsel %vm2008, %v1995, %v2021
    %2023 = vst [vmem:[#allocation2 + $0x4] sm:$0x1] %v2022
    %v2024 = vld [vmem:[#allocation2 + $0x5] sm:$0x1]
    %v2025 = vsel %vm2008, %v1996, %v2024
    %2026 = vst [vmem:[#allocation2 + $0x5] sm:$0x1] %v2025
    %v2027 = vld [vmem:[#allocation2 + $0x6] sm:$0x1]
    %v2028 = vsel %vm2008, %v1997, %v2027
    %2029 = vst [vmem:[#allocation2 + $0x6] sm:$0x1] %v2028
    %v2030 = vld [vmem:[#allocation2 + $0x7] sm:$0x1]
    %v2031 = vsel %vm2008, %v1998, %v2030
    %2032 = vst [vmem:[#allocation2 + $0x7] sm:$0x1] %v2031
    %2033 = vrot.lane.b32.xlu0 %v1822, 120
    %v2034 = vpop.permute.xlu0 %2033
    %2035 = vrot.lane.b32.xlu0 %v1837, 120
    %v2036 = vpop.permute.xlu0 %2035
    %v2038 = vsel %vm884, %v2034, 0
    %v2041 = vsel %vm884, %v2036, 0
    %2043 = vmatprep.subr.bf16.mxu0 0
    %2044 = vmatpush1.bf16.xpose.msra.mxu0 %v2041
    %2045 = vmatprep.subr.bf16.mxu0 0
    %2046 = vmatpush1.bf16.xpose.msra.mxu0 0
    %2047 = vmatprep.subr.bf16.mxu0 0
    %2048 = vmatpush1.bf16.xpose.msra.mxu0 0
    %2049 = vmatprep.subr.bf16.mxu0 0
    %2050 = vmatpush1.bf16.xpose.msra.mxu0 0
    %2051 = vmatprep.subr.bf16.mxu0 0
    %2052 = vmatpush1.bf16.xpose.msra.mxu0 0
    %2053 = vmatprep.subr.bf16.mxu0 0
    %2054 = vmatpush1.bf16.xpose.msra.mxu0 0
    %2055 = vmatprep.subr.bf16.mxu0 0
    %2056 = vmatpush1.bf16.xpose.msra.mxu0 0
    %2057 = vmatprep.subr.bf16.mxu0 0
    %2058 = vmatpush1.bf16.xpose.msra.mxu0 0
    %2059 = vmatprep.subr.bf16.mxu0 0
    %2060 = vmatpush1.bf16.xpose.msra.mxu0 0
    %2061 = vmatprep.subr.bf16.mxu0 0
    %2062 = vmatpush1.bf16.xpose.msra.mxu0 0
    %2063 = vmatprep.subr.bf16.mxu0 0
    %2064 = vmatpush1.bf16.xpose.msra.mxu0 0
    %2065 = vmatprep.subr.bf16.mxu0 0
    %2066 = vmatpush1.bf16.xpose.msra.mxu0 0
    %2067 = vmatprep.subr.bf16.mxu0 0
    %2068 = vmatpush1.bf16.xpose.msra.mxu0 0
    %2069 = vmatprep.subr.bf16.mxu0 0
    %2070 = vmatpush1.bf16.xpose.msra.mxu0 0
    %2071 = vmatprep.subr.bf16.mxu0 0
    %2072 = vmatpush1.bf16.xpose.msra.mxu0 0
    %2073 = vmatprep.subr.bf16.mxu0 0
    %2074 = vmatpush1.bf16.xpose.msra.mxu0 0
    %2075 = vmatprep.mubr.bf16.mxu0 0
    %2076 = vmatmul.mubr.bf16.gmra.mrb[0].mxu0 %v2038
    %v2077 = vpop.f32.mrb[0].mxu0
    %v2078 = vadd.f32 0.0, %v2077
    %v2079 = vpop.f32.mrb[0].mxu0
    %v2080 = vpop.f32.mrb[0].mxu0
    %v2081 = vpop.f32.mrb[0].mxu0
    %2082 = vdwg.mxu0
    %v2083 = vsel %vm884, %v2078, -inf
    %2084 = vmax.xlane.f32.xlu0 %v2083
    %v2085 = vpop.xlane.xlu0 %2084
    %v2086 = vsub.f32 %v2078, %v2085
    %v2087 = vmul.f32 %v2086, 1.442695
    %v2088 = vpow.pop %v2087
    %v2089 = vsel %vm884, %v2088, 0.0
    %2090 = vadd.xlane.f32.xlu0 %v2089
    %v2091 = vpop.xlane.xlu0 %2090
    %v2092 = vrcp.pop %v2091
    %v2093 = vmul.f32 %v2088, %v2092
    %v2094 = vpack.c.bf16 %v2093, %v2093
    %2095 = vrot.lane.b32.xlu0 %v1910, 120
    %v2096 = vpop.permute.xlu0 %2095
    %v2098 = vsel %vm884, %v2094, 0
    %v2101 = vsel %vm1081, %v2096, 0
    %2103 = vmatprep.subr.bf16.mxu0 0
    %2104 = vmatpush1.bf16.msra.mxu0 %v2101
    %2105 = vmatprep.subr.bf16.mxu0 0
    %2106 = vmatpush1.bf16.msra.mxu0 0
    %2107 = vmatprep.subr.bf16.mxu0 0
    %2108 = vmatpush1.bf16.msra.mxu0 0
    %2109 = vmatprep.subr.bf16.mxu0 0
    %2110 = vmatpush1.bf16.msra.mxu0 0
    %2111 = vmatprep.subr.bf16.mxu0 0
    %2112 = vmatpush1.bf16.msra.mxu0 0
    %2113 = vmatprep.subr.bf16.mxu0 0
    %2114 = vmatpush1.bf16.msra.mxu0 0
    %2115 = vmatprep.subr.bf16.mxu0 0
    %2116 = vmatpush1.bf16.msra.mxu0 0
    %2117 = vmatprep.subr.bf16.mxu0 0
    %2118 = vmatpush1.bf16.msra.mxu0 0
    %2119 = vmatprep.subr.bf16.mxu0 0
    %2120 = vmatpush1.bf16.msra.mxu0 0
    %2121 = vmatprep.subr.bf16.mxu0 0
    %2122 = vmatpush1.bf16.msra.mxu0 0
    %2123 = vmatprep.subr.bf16.mxu0 0
    %2124 = vmatpush1.bf16.msra.mxu0 0
    %2125 = vmatprep.subr.bf16.mxu0 0
    %2126 = vmatpush1.bf16.msra.mxu0 0
    %2127 = vmatprep.subr.bf16.mxu0 0
    %2128 = vmatpush1.bf16.msra.mxu0 0
    %2129 = vmatprep.subr.bf16.mxu0 0
    %2130 = vmatpush1.bf16.msra.mxu0 0
    %2131 = vmatprep.subr.bf16.mxu0 0
    %2132 = vmatpush1.bf16.msra.mxu0 0
    %2133 = vmatprep.subr.bf16.mxu0 0
    %2134 = vmatpush1.bf16.msra.mxu0 0
    %2135 = vmatprep.mubr.bf16.mxu0 0
    %2136 = vmatmul.mubr.bf16.gmra.mrb[0].mxu0 %v2098
    %v2137 = vpop.f32.mrb[0].mxu0
    %v2138 = vadd.f32 0.0, %v2137
    %v2139 = vpop.f32.mrb[0].mxu0
    %v2140 = vpop.f32.mrb[0].mxu0
    %v2141 = vpop.f32.mrb[0].mxu0
    %2142 = vdwg.mxu0
    %v2143 = vpack.c.bf16 %v2138, %v2138
    %v2146 = vunpack.c.l.s4 1966171168
    %v2147 = vunpack.c.0.s8 %v2146
    %v2148 = vlaneseq
    %v2149 = vshrl.u32 %v2148, 7
    %v2150 = vsub.s32 %v2147, %v2149
    %v2151 = vrot.slane %v2143, %v2150
    %v2152 = vcombine.high %v2151, %v2151
    %v2154 = vunpack.c.l.s4 1966171168
    %v2155 = vunpack.c.0.s8 %v2154
    %v2156 = vlaneseq
    %v2157 = vshrl.u32 %v2156, 7
    %v2158 = vsub.s32 %v2155, %v2157
    %v2159 = vrot.slane %v2151, %v2158
    %v2161 = vunpack.c.l.s4 1966171168
    %v2162 = vunpack.c.0.s8 %v2161
    %v2163 = vlaneseq
    %v2164 = vshrl.u32 %v2163, 7
    %v2165 = vsub.s32 %v2162, %v2164
    %v2166 = vrot.slane %v2152, %v2165
    %v2167 = vcombine.high %v2159, %v2159
    %v2168 = vcombine.high %v2166, %v2166
    %v2169 = vunpack.i.l.s16 %v2159
    %v2170 = vunpack.i.h.s16 %v2159
    %v2171 = vunpack.i.l.s16 %v2166
    %v2172 = vunpack.i.h.s16 %v2166
    %v2173 = vunpack.i.l.s16 %v2167
    %v2174 = vunpack.i.h.s16 %v2167
    %v2175 = vunpack.i.l.s16 %v2168
    %v2176 = vunpack.i.h.s16 %v2168
    %v2177 = vpack.i.b16 %v2169, %v2169
    %v2178 = vpack.i.b16 %v2170, %v2170
    %v2179 = vpack.i.b16 %v2171, %v2171
    %v2180 = vpack.i.b16 %v2172, %v2172
    %v2181 = vpack.i.b16 %v2173, %v2173
    %v2182 = vpack.i.b16 %v2174, %v2174
    %v2183 = vpack.i.b16 %v2175, %v2175
    %v2184 = vpack.i.b16 %v2176, %v2176
    %2185 = vrot.lane.b32.xlu0 %v2177, 8
    %v2186 = vpop.permute.xlu0 %2185
    %2187 = vrot.lane.b32.xlu0 %v2178, 8
    %v2188 = vpop.permute.xlu0 %2187
    %2189 = vrot.lane.b32.xlu0 %v2179, 8
    %v2190 = vpop.permute.xlu0 %2189
    %2191 = vrot.lane.b32.xlu0 %v2180, 8
    %v2192 = vpop.permute.xlu0 %2191
    %2193 = vrot.lane.b32.xlu0 %v2181, 8
    %v2194 = vpop.permute.xlu0 %2193
    %2195 = vrot.lane.b32.xlu0 %v2182, 8
    %v2196 = vpop.permute.xlu0 %2195
    %2197 = vrot.lane.b32.xlu0 %v2183, 8
    %v2198 = vpop.permute.xlu0 %2197
    %2199 = vrot.lane.b32.xlu0 %v2184, 8
    %v2200 = vpop.permute.xlu0 %2199
    %vm2209 = vmand %vm1378, %vm2007
    %v2210 = vld [vmem:[#allocation2] sm:$0x1]
    %v2211 = vsel %vm2209, %v2186, %v2210
    %2212 = vst [vmem:[#allocation2] sm:$0x1] %v2211
    %v2213 = vld [vmem:[#allocation2 + $0x1] sm:$0x1]
    %v2214 = vsel %vm2209, %v2188, %v2213
    %2215 = vst [vmem:[#allocation2 + $0x1] sm:$0x1] %v2214
    %v2216 = vld [vmem:[#allocation2 + $0x2] sm:$0x1]
    %v2217 = vsel %vm2209, %v2190, %v2216
    %2218 = vst [vmem:[#allocation2 + $0x2] sm:$0x1] %v2217
    %v2219 = vld [vmem:[#allocation2 + $0x3] sm:$0x1]
    %v2220 = vsel %vm2209, %v2192, %v2219
    %2221 = vst [vmem:[#allocation2 + $0x3] sm:$0x1] %v2220
    %v2222 = vld [vmem:[#allocation2 + $0x4] sm:$0x1]
    %v2223 = vsel %vm2209, %v2194, %v2222
    %2224 = vst [vmem:[#allocation2 + $0x4] sm:$0x1] %v2223
    %v2225 = vld [vmem:[#allocation2 + $0x5] sm:$0x1]
    %v2226 = vsel %vm2209, %v2196, %v2225
    %2227 = vst [vmem:[#allocation2 + $0x5] sm:$0x1] %v2226
    %v2228 = vld [vmem:[#allocation2 + $0x6] sm:$0x1]
    %v2229 = vsel %vm2209, %v2198, %v2228
    %2230 = vst [vmem:[#allocation2 + $0x6] sm:$0x1] %v2229
    %v2231 = vld [vmem:[#allocation2 + $0x7] sm:$0x1]
    %v2232 = vsel %vm2209, %v2200, %v2231
    %2233 = vst [vmem:[#allocation2 + $0x7] sm:$0x1] %v2232
    %2234 = vrot.lane.b32.xlu0 %v1822, 112
    %v2235 = vpop.permute.xlu0 %2234
    %2236 = vrot.lane.b32.xlu0 %v1837, 112
    %v2237 = vpop.permute.xlu0 %2236
    %v2239 = vsel %vm884, %v2235, 0
    %v2242 = vsel %vm884, %v2237, 0
    %2244 = vmatprep.subr.bf16.mxu0 0
    %2245 = vmatpush1.bf16.xpose.msra.mxu0 %v2242
    %2246 = vmatprep.subr.bf16.mxu0 0
    %2247 = vmatpush1.bf16.xpose.msra.mxu0 0
    %2248 = vmatprep.subr.bf16.mxu0 0
    %2249 = vmatpush1.bf16.xpose.msra.mxu0 0
    %2250 = vmatprep.subr.bf16.mxu0 0
    %2251 = vmatpush1.bf16.xpose.msra.mxu0 0
    %2252 = vmatprep.subr.bf16.mxu0 0
    %2253 = vmatpush1.bf16.xpose.msra.mxu0 0
    %2254 = vmatprep.subr.bf16.mxu0 0
    %2255 = vmatpush1.bf16.xpose.msra.mxu0 0
    %2256 = vmatprep.subr.bf16.mxu0 0
    %2257 = vmatpush1.bf16.xpose.msra.mxu0 0
    %2258 = vmatprep.subr.bf16.mxu0 0
    %2259 = vmatpush1.bf16.xpose.msra.mxu0 0
    %2260 = vmatprep.subr.bf16.mxu0 0
    %2261 = vmatpush1.bf16.xpose.msra.mxu0 0
    %2262 = vmatprep.subr.bf16.mxu0 0
    %2263 = vmatpush1.bf16.xpose.msra.mxu0 0
    %2264 = vmatprep.subr.bf16.mxu0 0
    %2265 = vmatpush1.bf16.xpose.msra.mxu0 0
    %2266 = vmatprep.subr.bf16.mxu0 0
    %2267 = vmatpush1.bf16.xpose.msra.mxu0 0
    %2268 = vmatprep.subr.bf16.mxu0 0
    %2269 = vmatpush1.bf16.xpose.msra.mxu0 0
    %2270 = vmatprep.subr.bf16.mxu0 0
    %2271 = vmatpush1.bf16.xpose.msra.mxu0 0
    %2272 = vmatprep.subr.bf16.mxu0 0
    %2273 = vmatpush1.bf16.xpose.msra.mxu0 0
    %2274 = vmatprep.subr.bf16.mxu0 0
    %2275 = vmatpush1.bf16.xpose.msra.mxu0 0
    %2276 = vmatprep.mubr.bf16.mxu0 0
    %2277 = vmatmul.mubr.bf16.gmra.mrb[0].mxu0 %v2239
    %v2278 = vpop.f32.mrb[0].mxu0
    %v2279 = vadd.f32 0.0, %v2278
    %v2280 = vpop.f32.mrb[0].mxu0
    %v2281 = vpop.f32.mrb[0].mxu0
    %v2282 = vpop.f32.mrb[0].mxu0
    %2283 = vdwg.mxu0
    %v2284 = vsel %vm884, %v2279, -inf
    %2285 = vmax.xlane.f32.xlu0 %v2284
    %v2286 = vpop.xlane.xlu0 %2285
    %v2287 = vsub.f32 %v2279, %v2286
    %v2288 = vmul.f32 %v2287, 1.442695
    %v2289 = vpow.pop %v2288
    %v2290 = vsel %vm884, %v2289, 0.0
    %2291 = vadd.xlane.f32.xlu0 %v2290
    %v2292 = vpop.xlane.xlu0 %2291
    %v2293 = vrcp.pop %v2292
    %v2294 = vmul.f32 %v2289, %v2293
    %v2295 = vpack.c.bf16 %v2294, %v2294
    %2296 = vrot.lane.b32.xlu0 %v1910, 112
    %v2297 = vpop.permute.xlu0 %2296
    %v2299 = vsel %vm884, %v2295, 0
    %v2302 = vsel %vm1081, %v2297, 0
    %2304 = vmatprep.subr.bf16.mxu0 0
    %2305 = vmatpush1.bf16.msra.mxu0 %v2302
    %2306 = vmatprep.subr.bf16.mxu0 0
    %2307 = vmatpush1.bf16.msra.mxu0 0
    %2308 = vmatprep.subr.bf16.mxu0 0
    %2309 = vmatpush1.bf16.msra.mxu0 0
    %2310 = vmatprep.subr.bf16.mxu0 0
    %2311 = vmatpush1.bf16.msra.mxu0 0
    %2312 = vmatprep.subr.bf16.mxu0 0
    %2313 = vmatpush1.bf16.msra.mxu0 0
    %2314 = vmatprep.subr.bf16.mxu0 0
    %2315 = vmatpush1.bf16.msra.mxu0 0
    %2316 = vmatprep.subr.bf16.mxu0 0
    %2317 = vmatpush1.bf16.msra.mxu0 0
    %2318 = vmatprep.subr.bf16.mxu0 0
    %2319 = vmatpush1.bf16.msra.mxu0 0
    %2320 = vmatprep.subr.bf16.mxu0 0
    %2321 = vmatpush1.bf16.msra.mxu0 0
    %2322 = vmatprep.subr.bf16.mxu0 0
    %2323 = vmatpush1.bf16.msra.mxu0 0
    %2324 = vmatprep.subr.bf16.mxu0 0
    %2325 = vmatpush1.bf16.msra.mxu0 0
    %2326 = vmatprep.subr.bf16.mxu0 0
    %2327 = vmatpush1.bf16.msra.mxu0 0
    %2328 = vmatprep.subr.bf16.mxu0 0
    %2329 = vmatpush1.bf16.msra.mxu0 0
    %2330 = vmatprep.subr.bf16.mxu0 0
    %2331 = vmatpush1.bf16.msra.mxu0 0
    %2332 = vmatprep.subr.bf16.mxu0 0
    %2333 = vmatpush1.bf16.msra.mxu0 0
    %2334 = vmatprep.subr.bf16.mxu0 0
    %2335 = vmatpush1.bf16.msra.mxu0 0
    %2336 = vmatprep.mubr.bf16.mxu0 0
    %2337 = vmatmul.mubr.bf16.gmra.mrb[0].mxu0 %v2299
    %v2338 = vpop.f32.mrb[0].mxu0
    %v2339 = vadd.f32 0.0, %v2338
    %v2340 = vpop.f32.mrb[0].mxu0
    %v2341 = vpop.f32.mrb[0].mxu0
    %v2342 = vpop.f32.mrb[0].mxu0
    %2343 = vdwg.mxu0
    %v2344 = vpack.c.bf16 %v2339, %v2339
    %v2347 = vunpack.c.l.s4 1966171168
    %v2348 = vunpack.c.0.s8 %v2347
    %v2349 = vlaneseq
    %v2350 = vshrl.u32 %v2349, 7
    %v2351 = vsub.s32 %v2348, %v2350
    %v2352 = vrot.slane %v2344, %v2351
    %v2353 = vcombine.high %v2352, %v2352
    %v2355 = vunpack.c.l.s4 1966171168
    %v2356 = vunpack.c.0.s8 %v2355
    %v2357 = vlaneseq
    %v2358 = vshrl.u32 %v2357, 7
    %v2359 = vsub.s32 %v2356, %v2358
    %v2360 = vrot.slane %v2352, %v2359
    %v2362 = vunpack.c.l.s4 1966171168
    %v2363 = vunpack.c.0.s8 %v2362
    %v2364 = vlaneseq
    %v2365 = vshrl.u32 %v2364, 7
    %v2366 = vsub.s32 %v2363, %v2365
    %v2367 = vrot.slane %v2353, %v2366
    %v2368 = vcombine.high %v2360, %v2360
    %v2369 = vcombine.high %v2367, %v2367
    %v2370 = vunpack.i.l.s16 %v2360
    %v2371 = vunpack.i.h.s16 %v2360
    %v2372 = vunpack.i.l.s16 %v2367
    %v2373 = vunpack.i.h.s16 %v2367
    %v2374 = vunpack.i.l.s16 %v2368
    %v2375 = vunpack.i.h.s16 %v2368
    %v2376 = vunpack.i.l.s16 %v2369
    %v2377 = vunpack.i.h.s16 %v2369
    %v2378 = vpack.i.b16 %v2370, %v2370
    %v2379 = vpack.i.b16 %v2371, %v2371
    %v2380 = vpack.i.b16 %v2372, %v2372
    %v2381 = vpack.i.b16 %v2373, %v2373
    %v2382 = vpack.i.b16 %v2374, %v2374
    %v2383 = vpack.i.b16 %v2375, %v2375
    %v2384 = vpack.i.b16 %v2376, %v2376
    %v2385 = vpack.i.b16 %v2377, %v2377
    %2386 = vrot.lane.b32.xlu0 %v2378, 16
    %v2387 = vpop.permute.xlu0 %2386
    %2388 = vrot.lane.b32.xlu0 %v2379, 16
    %v2389 = vpop.permute.xlu0 %2388
    %2390 = vrot.lane.b32.xlu0 %v2380, 16
    %v2391 = vpop.permute.xlu0 %2390
    %2392 = vrot.lane.b32.xlu0 %v2381, 16
    %v2393 = vpop.permute.xlu0 %2392
    %2394 = vrot.lane.b32.xlu0 %v2382, 16
    %v2395 = vpop.permute.xlu0 %2394
    %2396 = vrot.lane.b32.xlu0 %v2383, 16
    %v2397 = vpop.permute.xlu0 %2396
    %2398 = vrot.lane.b32.xlu0 %v2384, 16
    %v2399 = vpop.permute.xlu0 %2398
    %2400 = vrot.lane.b32.xlu0 %v2385, 16
    %v2401 = vpop.permute.xlu0 %2400
    %vm2410 = vmand %vm1580, %vm2007
    %v2411 = vld [vmem:[#allocation2] sm:$0x1]
    %v2412 = vsel %vm2410, %v2387, %v2411
    %2413 = vst [vmem:[#allocation2] sm:$0x1] %v2412
    %v2414 = vld [vmem:[#allocation2 + $0x1] sm:$0x1]
    %v2415 = vsel %vm2410, %v2389, %v2414
    %2416 = vst [vmem:[#allocation2 + $0x1] sm:$0x1] %v2415
    %v2417 = vld [vmem:[#allocation2 + $0x2] sm:$0x1]
    %v2418 = vsel %vm2410, %v2391, %v2417
    %2419 = vst [vmem:[#allocation2 + $0x2] sm:$0x1] %v2418
    %v2420 = vld [vmem:[#allocation2 + $0x3] sm:$0x1]
    %v2421 = vsel %vm2410, %v2393, %v2420
    %2422 = vst [vmem:[#allocation2 + $0x3] sm:$0x1] %v2421
    %v2423 = vld [vmem:[#allocation2 + $0x4] sm:$0x1]
    %v2424 = vsel %vm2410, %v2395, %v2423
    %2425 = vst [vmem:[#allocation2 + $0x4] sm:$0x1] %v2424
    %v2426 = vld [vmem:[#allocation2 + $0x5] sm:$0x1]
    %v2427 = vsel %vm2410, %v2397, %v2426
    %2428 = vst [vmem:[#allocation2 + $0x5] sm:$0x1] %v2427
    %v2429 = vld [vmem:[#allocation2 + $0x6] sm:$0x1]
    %v2430 = vsel %vm2410, %v2399, %v2429
    %2431 = vst [vmem:[#allocation2 + $0x6] sm:$0x1] %v2430
    %v2432 = vld [vmem:[#allocation2 + $0x7] sm:$0x1]
    %v2433 = vsel %vm2410, %v2401, %v2432
    %2434 = vst [vmem:[#allocation2 + $0x7] sm:$0x1] %v2433
    %2435 = vrot.lane.b32.xlu0 %v1822, 104
    %v2436 = vpop.permute.xlu0 %2435
    %2437 = vrot.lane.b32.xlu0 %v1837, 104
    %v2438 = vpop.permute.xlu0 %2437
    %v2440 = vsel %vm884, %v2436, 0
    %v2443 = vsel %vm884, %v2438, 0
    %2445 = vmatprep.subr.bf16.mxu0 0
    %2446 = vmatpush1.bf16.xpose.msra.mxu0 %v2443
    %2447 = vmatprep.subr.bf16.mxu0 0
    %2448 = vmatpush1.bf16.xpose.msra.mxu0 0
    %2449 = vmatprep.subr.bf16.mxu0 0
    %2450 = vmatpush1.bf16.xpose.msra.mxu0 0
    %2451 = vmatprep.subr.bf16.mxu0 0
    %2452 = vmatpush1.bf16.xpose.msra.mxu0 0
    %2453 = vmatprep.subr.bf16.mxu0 0
    %2454 = vmatpush1.bf16.xpose.msra.mxu0 0
    %2455 = vmatprep.subr.bf16.mxu0 0
    %2456 = vmatpush1.bf16.xpose.msra.mxu0 0
    %2457 = vmatprep.subr.bf16.mxu0 0
    %2458 = vmatpush1.bf16.xpose.msra.mxu0 0
    %2459 = vmatprep.subr.bf16.mxu0 0
    %2460 = vmatpush1.bf16.xpose.msra.mxu0 0
    %2461 = vmatprep.subr.bf16.mxu0 0
    %2462 = vmatpush1.bf16.xpose.msra.mxu0 0
    %2463 = vmatprep.subr.bf16.mxu0 0
    %2464 = vmatpush1.bf16.xpose.msra.mxu0 0
    %2465 = vmatprep.subr.bf16.mxu0 0
    %2466 = vmatpush1.bf16.xpose.msra.mxu0 0
    %2467 = vmatprep.subr.bf16.mxu0 0
    %2468 = vmatpush1.bf16.xpose.msra.mxu0 0
    %2469 = vmatprep.subr.bf16.mxu0 0
    %2470 = vmatpush1.bf16.xpose.msra.mxu0 0
    %2471 = vmatprep.subr.bf16.mxu0 0
    %2472 = vmatpush1.bf16.xpose.msra.mxu0 0
    %2473 = vmatprep.subr.bf16.mxu0 0
    %2474 = vmatpush1.bf16.xpose.msra.mxu0 0
    %2475 = vmatprep.subr.bf16.mxu0 0
    %2476 = vmatpush1.bf16.xpose.msra.mxu0 0
    %2477 = vmatprep.mubr.bf16.mxu0 0
    %2478 = vmatmul.mubr.bf16.gmra.mrb[0].mxu0 %v2440
    %v2479 = vpop.f32.mrb[0].mxu0
    %v2480 = vadd.f32 0.0, %v2479
    %v2481 = vpop.f32.mrb[0].mxu0
    %v2482 = vpop.f32.mrb[0].mxu0
    %v2483 = vpop.f32.mrb[0].mxu0
    %2484 = vdwg.mxu0
    %v2485 = vsel %vm884, %v2480, -inf
    %2486 = vmax.xlane.f32.xlu0 %v2485
    %v2487 = vpop.xlane.xlu0 %2486
    %v2488 = vsub.f32 %v2480, %v2487
    %v2489 = vmul.f32 %v2488, 1.442695
    %v2490 = vpow.pop %v2489
    %v2491 = vsel %vm884, %v2490, 0.0
    %2492 = vadd.xlane.f32.xlu0 %v2491
    %v2493 = vpop.xlane.xlu0 %2492
    %v2494 = vrcp.pop %v2493
    %v2495 = vmul.f32 %v2490, %v2494
    %v2496 = vpack.c.bf16 %v2495, %v2495
    %2497 = vrot.lane.b32.xlu0 %v1910, 104
    %v2498 = vpop.permute.xlu0 %2497
    %v2500 = vsel %vm884, %v2496, 0
    %v2503 = vsel %vm1081, %v2498, 0
    %2505 = vmatprep.subr.bf16.mxu0 0
    %2506 = vmatpush1.bf16.msra.mxu0 %v2503
    %2507 = vmatprep.subr.bf16.mxu0 0
    %2508 = vmatpush1.bf16.msra.mxu0 0
    %2509 = vmatprep.subr.bf16.mxu0 0
    %2510 = vmatpush1.bf16.msra.mxu0 0
    %2511 = vmatprep.subr.bf16.mxu0 0
    %2512 = vmatpush1.bf16.msra.mxu0 0
    %2513 = vmatprep.subr.bf16.mxu0 0
    %2514 = vmatpush1.bf16.msra.mxu0 0
    %2515 = vmatprep.subr.bf16.mxu0 0
    %2516 = vmatpush1.bf16.msra.mxu0 0
    %2517 = vmatprep.subr.bf16.mxu0 0
    %2518 = vmatpush1.bf16.msra.mxu0 0
    %2519 = vmatprep.subr.bf16.mxu0 0
    %2520 = vmatpush1.bf16.msra.mxu0 0
    %2521 = vmatprep.subr.bf16.mxu0 0
    %2522 = vmatpush1.bf16.msra.mxu0 0
    %2523 = vmatprep.subr.bf16.mxu0 0
    %2524 = vmatpush1.bf16.msra.mxu0 0
    %2525 = vmatprep.subr.bf16.mxu0 0
    %2526 = vmatpush1.bf16.msra.mxu0 0
    %2527 = vmatprep.subr.bf16.mxu0 0
    %2528 = vmatpush1.bf16.msra.mxu0 0
    %2529 = vmatprep.subr.bf16.mxu0 0
    %2530 = vmatpush1.bf16.msra.mxu0 0
    %2531 = vmatprep.subr.bf16.mxu0 0
    %2532 = vmatpush1.bf16.msra.mxu0 0
    %2533 = vmatprep.subr.bf16.mxu0 0
    %2534 = vmatpush1.bf16.msra.mxu0 0
    %2535 = vmatprep.subr.bf16.mxu0 0
    %2536 = vmatpush1.bf16.msra.mxu0 0
    %2537 = vmatprep.mubr.bf16.mxu0 0
    %2538 = vmatmul.mubr.bf16.gmra.mrb[0].mxu0 %v2500
    %v2539 = vpop.f32.mrb[0].mxu0
    %v2540 = vadd.f32 0.0, %v2539
    %v2541 = vpop.f32.mrb[0].mxu0
    %v2542 = vpop.f32.mrb[0].mxu0
    %v2543 = vpop.f32.mrb[0].mxu0
    %2544 = vdwg.mxu0
    %v2545 = vpack.c.bf16 %v2540, %v2540
    %v2548 = vunpack.c.l.s4 1966171168
    %v2549 = vunpack.c.0.s8 %v2548
    %v2550 = vlaneseq
    %v2551 = vshrl.u32 %v2550, 7
    %v2552 = vsub.s32 %v2549, %v2551
    %v2553 = vrot.slane %v2545, %v2552
    %v2554 = vcombine.high %v2553, %v2553
    %v2556 = vunpack.c.l.s4 1966171168
    %v2557 = vunpack.c.0.s8 %v2556
    %v2558 = vlaneseq
    %v2559 = vshrl.u32 %v2558, 7
    %v2560 = vsub.s32 %v2557, %v2559
    %v2561 = vrot.slane %v2553, %v2560
    %v2563 = vunpack.c.l.s4 1966171168
    %v2564 = vunpack.c.0.s8 %v2563
    %v2565 = vlaneseq
    %v2566 = vshrl.u32 %v2565, 7
    %v2567 = vsub.s32 %v2564, %v2566
    %v2568 = vrot.slane %v2554, %v2567
    %v2569 = vcombine.high %v2561, %v2561
    %v2570 = vcombine.high %v2568, %v2568
    %v2571 = vunpack.i.l.s16 %v2561
    %v2572 = vunpack.i.h.s16 %v2561
    %v2573 = vunpack.i.l.s16 %v2568
    %v2574 = vunpack.i.h.s16 %v2568
    %v2575 = vunpack.i.l.s16 %v2569
    %v2576 = vunpack.i.h.s16 %v2569
    %v2577 = vunpack.i.l.s16 %v2570
    %v2578 = vunpack.i.h.s16 %v2570
    %v2579 = vpack.i.b16 %v2571, %v2571
    %v2580 = vpack.i.b16 %v2572, %v2572
    %v2581 = vpack.i.b16 %v2573, %v2573
    %v2582 = vpack.i.b16 %v2574, %v2574
    %v2583 = vpack.i.b16 %v2575, %v2575
    %v2584 = vpack.i.b16 %v2576, %v2576
    %v2585 = vpack.i.b16 %v2577, %v2577
    %v2586 = vpack.i.b16 %v2578, %v2578
    %2587 = vrot.lane.b32.xlu0 %v2579, 24
    %v2588 = vpop.permute.xlu0 %2587
    %2589 = vrot.lane.b32.xlu0 %v2580, 24
    %v2590 = vpop.permute.xlu0 %2589
    %2591 = vrot.lane.b32.xlu0 %v2581, 24
    %v2592 = vpop.permute.xlu0 %2591
    %2593 = vrot.lane.b32.xlu0 %v2582, 24
    %v2594 = vpop.permute.xlu0 %2593
    %2595 = vrot.lane.b32.xlu0 %v2583, 24
    %v2596 = vpop.permute.xlu0 %2595
    %2597 = vrot.lane.b32.xlu0 %v2584, 24
    %v2598 = vpop.permute.xlu0 %2597
    %2599 = vrot.lane.b32.xlu0 %v2585, 24
    %v2600 = vpop.permute.xlu0 %2599
    %2601 = vrot.lane.b32.xlu0 %v2586, 24
    %v2602 = vpop.permute.xlu0 %2601
    %vm2611 = vmand %vm1782, %vm2007
    %v2612 = vld [vmem:[#allocation2] sm:$0x1]
    %v2613 = vsel %vm2611, %v2588, %v2612
    %2614 = vst [vmem:[#allocation2] sm:$0x1] %v2613
    %v2615 = vld [vmem:[#allocation2 + $0x1] sm:$0x1]
    %v2616 = vsel %vm2611, %v2590, %v2615
    %2617 = vst [vmem:[#allocation2 + $0x1] sm:$0x1] %v2616
    %v2618 = vld [vmem:[#allocation2 + $0x2] sm:$0x1]
    %v2619 = vsel %vm2611, %v2592, %v2618
    %2620 = vst [vmem:[#allocation2 + $0x2] sm:$0x1] %v2619
    %v2621 = vld [vmem:[#allocation2 + $0x3] sm:$0x1]
    %v2622 = vsel %vm2611, %v2594, %v2621
    %2623 = vst [vmem:[#allocation2 + $0x3] sm:$0x1] %v2622
    %v2624 = vld [vmem:[#allocation2 + $0x4] sm:$0x1]
    %v2625 = vsel %vm2611, %v2596, %v2624
    %2626 = vst [vmem:[#allocation2 + $0x4] sm:$0x1] %v2625
    %v2627 = vld [vmem:[#allocation2 + $0x5] sm:$0x1]
    %v2628 = vsel %vm2611, %v2598, %v2627
    %2629 = vst [vmem:[#allocation2 + $0x5] sm:$0x1] %v2628
    %v2630 = vld [vmem:[#allocation2 + $0x6] sm:$0x1]
    %v2631 = vsel %vm2611, %v2600, %v2630
    %2632 = vst [vmem:[#allocation2 + $0x6] sm:$0x1] %v2631
    %v2633 = vld [vmem:[#allocation2 + $0x7] sm:$0x1]
    %v2634 = vsel %vm2611, %v2602, %v2633
    %2635 = vst [vmem:[#allocation2 + $0x7] sm:$0x1] %v2634
    %v2636 = vld [vmem:[#allocation2] sm:$0x1]
    %v2637 = vld [vmem:[#allocation2 + $0x1] sm:$0x1]
    %v2638 = vld [vmem:[#allocation2 + $0x2] sm:$0x1]
    %v2639 = vld [vmem:[#allocation2 + $0x3] sm:$0x1]
    %v2640 = vld [vmem:[#allocation2 + $0x4] sm:$0x1]
    %v2641 = vld [vmem:[#allocation2 + $0x5] sm:$0x1]
    %v2642 = vld [vmem:[#allocation2 + $0x6] sm:$0x1]
    %v2643 = vld [vmem:[#allocation2 + $0x7] sm:$0x1]
    %v2644 = vld [vmem:[#allocation9] sm:$0xf]
    %v2645 = vld [vmem:[#allocation9 + $0x4] sm:$0xf]
    %v2646 = vld [vmem:[#allocation9 + $0x8] sm:$0xf]
    %v2647 = vld [vmem:[#allocation9 + $0xc] sm:$0xf]
    %v2648 = vld [vmem:[#allocation11] sm:$0x1]
    %v2650 = vlaneseq
    %v2651 = vshrl.u32 %v2650, 7
    %v2652 = vsub.s32 0, %v2651
    %v2653 = vrot.slane %v2648, %v2652
    %v2663 = vcombine.low %v2636, %v2637
    %v2664 = vcombine.low %v2638, %v2639
    %v2665 = vcombine.low %v2640, %v2641
    %v2666 = vcombine.low %v2642, %v2643
    %v2668 = vunpack.c.l.s4 1966171168
    %v2669 = vunpack.c.0.s8 %v2668
    %v2670 = vlaneseq
    %v2671 = vshrl.u32 %v2670, 7
    %v2672 = vsub.s32 %v2669, %v2671
    %v2673 = vrot.slane %v2663, %v2672
    %v2675 = vunpack.c.l.s4 1966171168
    %v2676 = vunpack.c.0.s8 %v2675
    %v2677 = vlaneseq
    %v2678 = vshrl.u32 %v2677, 7
    %v2679 = vsub.s32 %v2676, %v2678
    %v2680 = vrot.slane %v2664, %v2679
    %v2682 = vunpack.c.l.s4 1966171168
    %v2683 = vunpack.c.0.s8 %v2682
    %v2684 = vlaneseq
    %v2685 = vshrl.u32 %v2684, 7
    %v2686 = vsub.s32 %v2683, %v2685
    %v2687 = vrot.slane %v2665, %v2686
    %v2689 = vunpack.c.l.s4 1966171168
    %v2690 = vunpack.c.0.s8 %v2689
    %v2691 = vlaneseq
    %v2692 = vshrl.u32 %v2691, 7
    %v2693 = vsub.s32 %v2690, %v2692
    %v2694 = vrot.slane %v2666, %v2693
    %v2695 = vcombine.low %v2673, %v2680
    %v2696 = vcombine.low %v2687, %v2694
    %v2698 = vunpack.c.l.s4 1966171168
    %v2699 = vunpack.c.0.s8 %v2698
    %v2700 = vlaneseq
    %v2701 = vshrl.u32 %v2700, 7
    %v2702 = vsub.s32 %v2699, %v2701
    %v2703 = vrot.slane %v2695, %v2702
    %v2705 = vunpack.c.l.s4 1966171168
    %v2706 = vunpack.c.0.s8 %v2705
    %v2707 = vlaneseq
    %v2708 = vshrl.u32 %v2707, 7
    %v2709 = vsub.s32 %v2706, %v2708
    %v2710 = vrot.slane %v2696, %v2709
    %v2711 = vcombine.low %v2703, %v2710
    %v2716 = vunpack.c.l.b16 %v2644
    %v2717 = vunpack.c.l.b16 %v2645
    %v2718 = vunpack.c.l.b16 %v2646
    %v2719 = vunpack.c.l.b16 %v2647
    %v2720 = vpack.c.b16 %v2717, %v2716
    %v2721 = vpack.c.b16 %v2719, %v2718
    %v2725 = vsel %vm221, %v2711, 0
    %2727 = vmatprep.subr.bf16.mxu0 0
    %2728 = vmatpush1.bf16.msra.mxu0 %v2720
    %2729 = vmatprep.subr.bf16.mxu0 0
    %2730 = vmatpush1.bf16.msra.mxu0 %v2721
    %2731 = vmatprep.subr.bf16.mxu0 0
    %2732 = vmatpush1.bf16.msra.mxu0 0
    %2733 = vmatprep.subr.bf16.mxu0 0
    %2734 = vmatpush1.bf16.msra.mxu0 0
    %2735 = vmatprep.subr.bf16.mxu0 0
    %2736 = vmatpush1.bf16.msra.mxu0 0
    %2737 = vmatprep.subr.bf16.mxu0 0
    %2738 = vmatpush1.bf16.msra.mxu0 0
    %2739 = vmatprep.subr.bf16.mxu0 0
    %2740 = vmatpush1.bf16.msra.mxu0 0
    %2741 = vmatprep.subr.bf16.mxu0 0
    %2742 = vmatpush1.bf16.msra.mxu0 0
    %2743 = vmatprep.subr.bf16.mxu0 0
    %2744 = vmatpush1.bf16.msra.mxu0 0
    %2745 = vmatprep.subr.bf16.mxu0 0
    %2746 = vmatpush1.bf16.msra.mxu0 0
    %2747 = vmatprep.subr.bf16.mxu0 0
    %2748 = vmatpush1.bf16.msra.mxu0 0
    %2749 = vmatprep.subr.bf16.mxu0 0
    %2750 = vmatpush1.bf16.msra.mxu0 0
    %2751 = vmatprep.subr.bf16.mxu0 0
    %2752 = vmatpush1.bf16.msra.mxu0 0
    %2753 = vmatprep.subr.bf16.mxu0 0
    %2754 = vmatpush1.bf16.msra.mxu0 0
    %2755 = vmatprep.subr.bf16.mxu0 0
    %2756 = vmatpush1.bf16.msra.mxu0 0
    %2757 = vmatprep.subr.bf16.mxu0 0
    %2758 = vmatpush1.bf16.msra.mxu0 0
    %2759 = vmatprep.mubr.bf16.mxu0 0
    %2760 = vmatmul.mubr.bf16.gmra.mrb[0].mxu0 %v2725
    %v2761 = vpop.f32.mrb[0].mxu0
    %v2762 = vadd.f32 %v2653, %v2761
    %v2763 = vpop.f32.mrb[0].mxu0
    %v2764 = vpop.f32.mrb[0].mxu0
    %v2765 = vadd.f32 %v2653, %v2764
    %v2766 = vpop.f32.mrb[0].mxu0
    %2767 = vdwg.mxu0
    %v2768 = vunpack.c.l.bf16 %v125
    %v2769 = vunpack.c.l.bf16 %v126
    %v2770 = vunpack.c.l.bf16 %v127
    %v2771 = vunpack.c.l.bf16 %v128
    %v2772 = vunpack.c.l.bf16 %v129
    %v2773 = vunpack.c.l.bf16 %v130
    %v2774 = vunpack.c.l.bf16 %v131
    %v2775 = vunpack.c.l.bf16 %v132
    %v2778 = vcombine.high %v2762, %v2762
    %v2780 = vunpack.c.l.s4 1983009808
    %v2781 = vunpack.c.0.s8 %v2780
    %v2782 = vlaneseq
    %v2783 = vshrl.u32 %v2782, 7
    %v2784 = vsub.s32 %v2781, %v2783
    %v2785 = vrot.slane %v2762, %v2784
    %v2787 = vunpack.c.l.s4 1983009808
    %v2788 = vunpack.c.0.s8 %v2787
    %v2789 = vlaneseq
    %v2790 = vshrl.u32 %v2789, 7
    %v2791 = vsub.s32 %v2788, %v2790
    %v2792 = vrot.slane %v2778, %v2791
    %v2793 = vcombine.high %v2785, %v2785
    %v2794 = vcombine.high %v2792, %v2792
    %v2795 = vcombine.high %v2765, %v2765
    %v2797 = vunpack.c.l.s4 1983009808
    %v2798 = vunpack.c.0.s8 %v2797
    %v2799 = vlaneseq
    %v2800 = vshrl.u32 %v2799, 7
    %v2801 = vsub.s32 %v2798, %v2800
    %v2802 = vrot.slane %v2765, %v2801
    %v2804 = vunpack.c.l.s4 1983009808
    %v2805 = vunpack.c.0.s8 %v2804
    %v2806 = vlaneseq
    %v2807 = vshrl.u32 %v2806, 7
    %v2808 = vsub.s32 %v2805, %v2807
    %v2809 = vrot.slane %v2795, %v2808
    %v2810 = vcombine.high %v2802, %v2802
    %v2811 = vcombine.high %v2809, %v2809
    %v2820 = vadd.f32 %v2768, %v2785
    %v2821 = vadd.f32 %v2769, %v2793
    %v2822 = vadd.f32 %v2770, %v2792
    %v2823 = vadd.f32 %v2771, %v2794
    %v2824 = vadd.f32 %v2772, %v2802
    %v2825 = vadd.f32 %v2773, %v2810
    %v2826 = vadd.f32 %v2774, %v2809
    %v2827 = vadd.f32 %v2775, %v2811
    %v2828 = vld [vmem:[%s10] sm:$0x1]
    %v2829 = vld [vmem:[%s11] sm:$0x1]
    %v2838 = vcombine.low %v2820, %v2821
    %v2839 = vcombine.low %v2822, %v2823
    %v2841 = vunpack.c.l.s4 1983009808
    %v2842 = vunpack.c.0.s8 %v2841
    %v2843 = vlaneseq
    %v2844 = vshrl.u32 %v2843, 7
    %v2845 = vsub.s32 %v2842, %v2844
    %v2846 = vrot.slane %v2838, %v2845
    %v2848 = vunpack.c.l.s4 1983009808
    %v2849 = vunpack.c.0.s8 %v2848
    %v2850 = vlaneseq
    %v2851 = vshrl.u32 %v2850, 7
    %v2852 = vsub.s32 %v2849, %v2851
    %v2853 = vrot.slane %v2839, %v2852
    %v2854 = vcombine.low %v2846, %v2853
    %v2855 = vcombine.low %v2824, %v2825
    %v2856 = vcombine.low %v2826, %v2827
    %v2858 = vunpack.c.l.s4 1983009808
    %v2859 = vunpack.c.0.s8 %v2858
    %v2860 = vlaneseq
    %v2861 = vshrl.u32 %v2860, 7
    %v2862 = vsub.s32 %v2859, %v2861
    %v2863 = vrot.slane %v2855, %v2862
    %v2865 = vunpack.c.l.s4 1983009808
    %v2866 = vunpack.c.0.s8 %v2865
    %v2867 = vlaneseq
    %v2868 = vshrl.u32 %v2867, 7
    %v2869 = vsub.s32 %v2866, %v2868
    %v2870 = vrot.slane %v2856, %v2869
    %v2871 = vcombine.low %v2863, %v2870
    %v2874 = vsel %vm221, %v2854, 0.0
    %2875 = vadd.xlane.f32.xlu0 %v2874
    %v2876 = vpop.xlane.xlu0 %2875
    %v2877 = vsel %vm221, %v2871, 0.0
    %2878 = vadd.xlane.f32.xlu0 %v2877
    %v2879 = vpop.xlane.xlu0 %2878
    %v2880 = vrcp.pop 32.0
    %v2881 = vmul.f32 %v2876, %v2880
    %v2882 = vmul.f32 %v2879, %v2880
    %v2886 = vunpack.c.l.s4 269488144
    %v2887 = vunpack.c.0.s8 %v2886
    %v2888 = vlaneseq
    %v2889 = vshrl.u32 %v2888, 7
    %v2890 = vsub.s32 %v2887, %v2889
    %v2891 = vrot.slane %v2881, %v2890
    %v2893 = vunpack.c.l.s4 842150450
    %v2894 = vunpack.c.0.s8 %v2893
    %v2895 = vlaneseq
    %v2896 = vshrl.u32 %v2895, 7
    %v2897 = vsub.s32 %v2894, %v2896
    %v2898 = vrot.slane %v2881, %v2897
    %v2900 = vunpack.c.l.s4 1414812756
    %v2901 = vunpack.c.0.s8 %v2900
    %v2902 = vlaneseq
    %v2903 = vshrl.u32 %v2902, 7
    %v2904 = vsub.s32 %v2901, %v2903
    %v2905 = vrot.slane %v2881, %v2904
    %v2907 = vunpack.c.l.s4 1987475062
    %v2908 = vunpack.c.0.s8 %v2907
    %v2909 = vlaneseq
    %v2910 = vshrl.u32 %v2909, 7
    %v2911 = vsub.s32 %v2908, %v2910
    %v2912 = vrot.slane %v2881, %v2911
    %v2914 = vunpack.c.l.s4 269488144
    %v2915 = vunpack.c.0.s8 %v2914
    %v2916 = vlaneseq
    %v2917 = vshrl.u32 %v2916, 7
    %v2918 = vsub.s32 %v2915, %v2917
    %v2919 = vrot.slane %v2882, %v2918
    %v2921 = vunpack.c.l.s4 842150450
    %v2922 = vunpack.c.0.s8 %v2921
    %v2923 = vlaneseq
    %v2924 = vshrl.u32 %v2923, 7
    %v2925 = vsub.s32 %v2922, %v2924
    %v2926 = vrot.slane %v2882, %v2925
    %v2928 = vunpack.c.l.s4 1414812756
    %v2929 = vunpack.c.0.s8 %v2928
    %v2930 = vlaneseq
    %v2931 = vshrl.u32 %v2930, 7
    %v2932 = vsub.s32 %v2929, %v2931
    %v2933 = vrot.slane %v2882, %v2932
    %v2935 = vunpack.c.l.s4 1987475062
    %v2936 = vunpack.c.0.s8 %v2935
    %v2937 = vlaneseq
    %v2938 = vshrl.u32 %v2937, 7
    %v2939 = vsub.s32 %v2936, %v2938
    %v2940 = vrot.slane %v2882, %v2939
    %v2949 = vsub.f32 %v2820, %v2891
    %v2950 = vsub.f32 %v2821, %v2898
    %v2951 = vsub.f32 %v2822, %v2905
    %v2952 = vsub.f32 %v2823, %v2912
    %v2953 = vsub.f32 %v2824, %v2919
    %v2954 = vsub.f32 %v2825, %v2926
    %v2955 = vsub.f32 %v2826, %v2933
    %v2956 = vsub.f32 %v2827, %v2940
    %v2957 = vmul.f32 %v2949, %v2949
    %v2958 = vmul.f32 %v2950, %v2950
    %v2959 = vmul.f32 %v2951, %v2951
    %v2960 = vmul.f32 %v2952, %v2952
    %v2961 = vmul.f32 %v2953, %v2953
    %v2962 = vmul.f32 %v2954, %v2954
    %v2963 = vmul.f32 %v2955, %v2955
    %v2964 = vmul.f32 %v2956, %v2956
    %v2973 = vcombine.low %v2957, %v2958
    %v2974 = vcombine.low %v2959, %v2960
    %v2976 = vunpack.c.l.s4 1983009808
    %v2977 = vunpack.c.0.s8 %v2976
    %v2978 = vlaneseq
    %v2979 = vshrl.u32 %v2978, 7
    %v2980 = vsub.s32 %v2977, %v2979
    %v2981 = vrot.slane %v2973, %v2980
    %v2983 = vunpack.c.l.s4 1983009808
    %v2984 = vunpack.c.0.s8 %v2983
    %v2985 = vlaneseq
    %v2986 = vshrl.u32 %v2985, 7
    %v2987 = vsub.s32 %v2984, %v2986
    %v2988 = vrot.slane %v2974, %v2987
    %v2989 = vcombine.low %v2981, %v2988
    %v2990 = vcombine.low %v2961, %v2962
    %v2991 = vcombine.low %v2963, %v2964
    %v2993 = vunpack.c.l.s4 1983009808
    %v2994 = vunpack.c.0.s8 %v2993
    %v2995 = vlaneseq
    %v2996 = vshrl.u32 %v2995, 7
    %v2997 = vsub.s32 %v2994, %v2996
    %v2998 = vrot.slane %v2990, %v2997
    %v3000 = vunpack.c.l.s4 1983009808
    %v3001 = vunpack.c.0.s8 %v3000
    %v3002 = vlaneseq
    %v3003 = vshrl.u32 %v3002, 7
    %v3004 = vsub.s32 %v3001, %v3003
    %v3005 = vrot.slane %v2991, %v3004
    %v3006 = vcombine.low %v2998, %v3005
    %v3009 = vsel %vm221, %v2989, 0.0
    %3010 = vadd.xlane.f32.xlu0 %v3009
    %v3011 = vpop.xlane.xlu0 %3010
    %v3012 = vsel %vm221, %v3006, 0.0
    %3013 = vadd.xlane.f32.xlu0 %v3012
    %v3014 = vpop.xlane.xlu0 %3013
    %v3015 = vmul.f32 %v3011, %v2880
    %v3016 = vmul.f32 %v3014, %v2880
    %v3017 = vadd.f32 %v3015, 1e-05
    %v3018 = vadd.f32 %v3016, 1e-05
    %v3019 = vrsqrt.pop %v3017
    %v3020 = vrsqrt.pop %v3018
    %v3024 = vunpack.c.l.s4 269488144
    %v3025 = vunpack.c.0.s8 %v3024
    %v3026 = vlaneseq
    %v3027 = vshrl.u32 %v3026, 7
    %v3028 = vsub.s32 %v3025, %v3027
    %v3029 = vrot.slane %v3019, %v3028
    %v3031 = vunpack.c.l.s4 842150450
    %v3032 = vunpack.c.0.s8 %v3031
    %v3033 = vlaneseq
    %v3034 = vshrl.u32 %v3033, 7
    %v3035 = vsub.s32 %v3032, %v3034
    %v3036 = vrot.slane %v3019, %v3035
    %v3038 = vunpack.c.l.s4 1414812756
    %v3039 = vunpack.c.0.s8 %v3038
    %v3040 = vlaneseq
    %v3041 = vshrl.u32 %v3040, 7
    %v3042 = vsub.s32 %v3039, %v3041
    %v3043 = vrot.slane %v3019, %v3042
    %v3045 = vunpack.c.l.s4 1987475062
    %v3046 = vunpack.c.0.s8 %v3045
    %v3047 = vlaneseq
    %v3048 = vshrl.u32 %v3047, 7
    %v3049 = vsub.s32 %v3046, %v3048
    %v3050 = vrot.slane %v3019, %v3049
    %v3052 = vunpack.c.l.s4 269488144
    %v3053 = vunpack.c.0.s8 %v3052
    %v3054 = vlaneseq
    %v3055 = vshrl.u32 %v3054, 7
    %v3056 = vsub.s32 %v3053, %v3055
    %v3057 = vrot.slane %v3020, %v3056
    %v3059 = vunpack.c.l.s4 842150450
    %v3060 = vunpack.c.0.s8 %v3059
    %v3061 = vlaneseq
    %v3062 = vshrl.u32 %v3061, 7
    %v3063 = vsub.s32 %v3060, %v3062
    %v3064 = vrot.slane %v3020, %v3063
    %v3066 = vunpack.c.l.s4 1414812756
    %v3067 = vunpack.c.0.s8 %v3066
    %v3068 = vlaneseq
    %v3069 = vshrl.u32 %v3068, 7
    %v3070 = vsub.s32 %v3067, %v3069
    %v3071 = vrot.slane %v3020, %v3070
    %v3073 = vunpack.c.l.s4 1987475062
    %v3074 = vunpack.c.0.s8 %v3073
    %v3075 = vlaneseq
    %v3076 = vshrl.u32 %v3075, 7
    %v3077 = vsub.s32 %v3074, %v3076
    %v3078 = vrot.slane %v3020, %v3077
    %v3087 = vmul.f32 %v2949, %v3029
    %v3088 = vmul.f32 %v2950, %v3036
    %v3089 = vmul.f32 %v2951, %v3043
    %v3090 = vmul.f32 %v2952, %v3050
    %v3091 = vmul.f32 %v2953, %v3057
    %v3092 = vmul.f32 %v2954, %v3064
    %v3093 = vmul.f32 %v2955, %v3071
    %v3094 = vmul.f32 %v2956, %v3078
    %v3096 = vlaneseq
    %v3097 = vshrl.u32 %v3096, 7
    %v3098 = vsub.s32 0, %v3097
    %v3099 = vrot.slane %v2828, %v3098
    %v3100 = vcombine.high %v3099, %v3099
    %v3102 = vunpack.c.l.s4 1983009808
    %v3103 = vunpack.c.0.s8 %v3102
    %v3104 = vlaneseq
    %v3105 = vshrl.u32 %v3104, 7
    %v3106 = vsub.s32 %v3103, %v3105
    %v3107 = vrot.slane %v3099, %v3106
    %v3109 = vunpack.c.l.s4 1983009808
    %v3110 = vunpack.c.0.s8 %v3109
    %v3111 = vlaneseq
    %v3112 = vshrl.u32 %v3111, 7
    %v3113 = vsub.s32 %v3110, %v3112
    %v3114 = vrot.slane %v3100, %v3113
    %v3115 = vcombine.high %v3107, %v3107
    %v3116 = vcombine.high %v3114, %v3114
    %v3121 = vmul.f32 %v3087, %v3107
    %v3122 = vmul.f32 %v3088, %v3115
    %v3123 = vmul.f32 %v3089, %v3114
    %v3124 = vmul.f32 %v3090, %v3116
    %v3125 = vmul.f32 %v3091, %v3107
    %v3126 = vmul.f32 %v3092, %v3115
    %v3127 = vmul.f32 %v3093, %v3114
    %v3128 = vmul.f32 %v3094, %v3116
    %v3130 = vlaneseq
    %v3131 = vshrl.u32 %v3130, 7
    %v3132 = vsub.s32 0, %v3131
    %v3133 = vrot.slane %v2829, %v3132
    %v3134 = vcombine.high %v3133, %v3133
    %v3136 = vunpack.c.l.s4 1983009808
    %v3137 = vunpack.c.0.s8 %v3136
    %v3138 = vlaneseq
    %v3139 = vshrl.u32 %v3138, 7
    %v3140 = vsub.s32 %v3137, %v3139
    %v3141 = vrot.slane %v3133, %v3140
    %v3143 = vunpack.c.l.s4 1983009808
    %v3144 = vunpack.c.0.s8 %v3143
    %v3145 = vlaneseq
    %v3146 = vshrl.u32 %v3145, 7
    %v3147 = vsub.s32 %v3144, %v3146
    %v3148 = vrot.slane %v3134, %v3147
    %v3149 = vcombine.high %v3141, %v3141
    %v3150 = vcombine.high %v3148, %v3148
    %v3155 = vadd.f32 %v3121, %v3141
    %v3156 = vadd.f32 %v3122, %v3149
    %v3157 = vadd.f32 %v3123, %v3148
    %v3158 = vadd.f32 %v3124, %v3150
    %v3159 = vadd.f32 %v3125, %v3141
    %v3160 = vadd.f32 %v3126, %v3149
    %v3161 = vadd.f32 %v3127, %v3148
    %v3162 = vadd.f32 %v3128, %v3150
    %v3171 = vcombine.low %v3155, %v3156
    %v3172 = vcombine.low %v3157, %v3158
    %v3174 = vunpack.c.l.s4 1983009808
    %v3175 = vunpack.c.0.s8 %v3174
    %v3176 = vlaneseq
    %v3177 = vshrl.u32 %v3176, 7
    %v3178 = vsub.s32 %v3175, %v3177
    %v3179 = vrot.slane %v3171, %v3178
    %v3181 = vunpack.c.l.s4 1983009808
    %v3182 = vunpack.c.0.s8 %v3181
    %v3183 = vlaneseq
    %v3184 = vshrl.u32 %v3183, 7
    %v3185 = vsub.s32 %v3182, %v3184
    %v3186 = vrot.slane %v3172, %v3185
    %v3187 = vcombine.low %v3179, %v3186
    %v3188 = vcombine.low %v3159, %v3160
    %v3189 = vcombine.low %v3161, %v3162
    %v3191 = vunpack.c.l.s4 1983009808
    %v3192 = vunpack.c.0.s8 %v3191
    %v3193 = vlaneseq
    %v3194 = vshrl.u32 %v3193, 7
    %v3195 = vsub.s32 %v3192, %v3194
    %v3196 = vrot.slane %v3188, %v3195
    %v3198 = vunpack.c.l.s4 1983009808
    %v3199 = vunpack.c.0.s8 %v3198
    %v3200 = vlaneseq
    %v3201 = vshrl.u32 %v3200, 7
    %v3202 = vsub.s32 %v3199, %v3201
    %v3203 = vrot.slane %v3189, %v3202
    %v3204 = vcombine.low %v3196, %v3203
    %v3207 = vpack.c.bf16 %v3204, %v3187
    %v3208 = vld [vmem:[%s12] sm:$0xf]
    %v3209 = vld [vmem:[%s12 + $0x4] sm:$0xf]
    %v3210 = vld [vmem:[%s12 + $0x8] sm:$0xf]
    %v3211 = vld [vmem:[%s12 + $0xc] sm:$0xf]
    %v3212 = vld [vmem:[%s13] sm:$0x1]
    %v3214 = vlaneseq
    %v3215 = vshrl.u32 %v3214, 7
    %v3216 = vsub.s32 0, %v3215
    %v3217 = vrot.slane %v3212, %v3216
    %v3223 = vunpack.c.l.b16 %v3208
    %v3224 = vunpack.c.l.b16 %v3209
    %v3225 = vunpack.c.l.b16 %v3210
    %v3226 = vunpack.c.l.b16 %v3211
    %v3227 = vpack.c.b16 %v3224, %v3223
    %v3228 = vpack.c.b16 %v3226, %v3225
    %v3232 = vsel %vm221, %v3207, 0
    %3234 = vmatprep.subr.bf16.mxu0 0
    %3235 = vmatpush1.bf16.msra.mxu0 %v3227
    %3236 = vmatprep.subr.bf16.mxu0 0
    %3237 = vmatpush1.bf16.msra.mxu0 %v3228
    %3238 = vmatprep.subr.bf16.mxu0 0
    %3239 = vmatpush1.bf16.msra.mxu0 0
    %3240 = vmatprep.subr.bf16.mxu0 0
    %3241 = vmatpush1.bf16.msra.mxu0 0
    %3242 = vmatprep.subr.bf16.mxu0 0
    %3243 = vmatpush1.bf16.msra.mxu0 0
    %3244 = vmatprep.subr.bf16.mxu0 0
    %3245 = vmatpush1.bf16.msra.mxu0 0
    %3246 = vmatprep.subr.bf16.mxu0 0
    %3247 = vmatpush1.bf16.msra.mxu0 0
    %3248 = vmatprep.subr.bf16.mxu0 0
    %3249 = vmatpush1.bf16.msra.mxu0 0
    %3250 = vmatprep.subr.bf16.mxu0 0
    %3251 = vmatpush1.bf16.msra.mxu0 0
    %3252 = vmatprep.subr.bf16.mxu0 0
    %3253 = vmatpush1.bf16.msra.mxu0 0
    %3254 = vmatprep.subr.bf16.mxu0 0
    %3255 = vmatpush1.bf16.msra.mxu0 0
    %3256 = vmatprep.subr.bf16.mxu0 0
    %3257 = vmatpush1.bf16.msra.mxu0 0
    %3258 = vmatprep.subr.bf16.mxu0 0
    %3259 = vmatpush1.bf16.msra.mxu0 0
    %3260 = vmatprep.subr.bf16.mxu0 0
    %3261 = vmatpush1.bf16.msra.mxu0 0
    %3262 = vmatprep.subr.bf16.mxu0 0
    %3263 = vmatpush1.bf16.msra.mxu0 0
    %3264 = vmatprep.subr.bf16.mxu0 0
    %3265 = vmatpush1.bf16.msra.mxu0 0
    %3266 = vmatprep.mubr.bf16.mxu0 0
    %3267 = vmatmul.mubr.bf16.gmra.mrb[0].mxu0 %v3232
    %v3268 = vpop.f32.mrb[0].mxu0
    %v3269 = vadd.f32 %v3217, %v3268
    %v3270 = vpop.f32.mrb[0].mxu0
    %v3271 = vpop.f32.mrb[0].mxu0
    %v3272 = vadd.f32 %v3217, %v3271
    %v3273 = vpop.f32.mrb[0].mxu0
    %3274 = vdwg.mxu0
    %v3275 = vmax.f32 %v3269, 0.0
    %v3276 = vmax.f32 %v3272, 0.0
    %v3277 = vpack.c.bf16 %v3276, %v3275
    %v3278 = vld [vmem:[%s14] sm:$0xf]
    %v3279 = vld [vmem:[%s14 + $0x4] sm:$0xf]
    %v3280 = vld [vmem:[%s14 + $0x8] sm:$0xf]
    %v3281 = vld [vmem:[%s14 + $0xc] sm:$0xf]
    %v3282 = vld [vmem:[%s14 + $0x10] sm:$0xf]
    %v3283 = vld [vmem:[%s14 + $0x14] sm:$0xf]
    %v3284 = vld [vmem:[%s14 + $0x18] sm:$0xf]
    %v3285 = vld [vmem:[%s14 + $0x1c] sm:$0xf]
    %v3286 = vld [vmem:[%s15] sm:$0x1]
    %v3288 = vlaneseq
    %v3289 = vshrl.u32 %v3288, 7
    %v3290 = vsub.s32 0, %v3289
    %v3291 = vrot.slane %v3286, %v3290
    %v3301 = vunpack.c.l.b16 %v3278
    %v3302 = vunpack.c.l.b16 %v3279
    %v3303 = vunpack.c.l.b16 %v3280
    %v3304 = vunpack.c.l.b16 %v3281
    %v3305 = vunpack.c.l.b16 %v3282
    %v3306 = vunpack.c.l.b16 %v3283
    %v3307 = vunpack.c.l.b16 %v3284
    %v3308 = vunpack.c.l.b16 %v3285
    %v3309 = vpack.c.b16 %v3302, %v3301
    %v3310 = vpack.c.b16 %v3304, %v3303
    %v3311 = vpack.c.b16 %v3306, %v3305
    %v3312 = vpack.c.b16 %v3308, %v3307
    %vm3317 = vcmask 523264
    %v3319 = vsel %vm3317, %v3277, 0
    %3321 = vmatprep.subr.bf16.mxu0 0
    %3322 = vmatpush1.bf16.msra.mxu0 %v3309
    %3323 = vmatprep.subr.bf16.mxu0 0
    %3324 = vmatpush1.bf16.msra.mxu0 %v3310
    %3325 = vmatprep.subr.bf16.mxu0 0
    %3326 = vmatpush1.bf16.msra.mxu0 %v3311
    %3327 = vmatprep.subr.bf16.mxu0 0
    %3328 = vmatpush1.bf16.msra.mxu0 %v3312
    %3329 = vmatprep.subr.bf16.mxu0 0
    %3330 = vmatpush1.bf16.msra.mxu0 0
    %3331 = vmatprep.subr.bf16.mxu0 0
    %3332 = vmatpush1.bf16.msra.mxu0 0
    %3333 = vmatprep.subr.bf16.mxu0 0
    %3334 = vmatpush1.bf16.msra.mxu0 0
    %3335 = vmatprep.subr.bf16.mxu0 0
    %3336 = vmatpush1.bf16.msra.mxu0 0
    %3337 = vmatprep.subr.bf16.mxu0 0
    %3338 = vmatpush1.bf16.msra.mxu0 0
    %3339 = vmatprep.subr.bf16.mxu0 0
    %3340 = vmatpush1.bf16.msra.mxu0 0
    %3341 = vmatprep.subr.bf16.mxu0 0
    %3342 = vmatpush1.bf16.msra.mxu0 0
    %3343 = vmatprep.subr.bf16.mxu0 0
    %3344 = vmatpush1.bf16.msra.mxu0 0
    %3345 = vmatprep.subr.bf16.mxu0 0
    %3346 = vmatpush1.bf16.msra.mxu0 0
    %3347 = vmatprep.subr.bf16.mxu0 0
    %3348 = vmatpush1.bf16.msra.mxu0 0
    %3349 = vmatprep.subr.bf16.mxu0 0
    %3350 = vmatpush1.bf16.msra.mxu0 0
    %3351 = vmatprep.subr.bf16.mxu0 0
    %3352 = vmatpush1.bf16.msra.mxu0 0
    %3353 = vmatprep.mubr.bf16.mxu0 0
    %3354 = vmatmul.mubr.bf16.gmra.mrb[0].mxu0 %v3319
    %v3355 = vpop.f32.mrb[0].mxu0
    %v3356 = vadd.f32 %v3291, %v3355
    %v3357 = vpop.f32.mrb[0].mxu0
    %v3358 = vpop.f32.mrb[0].mxu0
    %v3359 = vadd.f32 %v3291, %v3358
    %v3360 = vpop.f32.mrb[0].mxu0
    %3361 = vdwg.mxu0
    %v3364 = vcombine.high %v3356, %v3356
    %v3366 = vunpack.c.l.s4 1983009808
    %v3367 = vunpack.c.0.s8 %v3366
    %v3368 = vlaneseq
    %v3369 = vshrl.u32 %v3368, 7
    %v3370 = vsub.s32 %v3367, %v3369
    %v3371 = vrot.slane %v3356, %v3370
    %v3373 = vunpack.c.l.s4 1983009808
    %v3374 = vunpack.c.0.s8 %v3373
    %v3375 = vlaneseq
    %v3376 = vshrl.u32 %v3375, 7
    %v3377 = vsub.s32 %v3374, %v3376
    %v3378 = vrot.slane %v3364, %v3377
    %v3379 = vcombine.high %v3371, %v3371
    %v3380 = vcombine.high %v3378, %v3378
    %v3381 = vcombine.high %v3359, %v3359
    %v3383 = vunpack.c.l.s4 1983009808
    %v3384 = vunpack.c.0.s8 %v3383
    %v3385 = vlaneseq
    %v3386 = vshrl.u32 %v3385, 7
    %v3387 = vsub.s32 %v3384, %v3386
    %v3388 = vrot.slane %v3359, %v3387
    %v3390 = vunpack.c.l.s4 1983009808
    %v3391 = vunpack.c.0.s8 %v3390
    %v3392 = vlaneseq
    %v3393 = vshrl.u32 %v3392, 7
    %v3394 = vsub.s32 %v3391, %v3393
    %v3395 = vrot.slane %v3381, %v3394
    %v3396 = vcombine.high %v3388, %v3388
    %v3397 = vcombine.high %v3395, %v3395
    %v3406 = vadd.f32 %v3155, %v3371
    %v3407 = vadd.f32 %v3156, %v3379
    %v3408 = vadd.f32 %v3157, %v3378
    %v3409 = vadd.f32 %v3158, %v3380
    %v3410 = vadd.f32 %v3159, %v3388
    %v3411 = vadd.f32 %v3160, %v3396
    %v3412 = vadd.f32 %v3161, %v3395
    %v3413 = vadd.f32 %v3162, %v3397
    %v3414 = vld [vmem:[%s16] sm:$0x1]
    %v3415 = vld [vmem:[%s17] sm:$0x1]
    %v3424 = vcombine.low %v3406, %v3407
    %v3425 = vcombine.low %v3408, %v3409
    %v3427 = vunpack.c.l.s4 1983009808
    %v3428 = vunpack.c.0.s8 %v3427
    %v3429 = vlaneseq
    %v3430 = vshrl.u32 %v3429, 7
    %v3431 = vsub.s32 %v3428, %v3430
    %v3432 = vrot.slane %v3424, %v3431
    %v3434 = vunpack.c.l.s4 1983009808
    %v3435 = vunpack.c.0.s8 %v3434
    %v3436 = vlaneseq
    %v3437 = vshrl.u32 %v3436, 7
    %v3438 = vsub.s32 %v3435, %v3437
    %v3439 = vrot.slane %v3425, %v3438
    %v3440 = vcombine.low %v3432, %v3439
    %v3441 = vcombine.low %v3410, %v3411
    %v3442 = vcombine.low %v3412, %v3413
    %v3444 = vunpack.c.l.s4 1983009808
    %v3445 = vunpack.c.0.s8 %v3444
    %v3446 = vlaneseq
    %v3447 = vshrl.u32 %v3446, 7
    %v3448 = vsub.s32 %v3445, %v3447
    %v3449 = vrot.slane %v3441, %v3448
    %v3451 = vunpack.c.l.s4 1983009808
    %v3452 = vunpack.c.0.s8 %v3451
    %v3453 = vlaneseq
    %v3454 = vshrl.u32 %v3453, 7
    %v3455 = vsub.s32 %v3452, %v3454
    %v3456 = vrot.slane %v3442, %v3455
    %v3457 = vcombine.low %v3449, %v3456
    %v3460 = vsel %vm221, %v3440, 0.0
    %3461 = vadd.xlane.f32.xlu0 %v3460
    %v3462 = vpop.xlane.xlu0 %3461
    %v3463 = vsel %vm221, %v3457, 0.0
    %3464 = vadd.xlane.f32.xlu0 %v3463
    %v3465 = vpop.xlane.xlu0 %3464
    %v3466 = vmul.f32 %v3462, %v2880
    %v3467 = vmul.f32 %v3465, %v2880
    %v3471 = vunpack.c.l.s4 269488144
    %v3472 = vunpack.c.0.s8 %v3471
    %v3473 = vlaneseq
    %v3474 = vshrl.u32 %v3473, 7
    %v3475 = vsub.s32 %v3472, %v3474
    %v3476 = vrot.slane %v3466, %v3475
    %v3478 = vunpack.c.l.s4 842150450
    %v3479 = vunpack.c.0.s8 %v3478
    %v3480 = vlaneseq
    %v3481 = vshrl.u32 %v3480, 7
    %v3482 = vsub.s32 %v3479, %v3481
    %v3483 = vrot.slane %v3466, %v3482
    %v3485 = vunpack.c.l.s4 1414812756
    %v3486 = vunpack.c.0.s8 %v3485
    %v3487 = vlaneseq
    %v3488 = vshrl.u32 %v3487, 7
    %v3489 = vsub.s32 %v3486, %v3488
    %v3490 = vrot.slane %v3466, %v3489
    %v3492 = vunpack.c.l.s4 1987475062
    %v3493 = vunpack.c.0.s8 %v3492
    %v3494 = vlaneseq
    %v3495 = vshrl.u32 %v3494, 7
    %v3496 = vsub.s32 %v3493, %v3495
    %v3497 = vrot.slane %v3466, %v3496
    %v3499 = vunpack.c.l.s4 269488144
    %v3500 = vunpack.c.0.s8 %v3499
    %v3501 = vlaneseq
    %v3502 = vshrl.u32 %v3501, 7
    %v3503 = vsub.s32 %v3500, %v3502
    %v3504 = vrot.slane %v3467, %v3503
    %v3506 = vunpack.c.l.s4 842150450
    %v3507 = vunpack.c.0.s8 %v3506
    %v3508 = vlaneseq
    %v3509 = vshrl.u32 %v3508, 7
    %v3510 = vsub.s32 %v3507, %v3509
    %v3511 = vrot.slane %v3467, %v3510
    %v3513 = vunpack.c.l.s4 1414812756
    %v3514 = vunpack.c.0.s8 %v3513
    %v3515 = vlaneseq
    %v3516 = vshrl.u32 %v3515, 7
    %v3517 = vsub.s32 %v3514, %v3516
    %v3518 = vrot.slane %v3467, %v3517
    %v3520 = vunpack.c.l.s4 1987475062
    %v3521 = vunpack.c.0.s8 %v3520
    %v3522 = vlaneseq
    %v3523 = vshrl.u32 %v3522, 7
    %v3524 = vsub.s32 %v3521, %v3523
    %v3525 = vrot.slane %v3467, %v3524
    %v3534 = vsub.f32 %v3406, %v3476
    %v3535 = vsub.f32 %v3407, %v3483
    %v3536 = vsub.f32 %v3408, %v3490
    %v3537 = vsub.f32 %v3409, %v3497
    %v3538 = vsub.f32 %v3410, %v3504
    %v3539 = vsub.f32 %v3411, %v3511
    %v3540 = vsub.f32 %v3412, %v3518
    %v3541 = vsub.f32 %v3413, %v3525
    %v3542 = vmul.f32 %v3534, %v3534
    %v3543 = vmul.f32 %v3535, %v3535
    %v3544 = vmul.f32 %v3536, %v3536
    %v3545 = vmul.f32 %v3537, %v3537
    %v3546 = vmul.f32 %v3538, %v3538
    %v3547 = vmul.f32 %v3539, %v3539
    %v3548 = vmul.f32 %v3540, %v3540
    %v3549 = vmul.f32 %v3541, %v3541
    %v3558 = vcombine.low %v3542, %v3543
    %v3559 = vcombine.low %v3544, %v3545
    %v3561 = vunpack.c.l.s4 1983009808
    %v3562 = vunpack.c.0.s8 %v3561
    %v3563 = vlaneseq
    %v3564 = vshrl.u32 %v3563, 7
    %v3565 = vsub.s32 %v3562, %v3564
    %v3566 = vrot.slane %v3558, %v3565
    %v3568 = vunpack.c.l.s4 1983009808
    %v3569 = vunpack.c.0.s8 %v3568
    %v3570 = vlaneseq
    %v3571 = vshrl.u32 %v3570, 7
    %v3572 = vsub.s32 %v3569, %v3571
    %v3573 = vrot.slane %v3559, %v3572
    %v3574 = vcombine.low %v3566, %v3573
    %v3575 = vcombine.low %v3546, %v3547
    %v3576 = vcombine.low %v3548, %v3549
    %v3578 = vunpack.c.l.s4 1983009808
    %v3579 = vunpack.c.0.s8 %v3578
    %v3580 = vlaneseq
    %v3581 = vshrl.u32 %v3580, 7
    %v3582 = vsub.s32 %v3579, %v3581
    %v3583 = vrot.slane %v3575, %v3582
    %v3585 = vunpack.c.l.s4 1983009808
    %v3586 = vunpack.c.0.s8 %v3585
    %v3587 = vlaneseq
    %v3588 = vshrl.u32 %v3587, 7
    %v3589 = vsub.s32 %v3586, %v3588
    %v3590 = vrot.slane %v3576, %v3589
    %v3591 = vcombine.low %v3583, %v3590
    %v3594 = vsel %vm221, %v3574, 0.0
    %3595 = vadd.xlane.f32.xlu0 %v3594
    %v3596 = vpop.xlane.xlu0 %3595
    %v3597 = vsel %vm221, %v3591, 0.0
    %3598 = vadd.xlane.f32.xlu0 %v3597
    %v3599 = vpop.xlane.xlu0 %3598
    %v3600 = vmul.f32 %v3596, %v2880
    %v3601 = vmul.f32 %v3599, %v2880
    %v3602 = vadd.f32 %v3600, 1e-05
    %v3603 = vadd.f32 %v3601, 1e-05
    %v3604 = vrsqrt.pop %v3602
    %v3605 = vrsqrt.pop %v3603
    %v3609 = vunpack.c.l.s4 269488144
    %v3610 = vunpack.c.0.s8 %v3609
    %v3611 = vlaneseq
    %v3612 = vshrl.u32 %v3611, 7
    %v3613 = vsub.s32 %v3610, %v3612
    %v3614 = vrot.slane %v3604, %v3613
    %v3616 = vunpack.c.l.s4 842150450
    %v3617 = vunpack.c.0.s8 %v3616
    %v3618 = vlaneseq
    %v3619 = vshrl.u32 %v3618, 7
    %v3620 = vsub.s32 %v3617, %v3619
    %v3621 = vrot.slane %v3604, %v3620
    %v3623 = vunpack.c.l.s4 1414812756
    %v3624 = vunpack.c.0.s8 %v3623
    %v3625 = vlaneseq
    %v3626 = vshrl.u32 %v3625, 7
    %v3627 = vsub.s32 %v3624, %v3626
    %v3628 = vrot.slane %v3604, %v3627
    %v3630 = vunpack.c.l.s4 1987475062
    %v3631 = vunpack.c.0.s8 %v3630
    %v3632 = vlaneseq
    %v3633 = vshrl.u32 %v3632, 7
    %v3634 = vsub.s32 %v3631, %v3633
    %v3635 = vrot.slane %v3604, %v3634
    %v3637 = vunpack.c.l.s4 269488144
    %v3638 = vunpack.c.0.s8 %v3637
    %v3639 = vlaneseq
    %v3640 = vshrl.u32 %v3639, 7
    %v3641 = vsub.s32 %v3638, %v3640
    %v3642 = vrot.slane %v3605, %v3641
    %v3644 = vunpack.c.l.s4 842150450
    %v3645 = vunpack.c.0.s8 %v3644
    %v3646 = vlaneseq
    %v3647 = vshrl.u32 %v3646, 7
    %v3648 = vsub.s32 %v3645, %v3647
    %v3649 = vrot.slane %v3605, %v3648
    %v3651 = vunpack.c.l.s4 1414812756
    %v3652 = vunpack.c.0.s8 %v3651
    %v3653 = vlaneseq
    %v3654 = vshrl.u32 %v3653, 7
    %v3655 = vsub.s32 %v3652, %v3654
    %v3656 = vrot.slane %v3605, %v3655
    %v3658 = vunpack.c.l.s4 1987475062
    %v3659 = vunpack.c.0.s8 %v3658
    %v3660 = vlaneseq
    %v3661 = vshrl.u32 %v3660, 7
    %v3662 = vsub.s32 %v3659, %v3661
    %v3663 = vrot.slane %v3605, %v3662
    %v3672 = vmul.f32 %v3534, %v3614
    %v3673 = vmul.f32 %v3535, %v3621
    %v3674 = vmul.f32 %v3536, %v3628
    %v3675 = vmul.f32 %v3537, %v3635
    %v3676 = vmul.f32 %v3538, %v3642
    %v3677 = vmul.f32 %v3539, %v3649
    %v3678 = vmul.f32 %v3540, %v3656
    %v3679 = vmul.f32 %v3541, %v3663
    %v3681 = vlaneseq
    %v3682 = vshrl.u32 %v3681, 7
    %v3683 = vsub.s32 0, %v3682
    %v3684 = vrot.slane %v3414, %v3683
    %v3685 = vcombine.high %v3684, %v3684
    %v3687 = vunpack.c.l.s4 1983009808
    %v3688 = vunpack.c.0.s8 %v3687
    %v3689 = vlaneseq
    %v3690 = vshrl.u32 %v3689, 7
    %v3691 = vsub.s32 %v3688, %v3690
    %v3692 = vrot.slane %v3684, %v3691
    %v3694 = vunpack.c.l.s4 1983009808
    %v3695 = vunpack.c.0.s8 %v3694
    %v3696 = vlaneseq
    %v3697 = vshrl.u32 %v3696, 7
    %v3698 = vsub.s32 %v3695, %v3697
    %v3699 = vrot.slane %v3685, %v3698
    %v3700 = vcombine.high %v3692, %v3692
    %v3701 = vcombine.high %v3699, %v3699
    %v3706 = vmul.f32 %v3672, %v3692
    %v3707 = vmul.f32 %v3673, %v3700
    %v3708 = vmul.f32 %v3674, %v3699
    %v3709 = vmul.f32 %v3675, %v3701
    %v3710 = vmul.f32 %v3676, %v3692
    %v3711 = vmul.f32 %v3677, %v3700
    %v3712 = vmul.f32 %v3678, %v3699
    %v3713 = vmul.f32 %v3679, %v3701
    %v3715 = vlaneseq
    %v3716 = vshrl.u32 %v3715, 7
    %v3717 = vsub.s32 0, %v3716
    %v3718 = vrot.slane %v3415, %v3717
    %v3719 = vcombine.high %v3718, %v3718
    %v3721 = vunpack.c.l.s4 1983009808
    %v3722 = vunpack.c.0.s8 %v3721
    %v3723 = vlaneseq
    %v3724 = vshrl.u32 %v3723, 7
    %v3725 = vsub.s32 %v3722, %v3724
    %v3726 = vrot.slane %v3718, %v3725
    %v3728 = vunpack.c.l.s4 1983009808
    %v3729 = vunpack.c.0.s8 %v3728
    %v3730 = vlaneseq
    %v3731 = vshrl.u32 %v3730, 7
    %v3732 = vsub.s32 %v3729, %v3731
    %v3733 = vrot.slane %v3719, %v3732
    %v3734 = vcombine.high %v3726, %v3726
    %v3735 = vcombine.high %v3733, %v3733
    %v3740 = vadd.f32 %v3706, %v3726
    %v3741 = vadd.f32 %v3707, %v3734
    %v3742 = vadd.f32 %v3708, %v3733
    %v3743 = vadd.f32 %v3709, %v3735
    %v3744 = vadd.f32 %v3710, %v3726
    %v3745 = vadd.f32 %v3711, %v3734
    %v3746 = vadd.f32 %v3712, %v3733
    %v3747 = vadd.f32 %v3713, %v3735
    %vm3748 = vcmask 254976
    %3749 = vst.msk [vmem:[#allocation12] sm:$0x3] %vm3748, %v3740
    %3750 = vst.msk [vmem:[#allocation12 + $0x2] sm:$0x3] %vm3748, %v3741
    %3751 = vst.msk [vmem:[#allocation12 + $0x4] sm:$0x3] %vm3748, %v3742
    %3752 = vst.msk [vmem:[#allocation12 + $0x6] sm:$0x3] %vm3748, %v3743
    %3753 = vst.msk [vmem:[#allocation12 + $0x8] sm:$0x3] %vm3748, %v3744
    %3754 = vst.msk [vmem:[#allocation12 + $0xa] sm:$0x3] %vm3748, %v3745
    %3755 = vst.msk [vmem:[#allocation12 + $0xc] sm:$0x3] %vm3748, %v3746
    %3756 = vst.msk [vmem:[#allocation12 + $0xe] sm:$0x3] %vm3748, %v3747
    // Predicated region
    $region94: #{tpu_custom_call.1} parent=1 // pred_check
      _
    $region95: #{tpu_custom_call.1} parent=1 // pred_check_branch
      %3758 = sbr.rel (0) target = $region97
    $region96: #{tpu_custom_call.1} parent=1 // pred_region
      %s3760 = ssub.s32 256, 256
      %3761 = vsyncadd [#allocation5], %s3760
      %s3762 = sshll.u32 [#allocation12], 4
      %s3763 = int_to_ptr.vmem [resolvable:$true] %s3762
      %3768 = dma.vmem_to_hbm [thread:$0]  %s3763, 256, %s18, [#allocation5], 32, 32, 2
    $region97: #{tpu_custom_call.1} parent=1 // pred_fallthru
      _
    // Predicated region
    $region98: #{tpu_custom_call.1} parent=1 // pred_check
      _
    $region99: #{tpu_custom_call.1} parent=1 // pred_check_branch
      %3770 = sbr.rel (0) target = $region101
    $region100: #{tpu_custom_call.1} parent=1 // pred_region
      %3771 = dma.done [#allocation5], 256
    $region101: #{tpu_custom_call.1} parent=1 // pred_fallthru
      _
    %3772 = vsyncpa [#allocation4], 1
    %3773 = vsyncpa [#allocation7], 1
    %3774 = vsyncpa [#allocation10], 1
    %3775 = vsyncpa [#allocation5], 1

// kernel: tpu_custom_call.1
$region0: #{tpu_custom_call.1}
  #allocation0 [shape = 'u32[]', space=smem, size = 0x4, offset = 0x4, fixed_abs, tag = 'smem constant byte address 0x4 - core index']
  #allocation1 [shape = 'u32[144,128]{1,0:T(1,128)}', space=vmem, size = 0x12000, scoped, tag = 'internal scratch']
  #allocation2 [shape = 'bf16[8,2,32]{2,1,0:T(2,128)(2,1)}', space=vmem, size = 0x1000, scoped, tag = 'scratch operand']
  %s0 = inlined_call_operand.hbm [shape: bf16[8,2,32], index: 0, kind: input, shape index: {}]
  %s1 = inlined_call_operand.hbm [shape: bf16[8,2,32], index: 1, kind: input, shape index: {}]
  %s2 = inlined_call_operand.vmem [shape: bf16[32,32], index: 2, kind: input, shape index: {}]
  %s3 = inlined_call_operand.vmem [shape: f32[1,32], index: 3, kind: input, shape index: {}]
  %s4 = inlined_call_operand.vmem [shape: bf16[32,32], index: 4, kind: input, shape index: {}]
  %s5 = inlined_call_operand.vmem [shape: f32[1,32], index: 5, kind: input, shape index: {}]
  %s6 = inlined_call_operand.vmem [shape: bf16[32,32], index: 6, kind: input, shape index: {}]
  %s7 = inlined_call_operand.hbm [shape: f32[1,32], index: 7, kind: input, shape index: {}]
  %s8 = inlined_call_operand.hbm [shape: bf16[32,32], index: 8, kind: input, shape index: {}]
  %s9 = inlined_call_operand.hbm [shape: f32[1,32], index: 9, kind: input, shape index: {}]
  %s10 = inlined_call_operand.vmem [shape: f32[1,32], index: 10, kind: input, shape index: {}]
  %s11 = inlined_call_operand.vmem [shape: f32[1,32], index: 11, kind: input, shape index: {}]
  %s12 = inlined_call_operand.vmem [shape: bf16[32,64], index: 12, kind: input, shape index: {}]
  %s13 = inlined_call_operand.vmem [shape: f32[1,64], index: 13, kind: input, shape index: {}]
  %s14 = inlined_call_operand.vmem [shape: bf16[64,32], index: 14, kind: input, shape index: {}]
  %s15 = inlined_call_operand.vmem [shape: f32[1,32], index: 15, kind: input, shape index: {}]
  %s16 = inlined_call_operand.vmem [shape: f32[1,32], index: 16, kind: input, shape index: {}]
  %s17 = inlined_call_operand.vmem [shape: f32[1,32], index: 17, kind: input, shape index: {}]
  %s18 = inlined_call_operand.hbm [shape: f32[8,2,32], index: 18, kind: output, shape index: {}]
  %s19 = sld [smem:[#allocation0]]
  $region102: #{tpu_custom_call.1} parent=0
    _
  %s21 = ssub.s32 1, %s19
  %s22 = scalar_select 0, %s21, %s19
  $region1: #{tpu_custom_call.1} parent=0
    #allocation3 [shape = 'u8[4096]{0}', space=vmem, size = 0x1000, scoped, tag = 'input window, operand 0, single buffered']
    #allocation4 [shape = 's32[1]{0}', space=sflag, size = 0x4, scoped, tag = 'scoped memory for tpu_custom_call.1']
    #allocation5 [shape = 's32[1]{0}', space=sflag, size = 0x4, scoped, tag = 'scoped memory for tpu_custom_call.1']
    #allocation6 [shape = 'u8[4096]{0}', space=vmem, size = 0x1000, scoped, tag = 'input window, operand 1, single buffered']
    #allocation7 [shape = 's32[1]{0}', space=sflag, size = 0x4, scoped, tag = 'scoped memory for tpu_custom_call.1']
    #allocation8 [shape = 'u8[512]{0}', space=vmem, size = 0x400, scoped, tag = 'input window, operand 7, single buffered']
    #allocation9 [shape = 'u8[8192]{0}', space=vmem, size = 0x2000, scoped, tag = 'input window, operand 8, single buffered']
    #allocation10 [shape = 's32[1]{0}', space=sflag, size = 0x4, scoped, tag = 'scoped memory for tpu_custom_call.1']
    #allocation11 [shape = 'u8[512]{0}', space=vmem, size = 0x400, scoped, tag = 'input window, operand 9, single buffered']
    #allocation12 [shape = 'u8[8192]{0}', space=vmem, size = 0x2000, scoped, tag = 'output window, operand 0, single buffered']
    %23 = vsyncpa [#allocation4], 0
    %24 = vsyncpa [#allocation7], 0
    %25 = vsyncpa [#allocation10], 0
    %26 = vsyncpa [#allocation5], 0
    // Predicated region
    $region2: #{tpu_custom_call.1} parent=1 // pred_check
      _
    $region3: #{tpu_custom_call.1} parent=1 // pred_check_branch
      %28 = sbr.rel (0) target = $region5
    $region4: #{tpu_custom_call.1} parent=1 // pred_region
      %s30 = ssub.s32 128, 128
      %31 = vsyncadd [#allocation4], %s30
      %s32 = sshll.u32 [#allocation3], 4
      %s33 = int_to_ptr.vmem [resolvable:$true] %s32
      %38 = dma.hbm_to_vmem [thread:$0]  %s0, 128, %s33, [#allocation4], 16, 16, 1
    $region5: #{tpu_custom_call.1} parent=1 // pred_fallthru
      _
    // Predicated region
    $region6: #{tpu_custom_call.1} parent=1 // pred_check
      _
    $region7: #{tpu_custom_call.1} parent=1 // pred_check_branch
      %40 = sbr.rel (0) target = $region9
    $region8: #{tpu_custom_call.1} parent=1 // pred_region
      %s42 = ssub.s32 128, 128
      %43 = vsyncadd [#allocation7], %s42
      %s44 = sshll.u32 [#allocation6], 4
      %s45 = int_to_ptr.vmem [resolvable:$true] %s44
      %50 = dma.hbm_to_vmem [thread:$0]  %s1, 128, %s45, [#allocation7], 16, 16, 1
    $region9: #{tpu_custom_call.1} parent=1 // pred_fallthru
      _
    // Predicated region
    $region10: #{tpu_custom_call.1} parent=1 // pred_check
      _
    $region11: #{tpu_custom_call.1} parent=1 // pred_check_branch
      %52 = sbr.rel (0) target = $region13
    $region12: #{tpu_custom_call.1} parent=1 // pred_region
      _
    $region13: #{tpu_custom_call.1} parent=1 // pred_fallthru
      _
    // Predicated region
    $region14: #{tpu_custom_call.1} parent=1 // pred_check
      _
    $region15: #{tpu_custom_call.1} parent=1 // pred_check_branch
      %54 = sbr.rel (0) target = $region17
    $region16: #{tpu_custom_call.1} parent=1 // pred_region
      _
    $region17: #{tpu_custom_call.1} parent=1 // pred_fallthru
      _
    // Predicated region
    $region18: #{tpu_custom_call.1} parent=1 // pred_check
      _
    $region19: #{tpu_custom_call.1} parent=1 // pred_check_branch
      %56 = sbr.rel (0) target = $region21
    $region20: #{tpu_custom_call.1} parent=1 // pred_region
      _
    $region21: #{tpu_custom_call.1} parent=1 // pred_fallthru
      _
    // Predicated region
    $region22: #{tpu_custom_call.1} parent=1 // pred_check
      _
    $region23: #{tpu_custom_call.1} parent=1 // pred_check_branch
      %58 = sbr.rel (0) target = $region25
    $region24: #{tpu_custom_call.1} parent=1 // pred_region
      _
    $region25: #{tpu_custom_call.1} parent=1 // pred_fallthru
      _
    // Predicated region
    $region26: #{tpu_custom_call.1} parent=1 // pred_check
      _
    $region27: #{tpu_custom_call.1} parent=1 // pred_check_branch
      %60 = sbr.rel (0) target = $region29
    $region28: #{tpu_custom_call.1} parent=1 // pred_region
      _
    $region29: #{tpu_custom_call.1} parent=1 // pred_fallthru
      _
    // Predicated region
    $region30: #{tpu_custom_call.1} parent=1 // pred_check
      _
    $region31: #{tpu_custom_call.1} parent=1 // pred_check_branch
      %62 = sbr.rel (0) target = $region33
    $region32: #{tpu_custom_call.1} parent=1 // pred_region
      %s64 = ssub.s32 16, 16
      %65 = vsyncadd [#allocation7], %s64
      %s67 = sshll.u32 [#allocation8], 4
      %s68 = int_to_ptr.vmem [resolvable:$true] %s67
      %70 = dma.hbm_to_vmem [thread:$0]  %s7, 16, %s68, [#allocation7]
    $region33: #{tpu_custom_call.1} parent=1 // pred_fallthru
      _
    // Predicated region
    $region34: #{tpu_custom_call.1} parent=1 // pred_check
      _
    $region35: #{tpu_custom_call.1} parent=1 // pred_check_branch
      %72 = sbr.rel (0) target = $region37
    $region36: #{tpu_custom_call.1} parent=1 // pred_region
      %s74 = ssub.s32 256, 256
      %75 = vsyncadd [#allocation10], %s74
      %s76 = sshll.u32 [#allocation9], 4
      %s77 = int_to_ptr.vmem [resolvable:$true] %s76
      %82 = dma.hbm_to_vmem [thread:$0]  %s8, 256, %s77, [#allocation10], 64, 64, 4
    $region37: #{tpu_custom_call.1} parent=1 // pred_fallthru
      _
    // Predicated region
    $region38: #{tpu_custom_call.1} parent=1 // pred_check
      _
    $region39: #{tpu_custom_call.1} parent=1 // pred_check_branch
      %84 = sbr.rel (0) target = $region41
    $region40: #{tpu_custom_call.1} parent=1 // pred_region
      %s86 = ssub.s32 16, 16
      %87 = vsyncadd [#allocation10], %s86
      %s89 = sshll.u32 [#allocation11], 4
      %s90 = int_to_ptr.vmem [resolvable:$true] %s89
      %92 = dma.hbm_to_vmem [thread:$0]  %s9, 16, %s90, [#allocation10]
    $region41: #{tpu_custom_call.1} parent=1 // pred_fallthru
      _
    // Predicated region
    $region42: #{tpu_custom_call.1} parent=1 // pred_check
      _
    $region43: #{tpu_custom_call.1} parent=1 // pred_check_branch
      %94 = sbr.rel (0) target = $region45
    $region44: #{tpu_custom_call.1} parent=1 // pred_region
      _
    $region45: #{tpu_custom_call.1} parent=1 // pred_fallthru
      _
    // Predicated region
    $region46: #{tpu_custom_call.1} parent=1 // pred_check
      _
    $region47: #{tpu_custom_call.1} parent=1 // pred_check_branch
      %96 = sbr.rel (0) target = $region49
    $region48: #{tpu_custom_call.1} parent=1 // pred_region
      _
    $region49: #{tpu_custom_call.1} parent=1 // pred_fallthru
      _
    // Predicated region
    $region50: #{tpu_custom_call.1} parent=1 // pred_check
      _
    $region51: #{tpu_custom_call.1} parent=1 // pred_check_branch
      %98 = sbr.rel (0) target = $region53
    $region52: #{tpu_custom_call.1} parent=1 // pred_region
      _
    $region53: #{tpu_custom_call.1} parent=1 // pred_fallthru
      _
    // Predicated region
    $region54: #{tpu_custom_call.1} parent=1 // pred_check
      _
    $region55: #{tpu_custom_call.1} parent=1 // pred_check_branch
      %100 = sbr.rel (0) target = $region57
    $region56: #{tpu_custom_call.1} parent=1 // pred_region
      _
    $region57: #{tpu_custom_call.1} parent=1 // pred_fallthru
      _
    // Predicated region
    $region58: #{tpu_custom_call.1} parent=1 // pred_check
      _
    $region59: #{tpu_custom_call.1} parent=1 // pred_check_branch
      %102 = sbr.rel (0) target = $region61
    $region60: #{tpu_custom_call.1} parent=1 // pred_region
      _
    $region61: #{tpu_custom_call.1} parent=1 // pred_fallthru
      _
    // Predicated region
    $region62: #{tpu_custom_call.1} parent=1 // pred_check
      _
    $region63: #{tpu_custom_call.1} parent=1 // pred_check_branch
      %104 = sbr.rel (0) target = $region65
    $region64: #{tpu_custom_call.1} parent=1 // pred_region
      _
    $region65: #{tpu_custom_call.1} parent=1 // pred_fallthru
      _
    // Predicated region
    $region66: #{tpu_custom_call.1} parent=1 // pred_check
      _
    $region67: #{tpu_custom_call.1} parent=1 // pred_check_branch
      %106 = sbr.rel (0) target = $region69
    $region68: #{tpu_custom_call.1} parent=1 // pred_region
      _
    $region69: #{tpu_custom_call.1} parent=1 // pred_fallthru
      _
    // Predicated region
    $region70: #{tpu_custom_call.1} parent=1 // pred_check
      _
    $region71: #{tpu_custom_call.1} parent=1 // pred_check_branch
      %108 = sbr.rel (0) target = $region73
    $region72: #{tpu_custom_call.1} parent=1 // pred_region
      _
    $region73: #{tpu_custom_call.1} parent=1 // pred_fallthru
      _
    // Predicated region
    $region74: #{tpu_custom_call.1} parent=1 // pred_check
      _
    $region75: #{tpu_custom_call.1} parent=1 // pred_check_branch
      %110 = sbr.rel (0) target = $region77
    $region76: #{tpu_custom_call.1} parent=1 // pred_region
      %111 = dma.done [#allocation4], 128
    $region77: #{tpu_custom_call.1} parent=1 // pred_fallthru
      _
    // Predicated region
    $region78: #{tpu_custom_call.1} parent=1 // pred_check
      _
    $region79: #{tpu_custom_call.1} parent=1 // pred_check_branch
      %113 = sbr.rel (0) target = $region81
    $region80: #{tpu_custom_call.1} parent=1 // pred_region
      %114 = dma.done [#allocation7], 128
    $region81: #{tpu_custom_call.1} parent=1 // pred_fallthru
      _
    // Predicated region
    $region82: #{tpu_custom_call.1} parent=1 // pred_check
      _
    $region83: #{tpu_custom_call.1} parent=1 // pred_check_branch
      %116 = sbr.rel (0) target = $region85
    $region84: #{tpu_custom_call.1} parent=1 // pred_region
      %117 = dma.done [#allocation7], 16
    $region85: #{tpu_custom_call.1} parent=1 // pred_fallthru
      _
    // Predicated region
    $region86: #{tpu_custom_call.1} parent=1 // pred_check
      _
    $region87: #{tpu_custom_call.1} parent=1 // pred_check_branch
      %119 = sbr.rel (0) target = $region89
    $region88: #{tpu_custom_call.1} parent=1 // pred_region
      %120 = dma.done [#allocation10], 256
    $region89: #{tpu_custom_call.1} parent=1 // pred_fallthru
      _
    // Predicated region
    $region90: #{tpu_custom_call.1} parent=1 // pred_check
      _
    $region91: #{tpu_custom_call.1} parent=1 // pred_check_branch
      %122 = sbr.rel (0) target = $region93
    $region92: #{tpu_custom_call.1} parent=1 // pred_region
      %123 = dma.done [#allocation10], 16
    $region93: #{tpu_custom_call.1} parent=1 // pred_fallthru
      _
    %v125 = vld [vmem:[#allocation3] sm:$0x1]
    %v126 = vld [vmem:[#allocation3 + $0x1] sm:$0x1]
    %v127 = vld [vmem:[#allocation3 + $0x2] sm:$0x1]
    %v128 = vld [vmem:[#allocation3 + $0x3] sm:$0x1]
    %v129 = vld [vmem:[#allocation3 + $0x4] sm:$0x1]
    %v130 = vld [vmem:[#allocation3 + $0x5] sm:$0x1]
    %v131 = vld [vmem:[#allocation3 + $0x6] sm:$0x1]
    %v132 = vld [vmem:[#allocation3 + $0x7] sm:$0x1]
    %v133 = vld [vmem:[#allocation6] sm:$0x1]
    %v134 = vld [vmem:[#allocation6 + $0x1] sm:$0x1]
    %v135 = vld [vmem:[#allocation6 + $0x2] sm:$0x1]
    %v136 = vld [vmem:[#allocation6 + $0x3] sm:$0x1]
    %v137 = vld [vmem:[#allocation6 + $0x4] sm:$0x1]
    %v138 = vld [vmem:[#allocation6 + $0x5] sm:$0x1]
    %v139 = vld [vmem:[#allocation6 + $0x6] sm:$0x1]
    %v140 = vld [vmem:[#allocation6 + $0x7] sm:$0x1]
    %v141 = vld [vmem:[%s2] sm:$0xf]
    %v142 = vld [vmem:[%s2 + $0x4] sm:$0xf]
    %v143 = vld [vmem:[%s2 + $0x8] sm:$0xf]
    %v144 = vld [vmem:[%s2 + $0xc] sm:$0xf]
    %v145 = vld [vmem:[%s3] sm:$0x1]
    %v147 = vlaneseq
    %v148 = vshrl.u32 %v147, 7
    %v149 = vsub.s32 0, %v148
    %v150 = vrot.slane %v145, %v149
    %v160 = vcombine.low %v125, %v126
    %v161 = vcombine.low %v127, %v128
    %v162 = vcombine.low %v129, %v130
    %v163 = vcombine.low %v131, %v132
    %v165 = vunpack.c.l.s4 1966171168
    %v166 = vunpack.c.0.s8 %v165
    %v167 = vlaneseq
    %v168 = vshrl.u32 %v167, 7
    %v169 = vsub.s32 %v166, %v168
    %v170 = vrot.slane %v160, %v169
    %v172 = vunpack.c.l.s4 1966171168
    %v173 = vunpack.c.0.s8 %v172
    %v174 = vlaneseq
    %v175 = vshrl.u32 %v174, 7
    %v176 = vsub.s32 %v173, %v175
    %v177 = vrot.slane %v161, %v176
    %v179 = vunpack.c.l.s4 1966171168
    %v180 = vunpack.c.0.s8 %v179
    %v181 = vlaneseq
    %v182 = vshrl.u32 %v181, 7
    %v183 = vsub.s32 %v180, %v182
    %v184 = vrot.slane %v162, %v183
    %v186 = vunpack.c.l.s4 1966171168
    %v187 = vunpack.c.0.s8 %v186
    %v188 = vlaneseq
    %v189 = vshrl.u32 %v188, 7
    %v190 = vsub.s32 %v187, %v189
    %v191 = vrot.slane %v163, %v190
    %v192 = vcombine.low %v170, %v177
    %v193 = vcombine.low %v184, %v191
    %v195 = vunpack.c.l.s4 1966171168
    %v196 = vunpack.c.0.s8 %v195
    %v197 = vlaneseq
    %v198 = vshrl.u32 %v197, 7
    %v199 = vsub.s32 %v196, %v198
    %v200 = vrot.slane %v192, %v199
    %v202 = vunpack.c.l.s4 1966171168
    %v203 = vunpack.c.0.s8 %v202
    %v204 = vlaneseq
    %v205 = vshrl.u32 %v204, 7
    %v206 = vsub.s32 %v203, %v205
    %v207 = vrot.slane %v193, %v206
    %v208 = vcombine.low %v200, %v207
    %v213 = vunpack.c.l.b16 %v141
    %v214 = vunpack.c.l.b16 %v142
    %v215 = vunpack.c.l.b16 %v143
    %v216 = vunpack.c.l.b16 %v144
    %v217 = vpack.c.b16 %v214, %v213
    %v218 = vpack.c.b16 %v216, %v215
    %vm221 = vcmask 261120
    %v223 = vsel %vm221, %v208, 0
    %225 = vmatprep.subr.bf16.mxu0 0
    %226 = vmatpush1.bf16.msra.mxu0 %v217
    %227 = vmatprep.subr.bf16.mxu0 0
    %228 = vmatpush1.bf16.msra.mxu0 %v218
    %229 = vmatprep.subr.bf16.mxu0 0
    %230 = vmatpush1.bf16.msra.mxu0 0
    %231 = vmatprep.subr.bf16.mxu0 0
    %232 = vmatpush1.bf16.msra.mxu0 0
    %233 = vmatprep.subr.bf16.mxu0 0
    %234 = vmatpush1.bf16.msra.mxu0 0
    %235 = vmatprep.subr.bf16.mxu0 0
    %236 = vmatpush1.bf16.msra.mxu0 0
    %237 = vmatprep.subr.bf16.mxu0 0
    %238 = vmatpush1.bf16.msra.mxu0 0
    %239 = vmatprep.subr.bf16.mxu0 0
    %240 = vmatpush1.bf16.msra.mxu0 0
    %241 = vmatprep.subr.bf16.mxu0 0
    %242 = vmatpush1.bf16.msra.mxu0 0
    %243 = vmatprep.subr.bf16.mxu0 0
    %244 = vmatpush1.bf16.msra.mxu0 0
    %245 = vmatprep.subr.bf16.mxu0 0
    %246 = vmatpush1.bf16.msra.mxu0 0
    %247 = vmatprep.subr.bf16.mxu0 0
    %248 = vmatpush1.bf16.msra.mxu0 0
    %249 = vmatprep.subr.bf16.mxu0 0
    %250 = vmatpush1.bf16.msra.mxu0 0
    %251 = vmatprep.subr.bf16.mxu0 0
    %252 = vmatpush1.bf16.msra.mxu0 0
    %253 = vmatprep.subr.bf16.mxu0 0
    %254 = vmatpush1.bf16.msra.mxu0 0
    %255 = vmatprep.subr.bf16.mxu0 0
    %256 = vmatpush1.bf16.msra.mxu0 0
    %257 = vmatprep.mubr.bf16.mxu0 0
    %258 = vmatmul.mubr.bf16.gmra.mrb[0].mxu0 %v223
    %v259 = vpop.f32.mrb[0].mxu0
    %v260 = vadd.f32 %v150, %v259
    %v261 = vpop.f32.mrb[0].mxu0
    %v262 = vpop.f32.mrb[0].mxu0
    %v263 = vadd.f32 %v150, %v262
    %v264 = vpop.f32.mrb[0].mxu0
    %265 = vdwg.mxu0
    %v266 = vld [vmem:[%s4] sm:$0xf]
    %v267 = vld [vmem:[%s4 + $0x4] sm:$0xf]
    %v268 = vld [vmem:[%s4 + $0x8] sm:$0xf]
    %v269 = vld [vmem:[%s4 + $0xc] sm:$0xf]
    %v270 = vld [vmem:[%s5] sm:$0x1]
    %v272 = vlaneseq
    %v273 = vshrl.u32 %v272, 7
    %v274 = vsub.s32 0, %v273
    %v275 = vrot.slane %v270, %v274
    %v281 = vunpack.c.l.b16 %v266
    %v282 = vunpack.c.l.b16 %v267
    %v283 = vunpack.c.l.b16 %v268
    %v284 = vunpack.c.l.b16 %v269
    %v285 = vpack.c.b16 %v282, %v281
    %v286 = vpack.c.b16 %v284, %v283
    %289 = vmatprep.subr.bf16.mxu0 0
    %290 = vmatpush1.bf16.msra.mxu0 %v285
    %291 = vmatprep.subr.bf16.mxu0 0
    %292 = vmatpush1.bf16.msra.mxu0 %v286
    %293 = vmatprep.subr.bf16.mxu0 0
    %294 = vmatpush1.bf16.msra.mxu0 0
    %295 = vmatprep.subr.bf16.mxu0 0
    %296 = vmatpush1.bf16.msra.mxu0 0
    %297 = vmatprep.subr.bf16.mxu0 0
    %298 = vmatpush1.bf16.msra.mxu0 0
    %299 = vmatprep.subr.bf16.mxu0 0
    %300 = vmatpush1.bf16.msra.mxu0 0
    %301 = vmatprep.subr.bf16.mxu0 0
    %302 = vmatpush1.bf16.msra.mxu0 0
    %303 = vmatprep.subr.bf16.mxu0 0
    %304 = vmatpush1.bf16.msra.mxu0 0
    %305 = vmatprep.subr.bf16.mxu0 0
    %306 = vmatpush1.bf16.msra.mxu0 0
    %307 = vmatprep.subr.bf16.mxu0 0
    %308 = vmatpush1.bf16.msra.mxu0 0
    %309 = vmatprep.subr.bf16.mxu0 0
    %310 = vmatpush1.bf16.msra.mxu0 0
    %311 = vmatprep.subr.bf16.mxu0 0
    %312 = vmatpush1.bf16.msra.mxu0 0
    %313 = vmatprep.subr.bf16.mxu0 0
    %314 = vmatpush1.bf16.msra.mxu0 0
    %315 = vmatprep.subr.bf16.mxu0 0
    %316 = vmatpush1.bf16.msra.mxu0 0
    %317 = vmatprep.subr.bf16.mxu0 0
    %318 = vmatpush1.bf16.msra.mxu0 0
    %319 = vmatprep.subr.bf16.mxu0 0
    %320 = vmatpush1.bf16.msra.mxu0 0
    %321 = vmatprep.mubr.bf16.mxu0 0
    %322 = vmatmul.mubr.bf16.gmra.mrb[0].mxu0 %v223
    %v323 = vpop.f32.mrb[0].mxu0
    %v324 = vadd.f32 %v275, %v323
    %v325 = vpop.f32.mrb[0].mxu0
    %v326 = vpop.f32.mrb[0].mxu0
    %v327 = vadd.f32 %v275, %v326
    %v328 = vpop.f32.mrb[0].mxu0
    %329 = vdwg.mxu0
    %v330 = vld [vmem:[%s6] sm:$0xf]
    %v331 = vld [vmem:[%s6 + $0x4] sm:$0xf]
    %v332 = vld [vmem:[%s6 + $0x8] sm:$0xf]
    %v333 = vld [vmem:[%s6 + $0xc] sm:$0xf]
    %v334 = vld [vmem:[#allocation8] sm:$0x1]
    %v336 = vlaneseq
    %v337 = vshrl.u32 %v336, 7
    %v338 = vsub.s32 0, %v337
    %v339 = vrot.slane %v334, %v338
    %v349 = vcombine.low %v133, %v134
    %v350 = vcombine.low %v135, %v136
    %v351 = vcombine.low %v137, %v138
    %v352 = vcombine.low %v139, %v140
    %v354 = vunpack.c.l.s4 1966171168
    %v355 = vunpack.c.0.s8 %v354
    %v356 = vlaneseq
    %v357 = vshrl.u32 %v356, 7
    %v358 = vsub.s32 %v355, %v357
    %v359 = vrot.slane %v349, %v358
    %v361 = vunpack.c.l.s4 1966171168
    %v362 = vunpack.c.0.s8 %v361
    %v363 = vlaneseq
    %v364 = vshrl.u32 %v363, 7
    %v365 = vsub.s32 %v362, %v364
    %v366 = vrot.slane %v350, %v365
    %v368 = vunpack.c.l.s4 1966171168
    %v369 = vunpack.c.0.s8 %v368
    %v370 = vlaneseq
    %v371 = vshrl.u32 %v370, 7
    %v372 = vsub.s32 %v369, %v371
    %v373 = vrot.slane %v351, %v372
    %v375 = vunpack.c.l.s4 1966171168
    %v376 = vunpack.c.0.s8 %v375
    %v377 = vlaneseq
    %v378 = vshrl.u32 %v377, 7
    %v379 = vsub.s32 %v376, %v378
    %v380 = vrot.slane %v352, %v379
    %v381 = vcombine.low %v359, %v366
    %v382 = vcombine.low %v373, %v380
    %v384 = vunpack.c.l.s4 1966171168
    %v385 = vunpack.c.0.s8 %v384
    %v386 = vlaneseq
    %v387 = vshrl.u32 %v386, 7
    %v388 = vsub.s32 %v385, %v387
    %v389 = vrot.slane %v381, %v388
    %v391 = vunpack.c.l.s4 1966171168
    %v392 = vunpack.c.0.s8 %v391
    %v393 = vlaneseq
    %v394 = vshrl.u32 %v393, 7
    %v395 = vsub.s32 %v392, %v394
    %v396 = vrot.slane %v382, %v395
    %v397 = vcombine.low %v389, %v396
    %v402 = vunpack.c.l.b16 %v330
    %v403 = vunpack.c.l.b16 %v331
    %v404 = vunpack.c.l.b16 %v332
    %v405 = vunpack.c.l.b16 %v333
    %v406 = vpack.c.b16 %v403, %v402
    %v407 = vpack.c.b16 %v405, %v404
    %v411 = vsel %vm221, %v397, 0
    %413 = vmatprep.subr.bf16.mxu0 0
    %414 = vmatpush1.bf16.msra.mxu0 %v406
    %415 = vmatprep.subr.bf16.mxu0 0
    %416 = vmatpush1.bf16.msra.mxu0 %v407
    %417 = vmatprep.subr.bf16.mxu0 0
    %418 = vmatpush1.bf16.msra.mxu0 0
    %419 = vmatprep.subr.bf16.mxu0 0
    %420 = vmatpush1.bf16.msra.mxu0 0
    %421 = vmatprep.subr.bf16.mxu0 0
    %422 = vmatpush1.bf16.msra.mxu0 0
    %423 = vmatprep.subr.bf16.mxu0 0
    %424 = vmatpush1.bf16.msra.mxu0 0
    %425 = vmatprep.subr.bf16.mxu0 0
    %426 = vmatpush1.bf16.msra.mxu0 0
    %427 = vmatprep.subr.bf16.mxu0 0
    %428 = vmatpush1.bf16.msra.mxu0 0
    %429 = vmatprep.subr.bf16.mxu0 0
    %430 = vmatpush1.bf16.msra.mxu0 0
    %431 = vmatprep.subr.bf16.mxu0 0
    %432 = vmatpush1.bf16.msra.mxu0 0
    %433 = vmatprep.subr.bf16.mxu0 0
    %434 = vmatpush1.bf16.msra.mxu0 0
    %435 = vmatprep.subr.bf16.mxu0 0
    %436 = vmatpush1.bf16.msra.mxu0 0
    %437 = vmatprep.subr.bf16.mxu0 0
    %438 = vmatpush1.bf16.msra.mxu0 0
    %439 = vmatprep.subr.bf16.mxu0 0
    %440 = vmatpush1.bf16.msra.mxu0 0
    %441 = vmatprep.subr.bf16.mxu0 0
    %442 = vmatpush1.bf16.msra.mxu0 0
    %443 = vmatprep.subr.bf16.mxu0 0
    %444 = vmatpush1.bf16.msra.mxu0 0
    %445 = vmatprep.mubr.bf16.mxu0 0
    %446 = vmatmul.mubr.bf16.gmra.mrb[0].mxu0 %v411
    %v447 = vpop.f32.mrb[0].mxu0
    %v448 = vadd.f32 %v339, %v447
    %v449 = vpop.f32.mrb[0].mxu0
    %v450 = vpop.f32.mrb[0].mxu0
    %v451 = vadd.f32 %v339, %v450
    %v452 = vpop.f32.mrb[0].mxu0
    %453 = vdwg.mxu0
    %v454 = vpack.c.bf16 %v263, %v260
    %v456 = vcombine.high %v454, %v454
    %v458 = vunpack.c.l.s4 1966171168
    %v459 = vunpack.c.0.s8 %v458
    %v460 = vlaneseq
    %v461 = vshrl.u32 %v460, 7
    %v462 = vsub.s32 %v459, %v461
    %v463 = vrot.slane %v454, %v462
    %v465 = vunpack.c.l.s4 1966171168
    %v466 = vunpack.c.0.s8 %v465
    %v467 = vlaneseq
    %v468 = vshrl.u32 %v467, 7
    %v469 = vsub.s32 %v466, %v468
    %v470 = vrot.slane %v456, %v469
    %v471 = vcombine.high %v463, %v463
    %v472 = vcombine.high %v470, %v470
    %v474 = vunpack.c.l.s4 1966171168
    %v475 = vunpack.c.0.s8 %v474
    %v476 = vlaneseq
    %v477 = vshrl.u32 %v476, 7
    %v478 = vsub.s32 %v475, %v477
    %v479 = vrot.slane %v463, %v478
    %v481 = vunpack.c.l.s4 1966171168
    %v482 = vunpack.c.0.s8 %v481
    %v483 = vlaneseq
    %v484 = vshrl.u32 %v483, 7
    %v485 = vsub.s32 %v482, %v484
    %v486 = vrot.slane %v470, %v485
    %v488 = vunpack.c.l.s4 1966171168
    %v489 = vunpack.c.0.s8 %v488
    %v490 = vlaneseq
    %v491 = vshrl.u32 %v490, 7
    %v492 = vsub.s32 %v489, %v491
    %v493 = vrot.slane %v471, %v492
    %v495 = vunpack.c.l.s4 1966171168
    %v496 = vunpack.c.0.s8 %v495
    %v497 = vlaneseq
    %v498 = vshrl.u32 %v497, 7
    %v499 = vsub.s32 %v496, %v498
    %v500 = vrot.slane %v472, %v499
    %v501 = vcombine.high %v479, %v479
    %v502 = vcombine.high %v486, %v486
    %v503 = vcombine.high %v493, %v493
    %v504 = vcombine.high %v500, %v500
    %v505 = vpack.c.bf16 %v327, %v324
    %v507 = vcombine.high %v505, %v505
    %v509 = vunpack.c.l.s4 1966171168
    %v510 = vunpack.c.0.s8 %v509
    %v511 = vlaneseq
    %v512 = vshrl.u32 %v511, 7
    %v513 = vsub.s32 %v510, %v512
    %v514 = vrot.slane %v505, %v513
    %v516 = vunpack.c.l.s4 1966171168
    %v517 = vunpack.c.0.s8 %v516
    %v518 = vlaneseq
    %v519 = vshrl.u32 %v518, 7
    %v520 = vsub.s32 %v517, %v519
    %v521 = vrot.slane %v507, %v520
    %v522 = vcombine.high %v514, %v514
    %v523 = vcombine.high %v521, %v521
    %v525 = vunpack.c.l.s4 1966171168
    %v526 = vunpack.c.0.s8 %v525
    %v527 = vlaneseq
    %v528 = vshrl.u32 %v527, 7
    %v529 = vsub.s32 %v526, %v528
    %v530 = vrot.slane %v514, %v529
    %v532 = vunpack.c.l.s4 1966171168
    %v533 = vunpack.c.0.s8 %v532
    %v534 = vlaneseq
    %v535 = vshrl.u32 %v534, 7
    %v536 = vsub.s32 %v533, %v535
    %v537 = vrot.slane %v521, %v536
    %v539 = vunpack.c.l.s4 1966171168
    %v540 = vunpack.c.0.s8 %v539
    %v541 = vlaneseq
    %v542 = vshrl.u32 %v541, 7
    %v543 = vsub.s32 %v540, %v542
    %v544 = vrot.slane %v522, %v543
    %v546 = vunpack.c.l.s4 1966171168
    %v547 = vunpack.c.0.s8 %v546
    %v548 = vlaneseq
    %v549 = vshrl.u32 %v548, 7
    %v550 = vsub.s32 %v547, %v549
    %v551 = vrot.slane %v523, %v550
    %v552 = vcombine.high %v530, %v530
    %v553 = vcombine.high %v537, %v537
    %v554 = vcombine.high %v544, %v544
    %v555 = vcombine.high %v551, %v551
    %v556 = vpack.c.bf16 %v451, %v448
    %v558 = vcombine.high %v556, %v556
    %v560 = vunpack.c.l.s4 1966171168
    %v561 = vunpack.c.0.s8 %v560
    %v562 = vlaneseq
    %v563 = vshrl.u32 %v562, 7
    %v564 = vsub.s32 %v561, %v563
    %v565 = vrot.slane %v556, %v564
    %v567 = vunpack.c.l.s4 1966171168
    %v568 = vunpack.c.0.s8 %v567
    %v569 = vlaneseq
    %v570 = vshrl.u32 %v569, 7
    %v571 = vsub.s32 %v568, %v570
    %v572 = vrot.slane %v558, %v571
    %v573 = vcombine.high %v565, %v565
    %v574 = vcombine.high %v572, %v572
    %v576 = vunpack.c.l.s4 1966171168
    %v577 = vunpack.c.0.s8 %v576
    %v578 = vlaneseq
    %v579 = vshrl.u32 %v578, 7
    %v580 = vsub.s32 %v577, %v579
    %v581 = vrot.slane %v565, %v580
    %v583 = vunpack.c.l.s4 1966171168
    %v584 = vunpack.c.0.s8 %v583
    %v585 = vlaneseq
    %v586 = vshrl.u32 %v585, 7
    %v587 = vsub.s32 %v584, %v586
    %v588 = vrot.slane %v572, %v587
    %v590 = vunpack.c.l.s4 1966171168
    %v591 = vunpack.c.0.s8 %v590
    %v592 = vlaneseq
    %v593 = vshrl.u32 %v592, 7
    %v594 = vsub.s32 %v591, %v593
    %v595 = vrot.slane %v573, %v594
    %v597 = vunpack.c.l.s4 1966171168
    %v598 = vunpack.c.0.s8 %v597
    %v599 = vlaneseq
    %v600 = vshrl.u32 %v599, 7
    %v601 = vsub.s32 %v598, %v600
    %v602 = vrot.slane %v574, %v601
    %v603 = vcombine.high %v581, %v581
    %v604 = vcombine.high %v588, %v588
    %v605 = vcombine.high %v595, %v595
    %v606 = vcombine.high %v602, %v602
    %v608 = vunpack.c.l.s4 1966171168
    %v609 = vunpack.c.0.s8 %v608
    %v610 = vlaneseq
    %v611 = vshrl.u32 %v610, 7
    %v612 = vsub.s32 %v609, %v611
    %v613 = vrot.slane %v479, %v612
    %v615 = vunpack.c.l.s4 1966171168
    %v616 = vunpack.c.0.s8 %v615
    %v617 = vlaneseq
    %v618 = vshrl.u32 %v617, 7
    %v619 = vsub.s32 %v616, %v618
    %v620 = vrot.slane %v613, %v619
    %v622 = vunpack.c.l.s4 1966171168
    %v623 = vunpack.c.0.s8 %v622
    %v624 = vlaneseq
    %v625 = vshrl.u32 %v624, 7
    %v626 = vsub.s32 %v623, %v625
    %v627 = vrot.slane %v493, %v626
    %v629 = vunpack.c.l.s4 1966171168
    %v630 = vunpack.c.0.s8 %v629
    %v631 = vlaneseq
    %v632 = vshrl.u32 %v631, 7
    %v633 = vsub.s32 %v630, %v632
    %v634 = vrot.slane %v627, %v633
    %v636 = vunpack.c.l.s4 1966171168
    %v637 = vunpack.c.0.s8 %v636
    %v638 = vlaneseq
    %v639 = vshrl.u32 %v638, 7
    %v640 = vsub.s32 %v637, %v639
    %v641 = vrot.slane %v501, %v640
    %v643 = vunpack.c.l.s4 1966171168
    %v644 = vunpack.c.0.s8 %v643
    %v645 = vlaneseq
    %v646 = vshrl.u32 %v645, 7
    %v647 = vsub.s32 %v644, %v646
    %v648 = vrot.slane %v641, %v647
    %v650 = vunpack.c.l.s4 1966171168
    %v651 = vunpack.c.0.s8 %v650
    %v652 = vlaneseq
    %v653 = vshrl.u32 %v652, 7
    %v654 = vsub.s32 %v651, %v653
    %v655 = vrot.slane %v503, %v654
    %v657 = vunpack.c.l.s4 1966171168
    %v658 = vunpack.c.0.s8 %v657
    %v659 = vlaneseq
    %v660 = vshrl.u32 %v659, 7
    %v661 = vsub.s32 %v658, %v660
    %v662 = vrot.slane %v655, %v661
    %v664 = vunpack.c.l.s4 1966171168
    %v665 = vunpack.c.0.s8 %v664
    %v666 = vlaneseq
    %v667 = vshrl.u32 %v666, 7
    %v668 = vsub.s32 %v665, %v667
    %v669 = vrot.slane %v486, %v668
    %v671 = vunpack.c.l.s4 1966171168
    %v672 = vunpack.c.0.s8 %v671
    %v673 = vlaneseq
    %v674 = vshrl.u32 %v673, 7
    %v675 = vsub.s32 %v672, %v674
    %v676 = vrot.slane %v669, %v675
    %v678 = vunpack.c.l.s4 1966171168
    %v679 = vunpack.c.0.s8 %v678
    %v680 = vlaneseq
    %v681 = vshrl.u32 %v680, 7
    %v682 = vsub.s32 %v679, %v681
    %v683 = vrot.slane %v500, %v682
    %v685 = vunpack.c.l.s4 1966171168
    %v686 = vunpack.c.0.s8 %v685
    %v687 = vlaneseq
    %v688 = vshrl.u32 %v687, 7
    %v689 = vsub.s32 %v686, %v688
    %v690 = vrot.slane %v683, %v689
    %v692 = vunpack.c.l.s4 1966171168
    %v693 = vunpack.c.0.s8 %v692
    %v694 = vlaneseq
    %v695 = vshrl.u32 %v694, 7
    %v696 = vsub.s32 %v693, %v695
    %v697 = vrot.slane %v502, %v696
    %v699 = vunpack.c.l.s4 1966171168
    %v700 = vunpack.c.0.s8 %v699
    %v701 = vlaneseq
    %v702 = vshrl.u32 %v701, 7
    %v703 = vsub.s32 %v700, %v702
    %v704 = vrot.slane %v697, %v703
    %v706 = vunpack.c.l.s4 1966171168
    %v707 = vunpack.c.0.s8 %v706
    %v708 = vlaneseq
    %v709 = vshrl.u32 %v708, 7
    %v710 = vsub.s32 %v707, %v709
    %v711 = vrot.slane %v504, %v710
    %v713 = vunpack.c.l.s4 1966171168
    %v714 = vunpack.c.0.s8 %v713
    %v715 = vlaneseq
    %v716 = vshrl.u32 %v715, 7
    %v717 = vsub.s32 %v714, %v716
    %v718 = vrot.slane %v711, %v717
    %v719 = vunpack.c.l.b16 %v620
    %v720 = vunpack.c.l.b16 %v634
    %v721 = vunpack.c.l.b16 %v648
    %v722 = vunpack.c.l.b16 %v662
    %v723 = vunpack.c.l.b16 %v676
    %v724 = vunpack.c.l.b16 %v690
    %v725 = vunpack.c.l.b16 %v704
    %v726 = vunpack.c.l.b16 %v718
    %v727 = vrot.slane %v720, 7
    %vm728 = vcmask 1041409
    %v729 = vsel %vm728, %v727, %v719
    %v730 = vrot.slane %v721, 6
    %vm731 = vcmask 1042434
    %v732 = vsel %vm731, %v730, %v729
    %v733 = vrot.slane %v722, 5
    %vm734 = vcmask 1043459
    %v735 = vsel %vm734, %v733, %v732
    %v736 = vrot.slane %v723, 4
    %vm737 = vcmask 1044484
    %v738 = vsel %vm737, %v736, %v735
    %v739 = vrot.slane %v724, 3
    %vm740 = vcmask 1045509
    %v741 = vsel %vm740, %v739, %v738
    %v742 = vrot.slane %v725, 2
    %vm743 = vcmask 1046534
    %v744 = vsel %vm743, %v742, %v741
    %v745 = vrot.slane %v726, 1
    %vm746 = vcmask 1047559
    %v747 = vsel %vm746, %v745, %v744
    %v748 = vpack.c.b16 %v747, %v747
    %v750 = vunpack.c.l.s4 1966171168
    %v751 = vunpack.c.0.s8 %v750
    %v752 = vlaneseq
    %v753 = vshrl.u32 %v752, 7
    %v754 = vsub.s32 %v751, %v753
    %v755 = vrot.slane %v530, %v754
    %v757 = vunpack.c.l.s4 1966171168
    %v758 = vunpack.c.0.s8 %v757
    %v759 = vlaneseq
    %v760 = vshrl.u32 %v759, 7
    %v761 = vsub.s32 %v758, %v760
    %v762 = vrot.slane %v755, %v761
    %v764 = vunpack.c.l.s4 1966171168
    %v765 = vunpack.c.0.s8 %v764
    %v766 = vlaneseq
    %v767 = vshrl.u32 %v766, 7
    %v768 = vsub.s32 %v765, %v767
    %v769 = vrot.slane %v544, %v768
    %v771 = vunpack.c.l.s4 1966171168
    %v772 = vunpack.c.0.s8 %v771
    %v773 = vlaneseq
    %v774 = vshrl.u32 %v773, 7
    %v775 = vsub.s32 %v772, %v774
    %v776 = vrot.slane %v769, %v775
    %v778 = vunpack.c.l.s4 1966171168
    %v779 = vunpack.c.0.s8 %v778
    %v780 = vlaneseq
    %v781 = vshrl.u32 %v780, 7
    %v782 = vsub.s32 %v779, %v781
    %v783 = vrot.slane %v552, %v782
    %v785 = vunpack.c.l.s4 1966171168
    %v786 = vunpack.c.0.s8 %v785
    %v787 = vlaneseq
    %v788 = vshrl.u32 %v787, 7
    %v789 = vsub.s32 %v786, %v788
    %v790 = vrot.slane %v783, %v789
    %v792 = vunpack.c.l.s4 1966171168
    %v793 = vunpack.c.0.s8 %v792
    %v794 = vlaneseq
    %v795 = vshrl.u32 %v794, 7
    %v796 = vsub.s32 %v793, %v795
    %v797 = vrot.slane %v554, %v796
    %v799 = vunpack.c.l.s4 1966171168
    %v800 = vunpack.c.0.s8 %v799
    %v801 = vlaneseq
    %v802 = vshrl.u32 %v801, 7
    %v803 = vsub.s32 %v800, %v802
    %v804 = vrot.slane %v797, %v803
    %v806 = vunpack.c.l.s4 1966171168
    %v807 = vunpack.c.0.s8 %v806
    %v808 = vlaneseq
    %v809 = vshrl.u32 %v808, 7
    %v810 = vsub.s32 %v807, %v809
    %v811 = vrot.slane %v537, %v810
    %v813 = vunpack.c.l.s4 1966171168
    %v814 = vunpack.c.0.s8 %v813
    %v815 = vlaneseq
    %v816 = vshrl.u32 %v815, 7
    %v817 = vsub.s32 %v814, %v816
    %v818 = vrot.slane %v811, %v817
    %v820 = vunpack.c.l.s4 1966171168
    %v821 = vunpack.c.0.s8 %v820
    %v822 = vlaneseq
    %v823 = vshrl.u32 %v822, 7
    %v824 = vsub.s32 %v821, %v823
    %v825 = vrot.slane %v551, %v824
    %v827 = vunpack.c.l.s4 1966171168
    %v828 = vunpack.c.0.s8 %v827
    %v829 = vlaneseq
    %v830 = vshrl.u32 %v829, 7
    %v831 = vsub.s32 %v828, %v830
    %v832 = vrot.slane %v825, %v831
    %v834 = vunpack.c.l.s4 1966171168
    %v835 = vunpack.c.0.s8 %v834
    %v836 = vlaneseq
    %v837 = vshrl.u32 %v836, 7
    %v838 = vsub.s32 %v835, %v837
    %v839 = vrot.slane %v553, %v838
    %v841 = vunpack.c.l.s4 1966171168
    %v842 = vunpack.c.0.s8 %v841
    %v843 = vlaneseq
    %v844 = vshrl.u32 %v843, 7
    %v845 = vsub.s32 %v842, %v844
    %v846 = vrot.slane %v839, %v845
    %v848 = vunpack.c.l.s4 1966171168
    %v849 = vunpack.c.0.s8 %v848
    %v850 = vlaneseq
    %v851 = vshrl.u32 %v850, 7
    %v852 = vsub.s32 %v849, %v851
    %v853 = vrot.slane %v555, %v852
    %v855 = vunpack.c.l.s4 1966171168
    %v856 = vunpack.c.0.s8 %v855
    %v857 = vlaneseq
    %v858 = vshrl.u32 %v857, 7
    %v859 = vsub.s32 %v856, %v858
    %v860 = vrot.slane %v853, %v859
    %v861 = vunpack.c.l.b16 %v762
    %v862 = vunpack.c.l.b16 %v776
    %v863 = vunpack.c.l.b16 %v790
    %v864 = vunpack.c.l.b16 %v804
    %v865 = vunpack.c.l.b16 %v818
    %v866 = vunpack.c.l.b16 %v832
    %v867 = vunpack.c.l.b16 %v846
    %v868 = vunpack.c.l.b16 %v860
    %v869 = vrot.slane %v862, 7
    %v870 = vsel %vm728, %v869, %v861
    %v871 = vrot.slane %v863, 6
    %v872 = vsel %vm731, %v871, %v870
    %v873 = vrot.slane %v864, 5
    %v874 = vsel %vm734, %v873, %v872
    %v875 = vrot.slane %v865, 4
    %v876 = vsel %vm737, %v875, %v874
    %v877 = vrot.slane %v866, 3
    %v878 = vsel %vm740, %v877, %v876
    %v879 = vrot.slane %v867, 2
    %v880 = vsel %vm743, %v879, %v878
    %v881 = vrot.slane %v868, 1
    %v882 = vsel %vm746, %v881, %v880
    %v883 = vpack.c.b16 %v882, %v882
    %vm884 = vcmask 64512
    %v886 = vsel %vm884, %v748, 0
    %v889 = vsel %vm884, %v883, 0
    %891 = vmatprep.subr.bf16.mxu0 0
    %892 = vmatpush1.bf16.xpose.msra.mxu0 %v889
    %893 = vmatprep.subr.bf16.mxu0 0
    %894 = vmatpush1.bf16.xpose.msra.mxu0 0
    %895 = vmatprep.subr.bf16.mxu0 0
    %896 = vmatpush1.bf16.xpose.msra.mxu0 0
    %897 = vmatprep.subr.bf16.mxu0 0
    %898 = vmatpush1.bf16.xpose.msra.mxu0 0
    %899 = vmatprep.subr.bf16.mxu0 0
    %900 = vmatpush1.bf16.xpose.msra.mxu0 0
    %901 = vmatprep.subr.bf16.mxu0 0
    %902 = vmatpush1.bf16.xpose.msra.mxu0 0
    %903 = vmatprep.subr.bf16.mxu0 0
    %904 = vmatpush1.bf16.xpose.msra.mxu0 0
    %905 = vmatprep.subr.bf16.mxu0 0
    %906 = vmatpush1.bf16.xpose.msra.mxu0 0
    %907 = vmatprep.subr.bf16.mxu0 0
    %908 = vmatpush1.bf16.xpose.msra.mxu0 0
    %909 = vmatprep.subr.bf16.mxu0 0
    %910 = vmatpush1.bf16.xpose.msra.mxu0 0
    %911 = vmatprep.subr.bf16.mxu0 0
    %912 = vmatpush1.bf16.xpose.msra.mxu0 0
    %913 = vmatprep.subr.bf16.mxu0 0
    %914 = vmatpush1.bf16.xpose.msra.mxu0 0
    %915 = vmatprep.subr.bf16.mxu0 0
    %916 = vmatpush1.bf16.xpose.msra.mxu0 0
    %917 = vmatprep.subr.bf16.mxu0 0
    %918 = vmatpush1.bf16.xpose.msra.mxu0 0
    %919 = vmatprep.subr.bf16.mxu0 0
    %920 = vmatpush1.bf16.xpose.msra.mxu0 0
    %921 = vmatprep.subr.bf16.mxu0 0
    %922 = vmatpush1.bf16.xpose.msra.mxu0 0
    %923 = vmatprep.mubr.bf16.mxu0 0
    %924 = vmatmul.mubr.bf16.gmra.mrb[0].mxu0 %v886
    %v925 = vpop.f32.mrb[0].mxu0
    %v926 = vadd.f32 0.0, %v925
    %v927 = vpop.f32.mrb[0].mxu0
    %v928 = vpop.f32.mrb[0].mxu0
    %v929 = vpop.f32.mrb[0].mxu0
    %930 = vdwg.mxu0
    %v931 = vsel %vm884, %v926, -inf
    %932 = vmax.xlane.f32.xlu0 %v931
    %v933 = vpop.xlane.xlu0 %932
    %v934 = vsub.f32 %v926, %v933
    %v935 = vmul.f32 %v934, 1.442695
    %v936 = vpow.pop %v935
    %v937 = vsel %vm884, %v936, 0.0
    %938 = vadd.xlane.f32.xlu0 %v937
    %v939 = vpop.xlane.xlu0 %938
    %v940 = vrcp.pop %v939
    %v941 = vmul.f32 %v936, %v940
    %v942 = vpack.c.bf16 %v941, %v941
    %v944 = vunpack.c.l.s4 1966171168
    %v945 = vunpack.c.0.s8 %v944
    %v946 = vlaneseq
    %v947 = vshrl.u32 %v946, 7
    %v948 = vsub.s32 %v945, %v947
    %v949 = vrot.slane %v581, %v948
    %v951 = vunpack.c.l.s4 1966171168
    %v952 = vunpack.c.0.s8 %v951
    %v953 = vlaneseq
    %v954 = vshrl.u32 %v953, 7
    %v955 = vsub.s32 %v952, %v954
    %v956 = vrot.slane %v949, %v955
    %v958 = vunpack.c.l.s4 1966171168
    %v959 = vunpack.c.0.s8 %v958
    %v960 = vlaneseq
    %v961 = vshrl.u32 %v960, 7
    %v962 = vsub.s32 %v959, %v961
    %v963 = vrot.slane %v595, %v962
    %v965 = vunpack.c.l.s4 1966171168
    %v966 = vunpack.c.0.s8 %v965
    %v967 = vlaneseq
    %v968 = vshrl.u32 %v967, 7
    %v969 = vsub.s32 %v966, %v968
    %v970 = vrot.slane %v963, %v969
    %v972 = vunpack.c.l.s4 1966171168
    %v973 = vunpack.c.0.s8 %v972
    %v974 = vlaneseq
    %v975 = vshrl.u32 %v974, 7
    %v976 = vsub.s32 %v973, %v975
    %v977 = vrot.slane %v603, %v976
    %v979 = vunpack.c.l.s4 1966171168
    %v980 = vunpack.c.0.s8 %v979
    %v981 = vlaneseq
    %v982 = vshrl.u32 %v981, 7
    %v983 = vsub.s32 %v980, %v982
    %v984 = vrot.slane %v977, %v983
    %v986 = vunpack.c.l.s4 1966171168
    %v987 = vunpack.c.0.s8 %v986
    %v988 = vlaneseq
    %v989 = vshrl.u32 %v988, 7
    %v990 = vsub.s32 %v987, %v989
    %v991 = vrot.slane %v605, %v990
    %v993 = vunpack.c.l.s4 1966171168
    %v994 = vunpack.c.0.s8 %v993
    %v995 = vlaneseq
    %v996 = vshrl.u32 %v995, 7
    %v997 = vsub.s32 %v994, %v996
    %v998 = vrot.slane %v991, %v997
    %v1000 = vunpack.c.l.s4 1966171168
    %v1001 = vunpack.c.0.s8 %v1000
    %v1002 = vlaneseq
    %v1003 = vshrl.u32 %v1002, 7
    %v1004 = vsub.s32 %v1001, %v1003
    %v1005 = vrot.slane %v588, %v1004
    %v1007 = vunpack.c.l.s4 1966171168
    %v1008 = vunpack.c.0.s8 %v1007
    %v1009 = vlaneseq
    %v1010 = vshrl.u32 %v1009, 7
    %v1011 = vsub.s32 %v1008, %v1010
    %v1012 = vrot.slane %v1005, %v1011
    %v1014 = vunpack.c.l.s4 1966171168
    %v1015 = vunpack.c.0.s8 %v1014
    %v1016 = vlaneseq
    %v1017 = vshrl.u32 %v1016, 7
    %v1018 = vsub.s32 %v1015, %v1017
    %v1019 = vrot.slane %v602, %v1018
    %v1021 = vunpack.c.l.s4 1966171168
    %v1022 = vunpack.c.0.s8 %v1021
    %v1023 = vlaneseq
    %v1024 = vshrl.u32 %v1023, 7
    %v1025 = vsub.s32 %v1022, %v1024
    %v1026 = vrot.slane %v1019, %v1025
    %v1028 = vunpack.c.l.s4 1966171168
    %v1029 = vunpack.c.0.s8 %v1028
    %v1030 = vlaneseq
    %v1031 = vshrl.u32 %v1030, 7
    %v1032 = vsub.s32 %v1029, %v1031
    %v1033 = vrot.slane %v604, %v1032
    %v1035 = vunpack.c.l.s4 1966171168
    %v1036 = vunpack.c.0.s8 %v1035
    %v1037 = vlaneseq
    %v1038 = vshrl.u32 %v1037, 7
    %v1039 = vsub.s32 %v1036, %v1038
    %v1040 = vrot.slane %v1033, %v1039
    %v1042 = vunpack.c.l.s4 1966171168
    %v1043 = vunpack.c.0.s8 %v1042
    %v1044 = vlaneseq
    %v1045 = vshrl.u32 %v1044, 7
    %v1046 = vsub.s32 %v1043, %v1045
    %v1047 = vrot.slane %v606, %v1046
    %v1049 = vunpack.c.l.s4 1966171168
    %v1050 = vunpack.c.0.s8 %v1049
    %v1051 = vlaneseq
    %v1052 = vshrl.u32 %v1051, 7
    %v1053 = vsub.s32 %v1050, %v1052
    %v1054 = vrot.slane %v1047, %v1053
    %v1055 = vunpack.c.l.b16 %v956
    %v1056 = vunpack.c.l.b16 %v970
    %v1057 = vunpack.c.l.b16 %v984
    %v1058 = vunpack.c.l.b16 %v998
    %v1059 = vunpack.c.l.b16 %v1012
    %v1060 = vunpack.c.l.b16 %v1026
    %v1061 = vunpack.c.l.b16 %v1040
    %v1062 = vunpack.c.l.b16 %v1054
    %v1063 = vrot.slane %v1056, 7
    %v1064 = vsel %vm728, %v1063, %v1055
    %v1065 = vrot.slane %v1057, 6
    %v1066 = vsel %vm731, %v1065, %v1064
    %v1067 = vrot.slane %v1058, 5
    %v1068 = vsel %vm734, %v1067, %v1066
    %v1069 = vrot.slane %v1059, 4
    %v1070 = vsel %vm737, %v1069, %v1068
    %v1071 = vrot.slane %v1060, 3
    %v1072 = vsel %vm740, %v1071, %v1070
    %v1073 = vrot.slane %v1061, 2
    %v1074 = vsel %vm743, %v1073, %v1072
    %v1075 = vrot.slane %v1062, 1
    %v1076 = vsel %vm746, %v1075, %v1074
    %v1077 = vpack.c.b16 %v1076, %v1076
    %v1079 = vsel %vm884, %v942, 0
    %vm1081 = vcmask 1043456
    %v1083 = vsel %vm1081, %v1077, 0
    %1085 = vmatprep.subr.bf16.mxu0 0
    %1086 = vmatpush1.bf16.msra.mxu0 %v1083
    %1087 = vmatprep.subr.bf16.mxu0 0
    %1088 = vmatpush1.bf16.msra.mxu0 0
    %1089 = vmatprep.subr.bf16.mxu0 0
    %1090 = vmatpush1.bf16.msra.mxu0 0
    %1091 = vmatprep.subr.bf16.mxu0 0
    %1092 = vmatpush1.bf16.msra.mxu0 0
    %1093 = vmatprep.subr.bf16.mxu0 0
    %1094 = vmatpush1.bf16.msra.mxu0 0
    %1095 = vmatprep.subr.bf16.mxu0 0
    %1096 = vmatpush1.bf16.msra.mxu0 0
    %1097 = vmatprep.subr.bf16.mxu0 0
    %1098 = vmatpush1.bf16.msra.mxu0 0
    %1099 = vmatprep.subr.bf16.mxu0 0
    %1100 = vmatpush1.bf16.msra.mxu0 0
    %1101 = vmatprep.subr.bf16.mxu0 0
    %1102 = vmatpush1.bf16.msra.mxu0 0
    %1103 = vmatprep.subr.bf16.mxu0 0
    %1104 = vmatpush1.bf16.msra.mxu0 0
    %1105 = vmatprep.subr.bf16.mxu0 0
    %1106 = vmatpush1.bf16.msra.mxu0 0
    %1107 = vmatprep.subr.bf16.mxu0 0
    %1108 = vmatpush1.bf16.msra.mxu0 0
    %1109 = vmatprep.subr.bf16.mxu0 0
    %1110 = vmatpush1.bf16.msra.mxu0 0
    %1111 = vmatprep.subr.bf16.mxu0 0
    %1112 = vmatpush1.bf16.msra.mxu0 0
    %1113 = vmatprep.subr.bf16.mxu0 0
    %1114 = vmatpush1.bf16.msra.mxu0 0
    %1115 = vmatprep.subr.bf16.mxu0 0
    %1116 = vmatpush1.bf16.msra.mxu0 0
    %1117 = vmatprep.mubr.bf16.mxu0 0
    %1118 = vmatmul.mubr.bf16.gmra.mrb[0].mxu0 %v1079
    %v1119 = vpop.f32.mrb[0].mxu0
    %v1120 = vadd.f32 0.0, %v1119
    %v1121 = vpop.f32.mrb[0].mxu0
    %v1122 = vpop.f32.mrb[0].mxu0
    %v1123 = vpop.f32.mrb[0].mxu0
    %1124 = vdwg.mxu0
    %v1125 = vpack.c.bf16 %v1120, %v1120
    %v1128 = vunpack.c.l.s4 1966171168
    %v1129 = vunpack.c.0.s8 %v1128
    %v1130 = vlaneseq
    %v1131 = vshrl.u32 %v1130, 7
    %v1132 = vsub.s32 %v1129, %v1131
    %v1133 = vrot.slane %v1125, %v1132
    %v1134 = vcombine.high %v1133, %v1133
    %v1136 = vunpack.c.l.s4 1966171168
    %v1137 = vunpack.c.0.s8 %v1136
    %v1138 = vlaneseq
    %v1139 = vshrl.u32 %v1138, 7
    %v1140 = vsub.s32 %v1137, %v1139
    %v1141 = vrot.slane %v1133, %v1140
    %v1143 = vunpack.c.l.s4 1966171168
    %v1144 = vunpack.c.0.s8 %v1143
    %v1145 = vlaneseq
    %v1146 = vshrl.u32 %v1145, 7
    %v1147 = vsub.s32 %v1144, %v1146
    %v1148 = vrot.slane %v1134, %v1147
    %v1149 = vcombine.high %v1141, %v1141
    %v1150 = vcombine.high %v1148, %v1148
    %v1151 = vunpack.i.l.s16 %v1141
    %v1152 = vunpack.i.h.s16 %v1141
    %v1153 = vunpack.i.l.s16 %v1148
    %v1154 = vunpack.i.h.s16 %v1148
    %v1155 = vunpack.i.l.s16 %v1149
    %v1156 = vunpack.i.h.s16 %v1149
    %v1157 = vunpack.i.l.s16 %v1150
    %v1158 = vunpack.i.h.s16 %v1150
    %v1159 = vpack.i.b16 %v1151, %v1151
    %v1160 = vpack.i.b16 %v1152, %v1152
    %v1161 = vpack.i.b16 %v1153, %v1153
    %v1162 = vpack.i.b16 %v1154, %v1154
    %v1163 = vpack.i.b16 %v1155, %v1155
    %v1164 = vpack.i.b16 %v1156, %v1156
    %v1165 = vpack.i.b16 %v1157, %v1157
    %v1166 = vpack.i.b16 %v1158, %v1158
    %vm1175 = vcmask 57344
    %vm1176 = vsmask.f32 256
    %vm1177 = vmand %vm1175, %vm1176
    %v1178 = vld [vmem:[#allocation2] sm:$0x1]
    %v1179 = vsel %vm1177, %v1159, %v1178
    %1180 = vst [vmem:[#allocation2] sm:$0x1] %v1179
    %v1181 = vld [vmem:[#allocation2 + $0x1] sm:$0x1]
    %v1182 = vsel %vm1177, %v1160, %v1181
    %1183 = vst [vmem:[#allocation2 + $0x1] sm:$0x1] %v1182
    %v1184 = vld [vmem:[#allocation2 + $0x2] sm:$0x1]
    %v1185 = vsel %vm1177, %v1161, %v1184
    %1186 = vst [vmem:[#allocation2 + $0x2] sm:$0x1] %v1185
    %v1187 = vld [vmem:[#allocation2 + $0x3] sm:$0x1]
    %v1188 = vsel %vm1177, %v1162, %v1187
    %1189 = vst [vmem:[#allocation2 + $0x3] sm:$0x1] %v1188
    %v1190 = vld [vmem:[#allocation2 + $0x4] sm:$0x1]
    %v1191 = vsel %vm1177, %v1163, %v1190
    %1192 = vst [vmem:[#allocation2 + $0x4] sm:$0x1] %v1191
    %v1193 = vld [vmem:[#allocation2 + $0x5] sm:$0x1]
    %v1194 = vsel %vm1177, %v1164, %v1193
    %1195 = vst [vmem:[#allocation2 + $0x5] sm:$0x1] %v1194
    %v1196 = vld [vmem:[#allocation2 + $0x6] sm:$0x1]
    %v1197 = vsel %vm1177, %v1165, %v1196
    %1198 = vst [vmem:[#allocation2 + $0x6] sm:$0x1] %v1197
    %v1199 = vld [vmem:[#allocation2 + $0x7] sm:$0x1]
    %v1200 = vsel %vm1177, %v1166, %v1199
    %1201 = vst [vmem:[#allocation2 + $0x7] sm:$0x1] %v1200
    %1202 = vrot.lane.b32.xlu0 %v748, 120
    %v1203 = vpop.permute.xlu0 %1202
    %1204 = vrot.lane.b32.xlu0 %v883, 120
    %v1205 = vpop.permute.xlu0 %1204
    %v1207 = vsel %vm884, %v1203, 0
    %v1210 = vsel %vm884, %v1205, 0
    %1212 = vmatprep.subr.bf16.mxu0 0
    %1213 = vmatpush1.bf16.xpose.msra.mxu0 %v1210
    %1214 = vmatprep.subr.bf16.mxu0 0
    %1215 = vmatpush1.bf16.xpose.msra.mxu0 0
    %1216 = vmatprep.subr.bf16.mxu0 0
    %1217 = vmatpush1.bf16.xpose.msra.mxu0 0
    %1218 = vmatprep.subr.bf16.mxu0 0
    %1219 = vmatpush1.bf16.xpose.msra.mxu0 0
    %1220 = vmatprep.subr.bf16.mxu0 0
    %1221 = vmatpush1.bf16.xpose.msra.mxu0 0
    %1222 = vmatprep.subr.bf16.mxu0 0
    %1223 = vmatpush1.bf16.xpose.msra.mxu0 0
    %1224 = vmatprep.subr.bf16.mxu0 0
    %1225 = vmatpush1.bf16.xpose.msra.mxu0 0
    %1226 = vmatprep.subr.bf16.mxu0 0
    %1227 = vmatpush1.bf16.xpose.msra.mxu0 0
    %1228 = vmatprep.subr.bf16.mxu0 0
    %1229 = vmatpush1.bf16.xpose.msra.mxu0 0
    %1230 = vmatprep.subr.bf16.mxu0 0
    %1231 = vmatpush1.bf16.xpose.msra.mxu0 0
    %1232 = vmatprep.subr.bf16.mxu0 0
    %1233 = vmatpush1.bf16.xpose.msra.mxu0 0
    %1234 = vmatprep.subr.bf16.mxu0 0
    %1235 = vmatpush1.bf16.xpose.msra.mxu0 0
    %1236 = vmatprep.subr.bf16.mxu0 0
    %1237 = vmatpush1.bf16.xpose.msra.mxu0 0
    %1238 = vmatprep.subr.bf16.mxu0 0
    %1239 = vmatpush1.bf16.xpose.msra.mxu0 0
    %1240 = vmatprep.subr.bf16.mxu0 0
    %1241 = vmatpush1.bf16.xpose.msra.mxu0 0
    %1242 = vmatprep.subr.bf16.mxu0 0
    %1243 = vmatpush1.bf16.xpose.msra.mxu0 0
    %1244 = vmatprep.mubr.bf16.mxu0 0
    %1245 = vmatmul.mubr.bf16.gmra.mrb[0].mxu0 %v1207
    %v1246 = vpop.f32.mrb[0].mxu0
    %v1247 = vadd.f32 0.0, %v1246
    %v1248 = vpop.f32.mrb[0].mxu0
    %v1249 = vpop.f32.mrb[0].mxu0
    %v1250 = vpop.f32.mrb[0].mxu0
    %1251 = vdwg.mxu0
    %v1252 = vsel %vm884, %v1247, -inf
    %1253 = vmax.xlane.f32.xlu0 %v1252
    %v1254 = vpop.xlane.xlu0 %1253
    %v1255 = vsub.f32 %v1247, %v1254
    %v1256 = vmul.f32 %v1255, 1.442695
    %v1257 = vpow.pop %v1256
    %v1258 = vsel %vm884, %v1257, 0.0
    %1259 = vadd.xlane.f32.xlu0 %v1258
    %v1260 = vpop.xlane.xlu0 %1259
    %v1261 = vrcp.pop %v1260
    %v1262 = vmul.f32 %v1257, %v1261
    %v1263 = vpack.c.bf16 %v1262, %v1262
    %1264 = vrot.lane.b32.xlu0 %v1077, 120
    %v1265 = vpop.permute.xlu0 %1264
    %v1267 = vsel %vm884, %v1263, 0
    %v1270 = vsel %vm1081, %v1265, 0
    %1272 = vmatprep.subr.bf16.mxu0 0
    %1273 = vmatpush1.bf16.msra.mxu0 %v1270
    %1274 = vmatprep.subr.bf16.mxu0 0
    %1275 = vmatpush1.bf16.msra.mxu0 0
    %1276 = vmatprep.subr.bf16.mxu0 0
    %1277 = vmatpush1.bf16.msra.mxu0 0
    %1278 = vmatprep.subr.bf16.mxu0 0
    %1279 = vmatpush1.bf16.msra.mxu0 0
    %1280 = vmatprep.subr.bf16.mxu0 0
    %1281 = vmatpush1.bf16.msra.mxu0 0
    %1282 = vmatprep.subr.bf16.mxu0 0
    %1283 = vmatpush1.bf16.msra.mxu0 0
    %1284 = vmatprep.subr.bf16.mxu0 0
    %1285 = vmatpush1.bf16.msra.mxu0 0
    %1286 = vmatprep.subr.bf16.mxu0 0
    %1287 = vmatpush1.bf16.msra.mxu0 0
    %1288 = vmatprep.subr.bf16.mxu0 0
    %1289 = vmatpush1.bf16.msra.mxu0 0
    %1290 = vmatprep.subr.bf16.mxu0 0
    %1291 = vmatpush1.bf16.msra.mxu0 0
    %1292 = vmatprep.subr.bf16.mxu0 0
    %1293 = vmatpush1.bf16.msra.mxu0 0
    %1294 = vmatprep.subr.bf16.mxu0 0
    %1295 = vmatpush1.bf16.msra.mxu0 0
    %1296 = vmatprep.subr.bf16.mxu0 0
    %1297 = vmatpush1.bf16.msra.mxu0 0
    %1298 = vmatprep.subr.bf16.mxu0 0
    %1299 = vmatpush1.bf16.msra.mxu0 0
    %1300 = vmatprep.subr.bf16.mxu0 0
    %1301 = vmatpush1.bf16.msra.mxu0 0
    %1302 = vmatprep.subr.bf16.mxu0 0
    %1303 = vmatpush1.bf16.msra.mxu0 0
    %1304 = vmatprep.mubr.bf16.mxu0 0
    %1305 = vmatmul.mubr.bf16.gmra.mrb[0].mxu0 %v1267
    %v1306 = vpop.f32.mrb[0].mxu0
    %v1307 = vadd.f32 0.0, %v1306
    %v1308 = vpop.f32.mrb[0].mxu0
    %v1309 = vpop.f32.mrb[0].mxu0
    %v1310 = vpop.f32.mrb[0].mxu0
    %1311 = vdwg.mxu0
    %v1312 = vpack.c.bf16 %v1307, %v1307
    %v1315 = vunpack.c.l.s4 1966171168
    %v1316 = vunpack.c.0.s8 %v1315
    %v1317 = vlaneseq
    %v1318 = vshrl.u32 %v1317, 7
    %v1319 = vsub.s32 %v1316, %v1318
    %v1320 = vrot.slane %v1312, %v1319
    %v1321 = vcombine.high %v1320, %v1320
    %v1323 = vunpack.c.l.s4 1966171168
    %v1324 = vunpack.c.0.s8 %v1323
    %v1325 = vlaneseq
    %v1326 = vshrl.u32 %v1325, 7
    %v1327 = vsub.s32 %v1324, %v1326
    %v1328 = vrot.slane %v1320, %v1327
    %v1330 = vunpack.c.l.s4 1966171168
    %v1331 = vunpack.c.0.s8 %v1330
    %v1332 = vlaneseq
    %v1333 = vshrl.u32 %v1332, 7
    %v1334 = vsub.s32 %v1331, %v1333
    %v1335 = vrot.slane %v1321, %v1334
    %v1336 = vcombine.high %v1328, %v1328
    %v1337 = vcombine.high %v1335, %v1335
    %v1338 = vunpack.i.l.s16 %v1328
    %v1339 = vunpack.i.h.s16 %v1328
    %v1340 = vunpack.i.l.s16 %v1335
    %v1341 = vunpack.i.h.s16 %v1335
    %v1342 = vunpack.i.l.s16 %v1336
    %v1343 = vunpack.i.h.s16 %v1336
    %v1344 = vunpack.i.l.s16 %v1337
    %v1345 = vunpack.i.h.s16 %v1337
    %v1346 = vpack.i.b16 %v1338, %v1338
    %v1347 = vpack.i.b16 %v1339, %v1339
    %v1348 = vpack.i.b16 %v1340, %v1340
    %v1349 = vpack.i.b16 %v1341, %v1341
    %v1350 = vpack.i.b16 %v1342, %v1342
    %v1351 = vpack.i.b16 %v1343, %v1343
    %v1352 = vpack.i.b16 %v1344, %v1344
    %v1353 = vpack.i.b16 %v1345, %v1345
    %1354 = vrot.lane.b32.xlu0 %v1346, 8
    %v1355 = vpop.permute.xlu0 %1354
    %1356 = vrot.lane.b32.xlu0 %v1347, 8
    %v1357 = vpop.permute.xlu0 %1356
    %1358 = vrot.lane.b32.xlu0 %v1348, 8
    %v1359 = vpop.permute.xlu0 %1358
    %1360 = vrot.lane.b32.xlu0 %v1349, 8
    %v1361 = vpop.permute.xlu0 %1360
    %1362 = vrot.lane.b32.xlu0 %v1350, 8
    %v1363 = vpop.permute.xlu0 %1362
    %1364 = vrot.lane.b32.xlu0 %v1351, 8
    %v1365 = vpop.permute.xlu0 %1364
    %1366 = vrot.lane.b32.xlu0 %v1352, 8
    %v1367 = vpop.permute.xlu0 %1366
    %1368 = vrot.lane.b32.xlu0 %v1353, 8
    %v1369 = vpop.permute.xlu0 %1368
    %vm1378 = vcmask 122944
    %vm1379 = vmand %vm1378, %vm1176
    %v1380 = vld [vmem:[#allocation2] sm:$0x1]
    %v1381 = vsel %vm1379, %v1355, %v1380
    %1382 = vst [vmem:[#allocation2] sm:$0x1] %v1381
    %v1383 = vld [vmem:[#allocation2 + $0x1] sm:$0x1]
    %v1384 = vsel %vm1379, %v1357, %v1383
    %1385 = vst [vmem:[#allocation2 + $0x1] sm:$0x1] %v1384
    %v1386 = vld [vmem:[#allocation2 + $0x2] sm:$0x1]
    %v1387 = vsel %vm1379, %v1359, %v1386
    %1388 = vst [vmem:[#allocation2 + $0x2] sm:$0x1] %v1387
    %v1389 = vld [vmem:[#allocation2 + $0x3] sm:$0x1]
    %v1390 = vsel %vm1379, %v1361, %v1389
    %1391 = vst [vmem:[#allocation2 + $0x3] sm:$0x1] %v1390
    %v1392 = vld [vmem:[#allocation2 + $0x4] sm:$0x1]
    %v1393 = vsel %vm1379, %v1363, %v1392
    %1394 = vst [vmem:[#allocation2 + $0x4] sm:$0x1] %v1393
    %v1395 = vld [vmem:[#allocation2 + $0x5] sm:$0x1]
    %v1396 = vsel %vm1379, %v1365, %v1395
    %1397 = vst [vmem:[#allocation2 + $0x5] sm:$0x1] %v1396
    %v1398 = vld [vmem:[#allocation2 + $0x6] sm:$0x1]
    %v1399 = vsel %vm1379, %v1367, %v1398
    %1400 = vst [vmem:[#allocation2 + $0x6] sm:$0x1] %v1399
    %v1401 = vld [vmem:[#allocation2 + $0x7] sm:$0x1]
    %v1402 = vsel %vm1379, %v1369, %v1401
    %1403 = vst [vmem:[#allocation2 + $0x7] sm:$0x1] %v1402
    %1404 = vrot.lane.b32.xlu0 %v748, 112
    %v1405 = vpop.permute.xlu0 %1404
    %1406 = vrot.lane.b32.xlu0 %v883, 112
    %v1407 = vpop.permute.xlu0 %1406
    %v1409 = vsel %vm884, %v1405, 0
    %v1412 = vsel %vm884, %v1407, 0
    %1414 = vmatprep.subr.bf16.mxu0 0
    %1415 = vmatpush1.bf16.xpose.msra.mxu0 %v1412
    %1416 = vmatprep.subr.bf16.mxu0 0
    %1417 = vmatpush1.bf16.xpose.msra.mxu0 0
    %1418 = vmatprep.subr.bf16.mxu0 0
    %1419 = vmatpush1.bf16.xpose.msra.mxu0 0
    %1420 = vmatprep.subr.bf16.mxu0 0
    %1421 = vmatpush1.bf16.xpose.msra.mxu0 0
    %1422 = vmatprep.subr.bf16.mxu0 0
    %1423 = vmatpush1.bf16.xpose.msra.mxu0 0
    %1424 = vmatprep.subr.bf16.mxu0 0
    %1425 = vmatpush1.bf16.xpose.msra.mxu0 0
    %1426 = vmatprep.subr.bf16.mxu0 0
    %1427 = vmatpush1.bf16.xpose.msra.mxu0 0
    %1428 = vmatprep.subr.bf16.mxu0 0
    %1429 = vmatpush1.bf16.xpose.msra.mxu0 0
    %1430 = vmatprep.subr.bf16.mxu0 0
    %1431 = vmatpush1.bf16.xpose.msra.mxu0 0
    %1432 = vmatprep.subr.bf16.mxu0 0
    %1433 = vmatpush1.bf16.xpose.msra.mxu0 0
    %1434 = vmatprep.subr.bf16.mxu0 0
    %1435 = vmatpush1.bf16.xpose.msra.mxu0 0
    %1436 = vmatprep.subr.bf16.mxu0 0
    %1437 = vmatpush1.bf16.xpose.msra.mxu0 0
    %1438 = vmatprep.subr.bf16.mxu0 0
    %1439 = vmatpush1.bf16.xpose.msra.mxu0 0
    %1440 = vmatprep.subr.bf16.mxu0 0
    %1441 = vmatpush1.bf16.xpose.msra.mxu0 0
    %1442 = vmatprep.subr.bf16.mxu0 0
    %1443 = vmatpush1.bf16.xpose.msra.mxu0 0
    %1444 = vmatprep.subr.bf16.mxu0 0
    %1445 = vmatpush1.bf16.xpose.msra.mxu0 0
    %1446 = vmatprep.mubr.bf16.mxu0 0
    %1447 = vmatmul.mubr.bf16.gmra.mrb[0].mxu0 %v1409
    %v1448 = vpop.f32.mrb[0].mxu0
    %v1449 = vadd.f32 0.0, %v1448
    %v1450 = vpop.f32.mrb[0].mxu0
    %v1451 = vpop.f32.mrb[0].mxu0
    %v1452 = vpop.f32.mrb[0].mxu0
    %1453 = vdwg.mxu0
    %v1454 = vsel %vm884, %v1449, -inf
    %1455 = vmax.xlane.f32.xlu0 %v1454
    %v1456 = vpop.xlane.xlu0 %1455
    %v1457 = vsub.f32 %v1449, %v1456
    %v1458 = vmul.f32 %v1457, 1.442695
    %v1459 = vpow.pop %v1458
    %v1460 = vsel %vm884, %v1459, 0.0
    %1461 = vadd.xlane.f32.xlu0 %v1460
    %v1462 = vpop.xlane.xlu0 %1461
    %v1463 = vrcp.pop %v1462
    %v1464 = vmul.f32 %v1459, %v1463
    %v1465 = vpack.c.bf16 %v1464, %v1464
    %1466 = vrot.lane.b32.xlu0 %v1077, 112
    %v1467 = vpop.permute.xlu0 %1466
    %v1469 = vsel %vm884, %v1465, 0
    %v1472 = vsel %vm1081, %v1467, 0
    %1474 = vmatprep.subr.bf16.mxu0 0
    %1475 = vmatpush1.bf16.msra.mxu0 %v1472
    %1476 = vmatprep.subr.bf16.mxu0 0
    %1477 = vmatpush1.bf16.msra.mxu0 0
    %1478 = vmatprep.subr.bf16.mxu0 0
    %1479 = vmatpush1.bf16.msra.mxu0 0
    %1480 = vmatprep.subr.bf16.mxu0 0
    %1481 = vmatpush1.bf16.msra.mxu0 0
    %1482 = vmatprep.subr.bf16.mxu0 0
    %1483 = vmatpush1.bf16.msra.mxu0 0
    %1484 = vmatprep.subr.bf16.mxu0 0
    %1485 = vmatpush1.bf16.msra.mxu0 0
    %1486 = vmatprep.subr.bf16.mxu0 0
    %1487 = vmatpush1.bf16.msra.mxu0 0
    %1488 = vmatprep.subr.bf16.mxu0 0
    %1489 = vmatpush1.bf16.msra.mxu0 0
    %1490 = vmatprep.subr.bf16.mxu0 0
    %1491 = vmatpush1.bf16.msra.mxu0 0
    %1492 = vmatprep.subr.bf16.mxu0 0
    %1493 = vmatpush1.bf16.msra.mxu0 0
    %1494 = vmatprep.subr.bf16.mxu0 0
    %1495 = vmatpush1.bf16.msra.mxu0 0
    %1496 = vmatprep.subr.bf16.mxu0 0
    %1497 = vmatpush1.bf16.msra.mxu0 0
    %1498 = vmatprep.subr.bf16.mxu0 0
    %1499 = vmatpush1.bf16.msra.mxu0 0
    %1500 = vmatprep.subr.bf16.mxu0 0
    %1501 = vmatpush1.bf16.msra.mxu0 0
    %1502 = vmatprep.subr.bf16.mxu0 0
    %1503 = vmatpush1.bf16.msra.mxu0 0
    %1504 = vmatprep.subr.bf16.mxu0 0
    %1505 = vmatpush1.bf16.msra.mxu0 0
    %1506 = vmatprep.mubr.bf16.mxu0 0
    %1507 = vmatmul.mubr.bf16.gmra.mrb[0].mxu0 %v1469
    %v1508 = vpop.f32.mrb[0].mxu0
    %v1509 = vadd.f32 0.0, %v1508
    %v1510 = vpop.f32.mrb[0].mxu0
    %v1511 = vpop.f32.mrb[0].mxu0
    %v1512 = vpop.f32.mrb[0].mxu0
    %1513 = vdwg.mxu0
    %v1514 = vpack.c.bf16 %v1509, %v1509
    %v1517 = vunpack.c.l.s4 1966171168
    %v1518 = vunpack.c.0.s8 %v1517
    %v1519 = vlaneseq
    %v1520 = vshrl.u32 %v1519, 7
    %v1521 = vsub.s32 %v1518, %v1520
    %v1522 = vrot.slane %v1514, %v1521
    %v1523 = vcombine.high %v1522, %v1522
    %v1525 = vunpack.c.l.s4 1966171168
    %v1526 = vunpack.c.0.s8 %v1525
    %v1527 = vlaneseq
    %v1528 = vshrl.u32 %v1527, 7
    %v1529 = vsub.s32 %v1526, %v1528
    %v1530 = vrot.slane %v1522, %v1529
    %v1532 = vunpack.c.l.s4 1966171168
    %v1533 = vunpack.c.0.s8 %v1532
    %v1534 = vlaneseq
    %v1535 = vshrl.u32 %v1534, 7
    %v1536 = vsub.s32 %v1533, %v1535
    %v1537 = vrot.slane %v1523, %v1536
    %v1538 = vcombine.high %v1530, %v1530
    %v1539 = vcombine.high %v1537, %v1537
    %v1540 = vunpack.i.l.s16 %v1530
    %v1541 = vunpack.i.h.s16 %v1530
    %v1542 = vunpack.i.l.s16 %v1537
    %v1543 = vunpack.i.h.s16 %v1537
    %v1544 = vunpack.i.l.s16 %v1538
    %v1545 = vunpack.i.h.s16 %v1538
    %v1546 = vunpack.i.l.s16 %v1539
    %v1547 = vunpack.i.h.s16 %v1539
    %v1548 = vpack.i.b16 %v1540, %v1540
    %v1549 = vpack.i.b16 %v1541, %v1541
    %v1550 = vpack.i.b16 %v1542, %v1542
    %v1551 = vpack.i.b16 %v1543, %v1543
    %v1552 = vpack.i.b16 %v1544, %v1544
    %v1553 = vpack.i.b16 %v1545, %v1545
    %v1554 = vpack.i.b16 %v1546, %v1546
    %v1555 = vpack.i.b16 %v1547, %v1547
    %1556 = vrot.lane.b32.xlu0 %v1548, 16
    %v1557 = vpop.permute.xlu0 %1556
    %1558 = vrot.lane.b32.xlu0 %v1549, 16
    %v1559 = vpop.permute.xlu0 %1558
    %1560 = vrot.lane.b32.xlu0 %v1550, 16
    %v1561 = vpop.permute.xlu0 %1560
    %1562 = vrot.lane.b32.xlu0 %v1551, 16
    %v1563 = vpop.permute.xlu0 %1562
    %1564 = vrot.lane.b32.xlu0 %v1552, 16
    %v1565 = vpop.permute.xlu0 %1564
    %1566 = vrot.lane.b32.xlu0 %v1553, 16
    %v1567 = vpop.permute.xlu0 %1566
    %1568 = vrot.lane.b32.xlu0 %v1554, 16
    %v1569 = vpop.permute.xlu0 %1568
    %1570 = vrot.lane.b32.xlu0 %v1555, 16
    %v1571 = vpop.permute.xlu0 %1570
    %vm1580 = vcmask 188544
    %vm1581 = vmand %vm1580, %vm1176
    %v1582 = vld [vmem:[#allocation2] sm:$0x1]
    %v1583 = vsel %vm1581, %v1557, %v1582
    %1584 = vst [vmem:[#allocation2] sm:$0x1] %v1583
    %v1585 = vld [vmem:[#allocation2 + $0x1] sm:$0x1]
    %v1586 = vsel %vm1581, %v1559, %v1585
    %1587 = vst [vmem:[#allocation2 + $0x1] sm:$0x1] %v1586
    %v1588 = vld [vmem:[#allocation2 + $0x2] sm:$0x1]
    %v1589 = vsel %vm1581, %v1561, %v1588
    %1590 = vst [vmem:[#allocation2 + $0x2] sm:$0x1] %v1589
    %v1591 = vld [vmem:[#allocation2 + $0x3] sm:$0x1]
    %v1592 = vsel %vm1581, %v1563, %v1591
    %1593 = vst [vmem:[#allocation2 + $0x3] sm:$0x1] %v1592
    %v1594 = vld [vmem:[#allocation2 + $0x4] sm:$0x1]
    %v1595 = vsel %vm1581, %v1565, %v1594
    %1596 = vst [vmem:[#allocation2 + $0x4] sm:$0x1] %v1595
    %v1597 = vld [vmem:[#allocation2 + $0x5] sm:$0x1]
    %v1598 = vsel %vm1581, %v1567, %v1597
    %1599 = vst [vmem:[#allocation2 + $0x5] sm:$0x1] %v1598
    %v1600 = vld [vmem:[#allocation2 + $0x6] sm:$0x1]
    %v1601 = vsel %vm1581, %v1569, %v1600
    %1602 = vst [vmem:[#allocation2 + $0x6] sm:$0x1] %v1601
    %v1603 = vld [vmem:[#allocation2 + $0x7] sm:$0x1]
    %v1604 = vsel %vm1581, %v1571, %v1603
    %1605 = vst [vmem:[#allocation2 + $0x7] sm:$0x1] %v1604
    %1606 = vrot.lane.b32.xlu0 %v748, 104
    %v1607 = vpop.permute.xlu0 %1606
    %1608 = vrot.lane.b32.xlu0 %v883, 104
    %v1609 = vpop.permute.xlu0 %1608
    %v1611 = vsel %vm884, %v1607, 0
    %v1614 = vsel %vm884, %v1609, 0
    %1616 = vmatprep.subr.bf16.mxu0 0
    %1617 = vmatpush1.bf16.xpose.msra.mxu0 %v1614
    %1618 = vmatprep.subr.bf16.mxu0 0
    %1619 = vmatpush1.bf16.xpose.msra.mxu0 0
    %1620 = vmatprep.subr.bf16.mxu0 0
    %1621 = vmatpush1.bf16.xpose.msra.mxu0 0
    %1622 = vmatprep.subr.bf16.mxu0 0
    %1623 = vmatpush1.bf16.xpose.msra.mxu0 0
    %1624 = vmatprep.subr.bf16.mxu0 0
    %1625 = vmatpush1.bf16.xpose.msra.mxu0 0
    %1626 = vmatprep.subr.bf16.mxu0 0
    %1627 = vmatpush1.bf16.xpose.msra.mxu0 0
    %1628 = vmatprep.subr.bf16.mxu0 0
    %1629 = vmatpush1.bf16.xpose.msra.mxu0 0
    %1630 = vmatprep.subr.bf16.mxu0 0
    %1631 = vmatpush1.bf16.xpose.msra.mxu0 0
    %1632 = vmatprep.subr.bf16.mxu0 0
    %1633 = vmatpush1.bf16.xpose.msra.mxu0 0
    %1634 = vmatprep.subr.bf16.mxu0 0
    %1635 = vmatpush1.bf16.xpose.msra.mxu0 0
    %1636 = vmatprep.subr.bf16.mxu0 0
    %1637 = vmatpush1.bf16.xpose.msra.mxu0 0
    %1638 = vmatprep.subr.bf16.mxu0 0
    %1639 = vmatpush1.bf16.xpose.msra.mxu0 0
    %1640 = vmatprep.subr.bf16.mxu0 0
    %1641 = vmatpush1.bf16.xpose.msra.mxu0 0
    %1642 = vmatprep.subr.bf16.mxu0 0
    %1643 = vmatpush1.bf16.xpose.msra.mxu0 0
    %1644 = vmatprep.subr.bf16.mxu0 0
    %1645 = vmatpush1.bf16.xpose.msra.mxu0 0
    %1646 = vmatprep.subr.bf16.mxu0 0
    %1647 = vmatpush1.bf16.xpose.msra.mxu0 0
    %1648 = vmatprep.mubr.bf16.mxu0 0
    %1649 = vmatmul.mubr.bf16.gmra.mrb[0].mxu0 %v1611
    %v1650 = vpop.f32.mrb[0].mxu0
    %v1651 = vadd.f32 0.0, %v1650
    %v1652 = vpop.f32.mrb[0].mxu0
    %v1653 = vpop.f32.mrb[0].mxu0
    %v1654 = vpop.f32.mrb[0].mxu0
    %1655 = vdwg.mxu0
    %v1656 = vsel %vm884, %v1651, -inf
    %1657 = vmax.xlane.f32.xlu0 %v1656
    %v1658 = vpop.xlane.xlu0 %1657
    %v1659 = vsub.f32 %v1651, %v1658
    %v1660 = vmul.f32 %v1659, 1.442695
    %v1661 = vpow.pop %v1660
    %v1662 = vsel %vm884, %v1661, 0.0
    %1663 = vadd.xlane.f32.xlu0 %v1662
    %v1664 = vpop.xlane.xlu0 %1663
    %v1665 = vrcp.pop %v1664
    %v1666 = vmul.f32 %v1661, %v1665
    %v1667 = vpack.c.bf16 %v1666, %v1666
    %1668 = vrot.lane.b32.xlu0 %v1077, 104
    %v1669 = vpop.permute.xlu0 %1668
    %v1671 = vsel %vm884, %v1667, 0
    %v1674 = vsel %vm1081, %v1669, 0
    %1676 = vmatprep.subr.bf16.mxu0 0
    %1677 = vmatpush1.bf16.msra.mxu0 %v1674
    %1678 = vmatprep.subr.bf16.mxu0 0
    %1679 = vmatpush1.bf16.msra.mxu0 0
    %1680 = vmatprep.subr.bf16.mxu0 0
    %1681 = vmatpush1.bf16.msra.mxu0 0
    %1682 = vmatprep.subr.bf16.mxu0 0
    %1683 = vmatpush1.bf16.msra.mxu0 0
    %1684 = vmatprep.subr.bf16.mxu0 0
    %1685 = vmatpush1.bf16.msra.mxu0 0
    %1686 = vmatprep.subr.bf16.mxu0 0
    %1687 = vmatpush1.bf16.msra.mxu0 0
    %1688 = vmatprep.subr.bf16.mxu0 0
    %1689 = vmatpush1.bf16.msra.mxu0 0
    %1690 = vmatprep.subr.bf16.mxu0 0
    %1691 = vmatpush1.bf16.msra.mxu0 0
    %1692 = vmatprep.subr.bf16.mxu0 0
    %1693 = vmatpush1.bf16.msra.mxu0 0
    %1694 = vmatprep.subr.bf16.mxu0 0
    %1695 = vmatpush1.bf16.msra.mxu0 0
    %1696 = vmatprep.subr.bf16.mxu0 0
    %1697 = vmatpush1.bf16.msra.mxu0 0
    %1698 = vmatprep.subr.bf16.mxu0 0
    %1699 = vmatpush1.bf16.msra.mxu0 0
    %1700 = vmatprep.subr.bf16.mxu0 0
    %1701 = vmatpush1.bf16.msra.mxu0 0
    %1702 = vmatprep.subr.bf16.mxu0 0
    %1703 = vmatpush1.bf16.msra.mxu0 0
    %1704 = vmatprep.subr.bf16.mxu0 0
    %1705 = vmatpush1.bf16.msra.mxu0 0
    %1706 = vmatprep.subr.bf16.mxu0 0
    %1707 = vmatpush1.bf16.msra.mxu0 0
    %1708 = vmatprep.mubr.bf16.mxu0 0
    %1709 = vmatmul.mubr.bf16.gmra.mrb[0].mxu0 %v1671
    %v1710 = vpop.f32.mrb[0].mxu0
    %v1711 = vadd.f32 0.0, %v1710
    %v1712 = vpop.f32.mrb[0].mxu0
    %v1713 = vpop.f32.mrb[0].mxu0
    %v1714 = vpop.f32.mrb[0].mxu0
    %1715 = vdwg.mxu0
    %v1716 = vpack.c.bf16 %v1711, %v1711
    %v1719 = vunpack.c.l.s4 1966171168
    %v1720 = vunpack.c.0.s8 %v1719
    %v1721 = vlaneseq
    %v1722 = vshrl.u32 %v1721, 7
    %v1723 = vsub.s32 %v1720, %v1722
    %v1724 = vrot.slane %v1716, %v1723
    %v1725 = vcombine.high %v1724, %v1724
    %v1727 = vunpack.c.l.s4 1966171168
    %v1728 = vunpack.c.0.s8 %v1727
    %v1729 = vlaneseq
    %v1730 = vshrl.u32 %v1729, 7
    %v1731 = vsub.s32 %v1728, %v1730
    %v1732 = vrot.slane %v1724, %v1731
    %v1734 = vunpack.c.l.s4 1966171168
    %v1735 = vunpack.c.0.s8 %v1734
    %v1736 = vlaneseq
    %v1737 = vshrl.u32 %v1736, 7
    %v1738 = vsub.s32 %v1735, %v1737
    %v1739 = vrot.slane %v1725, %v1738
    %v1740 = vcombine.high %v1732, %v1732
    %v1741 = vcombine.high %v1739, %v1739
    %v1742 = vunpack.i.l.s16 %v1732
    %v1743 = vunpack.i.h.s16 %v1732
    %v1744 = vunpack.i.l.s16 %v1739
    %v1745 = vunpack.i.h.s16 %v1739
    %v1746 = vunpack.i.l.s16 %v1740
    %v1747 = vunpack.i.h.s16 %v1740
    %v1748 = vunpack.i.l.s16 %v1741
    %v1749 = vunpack.i.h.s16 %v1741
    %v1750 = vpack.i.b16 %v1742, %v1742
    %v1751 = vpack.i.b16 %v1743, %v1743
    %v1752 = vpack.i.b16 %v1744, %v1744
    %v1753 = vpack.i.b16 %v1745, %v1745
    %v1754 = vpack.i.b16 %v1746, %v1746
    %v1755 = vpack.i.b16 %v1747, %v1747
    %v1756 = vpack.i.b16 %v1748, %v1748
    %v1757 = vpack.i.b16 %v1749, %v1749
    %1758 = vrot.lane.b32.xlu0 %v1750, 24
    %v1759 = vpop.permute.xlu0 %1758
    %1760 = vrot.lane.b32.xlu0 %v1751, 24
    %v1761 = vpop.permute.xlu0 %1760
    %1762 = vrot.lane.b32.xlu0 %v1752, 24
    %v1763 = vpop.permute.xlu0 %1762
    %1764 = vrot.lane.b32.xlu0 %v1753, 24
    %v1765 = vpop.permute.xlu0 %1764
    %1766 = vrot.lane.b32.xlu0 %v1754, 24
    %v1767 = vpop.permute.xlu0 %1766
    %1768 = vrot.lane.b32.xlu0 %v1755, 24
    %v1769 = vpop.permute.xlu0 %1768
    %1770 = vrot.lane.b32.xlu0 %v1756, 24
    %v1771 = vpop.permute.xlu0 %1770
    %1772 = vrot.lane.b32.xlu0 %v1757, 24
    %v1773 = vpop.permute.xlu0 %1772
    %vm1782 = vcmask 254144
    %vm1783 = vmand %vm1782, %vm1176
    %v1784 = vld [vmem:[#allocation2] sm:$0x1]
    %v1785 = vsel %vm1783, %v1759, %v1784
    %1786 = vst [vmem:[#allocation2] sm:$0x1] %v1785
    %v1787 = vld [vmem:[#allocation2 + $0x1] sm:$0x1]
    %v1788 = vsel %vm1783, %v1761, %v1787
    %1789 = vst [vmem:[#allocation2 + $0x1] sm:$0x1] %v1788
    %v1790 = vld [vmem:[#allocation2 + $0x2] sm:$0x1]
    %v1791 = vsel %vm1783, %v1763, %v1790
    %1792 = vst [vmem:[#allocation2 + $0x2] sm:$0x1] %v1791
    %v1793 = vld [vmem:[#allocation2 + $0x3] sm:$0x1]
    %v1794 = vsel %vm1783, %v1765, %v1793
    %1795 = vst [vmem:[#allocation2 + $0x3] sm:$0x1] %v1794
    %v1796 = vld [vmem:[#allocation2 + $0x4] sm:$0x1]
    %v1797 = vsel %vm1783, %v1767, %v1796
    %1798 = vst [vmem:[#allocation2 + $0x4] sm:$0x1] %v1797
    %v1799 = vld [vmem:[#allocation2 + $0x5] sm:$0x1]
    %v1800 = vsel %vm1783, %v1769, %v1799
    %1801 = vst [vmem:[#allocation2 + $0x5] sm:$0x1] %v1800
    %v1802 = vld [vmem:[#allocation2 + $0x6] sm:$0x1]
    %v1803 = vsel %vm1783, %v1771, %v1802
    %1804 = vst [vmem:[#allocation2 + $0x6] sm:$0x1] %v1803
    %v1805 = vld [vmem:[#allocation2 + $0x7] sm:$0x1]
    %v1806 = vsel %vm1783, %v1773, %v1805
    %1807 = vst [vmem:[#allocation2 + $0x7] sm:$0x1] %v1806
    %v1808 = vrot.slane %v719, 1
    %v1809 = vsel %vm728, %v720, %v1808
    %v1810 = vrot.slane %v721, 7
    %v1811 = vsel %vm731, %v1810, %v1809
    %v1812 = vrot.slane %v722, 6
    %v1813 = vsel %vm734, %v1812, %v1811
    %v1814 = vrot.slane %v723, 5
    %v1815 = vsel %vm737, %v1814, %v1813
    %v1816 = vrot.slane %v724, 4
    %v1817 = vsel %vm740, %v1816, %v1815
    %v1818 = vrot.slane %v725, 3
    %v1819 = vsel %vm743, %v1818, %v1817
    %v1820 = vrot.slane %v726, 2
    %v1821 = vsel %vm746, %v1820, %v1819
    %v1822 = vpack.c.b16 %v1821, %v1821
    %v1823 = vrot.slane %v861, 1
    %v1824 = vsel %vm728, %v862, %v1823
    %v1825 = vrot.slane %v863, 7
    %v1826 = vsel %vm731, %v1825, %v1824
    %v1827 = vrot.slane %v864, 6
    %v1828 = vsel %vm734, %v1827, %v1826
    %v1829 = vrot.slane %v865, 5
    %v1830 = vsel %vm737, %v1829, %v1828
    %v1831 = vrot.slane %v866, 4
    %v1832 = vsel %vm740, %v1831, %v1830
    %v1833 = vrot.slane %v867, 3
    %v1834 = vsel %vm743, %v1833, %v1832
    %v1835 = vrot.slane %v868, 2
    %v1836 = vsel %vm746, %v1835, %v1834
    %v1837 = vpack.c.b16 %v1836, %v1836
    %v1839 = vsel %vm884, %v1822, 0
    %v1842 = vsel %vm884, %v1837, 0
    %1844 = vmatprep.subr.bf16.mxu0 0
    %1845 = vmatpush1.bf16.xpose.msra.mxu0 %v1842
    %1846 = vmatprep.subr.bf16.mxu0 0
    %1847 = vmatpush1.bf16.xpose.msra.mxu0 0
    %1848 = vmatprep.subr.bf16.mxu0 0
    %1849 = vmatpush1.bf16.xpose.msra.mxu0 0
    %1850 = vmatprep.subr.bf16.mxu0 0
    %1851 = vmatpush1.bf16.xpose.msra.mxu0 0
    %1852 = vmatprep.subr.bf16.mxu0 0
    %1853 = vmatpush1.bf16.xpose.msra.mxu0 0
    %1854 = vmatprep.subr.bf16.mxu0 0
    %1855 = vmatpush1.bf16.xpose.msra.mxu0 0
    %1856 = vmatprep.subr.bf16.mxu0 0
    %1857 = vmatpush1.bf16.xpose.msra.mxu0 0
    %1858 = vmatprep.subr.bf16.mxu0 0
    %1859 = vmatpush1.bf16.xpose.msra.mxu0 0
    %1860 = vmatprep.subr.bf16.mxu0 0
    %1861 = vmatpush1.bf16.xpose.msra.mxu0 0
    %1862 = vmatprep.subr.bf16.mxu0 0
    %1863 = vmatpush1.bf16.xpose.msra.mxu0 0
    %1864 = vmatprep.subr.bf16.mxu0 0
    %1865 = vmatpush1.bf16.xpose.msra.mxu0 0
    %1866 = vmatprep.subr.bf16.mxu0 0
    %1867 = vmatpush1.bf16.xpose.msra.mxu0 0
    %1868 = vmatprep.subr.bf16.mxu0 0
    %1869 = vmatpush1.bf16.xpose.msra.mxu0 0
    %1870 = vmatprep.subr.bf16.mxu0 0
    %1871 = vmatpush1.bf16.xpose.msra.mxu0 0
    %1872 = vmatprep.subr.bf16.mxu0 0
    %1873 = vmatpush1.bf16.xpose.msra.mxu0 0
    %1874 = vmatprep.subr.bf16.mxu0 0
    %1875 = vmatpush1.bf16.xpose.msra.mxu0 0
    %1876 = vmatprep.mubr.bf16.mxu0 0
    %1877 = vmatmul.mubr.bf16.gmra.mrb[0].mxu0 %v1839
    %v1878 = vpop.f32.mrb[0].mxu0
    %v1879 = vadd.f32 0.0, %v1878
    %v1880 = vpop.f32.mrb[0].mxu0
    %v1881 = vpop.f32.mrb[0].mxu0
    %v1882 = vpop.f32.mrb[0].mxu0
    %1883 = vdwg.mxu0
    %v1884 = vsel %vm884, %v1879, -inf
    %1885 = vmax.xlane.f32.xlu0 %v1884
    %v1886 = vpop.xlane.xlu0 %1885
    %v1887 = vsub.f32 %v1879, %v1886
    %v1888 = vmul.f32 %v1887, 1.442695
    %v1889 = vpow.pop %v1888
    %v1890 = vsel %vm884, %v1889, 0.0
    %1891 = vadd.xlane.f32.xlu0 %v1890
    %v1892 = vpop.xlane.xlu0 %1891
    %v1893 = vrcp.pop %v1892
    %v1894 = vmul.f32 %v1889, %v1893
    %v1895 = vpack.c.bf16 %v1894, %v1894
    %v1896 = vrot.slane %v1055, 1
    %v1897 = vsel %vm728, %v1056, %v1896
    %v1898 = vrot.slane %v1057, 7
    %v1899 = vsel %vm731, %v1898, %v1897
    %v1900 = vrot.slane %v1058, 6
    %v1901 = vsel %vm734, %v1900, %v1899
    %v1902 = vrot.slane %v1059, 5
    %v1903 = vsel %vm737, %v1902, %v1901
    %v1904 = vrot.slane %v1060, 4
    %v1905 = vsel %vm740, %v1904, %v1903
    %v1906 = vrot.slane %v1061, 3
    %v1907 = vsel %vm743, %v1906, %v1905
    %v1908 = vrot.slane %v1062, 2
    %v1909 = vsel %vm746, %v1908, %v1907
    %v1910 = vpack.c.b16 %v1909, %v1909
    %v1912 = vsel %vm884, %v1895, 0
    %v1915 = vsel %vm1081, %v1910, 0
    %1917 = vmatprep.subr.bf16.mxu0 0
    %1918 = vmatpush1.bf16.msra.mxu0 %v1915
    %1919 = vmatprep.subr.bf16.mxu0 0
    %1920 = vmatpush1.bf16.msra.mxu0 0
    %1921 = vmatprep.subr.bf16.mxu0 0
    %1922 = vmatpush1.bf16.msra.mxu0 0
    %1923 = vmatprep.subr.bf16.mxu0 0
    %1924 = vmatpush1.bf16.msra.mxu0 0
    %1925 = vmatprep.subr.bf16.mxu0 0
    %1926 = vmatpush1.bf16.msra.mxu0 0
    %1927 = vmatprep.subr.bf16.mxu0 0
    %1928 = vmatpush1.bf16.msra.mxu0 0
    %1929 = vmatprep.subr.bf16.mxu0 0
    %1930 = vmatpush1.bf16.msra.mxu0 0
    %1931 = vmatprep.subr.bf16.mxu0 0
    %1932 = vmatpush1.bf16.msra.mxu0 0
    %1933 = vmatprep.subr.bf16.mxu0 0
    %1934 = vmatpush1.bf16.msra.mxu0 0
    %1935 = vmatprep.subr.bf16.mxu0 0
    %1936 = vmatpush1.bf16.msra.mxu0 0
    %1937 = vmatprep.subr.bf16.mxu0 0
    %1938 = vmatpush1.bf16.msra.mxu0 0
    %1939 = vmatprep.subr.bf16.mxu0 0
    %1940 = vmatpush1.bf16.msra.mxu0 0
    %1941 = vmatprep.subr.bf16.mxu0 0
    %1942 = vmatpush1.bf16.msra.mxu0 0
    %1943 = vmatprep.subr.bf16.mxu0 0
    %1944 = vmatpush1.bf16.msra.mxu0 0
    %1945 = vmatprep.subr.bf16.mxu0 0
    %1946 = vmatpush1.bf16.msra.mxu0 0
    %1947 = vmatprep.subr.bf16.mxu0 0
    %1948 = vmatpush1.bf16.msra.mxu0 0
    %1949 = vmatprep.mubr.bf16.mxu0 0
    %1950 = vmatmul.mubr.bf16.gmra.mrb[0].mxu0 %v1912
    %v1951 = vpop.f32.mrb[0].mxu0
    %v1952 = vadd.f32 0.0, %v1951
    %v1953 = vpop.f32.mrb[0].mxu0
    %v1954 = vpop.f32.mrb[0].mxu0
    %v1955 = vpop.f32.mrb[0].mxu0
    %1956 = vdwg.mxu0
    %v1957 = vpack.c.bf16 %v1952, %v1952
    %v1960 = vunpack.c.l.s4 1966171168
    %v1961 = vunpack.c.0.s8 %v1960
    %v1962 = vlaneseq
    %v1963 = vshrl.u32 %v1962, 7
    %v1964 = vsub.s32 %v1961, %v1963
    %v1965 = vrot.slane %v1957, %v1964
    %v1966 = vcombine.high %v1965, %v1965
    %v1968 = vunpack.c.l.s4 1966171168
    %v1969 = vunpack.c.0.s8 %v1968
    %v1970 = vlaneseq
    %v1971 = vshrl.u32 %v1970, 7
    %v1972 = vsub.s32 %v1969, %v1971
    %v1973 = vrot.slane %v1965, %v1972
    %v1975 = vunpack.c.l.s4 1966171168
    %v1976 = vunpack.c.0.s8 %v1975
    %v1977 = vlaneseq
    %v1978 = vshrl.u32 %v1977, 7
    %v1979 = vsub.s32 %v1976, %v1978
    %v1980 = vrot.slane %v1966, %v1979
    %v1981 = vcombine.high %v1973, %v1973
    %v1982 = vcombine.high %v1980, %v1980
    %v1983 = vunpack.i.l.s16 %v1973
    %v1984 = vunpack.i.h.s16 %v1973
    %v1985 = vunpack.i.l.s16 %v1980
    %v1986 = vunpack.i.h.s16 %v1980
    %v1987 = vunpack.i.l.s16 %v1981
    %v1988 = vunpack.i.h.s16 %v1981
    %v1989 = vunpack.i.l.s16 %v1982
    %v1990 = vunpack.i.h.s16 %v1982
    %v1991 = vpack.i.b16 %v1983, %v1983
    %v1992 = vpack.i.b16 %v1984, %v1984
    %v1993 = vpack.i.b16 %v1985, %v1985
    %v1994 = vpack.i.b16 %v1986, %v1986
    %v1995 = vpack.i.b16 %v1987, %v1987
    %v1996 = vpack.i.b16 %v1988, %v1988
    %v1997 = vpack.i.b16 %v1989, %v1989
    %v1998 = vpack.i.b16 %v1990, %v1990
    %vm2007 = vsmask.f32 7938
    %vm2008 = vmand %vm1175, %vm2007
    %v2009 = vld [vmem:[#allocation2] sm:$0x1]
    %v2010 = vsel %vm2008, %v1991, %v2009
    %2011 = vst [vmem:[#allocation2] sm:$0x1] %v2010
    %v2012 = vld [vmem:[#allocation2 + $0x1] sm:$0x1]
    %v2013 = vsel %vm2008, %v1992, %v2012
    %2014 = vst [vmem:[#allocation2 + $0x1] sm:$0x1] %v2013
    %v2015 = vld [vmem:[#allocation2 + $0x2] sm:$0x1]
    %v2016 = vsel %vm2008, %v1993, %v2015
    %2017 = vst [vmem:[#allocation2 + $0x2] sm:$0x1] %v2016
    %v2018 = vld [vmem:[#allocation2 + $0x3] sm:$0x1]
    %v2019 = vsel %vm2008, %v1994, %v2018
    %2020 = vst [vmem:[#allocation2 + $0x3] sm:$0x1] %v2019
    %v2021 = vld [vmem:[#allocation2 + $0x4] sm:$0x1]
    %v2022 = vsel %vm2008, %v1995, %v2021
    %2023 = vst [vmem:[#allocation2 + $0x4] sm:$0x1] %v2022
    %v2024 = vld [vmem:[#allocation2 + $0x5] sm:$0x1]
    %v2025 = vsel %vm2008, %v1996, %v2024
    %2026 = vst [vmem:[#allocation2 + $0x5] sm:$0x1] %v2025
    %v2027 = vld [vmem:[#allocation2 + $0x6] sm:$0x1]
    %v2028 = vsel %vm2008, %v1997, %v2027
    %2029 = vst [vmem:[#allocation2 + $0x6] sm:$0x1] %v2028
    %v2030 = vld [vmem:[#allocation2 + $0x7] sm:$0x1]
    %v2031 = vsel %vm2008, %v1998, %v2030
    %2032 = vst [vmem:[#allocation2 + $0x7] sm:$0x1] %v2031
    %2033 = vrot.lane.b32.xlu0 %v1822, 120
    %v2034 = vpop.permute.xlu0 %2033
    %2035 = vrot.lane.b32.xlu0 %v1837, 120
    %v2036 = vpop.permute.xlu0 %2035
    %v2038 = vsel %vm884, %v2034, 0
    %v2041 = vsel %vm884, %v2036, 0
    %2043 = vmatprep.subr.bf16.mxu0 0
    %2044 = vmatpush1.bf16.xpose.msra.mxu0 %v2041
    %2045 = vmatprep.subr.bf16.mxu0 0
    %2046 = vmatpush1.bf16.xpose.msra.mxu0 0
    %2047 = vmatprep.subr.bf16.mxu0 0
    %2048 = vmatpush1.bf16.xpose.msra.mxu0 0
    %2049 = vmatprep.subr.bf16.mxu0 0
    %2050 = vmatpush1.bf16.xpose.msra.mxu0 0
    %2051 = vmatprep.subr.bf16.mxu0 0
    %2052 = vmatpush1.bf16.xpose.msra.mxu0 0
    %2053 = vmatprep.subr.bf16.mxu0 0
    %2054 = vmatpush1.bf16.xpose.msra.mxu0 0
    %2055 = vmatprep.subr.bf16.mxu0 0
    %2056 = vmatpush1.bf16.xpose.msra.mxu0 0
    %2057 = vmatprep.subr.bf16.mxu0 0
    %2058 = vmatpush1.bf16.xpose.msra.mxu0 0
    %2059 = vmatprep.subr.bf16.mxu0 0
    %2060 = vmatpush1.bf16.xpose.msra.mxu0 0
    %2061 = vmatprep.subr.bf16.mxu0 0
    %2062 = vmatpush1.bf16.xpose.msra.mxu0 0
    %2063 = vmatprep.subr.bf16.mxu0 0
    %2064 = vmatpush1.bf16.xpose.msra.mxu0 0
    %2065 = vmatprep.subr.bf16.mxu0 0
    %2066 = vmatpush1.bf16.xpose.msra.mxu0 0
    %2067 = vmatprep.subr.bf16.mxu0 0
    %2068 = vmatpush1.bf16.xpose.msra.mxu0 0
    %2069 = vmatprep.subr.bf16.mxu0 0
    %2070 = vmatpush1.bf16.xpose.msra.mxu0 0
    %2071 = vmatprep.subr.bf16.mxu0 0
    %2072 = vmatpush1.bf16.xpose.msra.mxu0 0
    %2073 = vmatprep.subr.bf16.mxu0 0
    %2074 = vmatpush1.bf16.xpose.msra.mxu0 0
    %2075 = vmatprep.mubr.bf16.mxu0 0
    %2076 = vmatmul.mubr.bf16.gmra.mrb[0].mxu0 %v2038
    %v2077 = vpop.f32.mrb[0].mxu0
    %v2078 = vadd.f32 0.0, %v2077
    %v2079 = vpop.f32.mrb[0].mxu0
    %v2080 = vpop.f32.mrb[0].mxu0
    %v2081 = vpop.f32.mrb[0].mxu0
    %2082 = vdwg.mxu0
    %v2083 = vsel %vm884, %v2078, -inf
    %2084 = vmax.xlane.f32.xlu0 %v2083
    %v2085 = vpop.xlane.xlu0 %2084
    %v2086 = vsub.f32 %v2078, %v2085
    %v2087 = vmul.f32 %v2086, 1.442695
    %v2088 = vpow.pop %v2087
    %v2089 = vsel %vm884, %v2088, 0.0
    %2090 = vadd.xlane.f32.xlu0 %v2089
    %v2091 = vpop.xlane.xlu0 %2090
    %v2092 = vrcp.pop %v2091
    %v2093 = vmul.f32 %v2088, %v2092
    %v2094 = vpack.c.bf16 %v2093, %v2093
    %2095 = vrot.lane.b32.xlu0 %v1910, 120
    %v2096 = vpop.permute.xlu0 %2095
    %v2098 = vsel %vm884, %v2094, 0
    %v2101 = vsel %vm1081, %v2096, 0
    %2103 = vmatprep.subr.bf16.mxu0 0
    %2104 = vmatpush1.bf16.msra.mxu0 %v2101
    %2105 = vmatprep.subr.bf16.mxu0 0
    %2106 = vmatpush1.bf16.msra.mxu0 0
    %2107 = vmatprep.subr.bf16.mxu0 0
    %2108 = vmatpush1.bf16.msra.mxu0 0
    %2109 = vmatprep.subr.bf16.mxu0 0
    %2110 = vmatpush1.bf16.msra.mxu0 0
    %2111 = vmatprep.subr.bf16.mxu0 0
    %2112 = vmatpush1.bf16.msra.mxu0 0
    %2113 = vmatprep.subr.bf16.mxu0 0
    %2114 = vmatpush1.bf16.msra.mxu0 0
    %2115 = vmatprep.subr.bf16.mxu0 0
    %2116 = vmatpush1.bf16.msra.mxu0 0
    %2117 = vmatprep.subr.bf16.mxu0 0
    %2118 = vmatpush1.bf16.msra.mxu0 0
    %2119 = vmatprep.subr.bf16.mxu0 0
    %2120 = vmatpush1.bf16.msra.mxu0 0
    %2121 = vmatprep.subr.bf16.mxu0 0
    %2122 = vmatpush1.bf16.msra.mxu0 0
    %2123 = vmatprep.subr.bf16.mxu0 0
    %2124 = vmatpush1.bf16.msra.mxu0 0
    %2125 = vmatprep.subr.bf16.mxu0 0
    %2126 = vmatpush1.bf16.msra.mxu0 0
    %2127 = vmatprep.subr.bf16.mxu0 0
    %2128 = vmatpush1.bf16.msra.mxu0 0
    %2129 = vmatprep.subr.bf16.mxu0 0
    %2130 = vmatpush1.bf16.msra.mxu0 0
    %2131 = vmatprep.subr.bf16.mxu0 0
    %2132 = vmatpush1.bf16.msra.mxu0 0
    %2133 = vmatprep.subr.bf16.mxu0 0
    %2134 = vmatpush1.bf16.msra.mxu0 0
    %2135 = vmatprep.mubr.bf16.mxu0 0
    %2136 = vmatmul.mubr.bf16.gmra.mrb[0].mxu0 %v2098
    %v2137 = vpop.f32.mrb[0].mxu0
    %v2138 = vadd.f32 0.0, %v2137
    %v2139 = vpop.f32.mrb[0].mxu0
    %v2140 = vpop.f32.mrb[0].mxu0
    %v2141 = vpop.f32.mrb[0].mxu0
    %2142 = vdwg.mxu0
    %v2143 = vpack.c.bf16 %v2138, %v2138
    %v2146 = vunpack.c.l.s4 1966171168
    %v2147 = vunpack.c.0.s8 %v2146
    %v2148 = vlaneseq
    %v2149 = vshrl.u32 %v2148, 7
    %v2150 = vsub.s32 %v2147, %v2149
    %v2151 = vrot.slane %v2143, %v2150
    %v2152 = vcombine.high %v2151, %v2151
    %v2154 = vunpack.c.l.s4 1966171168
    %v2155 = vunpack.c.0.s8 %v2154
    %v2156 = vlaneseq
    %v2157 = vshrl.u32 %v2156, 7
    %v2158 = vsub.s32 %v2155, %v2157
    %v2159 = vrot.slane %v2151, %v2158
    %v2161 = vunpack.c.l.s4 1966171168
    %v2162 = vunpack.c.0.s8 %v2161
    %v2163 = vlaneseq
    %v2164 = vshrl.u32 %v2163, 7
    %v2165 = vsub.s32 %v2162, %v2164
    %v2166 = vrot.slane %v2152, %v2165
    %v2167 = vcombine.high %v2159, %v2159
    %v2168 = vcombine.high %v2166, %v2166
    %v2169 = vunpack.i.l.s16 %v2159
    %v2170 = vunpack.i.h.s16 %v2159
    %v2171 = vunpack.i.l.s16 %v2166
    %v2172 = vunpack.i.h.s16 %v2166
    %v2173 = vunpack.i.l.s16 %v2167
    %v2174 = vunpack.i.h.s16 %v2167
    %v2175 = vunpack.i.l.s16 %v2168
    %v2176 = vunpack.i.h.s16 %v2168
    %v2177 = vpack.i.b16 %v2169, %v2169
    %v2178 = vpack.i.b16 %v2170, %v2170
    %v2179 = vpack.i.b16 %v2171, %v2171
    %v2180 = vpack.i.b16 %v2172, %v2172
    %v2181 = vpack.i.b16 %v2173, %v2173
    %v2182 = vpack.i.b16 %v2174, %v2174
    %v2183 = vpack.i.b16 %v2175, %v2175
    %v2184 = vpack.i.b16 %v2176, %v2176
    %2185 = vrot.lane.b32.xlu0 %v2177, 8
    %v2186 = vpop.permute.xlu0 %2185
    %2187 = vrot.lane.b32.xlu0 %v2178, 8
    %v2188 = vpop.permute.xlu0 %2187
    %2189 = vrot.lane.b32.xlu0 %v2179, 8
    %v2190 = vpop.permute.xlu0 %2189
    %2191 = vrot.lane.b32.xlu0 %v2180, 8
    %v2192 = vpop.permute.xlu0 %2191
    %2193 = vrot.lane.b32.xlu0 %v2181, 8
    %v2194 = vpop.permute.xlu0 %2193
    %2195 = vrot.lane.b32.xlu0 %v2182, 8
    %v2196 = vpop.permute.xlu0 %2195
    %2197 = vrot.lane.b32.xlu0 %v2183, 8
    %v2198 = vpop.permute.xlu0 %2197
    %2199 = vrot.lane.b32.xlu0 %v2184, 8
    %v2200 = vpop.permute.xlu0 %2199
    %vm2209 = vmand %vm1378, %vm2007
    %v2210 = vld [vmem:[#allocation2] sm:$0x1]
    %v2211 = vsel %vm2209, %v2186, %v2210
    %2212 = vst [vmem:[#allocation2] sm:$0x1] %v2211
    %v2213 = vld [vmem:[#allocation2 + $0x1] sm:$0x1]
    %v2214 = vsel %vm2209, %v2188, %v2213
    %2215 = vst [vmem:[#allocation2 + $0x1] sm:$0x1] %v2214
    %v2216 = vld [vmem:[#allocation2 + $0x2] sm:$0x1]
    %v2217 = vsel %vm2209, %v2190, %v2216
    %2218 = vst [vmem:[#allocation2 + $0x2] sm:$0x1] %v2217
    %v2219 = vld [vmem:[#allocation2 + $0x3] sm:$0x1]
    %v2220 = vsel %vm2209, %v2192, %v2219
    %2221 = vst [vmem:[#allocation2 + $0x3] sm:$0x1] %v2220
    %v2222 = vld [vmem:[#allocation2 + $0x4] sm:$0x1]
    %v2223 = vsel %vm2209, %v2194, %v2222
    %2224 = vst [vmem:[#allocation2 + $0x4] sm:$0x1] %v2223
    %v2225 = vld [vmem:[#allocation2 + $0x5] sm:$0x1]
    %v2226 = vsel %vm2209, %v2196, %v2225
    %2227 = vst [vmem:[#allocation2 + $0x5] sm:$0x1] %v2226
    %v2228 = vld [vmem:[#allocation2 + $0x6] sm:$0x1]
    %v2229 = vsel %vm2209, %v2198, %v2228
    %2230 = vst [vmem:[#allocation2 + $0x6] sm:$0x1] %v2229
    %v2231 = vld [vmem:[#allocation2 + $0x7] sm:$0x1]
    %v2232 = vsel %vm2209, %v2200, %v2231
    %2233 = vst [vmem:[#allocation2 + $0x7] sm:$0x1] %v2232
    %2234 = vrot.lane.b32.xlu0 %v1822, 112
    %v2235 = vpop.permute.xlu0 %2234
    %2236 = vrot.lane.b32.xlu0 %v1837, 112
    %v2237 = vpop.permute.xlu0 %2236
    %v2239 = vsel %vm884, %v2235, 0
    %v2242 = vsel %vm884, %v2237, 0
    %2244 = vmatprep.subr.bf16.mxu0 0
    %2245 = vmatpush1.bf16.xpose.msra.mxu0 %v2242
    %2246 = vmatprep.subr.bf16.mxu0 0
    %2247 = vmatpush1.bf16.xpose.msra.mxu0 0
    %2248 = vmatprep.subr.bf16.mxu0 0
    %2249 = vmatpush1.bf16.xpose.msra.mxu0 0
    %2250 = vmatprep.subr.bf16.mxu0 0
    %2251 = vmatpush1.bf16.xpose.msra.mxu0 0
    %2252 = vmatprep.subr.bf16.mxu0 0
    %2253 = vmatpush1.bf16.xpose.msra.mxu0 0
    %2254 = vmatprep.subr.bf16.mxu0 0
    %2255 = vmatpush1.bf16.xpose.msra.mxu0 0
    %2256 = vmatprep.subr.bf16.mxu0 0
    %2257 = vmatpush1.bf16.xpose.msra.mxu0 0
    %2258 = vmatprep.subr.bf16.mxu0 0
    %2259 = vmatpush1.bf16.xpose.msra.mxu0 0
    %2260 = vmatprep.subr.bf16.mxu0 0
    %2261 = vmatpush1.bf16.xpose.msra.mxu0 0
    %2262 = vmatprep.subr.bf16.mxu0 0
    %2263 = vmatpush1.bf16.xpose.msra.mxu0 0
    %2264 = vmatprep.subr.bf16.mxu0 0
    %2265 = vmatpush1.bf16.xpose.msra.mxu0 0
    %2266 = vmatprep.subr.bf16.mxu0 0
    %2267 = vmatpush1.bf16.xpose.msra.mxu0 0
    %2268 = vmatprep.subr.bf16.mxu0 0
    %2269 = vmatpush1.bf16.xpose.msra.mxu0 0
    %2270 = vmatprep.subr.bf16.mxu0 0
    %2271 = vmatpush1.bf16.xpose.msra.mxu0 0
    %2272 = vmatprep.subr.bf16.mxu0 0
    %2273 = vmatpush1.bf16.xpose.msra.mxu0 0
    %2274 = vmatprep.subr.bf16.mxu0 0
    %2275 = vmatpush1.bf16.xpose.msra.mxu0 0
    %2276 = vmatprep.mubr.bf16.mxu0 0
    %2277 = vmatmul.mubr.bf16.gmra.mrb[0].mxu0 %v2239
    %v2278 = vpop.f32.mrb[0].mxu0
    %v2279 = vadd.f32 0.0, %v2278
    %v2280 = vpop.f32.mrb[0].mxu0
    %v2281 = vpop.f32.mrb[0].mxu0
    %v2282 = vpop.f32.mrb[0].mxu0
    %2283 = vdwg.mxu0
    %v2284 = vsel %vm884, %v2279, -inf
    %2285 = vmax.xlane.f32.xlu0 %v2284
    %v2286 = vpop.xlane.xlu0 %2285
    %v2287 = vsub.f32 %v2279, %v2286
    %v2288 = vmul.f32 %v2287, 1.442695
    %v2289 = vpow.pop %v2288
    %v2290 = vsel %vm884, %v2289, 0.0
    %2291 = vadd.xlane.f32.xlu0 %v2290
    %v2292 = vpop.xlane.xlu0 %2291
    %v2293 = vrcp.pop %v2292
    %v2294 = vmul.f32 %v2289, %v2293
    %v2295 = vpack.c.bf16 %v2294, %v2294
    %2296 = vrot.lane.b32.xlu0 %v1910, 112
    %v2297 = vpop.permute.xlu0 %2296
    %v2299 = vsel %vm884, %v2295, 0
    %v2302 = vsel %vm1081, %v2297, 0
    %2304 = vmatprep.subr.bf16.mxu0 0
    %2305 = vmatpush1.bf16.msra.mxu0 %v2302
    %2306 = vmatprep.subr.bf16.mxu0 0
    %2307 = vmatpush1.bf16.msra.mxu0 0
    %2308 = vmatprep.subr.bf16.mxu0 0
    %2309 = vmatpush1.bf16.msra.mxu0 0
    %2310 = vmatprep.subr.bf16.mxu0 0
    %2311 = vmatpush1.bf16.msra.mxu0 0
    %2312 = vmatprep.subr.bf16.mxu0 0
    %2313 = vmatpush1.bf16.msra.mxu0 0
    %2314 = vmatprep.subr.bf16.mxu0 0
    %2315 = vmatpush1.bf16.msra.mxu0 0
    %2316 = vmatprep.subr.bf16.mxu0 0
    %2317 = vmatpush1.bf16.msra.mxu0 0
    %2318 = vmatprep.subr.bf16.mxu0 0
    %2319 = vmatpush1.bf16.msra.mxu0 0
    %2320 = vmatprep.subr.bf16.mxu0 0
    %2321 = vmatpush1.bf16.msra.mxu0 0
    %2322 = vmatprep.subr.bf16.mxu0 0
    %2323 = vmatpush1.bf16.msra.mxu0 0
    %2324 = vmatprep.subr.bf16.mxu0 0
    %2325 = vmatpush1.bf16.msra.mxu0 0
    %2326 = vmatprep.subr.bf16.mxu0 0
    %2327 = vmatpush1.bf16.msra.mxu0 0
    %2328 = vmatprep.subr.bf16.mxu0 0
    %2329 = vmatpush1.bf16.msra.mxu0 0
    %2330 = vmatprep.subr.bf16.mxu0 0
    %2331 = vmatpush1.bf16.msra.mxu0 0
    %2332 = vmatprep.subr.bf16.mxu0 0
    %2333 = vmatpush1.bf16.msra.mxu0 0
    %2334 = vmatprep.subr.bf16.mxu0 0
    %2335 = vmatpush1.bf16.msra.mxu0 0
    %2336 = vmatprep.mubr.bf16.mxu0 0
    %2337 = vmatmul.mubr.bf16.gmra.mrb[0].mxu0 %v2299
    %v2338 = vpop.f32.mrb[0].mxu0
    %v2339 = vadd.f32 0.0, %v2338
    %v2340 = vpop.f32.mrb[0].mxu0
    %v2341 = vpop.f32.mrb[0].mxu0
    %v2342 = vpop.f32.mrb[0].mxu0
    %2343 = vdwg.mxu0
    %v2344 = vpack.c.bf16 %v2339, %v2339
    %v2347 = vunpack.c.l.s4 1966171168
    %v2348 = vunpack.c.0.s8 %v2347
    %v2349 = vlaneseq
    %v2350 = vshrl.u32 %v2349, 7
    %v2351 = vsub.s32 %v2348, %v2350
    %v2352 = vrot.slane %v2344, %v2351
    %v2353 = vcombine.high %v2352, %v2352
    %v2355 = vunpack.c.l.s4 1966171168
    %v2356 = vunpack.c.0.s8 %v2355
    %v2357 = vlaneseq
    %v2358 = vshrl.u32 %v2357, 7
    %v2359 = vsub.s32 %v2356, %v2358
    %v2360 = vrot.slane %v2352, %v2359
    %v2362 = vunpack.c.l.s4 1966171168
    %v2363 = vunpack.c.0.s8 %v2362
    %v2364 = vlaneseq
    %v2365 = vshrl.u32 %v2364, 7
    %v2366 = vsub.s32 %v2363, %v2365
    %v2367 = vrot.slane %v2353, %v2366
    %v2368 = vcombine.high %v2360, %v2360
    %v2369 = vcombine.high %v2367, %v2367
    %v2370 = vunpack.i.l.s16 %v2360
    %v2371 = vunpack.i.h.s16 %v2360
    %v2372 = vunpack.i.l.s16 %v2367
    %v2373 = vunpack.i.h.s16 %v2367
    %v2374 = vunpack.i.l.s16 %v2368
    %v2375 = vunpack.i.h.s16 %v2368
    %v2376 = vunpack.i.l.s16 %v2369
    %v2377 = vunpack.i.h.s16 %v2369
    %v2378 = vpack.i.b16 %v2370, %v2370
    %v2379 = vpack.i.b16 %v2371, %v2371
    %v2380 = vpack.i.b16 %v2372, %v2372
    %v2381 = vpack.i.b16 %v2373, %v2373
    %v2382 = vpack.i.b16 %v2374, %v2374
    %v2383 = vpack.i.b16 %v2375, %v2375
    %v2384 = vpack.i.b16 %v2376, %v2376
    %v2385 = vpack.i.b16 %v2377, %v2377
    %2386 = vrot.lane.b32.xlu0 %v2378, 16
    %v2387 = vpop.permute.xlu0 %2386
    %2388 = vrot.lane.b32.xlu0 %v2379, 16
    %v2389 = vpop.permute.xlu0 %2388
    %2390 = vrot.lane.b32.xlu0 %v2380, 16
    %v2391 = vpop.permute.xlu0 %2390
    %2392 = vrot.lane.b32.xlu0 %v2381, 16
    %v2393 = vpop.permute.xlu0 %2392
    %2394 = vrot.lane.b32.xlu0 %v2382, 16
    %v2395 = vpop.permute.xlu0 %2394
    %2396 = vrot.lane.b32.xlu0 %v2383, 16
    %v2397 = vpop.permute.xlu0 %2396
    %2398 = vrot.lane.b32.xlu0 %v2384, 16
    %v2399 = vpop.permute.xlu0 %2398
    %2400 = vrot.lane.b32.xlu0 %v2385, 16
    %v2401 = vpop.permute.xlu0 %2400
    %vm2410 = vmand %vm1580, %vm2007
    %v2411 = vld [vmem:[#allocation2] sm:$0x1]
    %v2412 = vsel %vm2410, %v2387, %v2411
    %2413 = vst [vmem:[#allocation2] sm:$0x1] %v2412
    %v2414 = vld [vmem:[#allocation2 + $0x1] sm:$0x1]
    %v2415 = vsel %vm2410, %v2389, %v2414
    %2416 = vst [vmem:[#allocation2 + $0x1] sm:$0x1] %v2415
    %v2417 = vld [vmem:[#allocation2 + $0x2] sm:$0x1]
    %v2418 = vsel %vm2410, %v2391, %v2417
    %2419 = vst [vmem:[#allocation2 + $0x2] sm:$0x1] %v2418
    %v2420 = vld [vmem:[#allocation2 + $0x3] sm:$0x1]
    %v2421 = vsel %vm2410, %v2393, %v2420
    %2422 = vst [vmem:[#allocation2 + $0x3] sm:$0x1] %v2421
    %v2423 = vld [vmem:[#allocation2 + $0x4] sm:$0x1]
    %v2424 = vsel %vm2410, %v2395, %v2423
    %2425 = vst [vmem:[#allocation2 + $0x4] sm:$0x1] %v2424
    %v2426 = vld [vmem:[#allocation2 + $0x5] sm:$0x1]
    %v2427 = vsel %vm2410, %v2397, %v2426
    %2428 = vst [vmem:[#allocation2 + $0x5] sm:$0x1] %v2427
    %v2429 = vld [vmem:[#allocation2 + $0x6] sm:$0x1]
    %v2430 = vsel %vm2410, %v2399, %v2429
    %2431 = vst [vmem:[#allocation2 + $0x6] sm:$0x1] %v2430
    %v2432 = vld [vmem:[#allocation2 + $0x7] sm:$0x1]
    %v2433 = vsel %vm2410, %v2401, %v2432
    %2434 = vst [vmem:[#allocation2 + $0x7] sm:$0x1] %v2433
    %2435 = vrot.lane.b32.xlu0 %v1822, 104
    %v2436 = vpop.permute.xlu0 %2435
    %2437 = vrot.lane.b32.xlu0 %v1837, 104
    %v2438 = vpop.permute.xlu0 %2437
    %v2440 = vsel %vm884, %v2436, 0
    %v2443 = vsel %vm884, %v2438, 0
    %2445 = vmatprep.subr.bf16.mxu0 0
    %2446 = vmatpush1.bf16.xpose.msra.mxu0 %v2443
    %2447 = vmatprep.subr.bf16.mxu0 0
    %2448 = vmatpush1.bf16.xpose.msra.mxu0 0
    %2449 = vmatprep.subr.bf16.mxu0 0
    %2450 = vmatpush1.bf16.xpose.msra.mxu0 0
    %2451 = vmatprep.subr.bf16.mxu0 0
    %2452 = vmatpush1.bf16.xpose.msra.mxu0 0
    %2453 = vmatprep.subr.bf16.mxu0 0
    %2454 = vmatpush1.bf16.xpose.msra.mxu0 0
    %2455 = vmatprep.subr.bf16.mxu0 0
    %2456 = vmatpush1.bf16.xpose.msra.mxu0 0
    %2457 = vmatprep.subr.bf16.mxu0 0
    %2458 = vmatpush1.bf16.xpose.msra.mxu0 0
    %2459 = vmatprep.subr.bf16.mxu0 0
    %2460 = vmatpush1.bf16.xpose.msra.mxu0 0
    %2461 = vmatprep.subr.bf16.mxu0 0
    %2462 = vmatpush1.bf16.xpose.msra.mxu0 0
    %2463 = vmatprep.subr.bf16.mxu0 0
    %2464 = vmatpush1.bf16.xpose.msra.mxu0 0
    %2465 = vmatprep.subr.bf16.mxu0 0
    %2466 = vmatpush1.bf16.xpose.msra.mxu0 0
    %2467 = vmatprep.subr.bf16.mxu0 0
    %2468 = vmatpush1.bf16.xpose.msra.mxu0 0
    %2469 = vmatprep.subr.bf16.mxu0 0
    %2470 = vmatpush1.bf16.xpose.msra.mxu0 0
    %2471 = vmatprep.subr.bf16.mxu0 0
    %2472 = vmatpush1.bf16.xpose.msra.mxu0 0
    %2473 = vmatprep.subr.bf16.mxu0 0
    %2474 = vmatpush1.bf16.xpose.msra.mxu0 0
    %2475 = vmatprep.subr.bf16.mxu0 0
    %2476 = vmatpush1.bf16.xpose.msra.mxu0 0
    %2477 = vmatprep.mubr.bf16.mxu0 0
    %2478 = vmatmul.mubr.bf16.gmra.mrb[0].mxu0 %v2440
    %v2479 = vpop.f32.mrb[0].mxu0
    %v2480 = vadd.f32 0.0, %v2479
    %v2481 = vpop.f32.mrb[0].mxu0
    %v2482 = vpop.f32.mrb[0].mxu0
    %v2483 = vpop.f32.mrb[0].mxu0
    %2484 = vdwg.mxu0
    %v2485 = vsel %vm884, %v2480, -inf
    %2486 = vmax.xlane.f32.xlu0 %v2485
    %v2487 = vpop.xlane.xlu0 %2486
    %v2488 = vsub.f32 %v2480, %v2487
    %v2489 = vmul.f32 %v2488, 1.442695
    %v2490 = vpow.pop %v2489
    %v2491 = vsel %vm884, %v2490, 0.0
    %2492 = vadd.xlane.f32.xlu0 %v2491
    %v2493 = vpop.xlane.xlu0 %2492
    %v2494 = vrcp.pop %v2493
    %v2495 = vmul.f32 %v2490, %v2494
    %v2496 = vpack.c.bf16 %v2495, %v2495
    %2497 = vrot.lane.b32.xlu0 %v1910, 104
    %v2498 = vpop.permute.xlu0 %2497
    %v2500 = vsel %vm884, %v2496, 0
    %v2503 = vsel %vm1081, %v2498, 0
    %2505 = vmatprep.subr.bf16.mxu0 0
    %2506 = vmatpush1.bf16.msra.mxu0 %v2503
    %2507 = vmatprep.subr.bf16.mxu0 0
    %2508 = vmatpush1.bf16.msra.mxu0 0
    %2509 = vmatprep.subr.bf16.mxu0 0
    %2510 = vmatpush1.bf16.msra.mxu0 0
    %2511 = vmatprep.subr.bf16.mxu0 0
    %2512 = vmatpush1.bf16.msra.mxu0 0
    %2513 = vmatprep.subr.bf16.mxu0 0
    %2514 = vmatpush1.bf16.msra.mxu0 0
    %2515 = vmatprep.subr.bf16.mxu0 0
    %2516 = vmatpush1.bf16.msra.mxu0 0
    %2517 = vmatprep.subr.bf16.mxu0 0
    %2518 = vmatpush1.bf16.msra.mxu0 0
    %2519 = vmatprep.subr.bf16.mxu0 0
    %2520 = vmatpush1.bf16.msra.mxu0 0
    %2521 = vmatprep.subr.bf16.mxu0 0
    %2522 = vmatpush1.bf16.msra.mxu0 0
    %2523 = vmatprep.subr.bf16.mxu0 0
    %2524 = vmatpush1.bf16.msra.mxu0 0
    %2525 = vmatprep.subr.bf16.mxu0 0
    %2526 = vmatpush1.bf16.msra.mxu0 0
    %2527 = vmatprep.subr.bf16.mxu0 0
    %2528 = vmatpush1.bf16.msra.mxu0 0
    %2529 = vmatprep.subr.bf16.mxu0 0
    %2530 = vmatpush1.bf16.msra.mxu0 0
    %2531 = vmatprep.subr.bf16.mxu0 0
    %2532 = vmatpush1.bf16.msra.mxu0 0
    %2533 = vmatprep.subr.bf16.mxu0 0
    %2534 = vmatpush1.bf16.msra.mxu0 0
    %2535 = vmatprep.subr.bf16.mxu0 0
    %2536 = vmatpush1.bf16.msra.mxu0 0
    %2537 = vmatprep.mubr.bf16.mxu0 0
    %2538 = vmatmul.mubr.bf16.gmra.mrb[0].mxu0 %v2500
    %v2539 = vpop.f32.mrb[0].mxu0
    %v2540 = vadd.f32 0.0, %v2539
    %v2541 = vpop.f32.mrb[0].mxu0
    %v2542 = vpop.f32.mrb[0].mxu0
    %v2543 = vpop.f32.mrb[0].mxu0
    %2544 = vdwg.mxu0
    %v2545 = vpack.c.bf16 %v2540, %v2540
    %v2548 = vunpack.c.l.s4 1966171168
    %v2549 = vunpack.c.0.s8 %v2548
    %v2550 = vlaneseq
    %v2551 = vshrl.u32 %v2550, 7
    %v2552 = vsub.s32 %v2549, %v2551
    %v2553 = vrot.slane %v2545, %v2552
    %v2554 = vcombine.high %v2553, %v2553
    %v2556 = vunpack.c.l.s4 1966171168
    %v2557 = vunpack.c.0.s8 %v2556
    %v2558 = vlaneseq
    %v2559 = vshrl.u32 %v2558, 7
    %v2560 = vsub.s32 %v2557, %v2559
    %v2561 = vrot.slane %v2553, %v2560
    %v2563 = vunpack.c.l.s4 1966171168
    %v2564 = vunpack.c.0.s8 %v2563
    %v2565 = vlaneseq
    %v2566 = vshrl.u32 %v2565, 7
    %v2567 = vsub.s32 %v2564, %v2566
    %v2568 = vrot.slane %v2554, %v2567
    %v2569 = vcombine.high %v2561, %v2561
    %v2570 = vcombine.high %v2568, %v2568
    %v2571 = vunpack.i.l.s16 %v2561
    %v2572 = vunpack.i.h.s16 %v2561
    %v2573 = vunpack.i.l.s16 %v2568
    %v2574 = vunpack.i.h.s16 %v2568
    %v2575 = vunpack.i.l.s16 %v2569
    %v2576 = vunpack.i.h.s16 %v2569
    %v2577 = vunpack.i.l.s16 %v2570
    %v2578 = vunpack.i.h.s16 %v2570
    %v2579 = vpack.i.b16 %v2571, %v2571
    %v2580 = vpack.i.b16 %v2572, %v2572
    %v2581 = vpack.i.b16 %v2573, %v2573
    %v2582 = vpack.i.b16 %v2574, %v2574
    %v2583 = vpack.i.b16 %v2575, %v2575
    %v2584 = vpack.i.b16 %v2576, %v2576
    %v2585 = vpack.i.b16 %v2577, %v2577
    %v2586 = vpack.i.b16 %v2578, %v2578
    %2587 = vrot.lane.b32.xlu0 %v2579, 24
    %v2588 = vpop.permute.xlu0 %2587
    %2589 = vrot.lane.b32.xlu0 %v2580, 24
    %v2590 = vpop.permute.xlu0 %2589
    %2591 = vrot.lane.b32.xlu0 %v2581, 24
    %v2592 = vpop.permute.xlu0 %2591
    %2593 = vrot.lane.b32.xlu0 %v2582, 24
    %v2594 = vpop.permute.xlu0 %2593
    %2595 = vrot.lane.b32.xlu0 %v2583, 24
    %v2596 = vpop.permute.xlu0 %2595
    %2597 = vrot.lane.b32.xlu0 %v2584, 24
    %v2598 = vpop.permute.xlu0 %2597
    %2599 = vrot.lane.b32.xlu0 %v2585, 24
    %v2600 = vpop.permute.xlu0 %2599
    %2601 = vrot.lane.b32.xlu0 %v2586, 24
    %v2602 = vpop.permute.xlu0 %2601
    %vm2611 = vmand %vm1782, %vm2007
    %v2612 = vld [vmem:[#allocation2] sm:$0x1]
    %v2613 = vsel %vm2611, %v2588, %v2612
    %2614 = vst [vmem:[#allocation2] sm:$0x1] %v2613
    %v2615 = vld [vmem:[#allocation2 + $0x1] sm:$0x1]
    %v2616 = vsel %vm2611, %v2590, %v2615
    %2617 = vst [vmem:[#allocation2 + $0x1] sm:$0x1] %v2616
    %v2618 = vld [vmem:[#allocation2 + $0x2] sm:$0x1]
    %v2619 = vsel %vm2611, %v2592, %v2618
    %2620 = vst [vmem:[#allocation2 + $0x2] sm:$0x1] %v2619
    %v2621 = vld [vmem:[#allocation2 + $0x3] sm:$0x1]
    %v2622 = vsel %vm2611, %v2594, %v2621
    %2623 = vst [vmem:[#allocation2 + $0x3] sm:$0x1] %v2622
    %v2624 = vld [vmem:[#allocation2 + $0x4] sm:$0x1]
    %v2625 = vsel %vm2611, %v2596, %v2624
    %2626 = vst [vmem:[#allocation2 + $0x4] sm:$0x1] %v2625
    %v2627 = vld [vmem:[#allocation2 + $0x5] sm:$0x1]
    %v2628 = vsel %vm2611, %v2598, %v2627
    %2629 = vst [vmem:[#allocation2 + $0x5] sm:$0x1] %v2628
    %v2630 = vld [vmem:[#allocation2 + $0x6] sm:$0x1]
    %v2631 = vsel %vm2611, %v2600, %v2630
    %2632 = vst [vmem:[#allocation2 + $0x6] sm:$0x1] %v2631
    %v2633 = vld [vmem:[#allocation2 + $0x7] sm:$0x1]
    %v2634 = vsel %vm2611, %v2602, %v2633
    %2635 = vst [vmem:[#allocation2 + $0x7] sm:$0x1] %v2634
    %v2636 = vld [vmem:[#allocation2] sm:$0x1]
    %v2637 = vld [vmem:[#allocation2 + $0x1] sm:$0x1]
    %v2638 = vld [vmem:[#allocation2 + $0x2] sm:$0x1]
    %v2639 = vld [vmem:[#allocation2 + $0x3] sm:$0x1]
    %v2640 = vld [vmem:[#allocation2 + $0x4] sm:$0x1]
    %v2641 = vld [vmem:[#allocation2 + $0x5] sm:$0x1]
    %v2642 = vld [vmem:[#allocation2 + $0x6] sm:$0x1]
    %v2643 = vld [vmem:[#allocation2 + $0x7] sm:$0x1]
    %v2644 = vld [vmem:[#allocation9] sm:$0xf]
    %v2645 = vld [vmem:[#allocation9 + $0x4] sm:$0xf]
    %v2646 = vld [vmem:[#allocation9 + $0x8] sm:$0xf]
    %v2647 = vld [vmem:[#allocation9 + $0xc] sm:$0xf]
    %v2648 = vld [vmem:[#allocation11] sm:$0x1]
    %v2650 = vlaneseq
    %v2651 = vshrl.u32 %v2650, 7
    %v2652 = vsub.s32 0, %v2651
    %v2653 = vrot.slane %v2648, %v2652
    %v2663 = vcombine.low %v2636, %v2637
    %v2664 = vcombine.low %v2638, %v2639
    %v2665 = vcombine.low %v2640, %v2641
    %v2666 = vcombine.low %v2642, %v2643
    %v2668 = vunpack.c.l.s4 1966171168
    %v2669 = vunpack.c.0.s8 %v2668
    %v2670 = vlaneseq
    %v2671 = vshrl.u32 %v2670, 7
    %v2672 = vsub.s32 %v2669, %v2671
    %v2673 = vrot.slane %v2663, %v2672
    %v2675 = vunpack.c.l.s4 1966171168
    %v2676 = vunpack.c.0.s8 %v2675
    %v2677 = vlaneseq
    %v2678 = vshrl.u32 %v2677, 7
    %v2679 = vsub.s32 %v2676, %v2678
    %v2680 = vrot.slane %v2664, %v2679
    %v2682 = vunpack.c.l.s4 1966171168
    %v2683 = vunpack.c.0.s8 %v2682
    %v2684 = vlaneseq
    %v2685 = vshrl.u32 %v2684, 7
    %v2686 = vsub.s32 %v2683, %v2685
    %v2687 = vrot.slane %v2665, %v2686
    %v2689 = vunpack.c.l.s4 1966171168
    %v2690 = vunpack.c.0.s8 %v2689
    %v2691 = vlaneseq
    %v2692 = vshrl.u32 %v2691, 7
    %v2693 = vsub.s32 %v2690, %v2692
    %v2694 = vrot.slane %v2666, %v2693
    %v2695 = vcombine.low %v2673, %v2680
    %v2696 = vcombine.low %v2687, %v2694
    %v2698 = vunpack.c.l.s4 1966171168
    %v2699 = vunpack.c.0.s8 %v2698
    %v2700 = vlaneseq
    %v2701 = vshrl.u32 %v2700, 7
    %v2702 = vsub.s32 %v2699, %v2701
    %v2703 = vrot.slane %v2695, %v2702
    %v2705 = vunpack.c.l.s4 1966171168
    %v2706 = vunpack.c.0.s8 %v2705
    %v2707 = vlaneseq
    %v2708 = vshrl.u32 %v2707, 7
    %v2709 = vsub.s32 %v2706, %v2708
    %v2710 = vrot.slane %v2696, %v2709
    %v2711 = vcombine.low %v2703, %v2710
    %v2716 = vunpack.c.l.b16 %v2644
    %v2717 = vunpack.c.l.b16 %v2645
    %v2718 = vunpack.c.l.b16 %v2646
    %v2719 = vunpack.c.l.b16 %v2647
    %v2720 = vpack.c.b16 %v2717, %v2716
    %v2721 = vpack.c.b16 %v2719, %v2718
    %v2725 = vsel %vm221, %v2711, 0
    %2727 = vmatprep.subr.bf16.mxu0 0
    %2728 = vmatpush1.bf16.msra.mxu0 %v2720
    %2729 = vmatprep.subr.bf16.mxu0 0
    %2730 = vmatpush1.bf16.msra.mxu0 %v2721
    %2731 = vmatprep.subr.bf16.mxu0 0
    %2732 = vmatpush1.bf16.msra.mxu0 0
    %2733 = vmatprep.subr.bf16.mxu0 0
    %2734 = vmatpush1.bf16.msra.mxu0 0
    %2735 = vmatprep.subr.bf16.mxu0 0
    %2736 = vmatpush1.bf16.msra.mxu0 0
    %2737 = vmatprep.subr.bf16.mxu0 0
    %2738 = vmatpush1.bf16.msra.mxu0 0
    %2739 = vmatprep.subr.bf16.mxu0 0
    %2740 = vmatpush1.bf16.msra.mxu0 0
    %2741 = vmatprep.subr.bf16.mxu0 0
    %2742 = vmatpush1.bf16.msra.mxu0 0
    %2743 = vmatprep.subr.bf16.mxu0 0
    %2744 = vmatpush1.bf16.msra.mxu0 0
    %2745 = vmatprep.subr.bf16.mxu0 0
    %2746 = vmatpush1.bf16.msra.mxu0 0
    %2747 = vmatprep.subr.bf16.mxu0 0
    %2748 = vmatpush1.bf16.msra.mxu0 0
    %2749 = vmatprep.subr.bf16.mxu0 0
    %2750 = vmatpush1.bf16.msra.mxu0 0
    %2751 = vmatprep.subr.bf16.mxu0 0
    %2752 = vmatpush1.bf16.msra.mxu0 0
    %2753 = vmatprep.subr.bf16.mxu0 0
    %2754 = vmatpush1.bf16.msra.mxu0 0
    %2755 = vmatprep.subr.bf16.mxu0 0
    %2756 = vmatpush1.bf16.msra.mxu0 0
    %2757 = vmatprep.subr.bf16.mxu0 0
    %2758 = vmatpush1.bf16.msra.mxu0 0
    %2759 = vmatprep.mubr.bf16.mxu0 0
    %2760 = vmatmul.mubr.bf16.gmra.mrb[0].mxu0 %v2725
    %v2761 = vpop.f32.mrb[0].mxu0
    %v2762 = vadd.f32 %v2653, %v2761
    %v2763 = vpop.f32.mrb[0].mxu0
    %v2764 = vpop.f32.mrb[0].mxu0
    %v2765 = vadd.f32 %v2653, %v2764
    %v2766 = vpop.f32.mrb[0].mxu0
    %2767 = vdwg.mxu0
    %v2768 = vunpack.c.l.bf16 %v125
    %v2769 = vunpack.c.l.bf16 %v126
    %v2770 = vunpack.c.l.bf16 %v127
    %v2771 = vunpack.c.l.bf16 %v128
    %v2772 = vunpack.c.l.bf16 %v129
    %v2773 = vunpack.c.l.bf16 %v130
    %v2774 = vunpack.c.l.bf16 %v131
    %v2775 = vunpack.c.l.bf16 %v132
    %v2778 = vcombine.high %v2762, %v2762
    %v2780 = vunpack.c.l.s4 1983009808
    %v2781 = vunpack.c.0.s8 %v2780
    %v2782 = vlaneseq
    %v2783 = vshrl.u32 %v2782, 7
    %v2784 = vsub.s32 %v2781, %v2783
    %v2785 = vrot.slane %v2762, %v2784
    %v2787 = vunpack.c.l.s4 1983009808
    %v2788 = vunpack.c.0.s8 %v2787
    %v2789 = vlaneseq
    %v2790 = vshrl.u32 %v2789, 7
    %v2791 = vsub.s32 %v2788, %v2790
    %v2792 = vrot.slane %v2778, %v2791
    %v2793 = vcombine.high %v2785, %v2785
    %v2794 = vcombine.high %v2792, %v2792
    %v2795 = vcombine.high %v2765, %v2765
    %v2797 = vunpack.c.l.s4 1983009808
    %v2798 = vunpack.c.0.s8 %v2797
    %v2799 = vlaneseq
    %v2800 = vshrl.u32 %v2799, 7
    %v2801 = vsub.s32 %v2798, %v2800
    %v2802 = vrot.slane %v2765, %v2801
    %v2804 = vunpack.c.l.s4 1983009808
    %v2805 = vunpack.c.0.s8 %v2804
    %v2806 = vlaneseq
    %v2807 = vshrl.u32 %v2806, 7
    %v2808 = vsub.s32 %v2805, %v2807
    %v2809 = vrot.slane %v2795, %v2808
    %v2810 = vcombine.high %v2802, %v2802
    %v2811 = vcombine.high %v2809, %v2809
    %v2820 = vadd.f32 %v2768, %v2785
    %v2821 = vadd.f32 %v2769, %v2793
    %v2822 = vadd.f32 %v2770, %v2792
    %v2823 = vadd.f32 %v2771, %v2794
    %v2824 = vadd.f32 %v2772, %v2802
    %v2825 = vadd.f32 %v2773, %v2810
    %v2826 = vadd.f32 %v2774, %v2809
    %v2827 = vadd.f32 %v2775, %v2811
    %v2828 = vld [vmem:[%s10] sm:$0x1]
    %v2829 = vld [vmem:[%s11] sm:$0x1]
    %v2838 = vcombine.low %v2820, %v2821
    %v2839 = vcombine.low %v2822, %v2823
    %v2841 = vunpack.c.l.s4 1983009808
    %v2842 = vunpack.c.0.s8 %v2841
    %v2843 = vlaneseq
    %v2844 = vshrl.u32 %v2843, 7
    %v2845 = vsub.s32 %v2842, %v2844
    %v2846 = vrot.slane %v2838, %v2845
    %v2848 = vunpack.c.l.s4 1983009808
    %v2849 = vunpack.c.0.s8 %v2848
    %v2850 = vlaneseq
    %v2851 = vshrl.u32 %v2850, 7
    %v2852 = vsub.s32 %v2849, %v2851
    %v2853 = vrot.slane %v2839, %v2852
    %v2854 = vcombine.low %v2846, %v2853
    %v2855 = vcombine.low %v2824, %v2825
    %v2856 = vcombine.low %v2826, %v2827
    %v2858 = vunpack.c.l.s4 1983009808
    %v2859 = vunpack.c.0.s8 %v2858
    %v2860 = vlaneseq
    %v2861 = vshrl.u32 %v2860, 7
    %v2862 = vsub.s32 %v2859, %v2861
    %v2863 = vrot.slane %v2855, %v2862
    %v2865 = vunpack.c.l.s4 1983009808
    %v2866 = vunpack.c.0.s8 %v2865
    %v2867 = vlaneseq
    %v2868 = vshrl.u32 %v2867, 7
    %v2869 = vsub.s32 %v2866, %v2868
    %v2870 = vrot.slane %v2856, %v2869
    %v2871 = vcombine.low %v2863, %v2870
    %v2874 = vsel %vm221, %v2854, 0.0
    %2875 = vadd.xlane.f32.xlu0 %v2874
    %v2876 = vpop.xlane.xlu0 %2875
    %v2877 = vsel %vm221, %v2871, 0.0
    %2878 = vadd.xlane.f32.xlu0 %v2877
    %v2879 = vpop.xlane.xlu0 %2878
    %v2880 = vrcp.pop 32.0
    %v2881 = vmul.f32 %v2876, %v2880
    %v2882 = vmul.f32 %v2879, %v2880
    %v2886 = vunpack.c.l.s4 269488144
    %v2887 = vunpack.c.0.s8 %v2886
    %v2888 = vlaneseq
    %v2889 = vshrl.u32 %v2888, 7
    %v2890 = vsub.s32 %v2887, %v2889
    %v2891 = vrot.slane %v2881, %v2890
    %v2893 = vunpack.c.l.s4 842150450
    %v2894 = vunpack.c.0.s8 %v2893
    %v2895 = vlaneseq
    %v2896 = vshrl.u32 %v2895, 7
    %v2897 = vsub.s32 %v2894, %v2896
    %v2898 = vrot.slane %v2881, %v2897
    %v2900 = vunpack.c.l.s4 1414812756
    %v2901 = vunpack.c.0.s8 %v2900
    %v2902 = vlaneseq
    %v2903 = vshrl.u32 %v2902, 7
    %v2904 = vsub.s32 %v2901, %v2903
    %v2905 = vrot.slane %v2881, %v2904
    %v2907 = vunpack.c.l.s4 1987475062
    %v2908 = vunpack.c.0.s8 %v2907
    %v2909 = vlaneseq
    %v2910 = vshrl.u32 %v2909, 7
    %v2911 = vsub.s32 %v2908, %v2910
    %v2912 = vrot.slane %v2881, %v2911
    %v2914 = vunpack.c.l.s4 269488144
    %v2915 = vunpack.c.0.s8 %v2914
    %v2916 = vlaneseq
    %v2917 = vshrl.u32 %v2916, 7
    %v2918 = vsub.s32 %v2915, %v2917
    %v2919 = vrot.slane %v2882, %v2918
    %v2921 = vunpack.c.l.s4 842150450
    %v2922 = vunpack.c.0.s8 %v2921
    %v2923 = vlaneseq
    %v2924 = vshrl.u32 %v2923, 7
    %v2925 = vsub.s32 %v2922, %v2924
    %v2926 = vrot.slane %v2882, %v2925
    %v2928 = vunpack.c.l.s4 1414812756
    %v2929 = vunpack.c.0.s8 %v2928
    %v2930 = vlaneseq
    %v2931 = vshrl.u32 %v2930, 7
    %v2932 = vsub.s32 %v2929, %v2931
    %v2933 = vrot.slane %v2882, %v2932
    %v2935 = vunpack.c.l.s4 1987475062
    %v2936 = vunpack.c.0.s8 %v2935
    %v2937 = vlaneseq
    %v2938 = vshrl.u32 %v2937, 7
    %v2939 = vsub.s32 %v2936, %v2938
    %v2940 = vrot.slane %v2882, %v2939
    %v2949 = vsub.f32 %v2820, %v2891
    %v2950 = vsub.f32 %v2821, %v2898
    %v2951 = vsub.f32 %v2822, %v2905
    %v2952 = vsub.f32 %v2823, %v2912
    %v2953 = vsub.f32 %v2824, %v2919
    %v2954 = vsub.f32 %v2825, %v2926
    %v2955 = vsub.f32 %v2826, %v2933
    %v2956 = vsub.f32 %v2827, %v2940
    %v2957 = vmul.f32 %v2949, %v2949
    %v2958 = vmul.f32 %v2950, %v2950
    %v2959 = vmul.f32 %v2951, %v2951
    %v2960 = vmul.f32 %v2952, %v2952
    %v2961 = vmul.f32 %v2953, %v2953
    %v2962 = vmul.f32 %v2954, %v2954
    %v2963 = vmul.f32 %v2955, %v2955
    %v2964 = vmul.f32 %v2956, %v2956
    %v2973 = vcombine.low %v2957, %v2958
    %v2974 = vcombine.low %v2959, %v2960
    %v2976 = vunpack.c.l.s4 1983009808
    %v2977 = vunpack.c.0.s8 %v2976
    %v2978 = vlaneseq
    %v2979 = vshrl.u32 %v2978, 7
    %v2980 = vsub.s32 %v2977, %v2979
    %v2981 = vrot.slane %v2973, %v2980
    %v2983 = vunpack.c.l.s4 1983009808
    %v2984 = vunpack.c.0.s8 %v2983
    %v2985 = vlaneseq
    %v2986 = vshrl.u32 %v2985, 7
    %v2987 = vsub.s32 %v2984, %v2986
    %v2988 = vrot.slane %v2974, %v2987
    %v2989 = vcombine.low %v2981, %v2988
    %v2990 = vcombine.low %v2961, %v2962
    %v2991 = vcombine.low %v2963, %v2964
    %v2993 = vunpack.c.l.s4 1983009808
    %v2994 = vunpack.c.0.s8 %v2993
    %v2995 = vlaneseq
    %v2996 = vshrl.u32 %v2995, 7
    %v2997 = vsub.s32 %v2994, %v2996
    %v2998 = vrot.slane %v2990, %v2997
    %v3000 = vunpack.c.l.s4 1983009808
    %v3001 = vunpack.c.0.s8 %v3000
    %v3002 = vlaneseq
    %v3003 = vshrl.u32 %v3002, 7
    %v3004 = vsub.s32 %v3001, %v3003
    %v3005 = vrot.slane %v2991, %v3004
    %v3006 = vcombine.low %v2998, %v3005
    %v3009 = vsel %vm221, %v2989, 0.0
    %3010 = vadd.xlane.f32.xlu0 %v3009
    %v3011 = vpop.xlane.xlu0 %3010
    %v3012 = vsel %vm221, %v3006, 0.0
    %3013 = vadd.xlane.f32.xlu0 %v3012
    %v3014 = vpop.xlane.xlu0 %3013
    %v3015 = vmul.f32 %v3011, %v2880
    %v3016 = vmul.f32 %v3014, %v2880
    %v3017 = vadd.f32 %v3015, 1e-05
    %v3018 = vadd.f32 %v3016, 1e-05
    %v3019 = vrsqrt.pop %v3017
    %v3020 = vrsqrt.pop %v3018
    %v3024 = vunpack.c.l.s4 269488144
    %v3025 = vunpack.c.0.s8 %v3024
    %v3026 = vlaneseq
    %v3027 = vshrl.u32 %v3026, 7
    %v3028 = vsub.s32 %v3025, %v3027
    %v3029 = vrot.slane %v3019, %v3028
    %v3031 = vunpack.c.l.s4 842150450
    %v3032 = vunpack.c.0.s8 %v3031
    %v3033 = vlaneseq
    %v3034 = vshrl.u32 %v3033, 7
    %v3035 = vsub.s32 %v3032, %v3034
    %v3036 = vrot.slane %v3019, %v3035
    %v3038 = vunpack.c.l.s4 1414812756
    %v3039 = vunpack.c.0.s8 %v3038
    %v3040 = vlaneseq
    %v3041 = vshrl.u32 %v3040, 7
    %v3042 = vsub.s32 %v3039, %v3041
    %v3043 = vrot.slane %v3019, %v3042
    %v3045 = vunpack.c.l.s4 1987475062
    %v3046 = vunpack.c.0.s8 %v3045
    %v3047 = vlaneseq
    %v3048 = vshrl.u32 %v3047, 7
    %v3049 = vsub.s32 %v3046, %v3048
    %v3050 = vrot.slane %v3019, %v3049
    %v3052 = vunpack.c.l.s4 269488144
    %v3053 = vunpack.c.0.s8 %v3052
    %v3054 = vlaneseq
    %v3055 = vshrl.u32 %v3054, 7
    %v3056 = vsub.s32 %v3053, %v3055
    %v3057 = vrot.slane %v3020, %v3056
    %v3059 = vunpack.c.l.s4 842150450
    %v3060 = vunpack.c.0.s8 %v3059
    %v3061 = vlaneseq
    %v3062 = vshrl.u32 %v3061, 7
    %v3063 = vsub.s32 %v3060, %v3062
    %v3064 = vrot.slane %v3020, %v3063
    %v3066 = vunpack.c.l.s4 1414812756
    %v3067 = vunpack.c.0.s8 %v3066
    %v3068 = vlaneseq
    %v3069 = vshrl.u32 %v3068, 7
    %v3070 = vsub.s32 %v3067, %v3069
    %v3071 = vrot.slane %v3020, %v3070
    %v3073 = vunpack.c.l.s4 1987475062
    %v3074 = vunpack.c.0.s8 %v3073
    %v3075 = vlaneseq
    %v3076 = vshrl.u32 %v3075, 7
    %v3077 = vsub.s32 %v3074, %v3076
    %v3078 = vrot.slane %v3020, %v3077
    %v3087 = vmul.f32 %v2949, %v3029
    %v3088 = vmul.f32 %v2950, %v3036
    %v3089 = vmul.f32 %v2951, %v3043
    %v3090 = vmul.f32 %v2952, %v3050
    %v3091 = vmul.f32 %v2953, %v3057
    %v3092 = vmul.f32 %v2954, %v3064
    %v3093 = vmul.f32 %v2955, %v3071
    %v3094 = vmul.f32 %v2956, %v3078
    %v3096 = vlaneseq
    %v3097 = vshrl.u32 %v3096, 7
    %v3098 = vsub.s32 0, %v3097
    %v3099 = vrot.slane %v2828, %v3098
    %v3100 = vcombine.high %v3099, %v3099
    %v3102 = vunpack.c.l.s4 1983009808
    %v3103 = vunpack.c.0.s8 %v3102
    %v3104 = vlaneseq
    %v3105 = vshrl.u32 %v3104, 7
    %v3106 = vsub.s32 %v3103, %v3105
    %v3107 = vrot.slane %v3099, %v3106
    %v3109 = vunpack.c.l.s4 1983009808
    %v3110 = vunpack.c.0.s8 %v3109
    %v3111 = vlaneseq
    %v3112 = vshrl.u32 %v3111, 7
    %v3113 = vsub.s32 %v3110, %v3112
    %v3114 = vrot.slane %v3100, %v3113
    %v3115 = vcombine.high %v3107, %v3107
    %v3116 = vcombine.high %v3114, %v3114
    %v3121 = vmul.f32 %v3087, %v3107
    %v3122 = vmul.f32 %v3088, %v3115
    %v3123 = vmul.f32 %v3089, %v3114
    %v3124 = vmul.f32 %v3090, %v3116
    %v3125 = vmul.f32 %v3091, %v3107
    %v3126 = vmul.f32 %v3092, %v3115
    %v3127 = vmul.f32 %v3093, %v3114
    %v3128 = vmul.f32 %v3094, %v3116
    %v3130 = vlaneseq
    %v3131 = vshrl.u32 %v3130, 7
    %v3132 = vsub.s32 0, %v3131
    %v3133 = vrot.slane %v2829, %v3132
    %v3134 = vcombine.high %v3133, %v3133
    %v3136 = vunpack.c.l.s4 1983009808
    %v3137 = vunpack.c.0.s8 %v3136
    %v3138 = vlaneseq
    %v3139 = vshrl.u32 %v3138, 7
    %v3140 = vsub.s32 %v3137, %v3139
    %v3141 = vrot.slane %v3133, %v3140
    %v3143 = vunpack.c.l.s4 1983009808
    %v3144 = vunpack.c.0.s8 %v3143
    %v3145 = vlaneseq
    %v3146 = vshrl.u32 %v3145, 7
    %v3147 = vsub.s32 %v3144, %v3146
    %v3148 = vrot.slane %v3134, %v3147
    %v3149 = vcombine.high %v3141, %v3141
    %v3150 = vcombine.high %v3148, %v3148
    %v3155 = vadd.f32 %v3121, %v3141
    %v3156 = vadd.f32 %v3122, %v3149
    %v3157 = vadd.f32 %v3123, %v3148
    %v3158 = vadd.f32 %v3124, %v3150
    %v3159 = vadd.f32 %v3125, %v3141
    %v3160 = vadd.f32 %v3126, %v3149
    %v3161 = vadd.f32 %v3127, %v3148
    %v3162 = vadd.f32 %v3128, %v3150
    %v3171 = vcombine.low %v3155, %v3156
    %v3172 = vcombine.low %v3157, %v3158
    %v3174 = vunpack.c.l.s4 1983009808
    %v3175 = vunpack.c.0.s8 %v3174
    %v3176 = vlaneseq
    %v3177 = vshrl.u32 %v3176, 7
    %v3178 = vsub.s32 %v3175, %v3177
    %v3179 = vrot.slane %v3171, %v3178
    %v3181 = vunpack.c.l.s4 1983009808
    %v3182 = vunpack.c.0.s8 %v3181
    %v3183 = vlaneseq
    %v3184 = vshrl.u32 %v3183, 7
    %v3185 = vsub.s32 %v3182, %v3184
    %v3186 = vrot.slane %v3172, %v3185
    %v3187 = vcombine.low %v3179, %v3186
    %v3188 = vcombine.low %v3159, %v3160
    %v3189 = vcombine.low %v3161, %v3162
    %v3191 = vunpack.c.l.s4 1983009808
    %v3192 = vunpack.c.0.s8 %v3191
    %v3193 = vlaneseq
    %v3194 = vshrl.u32 %v3193, 7
    %v3195 = vsub.s32 %v3192, %v3194
    %v3196 = vrot.slane %v3188, %v3195
    %v3198 = vunpack.c.l.s4 1983009808
    %v3199 = vunpack.c.0.s8 %v3198
    %v3200 = vlaneseq
    %v3201 = vshrl.u32 %v3200, 7
    %v3202 = vsub.s32 %v3199, %v3201
    %v3203 = vrot.slane %v3189, %v3202
    %v3204 = vcombine.low %v3196, %v3203
    %v3207 = vpack.c.bf16 %v3204, %v3187
    %v3208 = vld [vmem:[%s12] sm:$0xf]
    %v3209 = vld [vmem:[%s12 + $0x4] sm:$0xf]
    %v3210 = vld [vmem:[%s12 + $0x8] sm:$0xf]
    %v3211 = vld [vmem:[%s12 + $0xc] sm:$0xf]
    %v3212 = vld [vmem:[%s13] sm:$0x1]
    %v3214 = vlaneseq
    %v3215 = vshrl.u32 %v3214, 7
    %v3216 = vsub.s32 0, %v3215
    %v3217 = vrot.slane %v3212, %v3216
    %v3223 = vunpack.c.l.b16 %v3208
    %v3224 = vunpack.c.l.b16 %v3209
    %v3225 = vunpack.c.l.b16 %v3210
    %v3226 = vunpack.c.l.b16 %v3211
    %v3227 = vpack.c.b16 %v3224, %v3223
    %v3228 = vpack.c.b16 %v3226, %v3225
    %v3232 = vsel %vm221, %v3207, 0
    %3234 = vmatprep.subr.bf16.mxu0 0
    %3235 = vmatpush1.bf16.msra.mxu0 %v3227
    %3236 = vmatprep.subr.bf16.mxu0 0
    %3237 = vmatpush1.bf16.msra.mxu0 %v3228
    %3238 = vmatprep.subr.bf16.mxu0 0
    %3239 = vmatpush1.bf16.msra.mxu0 0
    %3240 = vmatprep.subr.bf16.mxu0 0
    %3241 = vmatpush1.bf16.msra.mxu0 0
    %3242 = vmatprep.subr.bf16.mxu0 0
    %3243 = vmatpush1.bf16.msra.mxu0 0
    %3244 = vmatprep.subr.bf16.mxu0 0
    %3245 = vmatpush1.bf16.msra.mxu0 0
    %3246 = vmatprep.subr.bf16.mxu0 0
    %3247 = vmatpush1.bf16.msra.mxu0 0
    %3248 = vmatprep.subr.bf16.mxu0 0
    %3249 = vmatpush1.bf16.msra.mxu0 0
    %3250 = vmatprep.subr.bf16.mxu0 0
    %3251 = vmatpush1.bf16.msra.mxu0 0
    %3252 = vmatprep.subr.bf16.mxu0 0
    %3253 = vmatpush1.bf16.msra.mxu0 0
    %3254 = vmatprep.subr.bf16.mxu0 0
    %3255 = vmatpush1.bf16.msra.mxu0 0
    %3256 = vmatprep.subr.bf16.mxu0 0
    %3257 = vmatpush1.bf16.msra.mxu0 0
    %3258 = vmatprep.subr.bf16.mxu0 0
    %3259 = vmatpush1.bf16.msra.mxu0 0
    %3260 = vmatprep.subr.bf16.mxu0 0
    %3261 = vmatpush1.bf16.msra.mxu0 0
    %3262 = vmatprep.subr.bf16.mxu0 0
    %3263 = vmatpush1.bf16.msra.mxu0 0
    %3264 = vmatprep.subr.bf16.mxu0 0
    %3265 = vmatpush1.bf16.msra.mxu0 0
    %3266 = vmatprep.mubr.bf16.mxu0 0
    %3267 = vmatmul.mubr.bf16.gmra.mrb[0].mxu0 %v3232
    %v3268 = vpop.f32.mrb[0].mxu0
    %v3269 = vadd.f32 %v3217, %v3268
    %v3270 = vpop.f32.mrb[0].mxu0
    %v3271 = vpop.f32.mrb[0].mxu0
    %v3272 = vadd.f32 %v3217, %v3271
    %v3273 = vpop.f32.mrb[0].mxu0
    %3274 = vdwg.mxu0
    %v3275 = vmax.f32 %v3269, 0.0
    %v3276 = vmax.f32 %v3272, 0.0
    %v3277 = vpack.c.bf16 %v3276, %v3275
    %v3278 = vld [vmem:[%s14] sm:$0xf]
    %v3279 = vld [vmem:[%s14 + $0x4] sm:$0xf]
    %v3280 = vld [vmem:[%s14 + $0x8] sm:$0xf]
    %v3281 = vld [vmem:[%s14 + $0xc] sm:$0xf]
    %v3282 = vld [vmem:[%s14 + $0x10] sm:$0xf]
    %v3283 = vld [vmem:[%s14 + $0x14] sm:$0xf]
    %v3284 = vld [vmem:[%s14 + $0x18] sm:$0xf]
    %v3285 = vld [vmem:[%s14 + $0x1c] sm:$0xf]
    %v3286 = vld [vmem:[%s15] sm:$0x1]
    %v3288 = vlaneseq
    %v3289 = vshrl.u32 %v3288, 7
    %v3290 = vsub.s32 0, %v3289
    %v3291 = vrot.slane %v3286, %v3290
    %v3301 = vunpack.c.l.b16 %v3278
    %v3302 = vunpack.c.l.b16 %v3279
    %v3303 = vunpack.c.l.b16 %v3280
    %v3304 = vunpack.c.l.b16 %v3281
    %v3305 = vunpack.c.l.b16 %v3282
    %v3306 = vunpack.c.l.b16 %v3283
    %v3307 = vunpack.c.l.b16 %v3284
    %v3308 = vunpack.c.l.b16 %v3285
    %v3309 = vpack.c.b16 %v3302, %v3301
    %v3310 = vpack.c.b16 %v3304, %v3303
    %v3311 = vpack.c.b16 %v3306, %v3305
    %v3312 = vpack.c.b16 %v3308, %v3307
    %vm3317 = vcmask 523264
    %v3319 = vsel %vm3317, %v3277, 0
    %3321 = vmatprep.subr.bf16.mxu0 0
    %3322 = vmatpush1.bf16.msra.mxu0 %v3309
    %3323 = vmatprep.subr.bf16.mxu0 0
    %3324 = vmatpush1.bf16.msra.mxu0 %v3310
    %3325 = vmatprep.subr.bf16.mxu0 0
    %3326 = vmatpush1.bf16.msra.mxu0 %v3311
    %3327 = vmatprep.subr.bf16.mxu0 0
    %3328 = vmatpush1.bf16.msra.mxu0 %v3312
    %3329 = vmatprep.subr.bf16.mxu0 0
    %3330 = vmatpush1.bf16.msra.mxu0 0
    %3331 = vmatprep.subr.bf16.mxu0 0
    %3332 = vmatpush1.bf16.msra.mxu0 0
    %3333 = vmatprep.subr.bf16.mxu0 0
    %3334 = vmatpush1.bf16.msra.mxu0 0
    %3335 = vmatprep.subr.bf16.mxu0 0
    %3336 = vmatpush1.bf16.msra.mxu0 0
    %3337 = vmatprep.subr.bf16.mxu0 0
    %3338 = vmatpush1.bf16.msra.mxu0 0
    %3339 = vmatprep.subr.bf16.mxu0 0
    %3340 = vmatpush1.bf16.msra.mxu0 0
    %3341 = vmatprep.subr.bf16.mxu0 0
    %3342 = vmatpush1.bf16.msra.mxu0 0
    %3343 = vmatprep.subr.bf16.mxu0 0
    %3344 = vmatpush1.bf16.msra.mxu0 0
    %3345 = vmatprep.subr.bf16.mxu0 0
    %3346 = vmatpush1.bf16.msra.mxu0 0
    %3347 = vmatprep.subr.bf16.mxu0 0
    %3348 = vmatpush1.bf16.msra.mxu0 0
    %3349 = vmatprep.subr.bf16.mxu0 0
    %3350 = vmatpush1.bf16.msra.mxu0 0
    %3351 = vmatprep.subr.bf16.mxu0 0
    %3352 = vmatpush1.bf16.msra.mxu0 0
    %3353 = vmatprep.mubr.bf16.mxu0 0
    %3354 = vmatmul.mubr.bf16.gmra.mrb[0].mxu0 %v3319
    %v3355 = vpop.f32.mrb[0].mxu0
    %v3356 = vadd.f32 %v3291, %v3355
    %v3357 = vpop.f32.mrb[0].mxu0
    %v3358 = vpop.f32.mrb[0].mxu0
    %v3359 = vadd.f32 %v3291, %v3358
    %v3360 = vpop.f32.mrb[0].mxu0
    %3361 = vdwg.mxu0
    %v3364 = vcombine.high %v3356, %v3356
    %v3366 = vunpack.c.l.s4 1983009808
    %v3367 = vunpack.c.0.s8 %v3366
    %v3368 = vlaneseq
    %v3369 = vshrl.u32 %v3368, 7
    %v3370 = vsub.s32 %v3367, %v3369
    %v3371 = vrot.slane %v3356, %v3370
    %v3373 = vunpack.c.l.s4 1983009808
    %v3374 = vunpack.c.0.s8 %v3373
    %v3375 = vlaneseq
    %v3376 = vshrl.u32 %v3375, 7
    %v3377 = vsub.s32 %v3374, %v3376
    %v3378 = vrot.slane %v3364, %v3377
    %v3379 = vcombine.high %v3371, %v3371
    %v3380 = vcombine.high %v3378, %v3378
    %v3381 = vcombine.high %v3359, %v3359
    %v3383 = vunpack.c.l.s4 1983009808
    %v3384 = vunpack.c.0.s8 %v3383
    %v3385 = vlaneseq
    %v3386 = vshrl.u32 %v3385, 7
    %v3387 = vsub.s32 %v3384, %v3386
    %v3388 = vrot.slane %v3359, %v3387
    %v3390 = vunpack.c.l.s4 1983009808
    %v3391 = vunpack.c.0.s8 %v3390
    %v3392 = vlaneseq
    %v3393 = vshrl.u32 %v3392, 7
    %v3394 = vsub.s32 %v3391, %v3393
    %v3395 = vrot.slane %v3381, %v3394
    %v3396 = vcombine.high %v3388, %v3388
    %v3397 = vcombine.high %v3395, %v3395
    %v3406 = vadd.f32 %v3155, %v3371
    %v3407 = vadd.f32 %v3156, %v3379
    %v3408 = vadd.f32 %v3157, %v3378
    %v3409 = vadd.f32 %v3158, %v3380
    %v3410 = vadd.f32 %v3159, %v3388
    %v3411 = vadd.f32 %v3160, %v3396
    %v3412 = vadd.f32 %v3161, %v3395
    %v3413 = vadd.f32 %v3162, %v3397
    %v3414 = vld [vmem:[%s16] sm:$0x1]
    %v3415 = vld [vmem:[%s17] sm:$0x1]
    %v3424 = vcombine.low %v3406, %v3407
    %v3425 = vcombine.low %v3408, %v3409
    %v3427 = vunpack.c.l.s4 1983009808
    %v3428 = vunpack.c.0.s8 %v3427
    %v3429 = vlaneseq
    %v3430 = vshrl.u32 %v3429, 7
    %v3431 = vsub.s32 %v3428, %v3430
    %v3432 = vrot.slane %v3424, %v3431
    %v3434 = vunpack.c.l.s4 1983009808
    %v3435 = vunpack.c.0.s8 %v3434
    %v3436 = vlaneseq
    %v3437 = vshrl.u32 %v3436, 7
    %v3438 = vsub.s32 %v3435, %v3437
    %v3439 = vrot.slane %v3425, %v3438
    %v3440 = vcombine.low %v3432, %v3439
    %v3441 = vcombine.low %v3410, %v3411
    %v3442 = vcombine.low %v3412, %v3413
    %v3444 = vunpack.c.l.s4 1983009808
    %v3445 = vunpack.c.0.s8 %v3444
    %v3446 = vlaneseq
    %v3447 = vshrl.u32 %v3446, 7
    %v3448 = vsub.s32 %v3445, %v3447
    %v3449 = vrot.slane %v3441, %v3448
    %v3451 = vunpack.c.l.s4 1983009808
    %v3452 = vunpack.c.0.s8 %v3451
    %v3453 = vlaneseq
    %v3454 = vshrl.u32 %v3453, 7
    %v3455 = vsub.s32 %v3452, %v3454
    %v3456 = vrot.slane %v3442, %v3455
    %v3457 = vcombine.low %v3449, %v3456
    %v3460 = vsel %vm221, %v3440, 0.0
    %3461 = vadd.xlane.f32.xlu0 %v3460
    %v3462 = vpop.xlane.xlu0 %3461
    %v3463 = vsel %vm221, %v3457, 0.0
    %3464 = vadd.xlane.f32.xlu0 %v3463
    %v3465 = vpop.xlane.xlu0 %3464
    %v3466 = vmul.f32 %v3462, %v2880
    %v3467 = vmul.f32 %v3465, %v2880
    %v3471 = vunpack.c.l.s4 269488144
    %v3472 = vunpack.c.0.s8 %v3471
    %v3473 = vlaneseq
    %v3474 = vshrl.u32 %v3473, 7
    %v3475 = vsub.s32 %v3472, %v3474
    %v3476 = vrot.slane %v3466, %v3475
    %v3478 = vunpack.c.l.s4 842150450
    %v3479 = vunpack.c.0.s8 %v3478
    %v3480 = vlaneseq
    %v3481 = vshrl.u32 %v3480, 7
    %v3482 = vsub.s32 %v3479, %v3481
    %v3483 = vrot.slane %v3466, %v3482
    %v3485 = vunpack.c.l.s4 1414812756
    %v3486 = vunpack.c.0.s8 %v3485
    %v3487 = vlaneseq
    %v3488 = vshrl.u32 %v3487, 7
    %v3489 = vsub.s32 %v3486, %v3488
    %v3490 = vrot.slane %v3466, %v3489
    %v3492 = vunpack.c.l.s4 1987475062
    %v3493 = vunpack.c.0.s8 %v3492
    %v3494 = vlaneseq
    %v3495 = vshrl.u32 %v3494, 7
    %v3496 = vsub.s32 %v3493, %v3495
    %v3497 = vrot.slane %v3466, %v3496
    %v3499 = vunpack.c.l.s4 269488144
    %v3500 = vunpack.c.0.s8 %v3499
    %v3501 = vlaneseq
    %v3502 = vshrl.u32 %v3501, 7
    %v3503 = vsub.s32 %v3500, %v3502
    %v3504 = vrot.slane %v3467, %v3503
    %v3506 = vunpack.c.l.s4 842150450
    %v3507 = vunpack.c.0.s8 %v3506
    %v3508 = vlaneseq
    %v3509 = vshrl.u32 %v3508, 7
    %v3510 = vsub.s32 %v3507, %v3509
    %v3511 = vrot.slane %v3467, %v3510
    %v3513 = vunpack.c.l.s4 1414812756
    %v3514 = vunpack.c.0.s8 %v3513
    %v3515 = vlaneseq
    %v3516 = vshrl.u32 %v3515, 7
    %v3517 = vsub.s32 %v3514, %v3516
    %v3518 = vrot.slane %v3467, %v3517
    %v3520 = vunpack.c.l.s4 1987475062
    %v3521 = vunpack.c.0.s8 %v3520
    %v3522 = vlaneseq
    %v3523 = vshrl.u32 %v3522, 7
    %v3524 = vsub.s32 %v3521, %v3523
    %v3525 = vrot.slane %v3467, %v3524
    %v3534 = vsub.f32 %v3406, %v3476
    %v3535 = vsub.f32 %v3407, %v3483
    %v3536 = vsub.f32 %v3408, %v3490
    %v3537 = vsub.f32 %v3409, %v3497
    %v3538 = vsub.f32 %v3410, %v3504
    %v3539 = vsub.f32 %v3411, %v3511
    %v3540 = vsub.f32 %v3412, %v3518
    %v3541 = vsub.f32 %v3413, %v3525
    %v3542 = vmul.f32 %v3534, %v3534
    %v3543 = vmul.f32 %v3535, %v3535
    %v3544 = vmul.f32 %v3536, %v3536
    %v3545 = vmul.f32 %v3537, %v3537
    %v3546 = vmul.f32 %v3538, %v3538
    %v3547 = vmul.f32 %v3539, %v3539
    %v3548 = vmul.f32 %v3540, %v3540
    %v3549 = vmul.f32 %v3541, %v3541
    %v3558 = vcombine.low %v3542, %v3543
    %v3559 = vcombine.low %v3544, %v3545
    %v3561 = vunpack.c.l.s4 1983009808
    %v3562 = vunpack.c.0.s8 %v3561
    %v3563 = vlaneseq
    %v3564 = vshrl.u32 %v3563, 7
    %v3565 = vsub.s32 %v3562, %v3564
    %v3566 = vrot.slane %v3558, %v3565
    %v3568 = vunpack.c.l.s4 1983009808
    %v3569 = vunpack.c.0.s8 %v3568
    %v3570 = vlaneseq
    %v3571 = vshrl.u32 %v3570, 7
    %v3572 = vsub.s32 %v3569, %v3571
    %v3573 = vrot.slane %v3559, %v3572
    %v3574 = vcombine.low %v3566, %v3573
    %v3575 = vcombine.low %v3546, %v3547
    %v3576 = vcombine.low %v3548, %v3549
    %v3578 = vunpack.c.l.s4 1983009808
    %v3579 = vunpack.c.0.s8 %v3578
    %v3580 = vlaneseq
    %v3581 = vshrl.u32 %v3580, 7
    %v3582 = vsub.s32 %v3579, %v3581
    %v3583 = vrot.slane %v3575, %v3582
    %v3585 = vunpack.c.l.s4 1983009808
    %v3586 = vunpack.c.0.s8 %v3585
    %v3587 = vlaneseq
    %v3588 = vshrl.u32 %v3587, 7
    %v3589 = vsub.s32 %v3586, %v3588
    %v3590 = vrot.slane %v3576, %v3589
    %v3591 = vcombine.low %v3583, %v3590
    %v3594 = vsel %vm221, %v3574, 0.0
    %3595 = vadd.xlane.f32.xlu0 %v3594
    %v3596 = vpop.xlane.xlu0 %3595
    %v3597 = vsel %vm221, %v3591, 0.0
    %3598 = vadd.xlane.f32.xlu0 %v3597
    %v3599 = vpop.xlane.xlu0 %3598
    %v3600 = vmul.f32 %v3596, %v2880
    %v3601 = vmul.f32 %v3599, %v2880
    %v3602 = vadd.f32 %v3600, 1e-05
    %v3603 = vadd.f32 %v3601, 1e-05
    %v3604 = vrsqrt.pop %v3602
    %v3605 = vrsqrt.pop %v3603
    %v3609 = vunpack.c.l.s4 269488144
    %v3610 = vunpack.c.0.s8 %v3609
    %v3611 = vlaneseq
    %v3612 = vshrl.u32 %v3611, 7
    %v3613 = vsub.s32 %v3610, %v3612
    %v3614 = vrot.slane %v3604, %v3613
    %v3616 = vunpack.c.l.s4 842150450
    %v3617 = vunpack.c.0.s8 %v3616
    %v3618 = vlaneseq
    %v3619 = vshrl.u32 %v3618, 7
    %v3620 = vsub.s32 %v3617, %v3619
    %v3621 = vrot.slane %v3604, %v3620
    %v3623 = vunpack.c.l.s4 1414812756
    %v3624 = vunpack.c.0.s8 %v3623
    %v3625 = vlaneseq
    %v3626 = vshrl.u32 %v3625, 7
    %v3627 = vsub.s32 %v3624, %v3626
    %v3628 = vrot.slane %v3604, %v3627
    %v3630 = vunpack.c.l.s4 1987475062
    %v3631 = vunpack.c.0.s8 %v3630
    %v3632 = vlaneseq
    %v3633 = vshrl.u32 %v3632, 7
    %v3634 = vsub.s32 %v3631, %v3633
    %v3635 = vrot.slane %v3604, %v3634
    %v3637 = vunpack.c.l.s4 269488144
    %v3638 = vunpack.c.0.s8 %v3637
    %v3639 = vlaneseq
    %v3640 = vshrl.u32 %v3639, 7
    %v3641 = vsub.s32 %v3638, %v3640
    %v3642 = vrot.slane %v3605, %v3641
    %v3644 = vunpack.c.l.s4 842150450
    %v3645 = vunpack.c.0.s8 %v3644
    %v3646 = vlaneseq
    %v3647 = vshrl.u32 %v3646, 7
    %v3648 = vsub.s32 %v3645, %v3647
    %v3649 = vrot.slane %v3605, %v3648
    %v3651 = vunpack.c.l.s4 1414812756
    %v3652 = vunpack.c.0.s8 %v3651
    %v3653 = vlaneseq
    %v3654 = vshrl.u32 %v3653, 7
    %v3655 = vsub.s32 %v3652, %v3654
    %v3656 = vrot.slane %v3605, %v3655
    %v3658 = vunpack.c.l.s4 1987475062
    %v3659 = vunpack.c.0.s8 %v3658
    %v3660 = vlaneseq
    %v3661 = vshrl.u32 %v3660, 7
    %v3662 = vsub.s32 %v3659, %v3661
    %v3663 = vrot.slane %v3605, %v3662
    %v3672 = vmul.f32 %v3534, %v3614
    %v3673 = vmul.f32 %v3535, %v3621
    %v3674 = vmul.f32 %v3536, %v3628
    %v3675 = vmul.f32 %v3537, %v3635
    %v3676 = vmul.f32 %v3538, %v3642
    %v3677 = vmul.f32 %v3539, %v3649
    %v3678 = vmul.f32 %v3540, %v3656
    %v3679 = vmul.f32 %v3541, %v3663
    %v3681 = vlaneseq
    %v3682 = vshrl.u32 %v3681, 7
    %v3683 = vsub.s32 0, %v3682
    %v3684 = vrot.slane %v3414, %v3683
    %v3685 = vcombine.high %v3684, %v3684
    %v3687 = vunpack.c.l.s4 1983009808
    %v3688 = vunpack.c.0.s8 %v3687
    %v3689 = vlaneseq
    %v3690 = vshrl.u32 %v3689, 7
    %v3691 = vsub.s32 %v3688, %v3690
    %v3692 = vrot.slane %v3684, %v3691
    %v3694 = vunpack.c.l.s4 1983009808
    %v3695 = vunpack.c.0.s8 %v3694
    %v3696 = vlaneseq
    %v3697 = vshrl.u32 %v3696, 7
    %v3698 = vsub.s32 %v3695, %v3697
    %v3699 = vrot.slane %v3685, %v3698
    %v3700 = vcombine.high %v3692, %v3692
    %v3701 = vcombine.high %v3699, %v3699
    %v3706 = vmul.f32 %v3672, %v3692
    %v3707 = vmul.f32 %v3673, %v3700
    %v3708 = vmul.f32 %v3674, %v3699
    %v3709 = vmul.f32 %v3675, %v3701
    %v3710 = vmul.f32 %v3676, %v3692
    %v3711 = vmul.f32 %v3677, %v3700
    %v3712 = vmul.f32 %v3678, %v3699
    %v3713 = vmul.f32 %v3679, %v3701
    %v3715 = vlaneseq
    %v3716 = vshrl.u32 %v3715, 7
    %v3717 = vsub.s32 0, %v3716
    %v3718 = vrot.slane %v3415, %v3717
    %v3719 = vcombine.high %v3718, %v3718
    %v3721 = vunpack.c.l.s4 1983009808
    %v3722 = vunpack.c.0.s8 %v3721
    %v3723 = vlaneseq
    %v3724 = vshrl.u32 %v3723, 7
    %v3725 = vsub.s32 %v3722, %v3724
    %v3726 = vrot.slane %v3718, %v3725
    %v3728 = vunpack.c.l.s4 1983009808
    %v3729 = vunpack.c.0.s8 %v3728
    %v3730 = vlaneseq
    %v3731 = vshrl.u32 %v3730, 7
    %v3732 = vsub.s32 %v3729, %v3731
    %v3733 = vrot.slane %v3719, %v3732
    %v3734 = vcombine.high %v3726, %v3726
    %v3735 = vcombine.high %v3733, %v3733
    %v3740 = vadd.f32 %v3706, %v3726
    %v3741 = vadd.f32 %v3707, %v3734
    %v3742 = vadd.f32 %v3708, %v3733
    %v3743 = vadd.f32 %v3709, %v3735
    %v3744 = vadd.f32 %v3710, %v3726
    %v3745 = vadd.f32 %v3711, %v3734
    %v3746 = vadd.f32 %v3712, %v3733
    %v3747 = vadd.f32 %v3713, %v3735
    %vm3748 = vcmask 254976
    %3749 = vst.msk [vmem:[#allocation12] sm:$0x3] %vm3748, %v3740
    %3750 = vst.msk [vmem:[#allocation12 + $0x2] sm:$0x3] %vm3748, %v3741
    %3751 = vst.msk [vmem:[#allocation12 + $0x4] sm:$0x3] %vm3748, %v3742
    %3752 = vst.msk [vmem:[#allocation12 + $0x6] sm:$0x3] %vm3748, %v3743
    %3753 = vst.msk [vmem:[#allocation12 + $0x8] sm:$0x3] %vm3748, %v3744
    %3754 = vst.msk [vmem:[#allocation12 + $0xa] sm:$0x3] %vm3748, %v3745
    %3755 = vst.msk [vmem:[#allocation12 + $0xc] sm:$0x3] %vm3748, %v3746
    %3756 = vst.msk [vmem:[#allocation12 + $0xe] sm:$0x3] %vm3748, %v3747
    // Predicated region
    $region94: #{tpu_custom_call.1} parent=1 // pred_check
      _
    $region95: #{tpu_custom_call.1} parent=1 // pred_check_branch
      %3758 = sbr.rel (0) target = $region97
    $region96: #{tpu_custom_call.1} parent=1 // pred_region
      %s3760 = ssub.s32 256, 256
      %3761 = vsyncadd [#allocation5], %s3760
      %s3762 = sshll.u32 [#allocation12], 4
      %s3763 = int_to_ptr.vmem [resolvable:$true] %s3762
      %3768 = dma.vmem_to_hbm [thread:$0]  %s3763, 256, %s18, [#allocation5], 32, 32, 2
    $region97: #{tpu_custom_call.1} parent=1 // pred_fallthru
      _
    // Predicated region
    $region98: #{tpu_custom_call.1} parent=1 // pred_check
      _
    $region99: #{tpu_custom_call.1} parent=1 // pred_check_branch
      %3770 = sbr.rel (0) target = $region101
    $region100: #{tpu_custom_call.1} parent=1 // pred_region
      %3771 = dma.done [#allocation5], 256
    $region101: #{tpu_custom_call.1} parent=1 // pred_fallthru
      _
    %3772 = vsyncpa [#allocation4], 1
    %3773 = vsyncpa [#allocation7], 1
    %3774 = vsyncpa [#allocation10], 1
    %3775 = vsyncpa [#allocation5], 1

</llo_original>
